<compile_context>
chip_gen: v7x
topology: tpu7x:2x2x1
jax: 0.10.0
libtpu: 0.0.40
codegen_flags: <defaults>
</compile_context>

<pallas_src>
import functools

import jax
import jax.numpy as jnp
import numpy as np
from jax.experimental import pallas as pl
from jax.experimental.pallas import tpu as pltpu


def _round_up(v, m):
    return -(-v // m) * m


def upconv_kernel(x_ref, w1_ref, b1_ref, w2_ref, b2_ref, w3_ref, b3_ref,
                  wlt_ref, bl_ref, o_ref,
                  p1_ref, p2_ref, s2_ref, p3_ref, s3a_ref, s3b_ref, lin_ref,
                  *, TB, L, Lp, K1, K2, K3, C1, C2, C3, TPC, W1p, W2p, W3p):
    """Processes TB batch rows per grid step.

    x_ref   : (TB, 1, Lp)        input rows (zero padded to Lp), f32
    w1_ref  : (C1, K1)           conv1 weight (Cin==1 squeezed), f32
    w2_ref  : (C2, K2*C1)        conv2 weight, columns grouped by tap, bf16
    w3_ref  : (C3, K3*C2)        conv3 weight, columns grouped by tap, bf16
    wlt_ref : (Lp, Lp)           linear weight W^T (zero padded), bf16
    bl_ref  : (1, Lp)            linear bias (zero padded), f32
    o_ref   : (TB*C3, Lp)        output block (flat batch*channel rows), f32
    p*_ref  : per-element zero-padded conv inputs (lane-aligned strides W*p)
    s2_ref  : conv2 im2col slab; s3a/s3b: alternating conv3 K-chunk slabs
    lin_ref : (TB*C3, Lp) bf16 staging slab for the fused linear dot
    """
    f32 = jnp.float32
    bf16 = jnp.bfloat16
    pad1, pad2, pad3 = (K1 - 1) // 2, (K2 - 1) // 2, (K3 - 1) // 2

    # Zero the padded staging buffers every step: each grid step is then fully
    # self-contained, which makes the batch axis safe under "parallel"
    # (megacore / v7x 2-TC sharding).  Cost is a few % of the per-step im2col
    # traffic.  Interior [pad, pad+L) of every element segment is rewritten
    # below; everything else must read as zero ('same' conv padding).
    p1_ref[...] = jnp.zeros_like(p1_ref)
    p2_ref[...] = jnp.zeros_like(p2_ref)
    p3_ref[...] = jnp.zeros_like(p3_ref)

    # ---- Conv1d(1 -> C1, k=K1, 'same') + ReLU : Cin=1, taps on the VPU ------
    for e in range(TB):
        xe = x_ref[e]                                            # (1, Lp) f32
        p1_ref[:, e * W1p + pad1: e * W1p + pad1 + L] = xe[:, :L]
    w1 = w1_ref[...]                                             # (C1, K1)
    b1 = b1_ref[...]                                             # (C1, 1)
    for e in range(TB):
        acc = jnp.zeros((C1, Lp), f32)
        for k in range(K1):                                      # shifted reads, no slab
            acc = acc + w1[:, k:k + 1] * p1_ref[:, e * W1p + k: e * W1p + k + Lp]
        a1e = jnp.maximum(acc + b1, 0.0).astype(bf16)            # (C1, Lp)
        # only the first L (real) columns feed the next layer
        p2_ref[:, e * W2p + pad2: e * W2p + pad2 + L] = a1e[:, :L]

    # ---- Conv1d(C1 -> C2, k=K2, 'same') + ReLU : one (C2,K2*C1) MXU dot -----
    for e in range(TB):
        for k in range(K2):                   # im2col: row block k holds tap k
            s2_ref[k * C1:(k + 1) * C1, e * Lp:(e + 1) * Lp] = \
                p2_ref[:, e * W2p + k: e * W2p + k + Lp]
    a2 = jnp.dot(w2_ref[...], s2_ref[...], preferred_element_type=f32)
    a2 = jnp.maximum(a2 + b2_ref[...], 0.0).astype(bf16)         # (C2, TB*Lp)
    for e in range(TB):
        p3_ref[:, e * W3p + pad3: e * W3p + pad3 + L] = a2[:, e * Lp: e * Lp + L]

    # ---- Conv1d(C2 -> C3, k=K3, 'same') + ReLU : K-chunked im2col -----------
    # TPC taps per chunk -> K depth TPC*C2 (=256 for TPC=4): full MXU K while
    # the slab scratch is ~K3/TPC times smaller than a monolithic im2col.  Two
    # alternating chunk buffers remove the false dependency between chunk
    # i+1's slab build and chunk i's dot, so they can overlap.
    s3_bufs = (s3a_ref, s3b_ref)
    acc3 = jnp.zeros((C3, TB * Lp), f32)
    n_chunks = (K3 + TPC - 1) // TPC
    for c in range(n_chunks):
        k0 = c * TPC
        nk = min(TPC, K3 - k0)
        buf = s3_bufs[c % 2]
        for e in range(TB):
            for kk in range(nk):
                buf[kk * C2:(kk + 1) * C2, e * Lp:(e + 1) * Lp] = \
                    p3_ref[:, e * W3p + k0 + kk: e * W3p + k0 + kk + Lp]
        acc3 = acc3 + jnp.dot(w3_ref[:, k0 * C2:(k0 + nk) * C2],
                              buf[:nk * C2, :], preferred_element_type=f32)
    a3 = jnp.maximum(acc3 + b3_ref[...], 0.0).astype(bf16)       # (C3, TB*Lp)

    # ---- Linear(L -> L) over the length axis : ONE fused MXU dot ------------
    # Stage a3 as (TB*C3, Lp) so the stationary (Lp,Lp) weight is pushed once
    # per step and the output is a single lane-dense store.
    for e in range(TB):
        lin_ref[e * C3:(e + 1) * C3, :] = a3[:, e * Lp:(e + 1) * Lp]
    y = jnp.dot(lin_ref[...], wlt_ref[...], preferred_element_type=f32) + bl_ref[...]
    o_ref[...] = y.astype(o_ref.dtype)                           # (TB*C3, Lp)


def _plan(B, Lp, C1, C2, C3, K1, K2, K3, TPC):
    """Generation-aware batch-tile and VMEM-limit selection."""
    try:
        info = pltpu.get_tpu_info()
        phys = int(getattr(info, "vmem_capacity_bytes", 0)) or 64 * 1024 * 1024
    except Exception:
        phys = 64 * 1024 * 1024            # conservative fallback: v7x per-core VMEM
    budget = (phys * 3) // 4               # headroom for compiler temporaries

    W1p = _round_up(Lp + K1 - 1, 128)
    W2p = _round_up(Lp + K2 - 1, 128)
    W3p = _round_up(Lp + K3 - 1, 128)

    # Grid-invariant operands (pipeline double-buffers them by default); now
    # includes the (Lp,Lp) linear weight and the conv3 weight.
    # TODO(synk): single-buffer these via pipeline_mode=pl.Buffered(1) once that
    # path is guaranteed on the target JAX version; budget assumes 2 copies.
    fixed = 2 * (C1 * K1 * 4 + C1 * 4 + C2 * K2 * C1 * 2 + C2 * 4
                 + C3 * K3 * C2 * 2 + C3 * 4 + Lp * Lp * 2 + Lp * 4)
    # Per batch-row residency: double-buffered in/out blocks, padded conv
    # inputs, im2col slabs (conv2 + 2 conv3 chunk buffers), linear staging
    # slab, and f32/bf16 activation temporaries.
    per_row = (2 * Lp * 4 + 2 * C3 * Lp * 4
               + W1p * 4 + C1 * W2p * 2 + C2 * W3p * 2
               + K2 * C1 * Lp * 2 + 2 * TPC * C2 * Lp * 2 + C3 * Lp * 2
               + (C2 + 2 * C3) * Lp * 4 + (C2 + C3) * Lp * 2)
    per_row = (per_row * 5) // 4           # 25% slack for lowering temporaries

    cap = 16 if Lp <= 256 else 8           # widen MXU N at small d_input
    tb = max(1, min(cap, B))
    while tb > 1 and fixed + tb * per_row > budget:
        tb -= 1
    # TODO(synk): for very large d_input the (Lp,Lp) linear weight alone can
    # outgrow v7x's 64 MiB VMEM; it would need a second (output-column) grid axis.
    return tb, int(budget)


def upconv_forward(x, params):
    """x: (B, d_input) float32 -> (B, 128, d_input) float32."""
    w1, b1, w2, b2, w3, b3, wl, bl = params
    B, L = x.shape
    C1, _, K1 = w1.shape        # (16, 1, 5)
    C2, _, K2 = w2.shape        # (64, 16, 9)
    C3, _, K3 = w3.shape        # (128, 64, 33)

    f32, bf16 = jnp.float32, jnp.bfloat16

    # Lane-dense length: pad L to a multiple of 128.
    Lp = _round_up(L, 128)
    TPC = 4                     # conv3 taps per K-chunk -> K depth 4*C2 = 256
    TB, vmem_limit = _plan(B, Lp, C1, C2, C3, K1, K2, K3, TPC)
    B_pad = -(-B // TB) * TB

    # Lane-aligned per-element strides inside the padded staging buffers.
    W1p = _round_up(Lp + K1 - 1, 128)
    W2p = _round_up(Lp + K2 - 1, 128)
    W3p = _round_up(Lp + K3 - 1, 128)

    # Input: (B_pad, 1, Lp), zero padded.
    x_k = jnp.zeros((B_pad, 1, Lp), f32).at[:B, 0, :L].set(x.astype(f32))

    # Conv weights re-laid out for im2col matmuls: column index = k*Cin + ci.
    w1_k = w1[:, 0, :].astype(f32)                                       # (16, K1)
    b1_k = b1.reshape(C1, 1).astype(f32)
    w2_k = jnp.transpose(w2, (0, 2, 1)).reshape(C2, K2 * C1).astype(bf16)
    b2_k = b2.reshape(C2, 1).astype(f32)
    w3_k = jnp.transpose(w3, (0, 2, 1)).reshape(C3, K3 * C2).astype(bf16)
    b3_k = b3.reshape(C3, 1).astype(f32)
    # Linear: y = a3 @ W^T + b.  Zero-pad to Lp so padded columns of a3 hit
    # all-zero weight rows and never leak into real outputs.
    wlt_k = jnp.zeros((Lp, Lp), f32).at[:L, :L].set(wl.T.astype(f32)).astype(bf16)
    bl_k = jnp.zeros((1, Lp), f32).at[0, :L].set(bl.astype(f32))

    kernel = functools.partial(
        upconv_kernel, TB=TB, L=L, Lp=Lp, K1=K1, K2=K2, K3=K3,
        C1=C1, C2=C2, C3=C3, TPC=TPC, W1p=W1p, W2p=W2p, W3p=W3p)

    grid_spec = pltpu.PrefetchScalarGridSpec(
        num_scalar_prefetch=0,
        grid=(B_pad // TB,),
        in_specs=[
            pl.BlockSpec((TB, 1, Lp), lambda b: (b, 0, 0)),        # x
            pl.BlockSpec((C1, K1), lambda b: (0, 0)),              # w1
            pl.BlockSpec((C1, 1), lambda b: (0, 0)),               # b1
            pl.BlockSpec((C2, K2 * C1), lambda b: (0, 0)),         # w2 (im2col layout)
            pl.BlockSpec((C2, 1), lambda b: (0, 0)),               # b2
            pl.BlockSpec((C3, K3 * C2), lambda b: (0, 0)),         # w3 (im2col layout)
            pl.BlockSpec((C3, 1), lambda b: (0, 0)),               # b3
            pl.BlockSpec((Lp, Lp), lambda b: (0, 0)),              # linear W^T
            pl.BlockSpec((1, Lp), lambda b: (0, 0)),               # linear bias
        ],
        # Output is flat (B_pad*C3, Lp): one lane-dense store per step; the
        # wrapper reshape to (B_pad, C3, Lp) is a free contiguous reinterpret.
        out_specs=pl.BlockSpec((TB * C3, Lp), lambda b: (b, 0)),
        scratch_shapes=[
            pltpu.VMEM((1, TB * W1p), f32),            # p1: padded conv1 input
            pltpu.VMEM((C1, TB * W2p), bf16),          # p2: padded conv2 input
            pltpu.VMEM((K2 * C1, TB * Lp), bf16),      # s2: conv2 im2col slab
            pltpu.VMEM((C2, TB * W3p), bf16),          # p3: padded conv3 input
            pltpu.VMEM((TPC * C2, TB * Lp), bf16),     # s3a: conv3 K-chunk slab
            pltpu.VMEM((TPC * C2, TB * Lp), bf16),     # s3b: conv3 K-chunk slab
            pltpu.VMEM((TB * C3, Lp), bf16),           # lin: fused-linear staging
        ],
    )

    out = pl.pallas_call(
        kernel,
        out_shape=jax.ShapeDtypeStruct((B_pad * C3, Lp), f32),
        grid_spec=grid_spec,
        # Every grid step zeroes its own staging buffers, so the batch axis is
        # safe to shard across TensorCores ("parallel"); no-op on 1-TC chips.
        compiler_params=pltpu.CompilerParams(
            dimension_semantics=("parallel",),
            vmem_limit_bytes=vmem_limit),
    )(x_k, w1_k, b1_k, w2_k, b2_k, w3_k, b3_k, wlt_k, bl_k)

    return out.reshape(B_pad, C3, Lp)[:B, :, :L]


def init_params(key, d_input, deconv_seq=(16, 64, 128), deconv_kernels=(5, 9, 33)):
    """Deterministic PyTorch-style (uniform +-1/sqrt(fan_in)) initialization."""
    seq = (1,) + tuple(deconv_seq)
    params = []
    keys = jax.random.split(key, 2 * len(deconv_kernels) + 2)
    ki = 0
    for cin, cout, k in zip(seq[:-1], seq[1:], deconv_kernels):
        bound = 1.0 / np.sqrt(cin * k)
        w = jax.random.uniform(keys[ki], (cout, cin, k), jnp.float32, -bound, bound)
        b = jax.random.uniform(keys[ki + 1], (cout,), jnp.float32, -bound, bound)
        params += [w, b]
        ki += 2
    bound = 1.0 / np.sqrt(d_input)
    wl = jax.random.uniform(keys[ki], (d_input, d_input), jnp.float32, -bound, bound)
    bl = jax.random.uniform(keys[ki + 1], (d_input,), jnp.float32, -bound, bound)
    params += [wl, bl]
    return tuple(params)


def upconv_reference(x, params):
    """Pure-JAX f32 reference mirroring the PyTorch module (for validation)."""
    w1, b1, w2, b2, w3, b3, wl, bl = params

    def conv1d_same(h, w, b):
        k = w.shape[-1]
        pad = (k - 1) // 2
        y = jax.lax.conv_general_dilated(
            h, w, window_strides=(1,), padding=[(pad, pad)],
            dimension_numbers=("NCH", "OIH", "NCH"),
            precision=jax.lax.Precision.HIGHEST)
        return y + b[None, :, None]

    h = x[:, None, :]
    h = jax.nn.relu(conv1d_same(h, w1, b1))
    h = jax.nn.relu(conv1d_same(h, w2, b2))
    h = jax.nn.relu(conv1d_same(h, w3, b3))
    return jnp.einsum("bcl,ol->bco", h, wl,
                      precision=jax.lax.Precision.HIGHEST) + bl[None, None, :]


if __name__ == "__main__":
    # bf16 MXU operands (f32 accumulate) -> compare against the f32 reference
    # with a tolerance appropriate for bf16 inputs.
    for (B, d_input) in [(2, 128), (3, 96)]:   # second case exercises Lp > L padding
        key = jax.random.PRNGKey(0)
        kx, kp = jax.random.split(key)
        x = jax.random.normal(kx, (B, d_input), jnp.float32)
        params = init_params(kp, d_input)

        out = jax.block_until_ready(upconv_forward(x, params))
        ref = jax.block_until_ready(upconv_reference(x, params))

        assert out.shape == (B, 128, d_input), out.shape
        np.testing.assert_allclose(np.asarray(out), np.asarray(ref),
                                   rtol=2e-2, atol=5e-3)
    print("KERNEL_OK")
</pallas_src>

<mosaic_0001>
module attributes {stable_mosaic.version = 11 : i64} {
  func.func @upconv_kernel(%arg0: i32, %arg1: memref<2x1x128xf32, #tpu.memory_space<vmem>>, %arg2: memref<16x5xf32, #tpu.memory_space<vmem>>, %arg3: memref<16x1xf32, #tpu.memory_space<vmem>>, %arg4: memref<64x144xbf16, #tpu.memory_space<vmem>>, %arg5: memref<64x1xf32, #tpu.memory_space<vmem>>, %arg6: memref<128x2112xbf16, #tpu.memory_space<vmem>>, %arg7: memref<128x1xf32, #tpu.memory_space<vmem>>, %arg8: memref<128x128xbf16, #tpu.memory_space<vmem>>, %arg9: memref<1x128xf32, #tpu.memory_space<vmem>>, %arg10: memref<256x128xf32, #tpu.memory_space<vmem>>, %arg11: memref<1x512xf32, #tpu.memory_space<vmem>>, %arg12: memref<16x512xbf16, #tpu.memory_space<vmem>>, %arg13: memref<144x256xbf16, #tpu.memory_space<vmem>>, %arg14: memref<64x512xbf16, #tpu.memory_space<vmem>>, %arg15: memref<256x256xbf16, #tpu.memory_space<vmem>>, %arg16: memref<256x256xbf16, #tpu.memory_space<vmem>>, %arg17: memref<256x128xbf16, #tpu.memory_space<vmem>>) attributes {dimension_semantics = [#tpu.dimension_semantics<parallel>], iteration_bounds = array<i64: 1>, scalar_prefetch = 0 : i64, scratch_operands = 7 : i64, tpu.core_type = #tpu.core_type<tc>, window_params = [{transform_indices = @transform_0, window_bounds = array<i64: 2, 1, 128>}, {pipeline_mode = #tpu.pipeline_mode<synchronous>, transform_indices = @transform_1, window_bounds = array<i64: 16, 5>}, {pipeline_mode = #tpu.pipeline_mode<synchronous>, transform_indices = @transform_2, window_bounds = array<i64: 16, 1>}, {pipeline_mode = #tpu.pipeline_mode<synchronous>, transform_indices = @transform_3, window_bounds = array<i64: 64, 144>}, {pipeline_mode = #tpu.pipeline_mode<synchronous>, transform_indices = @transform_4, window_bounds = array<i64: 64, 1>}, {pipeline_mode = #tpu.pipeline_mode<synchronous>, transform_indices = @transform_5, window_bounds = array<i64: 128, 2112>}, {pipeline_mode = #tpu.pipeline_mode<synchronous>, transform_indices = @transform_6, window_bounds = array<i64: 128, 1>}, {pipeline_mode = #tpu.pipeline_mode<synchronous>, transform_indices = @transform_7, window_bounds = array<i64: 128, 128>}, {pipeline_mode = #tpu.pipeline_mode<synchronous>, transform_indices = @transform_8, window_bounds = array<i64: 1, 128>}, {transform_indices = @transform_9, window_bounds = array<i64: 256, 128>}]} {
    %cst = arith.constant 0.000000e+00 : f32
    %0 = vector.broadcast %cst : f32 to vector<1x512xf32>
    %c0 = arith.constant 0 : index
    %c0_0 = arith.constant 0 : index
    %1 = vector.load %arg11[%c0, %c0_0] : memref<1x512xf32, #tpu.memory_space<vmem>>, vector<1x512xf32>
    tpu.vector_store %arg11[%c0, %c0_0], %0 {strides = array<i32>} : memref<1x512xf32, #tpu.memory_space<vmem>>, vector<1x512xf32>,
    %cst_1 = arith.constant 0.000000e+00 : bf16
    %2 = vector.broadcast %cst_1 : bf16 to vector<16x512xbf16>
    %c0_2 = arith.constant 0 : index
    %c0_3 = arith.constant 0 : index
    %3 = vector.load %arg12[%c0_2, %c0_3] : memref<16x512xbf16, #tpu.memory_space<vmem>>, vector<16x512xbf16>
    tpu.vector_store %arg12[%c0_2, %c0_3], %2 {strides = array<i32>} : memref<16x512xbf16, #tpu.memory_space<vmem>>, vector<16x512xbf16>,
    %cst_4 = arith.constant 0.000000e+00 : bf16
    %4 = vector.broadcast %cst_4 : bf16 to vector<64x512xbf16>
    %c0_5 = arith.constant 0 : index
    %c0_6 = arith.constant 0 : index
    %5 = vector.load %arg14[%c0_5, %c0_6] : memref<64x512xbf16, #tpu.memory_space<vmem>>, vector<64x512xbf16>
    tpu.vector_store %arg14[%c0_5, %c0_6], %4 {strides = array<i32>} : memref<64x512xbf16, #tpu.memory_space<vmem>>, vector<64x512xbf16>,
    %c0_7 = arith.constant 0 : index
    %c0_8 = arith.constant 0 : index
    %c0_9 = arith.constant 0 : index
    %6 = vector.load %arg1[%c0_7, %c0_8, %c0_9] : memref<2x1x128xf32, #tpu.memory_space<vmem>>, vector<1x1x128xf32>
    %7 = vector.shape_cast %6 : vector<1x1x128xf32> to vector<1x128xf32>
    %c0_10 = arith.constant 0 : index
    %c2 = arith.constant 2 : index
    %8 = vector.load %arg11[%c0_10, %c2] : memref<1x512xf32, #tpu.memory_space<vmem>>, vector<1x128xf32>
    tpu.vector_store %arg11[%c0_10, %c2], %7 {strides = array<i32>} : memref<1x512xf32, #tpu.memory_space<vmem>>, vector<1x128xf32>,
    %c1 = arith.constant 1 : index
    %c0_11 = arith.constant 0 : index
    %c0_12 = arith.constant 0 : index
    %9 = vector.load %arg1[%c1, %c0_11, %c0_12] : memref<2x1x128xf32, #tpu.memory_space<vmem>>, vector<1x1x128xf32>
    %10 = vector.shape_cast %9 : vector<1x1x128xf32> to vector<1x128xf32>
    %c0_13 = arith.constant 0 : index
    %c258 = arith.constant 258 : index
    %11 = vector.load %arg11[%c0_13, %c258] : memref<1x512xf32, #tpu.memory_space<vmem>>, vector<1x128xf32>
    tpu.vector_store %arg11[%c0_13, %c258], %10 {strides = array<i32>} : memref<1x512xf32, #tpu.memory_space<vmem>>, vector<1x128xf32>,
    %c0_14 = arith.constant 0 : index
    %c0_15 = arith.constant 0 : index
    %12 = vector.load %arg2[%c0_14, %c0_15] : memref<16x5xf32, #tpu.memory_space<vmem>>, vector<16x5xf32>
    %c0_16 = arith.constant 0 : index
    %c0_17 = arith.constant 0 : index
    %13 = vector.load %arg3[%c0_16, %c0_17] : memref<16x1xf32, #tpu.memory_space<vmem>>, vector<16x1xf32>
    %cst_18 = arith.constant 0.000000e+00 : f32
    %14 = vector.broadcast %cst_18 : f32 to vector<16x128xf32>
    %15 = vector.extract_strided_slice %12 {offsets = [0, 0], sizes = [16, 1], strides = [1, 1]} : vector<16x5xf32> to vector<16x1xf32>
    %c0_19 = arith.constant 0 : index
    %c0_20 = arith.constant 0 : index
    %16 = vector.load %arg11[%c0_19, %c0_20] : memref<1x512xf32, #tpu.memory_space<vmem>>, vector<1x128xf32>
    %17 = vector.broadcast %15 : vector<16x1xf32> to vector<16x128xf32>
    %18 = vector.broadcast %16 : vector<1x128xf32> to vector<16x128xf32>
    %19 = arith.mulf %17, %18 : vector<16x128xf32>
    %20 = arith.addf %14, %19 : vector<16x128xf32>
    %21 = vector.extract_strided_slice %12 {offsets = [0, 1], sizes = [16, 1], strides = [1, 1]} : vector<16x5xf32> to vector<16x1xf32>
    %c0_21 = arith.constant 0 : index
    %c1_22 = arith.constant 1 : index
    %22 = vector.load %arg11[%c0_21, %c1_22] : memref<1x512xf32, #tpu.memory_space<vmem>>, vector<1x128xf32>
    %23 = vector.broadcast %21 : vector<16x1xf32> to vector<16x128xf32>
    %24 = vector.broadcast %22 : vector<1x128xf32> to vector<16x128xf32>
    %25 = arith.mulf %23, %24 : vector<16x128xf32>
    %26 = arith.addf %20, %25 : vector<16x128xf32>
    %27 = vector.extract_strided_slice %12 {offsets = [0, 2], sizes = [16, 1], strides = [1, 1]} : vector<16x5xf32> to vector<16x1xf32>
    %c0_23 = arith.constant 0 : index
    %c2_24 = arith.constant 2 : index
    %28 = vector.load %arg11[%c0_23, %c2_24] : memref<1x512xf32, #tpu.memory_space<vmem>>, vector<1x128xf32>
    %29 = vector.broadcast %27 : vector<16x1xf32> to vector<16x128xf32>
    %30 = vector.broadcast %28 : vector<1x128xf32> to vector<16x128xf32>
    %31 = arith.mulf %29, %30 : vector<16x128xf32>
    %32 = arith.addf %26, %31 : vector<16x128xf32>
    %33 = vector.extract_strided_slice %12 {offsets = [0, 3], sizes = [16, 1], strides = [1, 1]} : vector<16x5xf32> to vector<16x1xf32>
    %c0_25 = arith.constant 0 : index
    %c3 = arith.constant 3 : index
    %34 = vector.load %arg11[%c0_25, %c3] : memref<1x512xf32, #tpu.memory_space<vmem>>, vector<1x128xf32>
    %35 = vector.broadcast %33 : vector<16x1xf32> to vector<16x128xf32>
    %36 = vector.broadcast %34 : vector<1x128xf32> to vector<16x128xf32>
    %37 = arith.mulf %35, %36 : vector<16x128xf32>
    %38 = arith.addf %32, %37 : vector<16x128xf32>
    %39 = vector.extract_strided_slice %12 {offsets = [0, 4], sizes = [16, 1], strides = [1, 1]} : vector<16x5xf32> to vector<16x1xf32>
    %c0_26 = arith.constant 0 : index
    %c4 = arith.constant 4 : index
    %40 = vector.load %arg11[%c0_26, %c4] : memref<1x512xf32, #tpu.memory_space<vmem>>, vector<1x128xf32>
    %41 = vector.broadcast %39 : vector<16x1xf32> to vector<16x128xf32>
    %42 = vector.broadcast %40 : vector<1x128xf32> to vector<16x128xf32>
    %43 = arith.mulf %41, %42 : vector<16x128xf32>
    %44 = arith.addf %38, %43 : vector<16x128xf32>
    %45 = vector.broadcast %13 : vector<16x1xf32> to vector<16x128xf32>
    %46 = arith.addf %44, %45 : vector<16x128xf32>
    %cst_27 = arith.constant 0.000000e+00 : f32
    %47 = vector.broadcast %cst_27 : f32 to vector<16x128xf32>
    %48 = arith.maximumf %46, %47 : vector<16x128xf32>
    %49 = arith.truncf %48 : vector<16x128xf32> to vector<16x128xbf16>
    %c0_28 = arith.constant 0 : index
    %c4_29 = arith.constant 4 : index
    %50 = vector.load %arg12[%c0_28, %c4_29] : memref<16x512xbf16, #tpu.memory_space<vmem>>, vector<16x128xbf16>
    tpu.vector_store %arg12[%c0_28, %c4_29], %49 {strides = array<i32>} : memref<16x512xbf16, #tpu.memory_space<vmem>>, vector<16x128xbf16>,
    %cst_30 = arith.constant 0.000000e+00 : f32
    %51 = vector.broadcast %cst_30 : f32 to vector<16x128xf32>
    %52 = vector.extract_strided_slice %12 {offsets = [0, 0], sizes = [16, 1], strides = [1, 1]} : vector<16x5xf32> to vector<16x1xf32>
    %c0_31 = arith.constant 0 : index
    %c256 = arith.constant 256 : index
    %53 = vector.load %arg11[%c0_31, %c256] : memref<1x512xf32, #tpu.memory_space<vmem>>, vector<1x128xf32>
    %54 = vector.broadcast %52 : vector<16x1xf32> to vector<16x128xf32>
    %55 = vector.broadcast %53 : vector<1x128xf32> to vector<16x128xf32>
    %56 = arith.mulf %54, %55 : vector<16x128xf32>
    %57 = arith.addf %51, %56 : vector<16x128xf32>
    %58 = vector.extract_strided_slice %12 {offsets = [0, 1], sizes = [16, 1], strides = [1, 1]} : vector<16x5xf32> to vector<16x1xf32>
    %c0_32 = arith.constant 0 : index
    %c257 = arith.constant 257 : index
    %59 = vector.load %arg11[%c0_32, %c257] : memref<1x512xf32, #tpu.memory_space<vmem>>, vector<1x128xf32>
    %60 = vector.broadcast %58 : vector<16x1xf32> to vector<16x128xf32>
    %61 = vector.broadcast %59 : vector<1x128xf32> to vector<16x128xf32>
    %62 = arith.mulf %60, %61 : vector<16x128xf32>
    %63 = arith.addf %57, %62 : vector<16x128xf32>
    %64 = vector.extract_strided_slice %12 {offsets = [0, 2], sizes = [16, 1], strides = [1, 1]} : vector<16x5xf32> to vector<16x1xf32>
    %c0_33 = arith.constant 0 : index
    %c258_34 = arith.constant 258 : index
    %65 = vector.load %arg11[%c0_33, %c258_34] : memref<1x512xf32, #tpu.memory_space<vmem>>, vector<1x128xf32>
    %66 = vector.broadcast %64 : vector<16x1xf32> to vector<16x128xf32>
    %67 = vector.broadcast %65 : vector<1x128xf32> to vector<16x128xf32>
    %68 = arith.mulf %66, %67 : vector<16x128xf32>
    %69 = arith.addf %63, %68 : vector<16x128xf32>
    %70 = vector.extract_strided_slice %12 {offsets = [0, 3], sizes = [16, 1], strides = [1, 1]} : vector<16x5xf32> to vector<16x1xf32>
    %c0_35 = arith.constant 0 : index
    %c259 = arith.constant 259 : index
    %71 = vector.load %arg11[%c0_35, %c259] : memref<1x512xf32, #tpu.memory_space<vmem>>, vector<1x128xf32>
    %72 = vector.broadcast %70 : vector<16x1xf32> to vector<16x128xf32>
    %73 = vector.broadcast %71 : vector<1x128xf32> to vector<16x128xf32>
    %74 = arith.mulf %72, %73 : vector<16x128xf32>
    %75 = arith.addf %69, %74 : vector<16x128xf32>
    %76 = vector.extract_strided_slice %12 {offsets = [0, 4], sizes = [16, 1], strides = [1, 1]} : vector<16x5xf32> to vector<16x1xf32>
    %c0_36 = arith.constant 0 : index
    %c260 = arith.constant 260 : index
    %77 = vector.load %arg11[%c0_36, %c260] : memref<1x512xf32, #tpu.memory_space<vmem>>, vector<1x128xf32>
    %78 = vector.broadcast %76 : vector<16x1xf32> to vector<16x128xf32>
    %79 = vector.broadcast %77 : vector<1x128xf32> to vector<16x128xf32>
    %80 = arith.mulf %78, %79 : vector<16x128xf32>
    %81 = arith.addf %75, %80 : vector<16x128xf32>
    %82 = vector.broadcast %13 : vector<16x1xf32> to vector<16x128xf32>
    %83 = arith.addf %81, %82 : vector<16x128xf32>
    %cst_37 = arith.constant 0.000000e+00 : f32
    %84 = vector.broadcast %cst_37 : f32 to vector<16x128xf32>
    %85 = arith.maximumf %83, %84 : vector<16x128xf32>
    %86 = arith.truncf %85 : vector<16x128xf32> to vector<16x128xbf16>
    %c0_38 = arith.constant 0 : index
    %c260_39 = arith.constant 260 : index
    %87 = vector.load %arg12[%c0_38, %c260_39] : memref<16x512xbf16, #tpu.memory_space<vmem>>, vector<16x128xbf16>
    tpu.vector_store %arg12[%c0_38, %c260_39], %86 {strides = array<i32>} : memref<16x512xbf16, #tpu.memory_space<vmem>>, vector<16x128xbf16>,
    %c0_40 = arith.constant 0 : index
    %c0_41 = arith.constant 0 : index
    %88 = vector.load %arg12[%c0_40, %c0_41] : memref<16x512xbf16, #tpu.memory_space<vmem>>, vector<16x128xbf16>
    %c0_42 = arith.constant 0 : index
    %c0_43 = arith.constant 0 : index
    %89 = vector.load %arg13[%c0_42, %c0_43] : memref<144x256xbf16, #tpu.memory_space<vmem>>, vector<16x128xbf16>
    tpu.vector_store %arg13[%c0_42, %c0_43], %88 {strides = array<i32>} : memref<144x256xbf16, #tpu.memory_space<vmem>>, vector<16x128xbf16>,
    %c0_44 = arith.constant 0 : index
    %c1_45 = arith.constant 1 : index
    %90 = vector.load %arg12[%c0_44, %c1_45] : memref<16x512xbf16, #tpu.memory_space<vmem>>, vector<16x128xbf16>
    %c16 = arith.constant 16 : index
    %c0_46 = arith.constant 0 : index
    %91 = vector.load %arg13[%c16, %c0_46] : memref<144x256xbf16, #tpu.memory_space<vmem>>, vector<16x128xbf16>
    tpu.vector_store %arg13[%c16, %c0_46], %90 {strides = array<i32>} : memref<144x256xbf16, #tpu.memory_space<vmem>>, vector<16x128xbf16>,
    %c0_47 = arith.constant 0 : index
    %c2_48 = arith.constant 2 : index
    %92 = vector.load %arg12[%c0_47, %c2_48] : memref<16x512xbf16, #tpu.memory_space<vmem>>, vector<16x128xbf16>
    %c32 = arith.constant 32 : index
    %c0_49 = arith.constant 0 : index
    %93 = vector.load %arg13[%c32, %c0_49] : memref<144x256xbf16, #tpu.memory_space<vmem>>, vector<16x128xbf16>
    tpu.vector_store %arg13[%c32, %c0_49], %92 {strides = array<i32>} : memref<144x256xbf16, #tpu.memory_space<vmem>>, vector<16x128xbf16>,
    %c0_50 = arith.constant 0 : index
    %c3_51 = arith.constant 3 : index
    %94 = vector.load %arg12[%c0_50, %c3_51] : memref<16x512xbf16, #tpu.memory_space<vmem>>, vector<16x128xbf16>
    %c48 = arith.constant 48 : index
    %c0_52 = arith.constant 0 : index
    %95 = vector.load %arg13[%c48, %c0_52] : memref<144x256xbf16, #tpu.memory_space<vmem>>, vector<16x128xbf16>
    tpu.vector_store %arg13[%c48, %c0_52], %94 {strides = array<i32>} : memref<144x256xbf16, #tpu.memory_space<vmem>>, vector<16x128xbf16>,
    %c0_53 = arith.constant 0 : index
    %c4_54 = arith.constant 4 : index
    %96 = vector.load %arg12[%c0_53, %c4_54] : memref<16x512xbf16, #tpu.memory_space<vmem>>, vector<16x128xbf16>
    %c64 = arith.constant 64 : index
    %c0_55 = arith.constant 0 : index
    %97 = vector.load %arg13[%c64, %c0_55] : memref<144x256xbf16, #tpu.memory_space<vmem>>, vector<16x128xbf16>
    tpu.vector_store %arg13[%c64, %c0_55], %96 {strides = array<i32>} : memref<144x256xbf16, #tpu.memory_space<vmem>>, vector<16x128xbf16>,
    %c0_56 = arith.constant 0 : index
    %c5 = arith.constant 5 : index
    %98 = vector.load %arg12[%c0_56, %c5] : memref<16x512xbf16, #tpu.memory_space<vmem>>, vector<16x128xbf16>
    %c80 = arith.constant 80 : index
    %c0_57 = arith.constant 0 : index
    %99 = vector.load %arg13[%c80, %c0_57] : memref<144x256xbf16, #tpu.memory_space<vmem>>, vector<16x128xbf16>
    tpu.vector_store %arg13[%c80, %c0_57], %98 {strides = array<i32>} : memref<144x256xbf16, #tpu.memory_space<vmem>>, vector<16x128xbf16>,
    %c0_58 = arith.constant 0 : index
    %c6 = arith.constant 6 : index
    %100 = vector.load %arg12[%c0_58, %c6] : memref<16x512xbf16, #tpu.memory_space<vmem>>, vector<16x128xbf16>
    %c96 = arith.constant 96 : index
    %c0_59 = arith.constant 0 : index
    %101 = vector.load %arg13[%c96, %c0_59] : memref<144x256xbf16, #tpu.memory_space<vmem>>, vector<16x128xbf16>
    tpu.vector_store %arg13[%c96, %c0_59], %100 {strides = array<i32>} : memref<144x256xbf16, #tpu.memory_space<vmem>>, vector<16x128xbf16>,
    %c0_60 = arith.constant 0 : index
    %c7 = arith.constant 7 : index
    %102 = vector.load %arg12[%c0_60, %c7] : memref<16x512xbf16, #tpu.memory_space<vmem>>, vector<16x128xbf16>
    %c112 = arith.constant 112 : index
    %c0_61 = arith.constant 0 : index
    %103 = vector.load %arg13[%c112, %c0_61] : memref<144x256xbf16, #tpu.memory_space<vmem>>, vector<16x128xbf16>
    tpu.vector_store %arg13[%c112, %c0_61], %102 {strides = array<i32>} : memref<144x256xbf16, #tpu.memory_space<vmem>>, vector<16x128xbf16>,
    %c0_62 = arith.constant 0 : index
    %c8 = arith.constant 8 : index
    %104 = vector.load %arg12[%c0_62, %c8] : memref<16x512xbf16, #tpu.memory_space<vmem>>, vector<16x128xbf16>
    %c128 = arith.constant 128 : index
    %c0_63 = arith.constant 0 : index
    %105 = vector.load %arg13[%c128, %c0_63] : memref<144x256xbf16, #tpu.memory_space<vmem>>, vector<16x128xbf16>
    tpu.vector_store %arg13[%c128, %c0_63], %104 {strides = array<i32>} : memref<144x256xbf16, #tpu.memory_space<vmem>>, vector<16x128xbf16>,
    %c0_64 = arith.constant 0 : index
    %c256_65 = arith.constant 256 : index
    %106 = vector.load %arg12[%c0_64, %c256_65] : memref<16x512xbf16, #tpu.memory_space<vmem>>, vector<16x128xbf16>
    %c0_66 = arith.constant 0 : index
    %c128_67 = arith.constant 128 : index
    %107 = vector.load %arg13[%c0_66, %c128_67] : memref<144x256xbf16, #tpu.memory_space<vmem>>, vector<16x128xbf16>
    tpu.vector_store %arg13[%c0_66, %c128_67], %106 {strides = array<i32>} : memref<144x256xbf16, #tpu.memory_space<vmem>>, vector<16x128xbf16>,
    %c0_68 = arith.constant 0 : index
    %c257_69 = arith.constant 257 : index
    %108 = vector.load %arg12[%c0_68, %c257_69] : memref<16x512xbf16, #tpu.memory_space<vmem>>, vector<16x128xbf16>
    %c16_70 = arith.constant 16 : index
    %c128_71 = arith.constant 128 : index
    %109 = vector.load %arg13[%c16_70, %c128_71] : memref<144x256xbf16, #tpu.memory_space<vmem>>, vector<16x128xbf16>
    tpu.vector_store %arg13[%c16_70, %c128_71], %108 {strides = array<i32>} : memref<144x256xbf16, #tpu.memory_space<vmem>>, vector<16x128xbf16>,
    %c0_72 = arith.constant 0 : index
    %c258_73 = arith.constant 258 : index
    %110 = vector.load %arg12[%c0_72, %c258_73] : memref<16x512xbf16, #tpu.memory_space<vmem>>, vector<16x128xbf16>
    %c32_74 = arith.constant 32 : index
    %c128_75 = arith.constant 128 : index
    %111 = vector.load %arg13[%c32_74, %c128_75] : memref<144x256xbf16, #tpu.memory_space<vmem>>, vector<16x128xbf16>
    tpu.vector_store %arg13[%c32_74, %c128_75], %110 {strides = array<i32>} : memref<144x256xbf16, #tpu.memory_space<vmem>>, vector<16x128xbf16>,
    %c0_76 = arith.constant 0 : index
    %c259_77 = arith.constant 259 : index
    %112 = vector.load %arg12[%c0_76, %c259_77] : memref<16x512xbf16, #tpu.memory_space<vmem>>, vector<16x128xbf16>
    %c48_78 = arith.constant 48 : index
    %c128_79 = arith.constant 128 : index
    %113 = vector.load %arg13[%c48_78, %c128_79] : memref<144x256xbf16, #tpu.memory_space<vmem>>, vector<16x128xbf16>
    tpu.vector_store %arg13[%c48_78, %c128_79], %112 {strides = array<i32>} : memref<144x256xbf16, #tpu.memory_space<vmem>>, vector<16x128xbf16>,
    %c0_80 = arith.constant 0 : index
    %c260_81 = arith.constant 260 : index
    %114 = vector.load %arg12[%c0_80, %c260_81] : memref<16x512xbf16, #tpu.memory_space<vmem>>, vector<16x128xbf16>
    %c64_82 = arith.constant 64 : index
    %c128_83 = arith.constant 128 : index
    %115 = vector.load %arg13[%c64_82, %c128_83] : memref<144x256xbf16, #tpu.memory_space<vmem>>, vector<16x128xbf16>
    tpu.vector_store %arg13[%c64_82, %c128_83], %114 {strides = array<i32>} : memref<144x256xbf16, #tpu.memory_space<vmem>>, vector<16x128xbf16>,
    %c0_84 = arith.constant 0 : index
    %c261 = arith.constant 261 : index
    %116 = vector.load %arg12[%c0_84, %c261] : memref<16x512xbf16, #tpu.memory_space<vmem>>, vector<16x128xbf16>
    %c80_85 = arith.constant 80 : index
    %c128_86 = arith.constant 128 : index
    %117 = vector.load %arg13[%c80_85, %c128_86] : memref<144x256xbf16, #tpu.memory_space<vmem>>, vector<16x128xbf16>
    tpu.vector_store %arg13[%c80_85, %c128_86], %116 {strides = array<i32>} : memref<144x256xbf16, #tpu.memory_space<vmem>>, vector<16x128xbf16>,
    %c0_87 = arith.constant 0 : index
    %c262 = arith.constant 262 : index
    %118 = vector.load %arg12[%c0_87, %c262] : memref<16x512xbf16, #tpu.memory_space<vmem>>, vector<16x128xbf16>
    %c96_88 = arith.constant 96 : index
    %c128_89 = arith.constant 128 : index
    %119 = vector.load %arg13[%c96_88, %c128_89] : memref<144x256xbf16, #tpu.memory_space<vmem>>, vector<16x128xbf16>
    tpu.vector_store %arg13[%c96_88, %c128_89], %118 {strides = array<i32>} : memref<144x256xbf16, #tpu.memory_space<vmem>>, vector<16x128xbf16>,
    %c0_90 = arith.constant 0 : index
    %c263 = arith.constant 263 : index
    %120 = vector.load %arg12[%c0_90, %c263] : memref<16x512xbf16, #tpu.memory_space<vmem>>, vector<16x128xbf16>
    %c112_91 = arith.constant 112 : index
    %c128_92 = arith.constant 128 : index
    %121 = vector.load %arg13[%c112_91, %c128_92] : memref<144x256xbf16, #tpu.memory_space<vmem>>, vector<16x128xbf16>
    tpu.vector_store %arg13[%c112_91, %c128_92], %120 {strides = array<i32>} : memref<144x256xbf16, #tpu.memory_space<vmem>>, vector<16x128xbf16>,
    %c0_93 = arith.constant 0 : index
    %c264 = arith.constant 264 : index
    %122 = vector.load %arg12[%c0_93, %c264] : memref<16x512xbf16, #tpu.memory_space<vmem>>, vector<16x128xbf16>
    %c128_94 = arith.constant 128 : index
    %c128_95 = arith.constant 128 : index
    %123 = vector.load %arg13[%c128_94, %c128_95] : memref<144x256xbf16, #tpu.memory_space<vmem>>, vector<16x128xbf16>
    tpu.vector_store %arg13[%c128_94, %c128_95], %122 {strides = array<i32>} : memref<144x256xbf16, #tpu.memory_space<vmem>>, vector<16x128xbf16>,
    %c0_96 = arith.constant 0 : index
    %c0_97 = arith.constant 0 : index
    %124 = vector.load %arg4[%c0_96, %c0_97] : memref<64x144xbf16, #tpu.memory_space<vmem>>, vector<64x144xbf16>
    %c0_98 = arith.constant 0 : index
    %c0_99 = arith.constant 0 : index
    %125 = vector.load %arg13[%c0_98, %c0_99] : memref<144x256xbf16, #tpu.memory_space<vmem>>, vector<144x256xbf16>
    %cst_100 = arith.constant dense<0.000000e+00> : vector<64x256xf32>
    %126 = tpu.matmul %124, %125, %cst_100 {dimension_numbers = #tpu.dot_dimension_numbers<[1], [0], [0], [1], [0, 0, 1, 1], [], []>} : vector<64x144xbf16>, vector<144x256xbf16>, vector<64x256xf32> -> vector<64x256xf32>
    %c0_101 = arith.constant 0 : index
    %c0_102 = arith.constant 0 : index
    %127 = vector.load %arg5[%c0_101, %c0_102] : memref<64x1xf32, #tpu.memory_space<vmem>>, vector<64x1xf32>
    %128 = vector.broadcast %127 : vector<64x1xf32> to vector<64x256xf32>
    %129 = arith.addf %126, %128 : vector<64x256xf32>
    %cst_103 = arith.constant 0.000000e+00 : f32
    %130 = vector.broadcast %cst_103 : f32 to vector<64x256xf32>
    %131 = arith.maximumf %129, %130 : vector<64x256xf32>
    %132 = arith.truncf %131 : vector<64x256xf32> to vector<64x256xbf16>
    %133 = vector.extract_strided_slice %132 {offsets = [0, 0], sizes = [64, 128], strides = [1, 1]} : vector<64x256xbf16> to vector<64x128xbf16>
    %c0_104 = arith.constant 0 : index
    %c16_105 = arith.constant 16 : index
    %134 = vector.load %arg14[%c0_104, %c16_105] : memref<64x512xbf16, #tpu.memory_space<vmem>>, vector<64x128xbf16>
    tpu.vector_store %arg14[%c0_104, %c16_105], %133 {strides = array<i32>} : memref<64x512xbf16, #tpu.memory_space<vmem>>, vector<64x128xbf16>,
    %135 = vector.extract_strided_slice %132 {offsets = [0, 128], sizes = [64, 128], strides = [1, 1]} : vector<64x256xbf16> to vector<64x128xbf16>
    %c0_106 = arith.constant 0 : index
    %c272 = arith.constant 272 : index
    %136 = vector.load %arg14[%c0_106, %c272] : memref<64x512xbf16, #tpu.memory_space<vmem>>, vector<64x128xbf16>
    tpu.vector_store %arg14[%c0_106, %c272], %135 {strides = array<i32>} : memref<64x512xbf16, #tpu.memory_space<vmem>>, vector<64x128xbf16>,
    %cst_107 = arith.constant 0.000000e+00 : f32
    %137 = vector.broadcast %cst_107 : f32 to vector<128x256xf32>
    %c0_108 = arith.constant 0 : index
    %c0_109 = arith.constant 0 : index
    %138 = vector.load %arg14[%c0_108, %c0_109] : memref<64x512xbf16, #tpu.memory_space<vmem>>, vector<64x128xbf16>
    %c0_110 = arith.constant 0 : index
    %c0_111 = arith.constant 0 : index
    %139 = vector.load %arg15[%c0_110, %c0_111] : memref<256x256xbf16, #tpu.memory_space<vmem>>, vector<64x128xbf16>
    tpu.vector_store %arg15[%c0_110, %c0_111], %138 {strides = array<i32>} : memref<256x256xbf16, #tpu.memory_space<vmem>>, vector<64x128xbf16>,
    %c0_112 = arith.constant 0 : index
    %c1_113 = arith.constant 1 : index
    %140 = vector.load %arg14[%c0_112, %c1_113] : memref<64x512xbf16, #tpu.memory_space<vmem>>, vector<64x128xbf16>
    %c64_114 = arith.constant 64 : index
    %c0_115 = arith.constant 0 : index
    %141 = vector.load %arg15[%c64_114, %c0_115] : memref<256x256xbf16, #tpu.memory_space<vmem>>, vector<64x128xbf16>
    tpu.vector_store %arg15[%c64_114, %c0_115], %140 {strides = array<i32>} : memref<256x256xbf16, #tpu.memory_space<vmem>>, vector<64x128xbf16>,
    %c0_116 = arith.constant 0 : index
    %c2_117 = arith.constant 2 : index
    %142 = vector.load %arg14[%c0_116, %c2_117] : memref<64x512xbf16, #tpu.memory_space<vmem>>, vector<64x128xbf16>
    %c128_118 = arith.constant 128 : index
    %c0_119 = arith.constant 0 : index
    %143 = vector.load %arg15[%c128_118, %c0_119] : memref<256x256xbf16, #tpu.memory_space<vmem>>, vector<64x128xbf16>
    tpu.vector_store %arg15[%c128_118, %c0_119], %142 {strides = array<i32>} : memref<256x256xbf16, #tpu.memory_space<vmem>>, vector<64x128xbf16>,
    %c0_120 = arith.constant 0 : index
    %c3_121 = arith.constant 3 : index
    %144 = vector.load %arg14[%c0_120, %c3_121] : memref<64x512xbf16, #tpu.memory_space<vmem>>, vector<64x128xbf16>
    %c192 = arith.constant 192 : index
    %c0_122 = arith.constant 0 : index
    %145 = vector.load %arg15[%c192, %c0_122] : memref<256x256xbf16, #tpu.memory_space<vmem>>, vector<64x128xbf16>
    tpu.vector_store %arg15[%c192, %c0_122], %144 {strides = array<i32>} : memref<256x256xbf16, #tpu.memory_space<vmem>>, vector<64x128xbf16>,
    %c0_123 = arith.constant 0 : index
    %c256_124 = arith.constant 256 : index
    %146 = vector.load %arg14[%c0_123, %c256_124] : memref<64x512xbf16, #tpu.memory_space<vmem>>, vector<64x128xbf16>
    %c0_125 = arith.constant 0 : index
    %c128_126 = arith.constant 128 : index
    %147 = vector.load %arg15[%c0_125, %c128_126] : memref<256x256xbf16, #tpu.memory_space<vmem>>, vector<64x128xbf16>
    tpu.vector_store %arg15[%c0_125, %c128_126], %146 {strides = array<i32>} : memref<256x256xbf16, #tpu.memory_space<vmem>>, vector<64x128xbf16>,
    %c0_127 = arith.constant 0 : index
    %c257_128 = arith.constant 257 : index
    %148 = vector.load %arg14[%c0_127, %c257_128] : memref<64x512xbf16, #tpu.memory_space<vmem>>, vector<64x128xbf16>
    %c64_129 = arith.constant 64 : index
    %c128_130 = arith.constant 128 : index
    %149 = vector.load %arg15[%c64_129, %c128_130] : memref<256x256xbf16, #tpu.memory_space<vmem>>, vector<64x128xbf16>
    tpu.vector_store %arg15[%c64_129, %c128_130], %148 {strides = array<i32>} : memref<256x256xbf16, #tpu.memory_space<vmem>>, vector<64x128xbf16>,
    %c0_131 = arith.constant 0 : index
    %c258_132 = arith.constant 258 : index
    %150 = vector.load %arg14[%c0_131, %c258_132] : memref<64x512xbf16, #tpu.memory_space<vmem>>, vector<64x128xbf16>
    %c128_133 = arith.constant 128 : index
    %c128_134 = arith.constant 128 : index
    %151 = vector.load %arg15[%c128_133, %c128_134] : memref<256x256xbf16, #tpu.memory_space<vmem>>, vector<64x128xbf16>
    tpu.vector_store %arg15[%c128_133, %c128_134], %150 {strides = array<i32>} : memref<256x256xbf16, #tpu.memory_space<vmem>>, vector<64x128xbf16>,
    %c0_135 = arith.constant 0 : index
    %c259_136 = arith.constant 259 : index
    %152 = vector.load %arg14[%c0_135, %c259_136] : memref<64x512xbf16, #tpu.memory_space<vmem>>, vector<64x128xbf16>
    %c192_137 = arith.constant 192 : index
    %c128_138 = arith.constant 128 : index
    %153 = vector.load %arg15[%c192_137, %c128_138] : memref<256x256xbf16, #tpu.memory_space<vmem>>, vector<64x128xbf16>
    tpu.vector_store %arg15[%c192_137, %c128_138], %152 {strides = array<i32>} : memref<256x256xbf16, #tpu.memory_space<vmem>>, vector<64x128xbf16>,
    %c0_139 = arith.constant 0 : index
    %c0_140 = arith.constant 0 : index
    %154 = vector.load %arg6[%c0_139, %c0_140] : memref<128x2112xbf16, #tpu.memory_space<vmem>>, vector<128x256xbf16>
    %c0_141 = arith.constant 0 : index
    %c0_142 = arith.constant 0 : index
    %155 = vector.load %arg15[%c0_141, %c0_142] : memref<256x256xbf16, #tpu.memory_space<vmem>>, vector<256x256xbf16>
    %cst_143 = arith.constant dense<0.000000e+00> : vector<128x256xf32>
    %156 = tpu.matmul %154, %155, %cst_143 {dimension_numbers = #tpu.dot_dimension_numbers<[1], [0], [0], [1], [0, 0, 1, 1], [], []>} : vector<128x256xbf16>, vector<256x256xbf16>, vector<128x256xf32> -> vector<128x256xf32>
    %157 = arith.addf %137, %156 : vector<128x256xf32>
    %c0_144 = arith.constant 0 : index
    %c4_145 = arith.constant 4 : index
    %158 = vector.load %arg14[%c0_144, %c4_145] : memref<64x512xbf16, #tpu.memory_space<vmem>>, vector<64x128xbf16>
    %c0_146 = arith.constant 0 : index
    %c0_147 = arith.constant 0 : index
    %159 = vector.load %arg16[%c0_146, %c0_147] : memref<256x256xbf16, #tpu.memory_space<vmem>>, vector<64x128xbf16>
    tpu.vector_store %arg16[%c0_146, %c0_147], %158 {strides = array<i32>} : memref<256x256xbf16, #tpu.memory_space<vmem>>, vector<64x128xbf16>,
    %c0_148 = arith.constant 0 : index
    %c5_149 = arith.constant 5 : index
    %160 = vector.load %arg14[%c0_148, %c5_149] : memref<64x512xbf16, #tpu.memory_space<vmem>>, vector<64x128xbf16>
    %c64_150 = arith.constant 64 : index
    %c0_151 = arith.constant 0 : index
    %161 = vector.load %arg16[%c64_150, %c0_151] : memref<256x256xbf16, #tpu.memory_space<vmem>>, vector<64x128xbf16>
    tpu.vector_store %arg16[%c64_150, %c0_151], %160 {strides = array<i32>} : memref<256x256xbf16, #tpu.memory_space<vmem>>, vector<64x128xbf16>,
    %c0_152 = arith.constant 0 : index
    %c6_153 = arith.constant 6 : index
    %162 = vector.load %arg14[%c0_152, %c6_153] : memref<64x512xbf16, #tpu.memory_space<vmem>>, vector<64x128xbf16>
    %c128_154 = arith.constant 128 : index
    %c0_155 = arith.constant 0 : index
    %163 = vector.load %arg16[%c128_154, %c0_155] : memref<256x256xbf16, #tpu.memory_space<vmem>>, vector<64x128xbf16>
    tpu.vector_store %arg16[%c128_154, %c0_155], %162 {strides = array<i32>} : memref<256x256xbf16, #tpu.memory_space<vmem>>, vector<64x128xbf16>,
    %c0_156 = arith.constant 0 : index
    %c7_157 = arith.constant 7 : index
    %164 = vector.load %arg14[%c0_156, %c7_157] : memref<64x512xbf16, #tpu.memory_space<vmem>>, vector<64x128xbf16>
    %c192_158 = arith.constant 192 : index
    %c0_159 = arith.constant 0 : index
    %165 = vector.load %arg16[%c192_158, %c0_159] : memref<256x256xbf16, #tpu.memory_space<vmem>>, vector<64x128xbf16>
    tpu.vector_store %arg16[%c192_158, %c0_159], %164 {strides = array<i32>} : memref<256x256xbf16, #tpu.memory_space<vmem>>, vector<64x128xbf16>,
    %c0_160 = arith.constant 0 : index
    %c260_161 = arith.constant 260 : index
    %166 = vector.load %arg14[%c0_160, %c260_161] : memref<64x512xbf16, #tpu.memory_space<vmem>>, vector<64x128xbf16>
    %c0_162 = arith.constant 0 : index
    %c128_163 = arith.constant 128 : index
    %167 = vector.load %arg16[%c0_162, %c128_163] : memref<256x256xbf16, #tpu.memory_space<vmem>>, vector<64x128xbf16>
    tpu.vector_store %arg16[%c0_162, %c128_163], %166 {strides = array<i32>} : memref<256x256xbf16, #tpu.memory_space<vmem>>, vector<64x128xbf16>,
    %c0_164 = arith.constant 0 : index
    %c261_165 = arith.constant 261 : index
    %168 = vector.load %arg14[%c0_164, %c261_165] : memref<64x512xbf16, #tpu.memory_space<vmem>>, vector<64x128xbf16>
    %c64_166 = arith.constant 64 : index
    %c128_167 = arith.constant 128 : index
    %169 = vector.load %arg16[%c64_166, %c128_167] : memref<256x256xbf16, #tpu.memory_space<vmem>>, vector<64x128xbf16>
    tpu.vector_store %arg16[%c64_166, %c128_167], %168 {strides = array<i32>} : memref<256x256xbf16, #tpu.memory_space<vmem>>, vector<64x128xbf16>,
    %c0_168 = arith.constant 0 : index
    %c262_169 = arith.constant 262 : index
    %170 = vector.load %arg14[%c0_168, %c262_169] : memref<64x512xbf16, #tpu.memory_space<vmem>>, vector<64x128xbf16>
    %c128_170 = arith.constant 128 : index
    %c128_171 = arith.constant 128 : index
    %171 = vector.load %arg16[%c128_170, %c128_171] : memref<256x256xbf16, #tpu.memory_space<vmem>>, vector<64x128xbf16>
    tpu.vector_store %arg16[%c128_170, %c128_171], %170 {strides = array<i32>} : memref<256x256xbf16, #tpu.memory_space<vmem>>, vector<64x128xbf16>,
    %c0_172 = arith.constant 0 : index
    %c263_173 = arith.constant 263 : index
    %172 = vector.load %arg14[%c0_172, %c263_173] : memref<64x512xbf16, #tpu.memory_space<vmem>>, vector<64x128xbf16>
    %c192_174 = arith.constant 192 : index
    %c128_175 = arith.constant 128 : index
    %173 = vector.load %arg16[%c192_174, %c128_175] : memref<256x256xbf16, #tpu.memory_space<vmem>>, vector<64x128xbf16>
    tpu.vector_store %arg16[%c192_174, %c128_175], %172 {strides = array<i32>} : memref<256x256xbf16, #tpu.memory_space<vmem>>, vector<64x128xbf16>,
    %c0_176 = arith.constant 0 : index
    %c256_177 = arith.constant 256 : index
    %174 = vector.load %arg6[%c0_176, %c256_177] : memref<128x2112xbf16, #tpu.memory_space<vmem>>, vector<128x256xbf16>
    %c0_178 = arith.constant 0 : index
    %c0_179 = arith.constant 0 : index
    %175 = vector.load %arg16[%c0_178, %c0_179] : memref<256x256xbf16, #tpu.memory_space<vmem>>, vector<256x256xbf16>
    %cst_180 = arith.constant dense<0.000000e+00> : vector<128x256xf32>
    %176 = tpu.matmul %174, %175, %cst_180 {dimension_numbers = #tpu.dot_dimension_numbers<[1], [0], [0], [1], [0, 0, 1, 1], [], []>} : vector<128x256xbf16>, vector<256x256xbf16>, vector<128x256xf32> -> vector<128x256xf32>
    %177 = arith.addf %157, %176 : vector<128x256xf32>
    %c0_181 = arith.constant 0 : index
    %c8_182 = arith.constant 8 : index
    %178 = vector.load %arg14[%c0_181, %c8_182] : memref<64x512xbf16, #tpu.memory_space<vmem>>, vector<64x128xbf16>
    %c0_183 = arith.constant 0 : index
    %c0_184 = arith.constant 0 : index
    %179 = vector.load %arg15[%c0_183, %c0_184] : memref<256x256xbf16, #tpu.memory_space<vmem>>, vector<64x128xbf16>
    tpu.vector_store %arg15[%c0_183, %c0_184], %178 {strides = array<i32>} : memref<256x256xbf16, #tpu.memory_space<vmem>>, vector<64x128xbf16>,
    %c0_185 = arith.constant 0 : index
    %c9 = arith.constant 9 : index
    %180 = vector.load %arg14[%c0_185, %c9] : memref<64x512xbf16, #tpu.memory_space<vmem>>, vector<64x128xbf16>
    %c64_186 = arith.constant 64 : index
    %c0_187 = arith.constant 0 : index
    %181 = vector.load %arg15[%c64_186, %c0_187] : memref<256x256xbf16, #tpu.memory_space<vmem>>, vector<64x128xbf16>
    tpu.vector_store %arg15[%c64_186, %c0_187], %180 {strides = array<i32>} : memref<256x256xbf16, #tpu.memory_space<vmem>>, vector<64x128xbf16>,
    %c0_188 = arith.constant 0 : index
    %c10 = arith.constant 10 : index
    %182 = vector.load %arg14[%c0_188, %c10] : memref<64x512xbf16, #tpu.memory_space<vmem>>, vector<64x128xbf16>
    %c128_189 = arith.constant 128 : index
    %c0_190 = arith.constant 0 : index
    %183 = vector.load %arg15[%c128_189, %c0_190] : memref<256x256xbf16, #tpu.memory_space<vmem>>, vector<64x128xbf16>
    tpu.vector_store %arg15[%c128_189, %c0_190], %182 {strides = array<i32>} : memref<256x256xbf16, #tpu.memory_space<vmem>>, vector<64x128xbf16>,
    %c0_191 = arith.constant 0 : index
    %c11 = arith.constant 11 : index
    %184 = vector.load %arg14[%c0_191, %c11] : memref<64x512xbf16, #tpu.memory_space<vmem>>, vector<64x128xbf16>
    %c192_192 = arith.constant 192 : index
    %c0_193 = arith.constant 0 : index
    %185 = vector.load %arg15[%c192_192, %c0_193] : memref<256x256xbf16, #tpu.memory_space<vmem>>, vector<64x128xbf16>
    tpu.vector_store %arg15[%c192_192, %c0_193], %184 {strides = array<i32>} : memref<256x256xbf16, #tpu.memory_space<vmem>>, vector<64x128xbf16>,
    %c0_194 = arith.constant 0 : index
    %c264_195 = arith.constant 264 : index
    %186 = vector.load %arg14[%c0_194, %c264_195] : memref<64x512xbf16, #tpu.memory_space<vmem>>, vector<64x128xbf16>
    %c0_196 = arith.constant 0 : index
    %c128_197 = arith.constant 128 : index
    %187 = vector.load %arg15[%c0_196, %c128_197] : memref<256x256xbf16, #tpu.memory_space<vmem>>, vector<64x128xbf16>
    tpu.vector_store %arg15[%c0_196, %c128_197], %186 {strides = array<i32>} : memref<256x256xbf16, #tpu.memory_space<vmem>>, vector<64x128xbf16>,
    %c0_198 = arith.constant 0 : index
    %c265 = arith.constant 265 : index
    %188 = vector.load %arg14[%c0_198, %c265] : memref<64x512xbf16, #tpu.memory_space<vmem>>, vector<64x128xbf16>
    %c64_199 = arith.constant 64 : index
    %c128_200 = arith.constant 128 : index
    %189 = vector.load %arg15[%c64_199, %c128_200] : memref<256x256xbf16, #tpu.memory_space<vmem>>, vector<64x128xbf16>
    tpu.vector_store %arg15[%c64_199, %c128_200], %188 {strides = array<i32>} : memref<256x256xbf16, #tpu.memory_space<vmem>>, vector<64x128xbf16>,
    %c0_201 = arith.constant 0 : index
    %c266 = arith.constant 266 : index
    %190 = vector.load %arg14[%c0_201, %c266] : memref<64x512xbf16, #tpu.memory_space<vmem>>, vector<64x128xbf16>
    %c128_202 = arith.constant 128 : index
    %c128_203 = arith.constant 128 : index
    %191 = vector.load %arg15[%c128_202, %c128_203] : memref<256x256xbf16, #tpu.memory_space<vmem>>, vector<64x128xbf16>
    tpu.vector_store %arg15[%c128_202, %c128_203], %190 {strides = array<i32>} : memref<256x256xbf16, #tpu.memory_space<vmem>>, vector<64x128xbf16>,
    %c0_204 = arith.constant 0 : index
    %c267 = arith.constant 267 : index
    %192 = vector.load %arg14[%c0_204, %c267] : memref<64x512xbf16, #tpu.memory_space<vmem>>, vector<64x128xbf16>
    %c192_205 = arith.constant 192 : index
    %c128_206 = arith.constant 128 : index
    %193 = vector.load %arg15[%c192_205, %c128_206] : memref<256x256xbf16, #tpu.memory_space<vmem>>, vector<64x128xbf16>
    tpu.vector_store %arg15[%c192_205, %c128_206], %192 {strides = array<i32>} : memref<256x256xbf16, #tpu.memory_space<vmem>>, vector<64x128xbf16>,
    %c0_207 = arith.constant 0 : index
    %c512 = arith.constant 512 : index
    %194 = vector.load %arg6[%c0_207, %c512] : memref<128x2112xbf16, #tpu.memory_space<vmem>>, vector<128x256xbf16>
    %c0_208 = arith.constant 0 : index
    %c0_209 = arith.constant 0 : index
    %195 = vector.load %arg15[%c0_208, %c0_209] : memref<256x256xbf16, #tpu.memory_space<vmem>>, vector<256x256xbf16>
    %cst_210 = arith.constant dense<0.000000e+00> : vector<128x256xf32>
    %196 = tpu.matmul %194, %195, %cst_210 {dimension_numbers = #tpu.dot_dimension_numbers<[1], [0], [0], [1], [0, 0, 1, 1], [], []>} : vector<128x256xbf16>, vector<256x256xbf16>, vector<128x256xf32> -> vector<128x256xf32>
    %197 = arith.addf %177, %196 : vector<128x256xf32>
    %c0_211 = arith.constant 0 : index
    %c12 = arith.constant 12 : index
    %198 = vector.load %arg14[%c0_211, %c12] : memref<64x512xbf16, #tpu.memory_space<vmem>>, vector<64x128xbf16>
    %c0_212 = arith.constant 0 : index
    %c0_213 = arith.constant 0 : index
    %199 = vector.load %arg16[%c0_212, %c0_213] : memref<256x256xbf16, #tpu.memory_space<vmem>>, vector<64x128xbf16>
    tpu.vector_store %arg16[%c0_212, %c0_213], %198 {strides = array<i32>} : memref<256x256xbf16, #tpu.memory_space<vmem>>, vector<64x128xbf16>,
    %c0_214 = arith.constant 0 : index
    %c13 = arith.constant 13 : index
    %200 = vector.load %arg14[%c0_214, %c13] : memref<64x512xbf16, #tpu.memory_space<vmem>>, vector<64x128xbf16>
    %c64_215 = arith.constant 64 : index
    %c0_216 = arith.constant 0 : index
    %201 = vector.load %arg16[%c64_215, %c0_216] : memref<256x256xbf16, #tpu.memory_space<vmem>>, vector<64x128xbf16>
    tpu.vector_store %arg16[%c64_215, %c0_216], %200 {strides = array<i32>} : memref<256x256xbf16, #tpu.memory_space<vmem>>, vector<64x128xbf16>,
    %c0_217 = arith.constant 0 : index
    %c14 = arith.constant 14 : index
    %202 = vector.load %arg14[%c0_217, %c14] : memref<64x512xbf16, #tpu.memory_space<vmem>>, vector<64x128xbf16>
    %c128_218 = arith.constant 128 : index
    %c0_219 = arith.constant 0 : index
    %203 = vector.load %arg16[%c128_218, %c0_219] : memref<256x256xbf16, #tpu.memory_space<vmem>>, vector<64x128xbf16>
    tpu.vector_store %arg16[%c128_218, %c0_219], %202 {strides = array<i32>} : memref<256x256xbf16, #tpu.memory_space<vmem>>, vector<64x128xbf16>,
    %c0_220 = arith.constant 0 : index
    %c15 = arith.constant 15 : index
    %204 = vector.load %arg14[%c0_220, %c15] : memref<64x512xbf16, #tpu.memory_space<vmem>>, vector<64x128xbf16>
    %c192_221 = arith.constant 192 : index
    %c0_222 = arith.constant 0 : index
    %205 = vector.load %arg16[%c192_221, %c0_222] : memref<256x256xbf16, #tpu.memory_space<vmem>>, vector<64x128xbf16>
    tpu.vector_store %arg16[%c192_221, %c0_222], %204 {strides = array<i32>} : memref<256x256xbf16, #tpu.memory_space<vmem>>, vector<64x128xbf16>,
    %c0_223 = arith.constant 0 : index
    %c268 = arith.constant 268 : index
    %206 = vector.load %arg14[%c0_223, %c268] : memref<64x512xbf16, #tpu.memory_space<vmem>>, vector<64x128xbf16>
    %c0_224 = arith.constant 0 : index
    %c128_225 = arith.constant 128 : index
    %207 = vector.load %arg16[%c0_224, %c128_225] : memref<256x256xbf16, #tpu.memory_space<vmem>>, vector<64x128xbf16>
    tpu.vector_store %arg16[%c0_224, %c128_225], %206 {strides = array<i32>} : memref<256x256xbf16, #tpu.memory_space<vmem>>, vector<64x128xbf16>,
    %c0_226 = arith.constant 0 : index
    %c269 = arith.constant 269 : index
    %208 = vector.load %arg14[%c0_226, %c269] : memref<64x512xbf16, #tpu.memory_space<vmem>>, vector<64x128xbf16>
    %c64_227 = arith.constant 64 : index
    %c128_228 = arith.constant 128 : index
    %209 = vector.load %arg16[%c64_227, %c128_228] : memref<256x256xbf16, #tpu.memory_space<vmem>>, vector<64x128xbf16>
    tpu.vector_store %arg16[%c64_227, %c128_228], %208 {strides = array<i32>} : memref<256x256xbf16, #tpu.memory_space<vmem>>, vector<64x128xbf16>,
    %c0_229 = arith.constant 0 : index
    %c270 = arith.constant 270 : index
    %210 = vector.load %arg14[%c0_229, %c270] : memref<64x512xbf16, #tpu.memory_space<vmem>>, vector<64x128xbf16>
    %c128_230 = arith.constant 128 : index
    %c128_231 = arith.constant 128 : index
    %211 = vector.load %arg16[%c128_230, %c128_231] : memref<256x256xbf16, #tpu.memory_space<vmem>>, vector<64x128xbf16>
    tpu.vector_store %arg16[%c128_230, %c128_231], %210 {strides = array<i32>} : memref<256x256xbf16, #tpu.memory_space<vmem>>, vector<64x128xbf16>,
    %c0_232 = arith.constant 0 : index
    %c271 = arith.constant 271 : index
    %212 = vector.load %arg14[%c0_232, %c271] : memref<64x512xbf16, #tpu.memory_space<vmem>>, vector<64x128xbf16>
    %c192_233 = arith.constant 192 : index
    %c128_234 = arith.constant 128 : index
    %213 = vector.load %arg16[%c192_233, %c128_234] : memref<256x256xbf16, #tpu.memory_space<vmem>>, vector<64x128xbf16>
    tpu.vector_store %arg16[%c192_233, %c128_234], %212 {strides = array<i32>} : memref<256x256xbf16, #tpu.memory_space<vmem>>, vector<64x128xbf16>,
    %c0_235 = arith.constant 0 : index
    %c768 = arith.constant 768 : index
    %214 = vector.load %arg6[%c0_235, %c768] : memref<128x2112xbf16, #tpu.memory_space<vmem>>, vector<128x256xbf16>
    %c0_236 = arith.constant 0 : index
    %c0_237 = arith.constant 0 : index
    %215 = vector.load %arg16[%c0_236, %c0_237] : memref<256x256xbf16, #tpu.memory_space<vmem>>, vector<256x256xbf16>
    %cst_238 = arith.constant dense<0.000000e+00> : vector<128x256xf32>
    %216 = tpu.matmul %214, %215, %cst_238 {dimension_numbers = #tpu.dot_dimension_numbers<[1], [0], [0], [1], [0, 0, 1, 1], [], []>} : vector<128x256xbf16>, vector<256x256xbf16>, vector<128x256xf32> -> vector<128x256xf32>
    %217 = arith.addf %197, %216 : vector<128x256xf32>
    %c0_239 = arith.constant 0 : index
    %c16_240 = arith.constant 16 : index
    %218 = vector.load %arg14[%c0_239, %c16_240] : memref<64x512xbf16, #tpu.memory_space<vmem>>, vector<64x128xbf16>
    %c0_241 = arith.constant 0 : index
    %c0_242 = arith.constant 0 : index
    %219 = vector.load %arg15[%c0_241, %c0_242] : memref<256x256xbf16, #tpu.memory_space<vmem>>, vector<64x128xbf16>
    tpu.vector_store %arg15[%c0_241, %c0_242], %218 {strides = array<i32>} : memref<256x256xbf16, #tpu.memory_space<vmem>>, vector<64x128xbf16>,
    %c0_243 = arith.constant 0 : index
    %c17 = arith.constant 17 : index
    %220 = vector.load %arg14[%c0_243, %c17] : memref<64x512xbf16, #tpu.memory_space<vmem>>, vector<64x128xbf16>
    %c64_244 = arith.constant 64 : index
    %c0_245 = arith.constant 0 : index
    %221 = vector.load %arg15[%c64_244, %c0_245] : memref<256x256xbf16, #tpu.memory_space<vmem>>, vector<64x128xbf16>
    tpu.vector_store %arg15[%c64_244, %c0_245], %220 {strides = array<i32>} : memref<256x256xbf16, #tpu.memory_space<vmem>>, vector<64x128xbf16>,
    %c0_246 = arith.constant 0 : index
    %c18 = arith.constant 18 : index
    %222 = vector.load %arg14[%c0_246, %c18] : memref<64x512xbf16, #tpu.memory_space<vmem>>, vector<64x128xbf16>
    %c128_247 = arith.constant 128 : index
    %c0_248 = arith.constant 0 : index
    %223 = vector.load %arg15[%c128_247, %c0_248] : memref<256x256xbf16, #tpu.memory_space<vmem>>, vector<64x128xbf16>
    tpu.vector_store %arg15[%c128_247, %c0_248], %222 {strides = array<i32>} : memref<256x256xbf16, #tpu.memory_space<vmem>>, vector<64x128xbf16>,
    %c0_249 = arith.constant 0 : index
    %c19 = arith.constant 19 : index
    %224 = vector.load %arg14[%c0_249, %c19] : memref<64x512xbf16, #tpu.memory_space<vmem>>, vector<64x128xbf16>
    %c192_250 = arith.constant 192 : index
    %c0_251 = arith.constant 0 : index
    %225 = vector.load %arg15[%c192_250, %c0_251] : memref<256x256xbf16, #tpu.memory_space<vmem>>, vector<64x128xbf16>
    tpu.vector_store %arg15[%c192_250, %c0_251], %224 {strides = array<i32>} : memref<256x256xbf16, #tpu.memory_space<vmem>>, vector<64x128xbf16>,
    %c0_252 = arith.constant 0 : index
    %c272_253 = arith.constant 272 : index
    %226 = vector.load %arg14[%c0_252, %c272_253] : memref<64x512xbf16, #tpu.memory_space<vmem>>, vector<64x128xbf16>
    %c0_254 = arith.constant 0 : index
    %c128_255 = arith.constant 128 : index
    %227 = vector.load %arg15[%c0_254, %c128_255] : memref<256x256xbf16, #tpu.memory_space<vmem>>, vector<64x128xbf16>
    tpu.vector_store %arg15[%c0_254, %c128_255], %226 {strides = array<i32>} : memref<256x256xbf16, #tpu.memory_space<vmem>>, vector<64x128xbf16>,
    %c0_256 = arith.constant 0 : index
    %c273 = arith.constant 273 : index
    %228 = vector.load %arg14[%c0_256, %c273] : memref<64x512xbf16, #tpu.memory_space<vmem>>, vector<64x128xbf16>
    %c64_257 = arith.constant 64 : index
    %c128_258 = arith.constant 128 : index
    %229 = vector.load %arg15[%c64_257, %c128_258] : memref<256x256xbf16, #tpu.memory_space<vmem>>, vector<64x128xbf16>
    tpu.vector_store %arg15[%c64_257, %c128_258], %228 {strides = array<i32>} : memref<256x256xbf16, #tpu.memory_space<vmem>>, vector<64x128xbf16>,
    %c0_259 = arith.constant 0 : index
    %c274 = arith.constant 274 : index
    %230 = vector.load %arg14[%c0_259, %c274] : memref<64x512xbf16, #tpu.memory_space<vmem>>, vector<64x128xbf16>
    %c128_260 = arith.constant 128 : index
    %c128_261 = arith.constant 128 : index
    %231 = vector.load %arg15[%c128_260, %c128_261] : memref<256x256xbf16, #tpu.memory_space<vmem>>, vector<64x128xbf16>
    tpu.vector_store %arg15[%c128_260, %c128_261], %230 {strides = array<i32>} : memref<256x256xbf16, #tpu.memory_space<vmem>>, vector<64x128xbf16>,
    %c0_262 = arith.constant 0 : index
    %c275 = arith.constant 275 : index
    %232 = vector.load %arg14[%c0_262, %c275] : memref<64x512xbf16, #tpu.memory_space<vmem>>, vector<64x128xbf16>
    %c192_263 = arith.constant 192 : index
    %c128_264 = arith.constant 128 : index
    %233 = vector.load %arg15[%c192_263, %c128_264] : memref<256x256xbf16, #tpu.memory_space<vmem>>, vector<64x128xbf16>
    tpu.vector_store %arg15[%c192_263, %c128_264], %232 {strides = array<i32>} : memref<256x256xbf16, #tpu.memory_space<vmem>>, vector<64x128xbf16>,
    %c0_265 = arith.constant 0 : index
    %c1024 = arith.constant 1024 : index
    %234 = vector.load %arg6[%c0_265, %c1024] : memref<128x2112xbf16, #tpu.memory_space<vmem>>, vector<128x256xbf16>
    %c0_266 = arith.constant 0 : index
    %c0_267 = arith.constant 0 : index
    %235 = vector.load %arg15[%c0_266, %c0_267] : memref<256x256xbf16, #tpu.memory_space<vmem>>, vector<256x256xbf16>
    %cst_268 = arith.constant dense<0.000000e+00> : vector<128x256xf32>
    %236 = tpu.matmul %234, %235, %cst_268 {dimension_numbers = #tpu.dot_dimension_numbers<[1], [0], [0], [1], [0, 0, 1, 1], [], []>} : vector<128x256xbf16>, vector<256x256xbf16>, vector<128x256xf32> -> vector<128x256xf32>
    %237 = arith.addf %217, %236 : vector<128x256xf32>
    %c0_269 = arith.constant 0 : index
    %c20 = arith.constant 20 : index
    %238 = vector.load %arg14[%c0_269, %c20] : memref<64x512xbf16, #tpu.memory_space<vmem>>, vector<64x128xbf16>
    %c0_270 = arith.constant 0 : index
    %c0_271 = arith.constant 0 : index
    %239 = vector.load %arg16[%c0_270, %c0_271] : memref<256x256xbf16, #tpu.memory_space<vmem>>, vector<64x128xbf16>
    tpu.vector_store %arg16[%c0_270, %c0_271], %238 {strides = array<i32>} : memref<256x256xbf16, #tpu.memory_space<vmem>>, vector<64x128xbf16>,
    %c0_272 = arith.constant 0 : index
    %c21 = arith.constant 21 : index
    %240 = vector.load %arg14[%c0_272, %c21] : memref<64x512xbf16, #tpu.memory_space<vmem>>, vector<64x128xbf16>
    %c64_273 = arith.constant 64 : index
    %c0_274 = arith.constant 0 : index
    %241 = vector.load %arg16[%c64_273, %c0_274] : memref<256x256xbf16, #tpu.memory_space<vmem>>, vector<64x128xbf16>
    tpu.vector_store %arg16[%c64_273, %c0_274], %240 {strides = array<i32>} : memref<256x256xbf16, #tpu.memory_space<vmem>>, vector<64x128xbf16>,
    %c0_275 = arith.constant 0 : index
    %c22 = arith.constant 22 : index
    %242 = vector.load %arg14[%c0_275, %c22] : memref<64x512xbf16, #tpu.memory_space<vmem>>, vector<64x128xbf16>
    %c128_276 = arith.constant 128 : index
    %c0_277 = arith.constant 0 : index
    %243 = vector.load %arg16[%c128_276, %c0_277] : memref<256x256xbf16, #tpu.memory_space<vmem>>, vector<64x128xbf16>
    tpu.vector_store %arg16[%c128_276, %c0_277], %242 {strides = array<i32>} : memref<256x256xbf16, #tpu.memory_space<vmem>>, vector<64x128xbf16>,
    %c0_278 = arith.constant 0 : index
    %c23 = arith.constant 23 : index
    %244 = vector.load %arg14[%c0_278, %c23] : memref<64x512xbf16, #tpu.memory_space<vmem>>, vector<64x128xbf16>
    %c192_279 = arith.constant 192 : index
    %c0_280 = arith.constant 0 : index
    %245 = vector.load %arg16[%c192_279, %c0_280] : memref<256x256xbf16, #tpu.memory_space<vmem>>, vector<64x128xbf16>
    tpu.vector_store %arg16[%c192_279, %c0_280], %244 {strides = array<i32>} : memref<256x256xbf16, #tpu.memory_space<vmem>>, vector<64x128xbf16>,
    %c0_281 = arith.constant 0 : index
    %c276 = arith.constant 276 : index
    %246 = vector.load %arg14[%c0_281, %c276] : memref<64x512xbf16, #tpu.memory_space<vmem>>, vector<64x128xbf16>
    %c0_282 = arith.constant 0 : index
    %c128_283 = arith.constant 128 : index
    %247 = vector.load %arg16[%c0_282, %c128_283] : memref<256x256xbf16, #tpu.memory_space<vmem>>, vector<64x128xbf16>
    tpu.vector_store %arg16[%c0_282, %c128_283], %246 {strides = array<i32>} : memref<256x256xbf16, #tpu.memory_space<vmem>>, vector<64x128xbf16>,
    %c0_284 = arith.constant 0 : index
    %c277 = arith.constant 277 : index
    %248 = vector.load %arg14[%c0_284, %c277] : memref<64x512xbf16, #tpu.memory_space<vmem>>, vector<64x128xbf16>
    %c64_285 = arith.constant 64 : index
    %c128_286 = arith.constant 128 : index
    %249 = vector.load %arg16[%c64_285, %c128_286] : memref<256x256xbf16, #tpu.memory_space<vmem>>, vector<64x128xbf16>
    tpu.vector_store %arg16[%c64_285, %c128_286], %248 {strides = array<i32>} : memref<256x256xbf16, #tpu.memory_space<vmem>>, vector<64x128xbf16>,
    %c0_287 = arith.constant 0 : index
    %c278 = arith.constant 278 : index
    %250 = vector.load %arg14[%c0_287, %c278] : memref<64x512xbf16, #tpu.memory_space<vmem>>, vector<64x128xbf16>
    %c128_288 = arith.constant 128 : index
    %c128_289 = arith.constant 128 : index
    %251 = vector.load %arg16[%c128_288, %c128_289] : memref<256x256xbf16, #tpu.memory_space<vmem>>, vector<64x128xbf16>
    tpu.vector_store %arg16[%c128_288, %c128_289], %250 {strides = array<i32>} : memref<256x256xbf16, #tpu.memory_space<vmem>>, vector<64x128xbf16>,
    %c0_290 = arith.constant 0 : index
    %c279 = arith.constant 279 : index
    %252 = vector.load %arg14[%c0_290, %c279] : memref<64x512xbf16, #tpu.memory_space<vmem>>, vector<64x128xbf16>
    %c192_291 = arith.constant 192 : index
    %c128_292 = arith.constant 128 : index
    %253 = vector.load %arg16[%c192_291, %c128_292] : memref<256x256xbf16, #tpu.memory_space<vmem>>, vector<64x128xbf16>
    tpu.vector_store %arg16[%c192_291, %c128_292], %252 {strides = array<i32>} : memref<256x256xbf16, #tpu.memory_space<vmem>>, vector<64x128xbf16>,
    %c0_293 = arith.constant 0 : index
    %c1280 = arith.constant 1280 : index
    %254 = vector.load %arg6[%c0_293, %c1280] : memref<128x2112xbf16, #tpu.memory_space<vmem>>, vector<128x256xbf16>
    %c0_294 = arith.constant 0 : index
    %c0_295 = arith.constant 0 : index
    %255 = vector.load %arg16[%c0_294, %c0_295] : memref<256x256xbf16, #tpu.memory_space<vmem>>, vector<256x256xbf16>
    %cst_296 = arith.constant dense<0.000000e+00> : vector<128x256xf32>
    %256 = tpu.matmul %254, %255, %cst_296 {dimension_numbers = #tpu.dot_dimension_numbers<[1], [0], [0], [1], [0, 0, 1, 1], [], []>} : vector<128x256xbf16>, vector<256x256xbf16>, vector<128x256xf32> -> vector<128x256xf32>
    %257 = arith.addf %237, %256 : vector<128x256xf32>
    %c0_297 = arith.constant 0 : index
    %c24 = arith.constant 24 : index
    %258 = vector.load %arg14[%c0_297, %c24] : memref<64x512xbf16, #tpu.memory_space<vmem>>, vector<64x128xbf16>
    %c0_298 = arith.constant 0 : index
    %c0_299 = arith.constant 0 : index
    %259 = vector.load %arg15[%c0_298, %c0_299] : memref<256x256xbf16, #tpu.memory_space<vmem>>, vector<64x128xbf16>
    tpu.vector_store %arg15[%c0_298, %c0_299], %258 {strides = array<i32>} : memref<256x256xbf16, #tpu.memory_space<vmem>>, vector<64x128xbf16>,
    %c0_300 = arith.constant 0 : index
    %c25 = arith.constant 25 : index
    %260 = vector.load %arg14[%c0_300, %c25] : memref<64x512xbf16, #tpu.memory_space<vmem>>, vector<64x128xbf16>
    %c64_301 = arith.constant 64 : index
    %c0_302 = arith.constant 0 : index
    %261 = vector.load %arg15[%c64_301, %c0_302] : memref<256x256xbf16, #tpu.memory_space<vmem>>, vector<64x128xbf16>
    tpu.vector_store %arg15[%c64_301, %c0_302], %260 {strides = array<i32>} : memref<256x256xbf16, #tpu.memory_space<vmem>>, vector<64x128xbf16>,
    %c0_303 = arith.constant 0 : index
    %c26 = arith.constant 26 : index
    %262 = vector.load %arg14[%c0_303, %c26] : memref<64x512xbf16, #tpu.memory_space<vmem>>, vector<64x128xbf16>
    %c128_304 = arith.constant 128 : index
    %c0_305 = arith.constant 0 : index
    %263 = vector.load %arg15[%c128_304, %c0_305] : memref<256x256xbf16, #tpu.memory_space<vmem>>, vector<64x128xbf16>
    tpu.vector_store %arg15[%c128_304, %c0_305], %262 {strides = array<i32>} : memref<256x256xbf16, #tpu.memory_space<vmem>>, vector<64x128xbf16>,
    %c0_306 = arith.constant 0 : index
    %c27 = arith.constant 27 : index
    %264 = vector.load %arg14[%c0_306, %c27] : memref<64x512xbf16, #tpu.memory_space<vmem>>, vector<64x128xbf16>
    %c192_307 = arith.constant 192 : index
    %c0_308 = arith.constant 0 : index
    %265 = vector.load %arg15[%c192_307, %c0_308] : memref<256x256xbf16, #tpu.memory_space<vmem>>, vector<64x128xbf16>
    tpu.vector_store %arg15[%c192_307, %c0_308], %264 {strides = array<i32>} : memref<256x256xbf16, #tpu.memory_space<vmem>>, vector<64x128xbf16>,
    %c0_309 = arith.constant 0 : index
    %c280 = arith.constant 280 : index
    %266 = vector.load %arg14[%c0_309, %c280] : memref<64x512xbf16, #tpu.memory_space<vmem>>, vector<64x128xbf16>
    %c0_310 = arith.constant 0 : index
    %c128_311 = arith.constant 128 : index
    %267 = vector.load %arg15[%c0_310, %c128_311] : memref<256x256xbf16, #tpu.memory_space<vmem>>, vector<64x128xbf16>
    tpu.vector_store %arg15[%c0_310, %c128_311], %266 {strides = array<i32>} : memref<256x256xbf16, #tpu.memory_space<vmem>>, vector<64x128xbf16>,
    %c0_312 = arith.constant 0 : index
    %c281 = arith.constant 281 : index
    %268 = vector.load %arg14[%c0_312, %c281] : memref<64x512xbf16, #tpu.memory_space<vmem>>, vector<64x128xbf16>
    %c64_313 = arith.constant 64 : index
    %c128_314 = arith.constant 128 : index
    %269 = vector.load %arg15[%c64_313, %c128_314] : memref<256x256xbf16, #tpu.memory_space<vmem>>, vector<64x128xbf16>
    tpu.vector_store %arg15[%c64_313, %c128_314], %268 {strides = array<i32>} : memref<256x256xbf16, #tpu.memory_space<vmem>>, vector<64x128xbf16>,
    %c0_315 = arith.constant 0 : index
    %c282 = arith.constant 282 : index
    %270 = vector.load %arg14[%c0_315, %c282] : memref<64x512xbf16, #tpu.memory_space<vmem>>, vector<64x128xbf16>
    %c128_316 = arith.constant 128 : index
    %c128_317 = arith.constant 128 : index
    %271 = vector.load %arg15[%c128_316, %c128_317] : memref<256x256xbf16, #tpu.memory_space<vmem>>, vector<64x128xbf16>
    tpu.vector_store %arg15[%c128_316, %c128_317], %270 {strides = array<i32>} : memref<256x256xbf16, #tpu.memory_space<vmem>>, vector<64x128xbf16>,
    %c0_318 = arith.constant 0 : index
    %c283 = arith.constant 283 : index
    %272 = vector.load %arg14[%c0_318, %c283] : memref<64x512xbf16, #tpu.memory_space<vmem>>, vector<64x128xbf16>
    %c192_319 = arith.constant 192 : index
    %c128_320 = arith.constant 128 : index
    %273 = vector.load %arg15[%c192_319, %c128_320] : memref<256x256xbf16, #tpu.memory_space<vmem>>, vector<64x128xbf16>
    tpu.vector_store %arg15[%c192_319, %c128_320], %272 {strides = array<i32>} : memref<256x256xbf16, #tpu.memory_space<vmem>>, vector<64x128xbf16>,
    %c0_321 = arith.constant 0 : index
    %c1536 = arith.constant 1536 : index
    %274 = vector.load %arg6[%c0_321, %c1536] : memref<128x2112xbf16, #tpu.memory_space<vmem>>, vector<128x256xbf16>
    %c0_322 = arith.constant 0 : index
    %c0_323 = arith.constant 0 : index
    %275 = vector.load %arg15[%c0_322, %c0_323] : memref<256x256xbf16, #tpu.memory_space<vmem>>, vector<256x256xbf16>
    %cst_324 = arith.constant dense<0.000000e+00> : vector<128x256xf32>
    %276 = tpu.matmul %274, %275, %cst_324 {dimension_numbers = #tpu.dot_dimension_numbers<[1], [0], [0], [1], [0, 0, 1, 1], [], []>} : vector<128x256xbf16>, vector<256x256xbf16>, vector<128x256xf32> -> vector<128x256xf32>
    %277 = arith.addf %257, %276 : vector<128x256xf32>
    %c0_325 = arith.constant 0 : index
    %c28 = arith.constant 28 : index
    %278 = vector.load %arg14[%c0_325, %c28] : memref<64x512xbf16, #tpu.memory_space<vmem>>, vector<64x128xbf16>
    %c0_326 = arith.constant 0 : index
    %c0_327 = arith.constant 0 : index
    %279 = vector.load %arg16[%c0_326, %c0_327] : memref<256x256xbf16, #tpu.memory_space<vmem>>, vector<64x128xbf16>
    tpu.vector_store %arg16[%c0_326, %c0_327], %278 {strides = array<i32>} : memref<256x256xbf16, #tpu.memory_space<vmem>>, vector<64x128xbf16>,
    %c0_328 = arith.constant 0 : index
    %c29 = arith.constant 29 : index
    %280 = vector.load %arg14[%c0_328, %c29] : memref<64x512xbf16, #tpu.memory_space<vmem>>, vector<64x128xbf16>
    %c64_329 = arith.constant 64 : index
    %c0_330 = arith.constant 0 : index
    %281 = vector.load %arg16[%c64_329, %c0_330] : memref<256x256xbf16, #tpu.memory_space<vmem>>, vector<64x128xbf16>
    tpu.vector_store %arg16[%c64_329, %c0_330], %280 {strides = array<i32>} : memref<256x256xbf16, #tpu.memory_space<vmem>>, vector<64x128xbf16>,
    %c0_331 = arith.constant 0 : index
    %c30 = arith.constant 30 : index
    %282 = vector.load %arg14[%c0_331, %c30] : memref<64x512xbf16, #tpu.memory_space<vmem>>, vector<64x128xbf16>
    %c128_332 = arith.constant 128 : index
    %c0_333 = arith.constant 0 : index
    %283 = vector.load %arg16[%c128_332, %c0_333] : memref<256x256xbf16, #tpu.memory_space<vmem>>, vector<64x128xbf16>
    tpu.vector_store %arg16[%c128_332, %c0_333], %282 {strides = array<i32>} : memref<256x256xbf16, #tpu.memory_space<vmem>>, vector<64x128xbf16>,
    %c0_334 = arith.constant 0 : index
    %c31 = arith.constant 31 : index
    %284 = vector.load %arg14[%c0_334, %c31] : memref<64x512xbf16, #tpu.memory_space<vmem>>, vector<64x128xbf16>
    %c192_335 = arith.constant 192 : index
    %c0_336 = arith.constant 0 : index
    %285 = vector.load %arg16[%c192_335, %c0_336] : memref<256x256xbf16, #tpu.memory_space<vmem>>, vector<64x128xbf16>
    tpu.vector_store %arg16[%c192_335, %c0_336], %284 {strides = array<i32>} : memref<256x256xbf16, #tpu.memory_space<vmem>>, vector<64x128xbf16>,
    %c0_337 = arith.constant 0 : index
    %c284 = arith.constant 284 : index
    %286 = vector.load %arg14[%c0_337, %c284] : memref<64x512xbf16, #tpu.memory_space<vmem>>, vector<64x128xbf16>
    %c0_338 = arith.constant 0 : index
    %c128_339 = arith.constant 128 : index
    %287 = vector.load %arg16[%c0_338, %c128_339] : memref<256x256xbf16, #tpu.memory_space<vmem>>, vector<64x128xbf16>
    tpu.vector_store %arg16[%c0_338, %c128_339], %286 {strides = array<i32>} : memref<256x256xbf16, #tpu.memory_space<vmem>>, vector<64x128xbf16>,
    %c0_340 = arith.constant 0 : index
    %c285 = arith.constant 285 : index
    %288 = vector.load %arg14[%c0_340, %c285] : memref<64x512xbf16, #tpu.memory_space<vmem>>, vector<64x128xbf16>
    %c64_341 = arith.constant 64 : index
    %c128_342 = arith.constant 128 : index
    %289 = vector.load %arg16[%c64_341, %c128_342] : memref<256x256xbf16, #tpu.memory_space<vmem>>, vector<64x128xbf16>
    tpu.vector_store %arg16[%c64_341, %c128_342], %288 {strides = array<i32>} : memref<256x256xbf16, #tpu.memory_space<vmem>>, vector<64x128xbf16>,
    %c0_343 = arith.constant 0 : index
    %c286 = arith.constant 286 : index
    %290 = vector.load %arg14[%c0_343, %c286] : memref<64x512xbf16, #tpu.memory_space<vmem>>, vector<64x128xbf16>
    %c128_344 = arith.constant 128 : index
    %c128_345 = arith.constant 128 : index
    %291 = vector.load %arg16[%c128_344, %c128_345] : memref<256x256xbf16, #tpu.memory_space<vmem>>, vector<64x128xbf16>
    tpu.vector_store %arg16[%c128_344, %c128_345], %290 {strides = array<i32>} : memref<256x256xbf16, #tpu.memory_space<vmem>>, vector<64x128xbf16>,
    %c0_346 = arith.constant 0 : index
    %c287 = arith.constant 287 : index
    %292 = vector.load %arg14[%c0_346, %c287] : memref<64x512xbf16, #tpu.memory_space<vmem>>, vector<64x128xbf16>
    %c192_347 = arith.constant 192 : index
    %c128_348 = arith.constant 128 : index
    %293 = vector.load %arg16[%c192_347, %c128_348] : memref<256x256xbf16, #tpu.memory_space<vmem>>, vector<64x128xbf16>
    tpu.vector_store %arg16[%c192_347, %c128_348], %292 {strides = array<i32>} : memref<256x256xbf16, #tpu.memory_space<vmem>>, vector<64x128xbf16>,
    %c0_349 = arith.constant 0 : index
    %c1792 = arith.constant 1792 : index
    %294 = vector.load %arg6[%c0_349, %c1792] : memref<128x2112xbf16, #tpu.memory_space<vmem>>, vector<128x256xbf16>
    %c0_350 = arith.constant 0 : index
    %c0_351 = arith.constant 0 : index
    %295 = vector.load %arg16[%c0_350, %c0_351] : memref<256x256xbf16, #tpu.memory_space<vmem>>, vector<256x256xbf16>
    %cst_352 = arith.constant dense<0.000000e+00> : vector<128x256xf32>
    %296 = tpu.matmul %294, %295, %cst_352 {dimension_numbers = #tpu.dot_dimension_numbers<[1], [0], [0], [1], [0, 0, 1, 1], [], []>} : vector<128x256xbf16>, vector<256x256xbf16>, vector<128x256xf32> -> vector<128x256xf32>
    %297 = arith.addf %277, %296 : vector<128x256xf32>
    %c0_353 = arith.constant 0 : index
    %c32_354 = arith.constant 32 : index
    %298 = vector.load %arg14[%c0_353, %c32_354] : memref<64x512xbf16, #tpu.memory_space<vmem>>, vector<64x128xbf16>
    %c0_355 = arith.constant 0 : index
    %c0_356 = arith.constant 0 : index
    %299 = vector.load %arg15[%c0_355, %c0_356] : memref<256x256xbf16, #tpu.memory_space<vmem>>, vector<64x128xbf16>
    tpu.vector_store %arg15[%c0_355, %c0_356], %298 {strides = array<i32>} : memref<256x256xbf16, #tpu.memory_space<vmem>>, vector<64x128xbf16>,
    %c0_357 = arith.constant 0 : index
    %c288 = arith.constant 288 : index
    %300 = vector.load %arg14[%c0_357, %c288] : memref<64x512xbf16, #tpu.memory_space<vmem>>, vector<64x128xbf16>
    %c0_358 = arith.constant 0 : index
    %c128_359 = arith.constant 128 : index
    %301 = vector.load %arg15[%c0_358, %c128_359] : memref<256x256xbf16, #tpu.memory_space<vmem>>, vector<64x128xbf16>
    tpu.vector_store %arg15[%c0_358, %c128_359], %300 {strides = array<i32>} : memref<256x256xbf16, #tpu.memory_space<vmem>>, vector<64x128xbf16>,
    %c0_360 = arith.constant 0 : index
    %c2048 = arith.constant 2048 : index
    %302 = vector.load %arg6[%c0_360, %c2048] : memref<128x2112xbf16, #tpu.memory_space<vmem>>, vector<128x64xbf16>
    %c0_361 = arith.constant 0 : index
    %c0_362 = arith.constant 0 : index
    %303 = vector.load %arg15[%c0_361, %c0_362] : memref<256x256xbf16, #tpu.memory_space<vmem>>, vector<64x256xbf16>
    %cst_363 = arith.constant dense<0.000000e+00> : vector<128x256xf32>
    %304 = tpu.matmul %302, %303, %cst_363 {dimension_numbers = #tpu.dot_dimension_numbers<[1], [0], [0], [1], [0, 0, 1, 1], [], []>} : vector<128x64xbf16>, vector<64x256xbf16>, vector<128x256xf32> -> vector<128x256xf32>
    %305 = arith.addf %297, %304 : vector<128x256xf32>
    %c0_364 = arith.constant 0 : index
    %c0_365 = arith.constant 0 : index
    %306 = vector.load %arg7[%c0_364, %c0_365] : memref<128x1xf32, #tpu.memory_space<vmem>>, vector<128x1xf32>
    %307 = vector.broadcast %306 : vector<128x1xf32> to vector<128x256xf32>
    %308 = arith.addf %305, %307 : vector<128x256xf32>
    %cst_366 = arith.constant 0.000000e+00 : f32
    %309 = vector.broadcast %cst_366 : f32 to vector<128x256xf32>
    %310 = arith.maximumf %308, %309 : vector<128x256xf32>
    %311 = arith.truncf %310 : vector<128x256xf32> to vector<128x256xbf16>
    %312 = vector.extract_strided_slice %311 {offsets = [0, 0], sizes = [128, 128], strides = [1, 1]} : vector<128x256xbf16> to vector<128x128xbf16>
    %c0_367 = arith.constant 0 : index
    %c0_368 = arith.constant 0 : index
    %313 = vector.load %arg17[%c0_367, %c0_368] : memref<256x128xbf16, #tpu.memory_space<vmem>>, vector<128x128xbf16>
    tpu.vector_store %arg17[%c0_367, %c0_368], %312 {strides = array<i32>} : memref<256x128xbf16, #tpu.memory_space<vmem>>, vector<128x128xbf16>,
    %314 = vector.extract_strided_slice %311 {offsets = [0, 128], sizes = [128, 128], strides = [1, 1]} : vector<128x256xbf16> to vector<128x128xbf16>
    %c128_369 = arith.constant 128 : index
    %c0_370 = arith.constant 0 : index
    %315 = vector.load %arg17[%c128_369, %c0_370] : memref<256x128xbf16, #tpu.memory_space<vmem>>, vector<128x128xbf16>
    tpu.vector_store %arg17[%c128_369, %c0_370], %314 {strides = array<i32>} : memref<256x128xbf16, #tpu.memory_space<vmem>>, vector<128x128xbf16>,
    %c0_371 = arith.constant 0 : index
    %c0_372 = arith.constant 0 : index
    %316 = vector.load %arg17[%c0_371, %c0_372] : memref<256x128xbf16, #tpu.memory_space<vmem>>, vector<256x128xbf16>
    %c0_373 = arith.constant 0 : index
    %c0_374 = arith.constant 0 : index
    %317 = vector.load %arg8[%c0_373, %c0_374] : memref<128x128xbf16, #tpu.memory_space<vmem>>, vector<128x128xbf16>
    %cst_375 = arith.constant dense<0.000000e+00> : vector<256x128xf32>
    %318 = tpu.matmul %316, %317, %cst_375 {dimension_numbers = #tpu.dot_dimension_numbers<[1], [0], [0], [1], [0, 0, 1, 1], [], []>} : vector<256x128xbf16>, vector<128x128xbf16>, vector<256x128xf32> -> vector<256x128xf32>
    %c0_376 = arith.constant 0 : index
    %c0_377 = arith.constant 0 : index
    %319 = vector.load %arg9[%c0_376, %c0_377] : memref<1x128xf32, #tpu.memory_space<vmem>>, vector<1x128xf32>
    %320 = vector.broadcast %319 : vector<1x128xf32> to vector<256x128xf32>
    %321 = arith.addf %318, %320 : vector<256x128xf32>
    %c0_378 = arith.constant 0 : index
    %c0_379 = arith.constant 0 : index
    %322 = vector.load %arg10[%c0_378, %c0_379] : memref<256x128xf32, #tpu.memory_space<vmem>>, vector<256x128xf32>
    tpu.vector_store %arg10[%c0_378, %c0_379], %321 {strides = array<i32>} : memref<256x128xf32, #tpu.memory_space<vmem>>, vector<256x128xf32>,
    return
  }
  func.func @transform_0(%arg0: i32) -> (i32, i32, i32) {
    %c0_i32 = arith.constant 0 : i32
    %c0_i32_0 = arith.constant 0 : i32
    %c0_i32_1 = arith.constant 0 : i32
    return %arg0, %c0_i32, %c0_i32_0 : i32, i32, i32
  }
  func.func @transform_1(%arg0: i32) -> (i32, i32) {
    %c0_i32 = arith.constant 0 : i32
    %c0_i32_0 = arith.constant 0 : i32
    %c0_i32_1 = arith.constant 0 : i32
    return %c0_i32, %c0_i32_0 : i32, i32
  }
  func.func @transform_2(%arg0: i32) -> (i32, i32) {
    %c0_i32 = arith.constant 0 : i32
    %c0_i32_0 = arith.constant 0 : i32
    %c0_i32_1 = arith.constant 0 : i32
    return %c0_i32, %c0_i32_0 : i32, i32
  }
  func.func @transform_3(%arg0: i32) -> (i32, i32) {
    %c0_i32 = arith.constant 0 : i32
    %c0_i32_0 = arith.constant 0 : i32
    %c0_i32_1 = arith.constant 0 : i32
    return %c0_i32, %c0_i32_0 : i32, i32
  }
  func.func @transform_4(%arg0: i32) -> (i32, i32) {
    %c0_i32 = arith.constant 0 : i32
    %c0_i32_0 = arith.constant 0 : i32
    %c0_i32_1 = arith.constant 0 : i32
    return %c0_i32, %c0_i32_0 : i32, i32
  }
  func.func @transform_5(%arg0: i32) -> (i32, i32) {
    %c0_i32 = arith.constant 0 : i32
    %c0_i32_0 = arith.constant 0 : i32
    %c0_i32_1 = arith.constant 0 : i32
    return %c0_i32, %c0_i32_0 : i32, i32
  }
  func.func @transform_6(%arg0: i32) -> (i32, i32) {
    %c0_i32 = arith.constant 0 : i32
    %c0_i32_0 = arith.constant 0 : i32
    %c0_i32_1 = arith.constant 0 : i32
    return %c0_i32, %c0_i32_0 : i32, i32
  }
  func.func @transform_7(%arg0: i32) -> (i32, i32) {
    %c0_i32 = arith.constant 0 : i32
    %c0_i32_0 = arith.constant 0 : i32
    %c0_i32_1 = arith.constant 0 : i32
    return %c0_i32, %c0_i32_0 : i32, i32
  }
  func.func @transform_8(%arg0: i32) -> (i32, i32) {
    %c0_i32 = arith.constant 0 : i32
    %c0_i32_0 = arith.constant 0 : i32
    %c0_i32_1 = arith.constant 0 : i32
    return %c0_i32, %c0_i32_0 : i32, i32
  }
  func.func @transform_9(%arg0: i32) -> (i32, i32) {
    %c0_i32 = arith.constant 0 : i32
    %c0_i32_0 = arith.constant 0 : i32
    return %arg0, %c0_i32 : i32, i32
  }
}

</mosaic_0001>

<llo_original>
// kernel: tpu_custom_call.1
$region0: #{tpu_custom_call.1}
  #allocation0 [shape = 'u32[]', space=smem, size = 0x4, offset = 0x4, fixed_abs, tag = 'smem constant byte address 0x4 - core index']
  #allocation1 [shape = 'u32[144,128]{1,0:T(1,128)}', space=vmem, size = 0x12000, scoped, tag = 'internal scratch']
  #allocation2 [shape = 'f32[1,512]{1,0:T(1,128)}', space=vmem, size = 0x800, scoped, tag = 'scratch operand']
  #allocation3 [shape = 'bf16[16,512]{1,0:T(16,128)(2,1)}', space=vmem, size = 0x4000, scoped, tag = 'scratch operand']
  #allocation4 [shape = 'bf16[144,256]{1,0:T(16,128)(2,1)}', space=vmem, size = 0x12000, scoped, tag = 'scratch operand']
  #allocation5 [shape = 'bf16[64,512]{1,0:T(16,128)(2,1)}', space=vmem, size = 0x10000, scoped, tag = 'scratch operand']
  #allocation6 [shape = 'bf16[256,256]{1,0:T(16,128)(2,1)}', space=vmem, size = 0x20000, scoped, tag = 'scratch operand']
  #allocation7 [shape = 'bf16[256,256]{1,0:T(16,128)(2,1)}', space=vmem, size = 0x20000, scoped, tag = 'scratch operand']
  #allocation8 [shape = 'bf16[256,128]{1,0:T(16,128)(2,1)}', space=vmem, size = 0x10000, scoped, tag = 'scratch operand']
  %s0 = inlined_call_operand.vmem [shape: f32[2,1,128], index: 0, kind: input, shape index: {}]
  %s1 = inlined_call_operand.vmem [shape: f32[16,5], index: 1, kind: input, shape index: {}]
  %s2 = inlined_call_operand.vmem [shape: f32[16,1], index: 2, kind: input, shape index: {}]
  %s3 = inlined_call_operand.vmem [shape: bf16[64,144], index: 3, kind: input, shape index: {}]
  %s4 = inlined_call_operand.vmem [shape: f32[64,1], index: 4, kind: input, shape index: {}]
  %s5 = inlined_call_operand.vmem [shape: bf16[128,2112], index: 5, kind: input, shape index: {}]
  %s6 = inlined_call_operand.vmem [shape: f32[128,1], index: 6, kind: input, shape index: {}]
  %s7 = inlined_call_operand.vmem [shape: bf16[128,128], index: 7, kind: input, shape index: {}]
  %s8 = inlined_call_operand.vmem [shape: f32[1,128], index: 8, kind: input, shape index: {}]
  %s9 = inlined_call_operand.hbm [shape: f32[256,128], index: 9, kind: output, shape index: {}]
  %s10 = sld [smem:[#allocation0]]
  $region46: #{tpu_custom_call.1} parent=0
    _
  %s12 = ssub.s32 1, %s10
  %s13 = scalar_select 0, %s12, %s10
  $region1: #{tpu_custom_call.1} parent=0
    #allocation9 [shape = 'u8[131072]{0}', space=vmem, size = 0x20000, scoped, tag = 'output window, operand 0, single buffered']
    #allocation10 [shape = 's32[1]{0}', space=sflag, size = 0x4, scoped, tag = 'scoped memory for tpu_custom_call.1']
    %14 = vsyncpa [#allocation10], 0
    // Predicated region
    $region2: #{tpu_custom_call.1} parent=1 // pred_check
      _
    $region3: #{tpu_custom_call.1} parent=1 // pred_check_branch
      %16 = sbr.rel (0) target = $region5
    $region4: #{tpu_custom_call.1} parent=1 // pred_region
      _
    $region5: #{tpu_custom_call.1} parent=1 // pred_fallthru
      _
    // Predicated region
    $region6: #{tpu_custom_call.1} parent=1 // pred_check
      _
    $region7: #{tpu_custom_call.1} parent=1 // pred_check_branch
      %18 = sbr.rel (0) target = $region9
    $region8: #{tpu_custom_call.1} parent=1 // pred_region
      _
    $region9: #{tpu_custom_call.1} parent=1 // pred_fallthru
      _
    // Predicated region
    $region10: #{tpu_custom_call.1} parent=1 // pred_check
      _
    $region11: #{tpu_custom_call.1} parent=1 // pred_check_branch
      %20 = sbr.rel (0) target = $region13
    $region12: #{tpu_custom_call.1} parent=1 // pred_region
      _
    $region13: #{tpu_custom_call.1} parent=1 // pred_fallthru
      _
    // Predicated region
    $region14: #{tpu_custom_call.1} parent=1 // pred_check
      _
    $region15: #{tpu_custom_call.1} parent=1 // pred_check_branch
      %22 = sbr.rel (0) target = $region17
    $region16: #{tpu_custom_call.1} parent=1 // pred_region
      _
    $region17: #{tpu_custom_call.1} parent=1 // pred_fallthru
      _
    // Predicated region
    $region18: #{tpu_custom_call.1} parent=1 // pred_check
      _
    $region19: #{tpu_custom_call.1} parent=1 // pred_check_branch
      %24 = sbr.rel (0) target = $region21
    $region20: #{tpu_custom_call.1} parent=1 // pred_region
      _
    $region21: #{tpu_custom_call.1} parent=1 // pred_fallthru
      _
    // Predicated region
    $region22: #{tpu_custom_call.1} parent=1 // pred_check
      _
    $region23: #{tpu_custom_call.1} parent=1 // pred_check_branch
      %26 = sbr.rel (0) target = $region25
    $region24: #{tpu_custom_call.1} parent=1 // pred_region
      _
    $region25: #{tpu_custom_call.1} parent=1 // pred_fallthru
      _
    // Predicated region
    $region26: #{tpu_custom_call.1} parent=1 // pred_check
      _
    $region27: #{tpu_custom_call.1} parent=1 // pred_check_branch
      %28 = sbr.rel (0) target = $region29
    $region28: #{tpu_custom_call.1} parent=1 // pred_region
      _
    $region29: #{tpu_custom_call.1} parent=1 // pred_fallthru
      _
    // Predicated region
    $region30: #{tpu_custom_call.1} parent=1 // pred_check
      _
    $region31: #{tpu_custom_call.1} parent=1 // pred_check_branch
      %30 = sbr.rel (0) target = $region33
    $region32: #{tpu_custom_call.1} parent=1 // pred_region
      _
    $region33: #{tpu_custom_call.1} parent=1 // pred_fallthru
      _
    // Predicated region
    $region34: #{tpu_custom_call.1} parent=1 // pred_check
      _
    $region35: #{tpu_custom_call.1} parent=1 // pred_check_branch
      %32 = sbr.rel (0) target = $region37
    $region36: #{tpu_custom_call.1} parent=1 // pred_region
      _
    $region37: #{tpu_custom_call.1} parent=1 // pred_fallthru
      _
    %v34 = vlaneseq
    %vm35 = vcmp.ge.s32.totalorder %v34, 0
    %vm36 = vcmp.lt.s32.totalorder %v34, 512
    %vm37 = vmand %vm35, %vm36
    %38 = vst.msk [vmem:[#allocation2] sm:$0xf] %vm37, 0.0
    %39 = vst [vmem:[#allocation3] sm:$0xff] 0
    %40 = vst [vmem:[#allocation3 + $0x8] sm:$0xff] 0
    %41 = vst [vmem:[#allocation3 + $0x10] sm:$0xff] 0
    %42 = vst [vmem:[#allocation3 + $0x18] sm:$0xff] 0
    %43 = vst [vmem:[#allocation5] sm:$0xff] 0
    %44 = vst [vmem:[#allocation5 + $0x8] sm:$0xff] 0
    %45 = vst [vmem:[#allocation5 + $0x10] sm:$0xff] 0
    %46 = vst [vmem:[#allocation5 + $0x18] sm:$0xff] 0
    %47 = vst [vmem:[#allocation5 + $0x20] sm:$0xff] 0
    %48 = vst [vmem:[#allocation5 + $0x28] sm:$0xff] 0
    %49 = vst [vmem:[#allocation5 + $0x30] sm:$0xff] 0
    %50 = vst [vmem:[#allocation5 + $0x38] sm:$0xff] 0
    %51 = vst [vmem:[#allocation5 + $0x40] sm:$0xff] 0
    %52 = vst [vmem:[#allocation5 + $0x48] sm:$0xff] 0
    %53 = vst [vmem:[#allocation5 + $0x50] sm:$0xff] 0
    %54 = vst [vmem:[#allocation5 + $0x58] sm:$0xff] 0
    %55 = vst [vmem:[#allocation5 + $0x60] sm:$0xff] 0
    %56 = vst [vmem:[#allocation5 + $0x68] sm:$0xff] 0
    %57 = vst [vmem:[#allocation5 + $0x70] sm:$0xff] 0
    %58 = vst [vmem:[#allocation5 + $0x78] sm:$0xff] 0
    %v59 = vld [vmem:[%s0] sm:$0x1]
    %61 = vrot.lane.b32.xlu0 %v59, 2
    %v62 = vpop.permute.xlu0 %61
    %v63 = vrot.slane %v62, 7
    %vm64 = vcmask 15360
    %v65 = vsel %vm64, %v63, %v62
    %vm67 = vcmp.ge.s32.totalorder %v34, 2
    %vm68 = vcmp.lt.s32.totalorder %v34, 130
    %vm69 = vmand %vm67, %vm68
    %70 = vst.msk [vmem:[#allocation2] sm:$0x3] %vm69, %v65
    %s71 = scalar_lea.vmem %s0, 1
    %v72 = vld [vmem:[%s71] sm:$0x1]
    %74 = vrot.lane.b32.xlu0 %v72, 2
    %v75 = vpop.permute.xlu0 %74
    %v76 = vrot.slane %v75, 7
    %v77 = vsel %vm64, %v76, %v75
    %79 = vst.msk [vmem:[#allocation2 + $0x2] sm:$0x3] %vm69, %v77
    %v80 = vld [vmem:[%s1] sm:$0xff]
    %v81 = vld [vmem:[%s1 + $0x8] sm:$0xff]
    %v82 = vld [vmem:[%s2] sm:$0xff]
    %v83 = vld [vmem:[%s2 + $0x8] sm:$0xff]
    %v84 = vld [vmem:[#allocation2] sm:$0x1]
    %86 = vset.pattern.permute.xlu0 0
    %87 = vperm.xlu0 %86, %v80
    %v88 = vpop.permute.xlu0 %87
    %91 = vset.pattern.permute.xlu0 0
    %92 = vperm.xlu0 %91, %v81
    %v93 = vpop.permute.xlu0 %92
    %v96 = vlaneseq
    %v97 = vshrl.u32 %v96, 7
    %v98 = vsub.s32 0, %v97
    %v99 = vrot.slane %v84, %v98
    %v101 = vmul.f32 %v88, %v99
    %v102 = vmul.f32 %v93, %v99
    %v103 = vadd.f32 %v101, 0.0
    %v104 = vadd.f32 %v102, 0.0
    %v105 = vld [vmem:[#allocation2] sm:$0x3]
    %106 = vset.pattern.permute.xlu0 1
    %107 = vperm.xlu0 %106, %v80
    %v108 = vpop.permute.xlu0 %107
    %110 = vset.pattern.permute.xlu0 1
    %111 = vperm.xlu0 %110, %v81
    %v112 = vpop.permute.xlu0 %111
    %v115 = vlaneseq
    %v116 = vshrl.u32 %v115, 7
    %v117 = vsub.s32 0, %v116
    %v118 = vrot.slane %v105, %v117
    %v119 = vlaneseq
    %v120 = vshrl.u32 %v119, 7
    %v121 = vsub.s32 1, %v120
    %v122 = vrot.slane %v105, %v121
    %v125 = vmul.f32 %v108, %v118
    %v126 = vmul.f32 %v108, %v122
    %v127 = vmul.f32 %v112, %v118
    %v128 = vmul.f32 %v112, %v122
    %133 = vrot.lane.b32.xlu0 %v125, 127
    %v134 = vpop.permute.xlu0 %133
    %135 = vrot.lane.b32.xlu0 %v126, 127
    %v136 = vpop.permute.xlu0 %135
    %137 = vrot.lane.b32.xlu0 %v127, 127
    %v138 = vpop.permute.xlu0 %137
    %139 = vrot.lane.b32.xlu0 %v128, 127
    %v140 = vpop.permute.xlu0 %139
    %vm141 = vcmask 1039360
    %v142 = vsel %vm141, %v134, %v136
    %v143 = vsel %vm141, %v138, %v140
    %v146 = vadd.f32 %v103, %v142
    %v147 = vadd.f32 %v104, %v143
    %148 = vset.pattern.permute.xlu0 2
    %149 = vperm.xlu0 %148, %v80
    %v150 = vpop.permute.xlu0 %149
    %152 = vset.pattern.permute.xlu0 2
    %153 = vperm.xlu0 %152, %v81
    %v154 = vpop.permute.xlu0 %153
    %v156 = vmul.f32 %v150, %v118
    %v157 = vmul.f32 %v150, %v122
    %v158 = vmul.f32 %v154, %v118
    %v159 = vmul.f32 %v154, %v122
    %164 = vrot.lane.b32.xlu0 %v156, 126
    %v165 = vpop.permute.xlu0 %164
    %166 = vrot.lane.b32.xlu0 %v157, 126
    %v167 = vpop.permute.xlu0 %166
    %168 = vrot.lane.b32.xlu0 %v158, 126
    %v169 = vpop.permute.xlu0 %168
    %170 = vrot.lane.b32.xlu0 %v159, 126
    %v171 = vpop.permute.xlu0 %170
    %vm172 = vcmask 1031168
    %v173 = vsel %vm172, %v165, %v167
    %v174 = vsel %vm172, %v169, %v171
    %v177 = vadd.f32 %v146, %v173
    %v178 = vadd.f32 %v147, %v174
    %179 = vset.pattern.permute.xlu0 3
    %180 = vperm.xlu0 %179, %v80
    %v181 = vpop.permute.xlu0 %180
    %183 = vset.pattern.permute.xlu0 3
    %184 = vperm.xlu0 %183, %v81
    %v185 = vpop.permute.xlu0 %184
    %v187 = vmul.f32 %v181, %v118
    %v188 = vmul.f32 %v181, %v122
    %v189 = vmul.f32 %v185, %v118
    %v190 = vmul.f32 %v185, %v122
    %195 = vrot.lane.b32.xlu0 %v187, 125
    %v196 = vpop.permute.xlu0 %195
    %197 = vrot.lane.b32.xlu0 %v188, 125
    %v198 = vpop.permute.xlu0 %197
    %199 = vrot.lane.b32.xlu0 %v189, 125
    %v200 = vpop.permute.xlu0 %199
    %201 = vrot.lane.b32.xlu0 %v190, 125
    %v202 = vpop.permute.xlu0 %201
    %vm203 = vcmask 1022976
    %v204 = vsel %vm203, %v196, %v198
    %v205 = vsel %vm203, %v200, %v202
    %v208 = vadd.f32 %v177, %v204
    %v209 = vadd.f32 %v178, %v205
    %210 = vset.pattern.permute.xlu0 4
    %211 = vperm.xlu0 %210, %v80
    %v212 = vpop.permute.xlu0 %211
    %214 = vset.pattern.permute.xlu0 4
    %215 = vperm.xlu0 %214, %v81
    %v216 = vpop.permute.xlu0 %215
    %v218 = vmul.f32 %v212, %v118
    %v219 = vmul.f32 %v212, %v122
    %v220 = vmul.f32 %v216, %v118
    %v221 = vmul.f32 %v216, %v122
    %226 = vrot.lane.b32.xlu0 %v218, 124
    %v227 = vpop.permute.xlu0 %226
    %228 = vrot.lane.b32.xlu0 %v219, 124
    %v229 = vpop.permute.xlu0 %228
    %230 = vrot.lane.b32.xlu0 %v220, 124
    %v231 = vpop.permute.xlu0 %230
    %232 = vrot.lane.b32.xlu0 %v221, 124
    %v233 = vpop.permute.xlu0 %232
    %vm234 = vcmask 1014784
    %v235 = vsel %vm234, %v227, %v229
    %v236 = vsel %vm234, %v231, %v233
    %v239 = vadd.f32 %v208, %v235
    %v240 = vadd.f32 %v209, %v236
    %242 = vset.pattern.permute.xlu0 0
    %243 = vperm.xlu0 %242, %v82
    %v244 = vpop.permute.xlu0 %243
    %247 = vset.pattern.permute.xlu0 0
    %248 = vperm.xlu0 %247, %v83
    %v249 = vpop.permute.xlu0 %248
    %v251 = vadd.f32 %v239, %v244
    %v252 = vadd.f32 %v240, %v249
    %v253 = vmax.f32 %v251, 0.0
    %v254 = vmax.f32 %v252, 0.0
    %v255 = vpack.c.bf16 %v254, %v253
    %257 = vrot.lane.b32.xlu0 %v255, 4
    %v258 = vpop.permute.xlu0 %257
    %vm260 = vcmask 1047584
    %261 = vst.msk [vmem:[#allocation3] sm:$0xff] %vm260, %v258
    %vm262 = vcmask 31744
    %263 = vst.msk [vmem:[#allocation3 + $0x8] sm:$0xff] %vm262, %v258
    %v264 = vld [vmem:[#allocation2 + $0x2] sm:$0x1]
    %v266 = vlaneseq
    %v267 = vshrl.u32 %v266, 7
    %v268 = vsub.s32 0, %v267
    %v269 = vrot.slane %v264, %v268
    %v271 = vmul.f32 %v88, %v269
    %v272 = vmul.f32 %v93, %v269
    %v273 = vadd.f32 %v271, 0.0
    %v274 = vadd.f32 %v272, 0.0
    %v275 = vld [vmem:[#allocation2 + $0x2] sm:$0x3]
    %v277 = vlaneseq
    %v278 = vshrl.u32 %v277, 7
    %v279 = vsub.s32 0, %v278
    %v280 = vrot.slane %v275, %v279
    %v281 = vlaneseq
    %v282 = vshrl.u32 %v281, 7
    %v283 = vsub.s32 1, %v282
    %v284 = vrot.slane %v275, %v283
    %v287 = vmul.f32 %v108, %v280
    %v288 = vmul.f32 %v108, %v284
    %v289 = vmul.f32 %v112, %v280
    %v290 = vmul.f32 %v112, %v284
    %295 = vrot.lane.b32.xlu0 %v287, 127
    %v296 = vpop.permute.xlu0 %295
    %297 = vrot.lane.b32.xlu0 %v288, 127
    %v298 = vpop.permute.xlu0 %297
    %299 = vrot.lane.b32.xlu0 %v289, 127
    %v300 = vpop.permute.xlu0 %299
    %301 = vrot.lane.b32.xlu0 %v290, 127
    %v302 = vpop.permute.xlu0 %301
    %v303 = vsel %vm141, %v296, %v298
    %v304 = vsel %vm141, %v300, %v302
    %v307 = vadd.f32 %v273, %v303
    %v308 = vadd.f32 %v274, %v304
    %v309 = vmul.f32 %v150, %v280
    %v310 = vmul.f32 %v150, %v284
    %v311 = vmul.f32 %v154, %v280
    %v312 = vmul.f32 %v154, %v284
    %317 = vrot.lane.b32.xlu0 %v309, 126
    %v318 = vpop.permute.xlu0 %317
    %319 = vrot.lane.b32.xlu0 %v310, 126
    %v320 = vpop.permute.xlu0 %319
    %321 = vrot.lane.b32.xlu0 %v311, 126
    %v322 = vpop.permute.xlu0 %321
    %323 = vrot.lane.b32.xlu0 %v312, 126
    %v324 = vpop.permute.xlu0 %323
    %v325 = vsel %vm172, %v318, %v320
    %v326 = vsel %vm172, %v322, %v324
    %v329 = vadd.f32 %v307, %v325
    %v330 = vadd.f32 %v308, %v326
    %v331 = vmul.f32 %v181, %v280
    %v332 = vmul.f32 %v181, %v284
    %v333 = vmul.f32 %v185, %v280
    %v334 = vmul.f32 %v185, %v284
    %339 = vrot.lane.b32.xlu0 %v331, 125
    %v340 = vpop.permute.xlu0 %339
    %341 = vrot.lane.b32.xlu0 %v332, 125
    %v342 = vpop.permute.xlu0 %341
    %343 = vrot.lane.b32.xlu0 %v333, 125
    %v344 = vpop.permute.xlu0 %343
    %345 = vrot.lane.b32.xlu0 %v334, 125
    %v346 = vpop.permute.xlu0 %345
    %v347 = vsel %vm203, %v340, %v342
    %v348 = vsel %vm203, %v344, %v346
    %v351 = vadd.f32 %v329, %v347
    %v352 = vadd.f32 %v330, %v348
    %v353 = vmul.f32 %v212, %v280
    %v354 = vmul.f32 %v212, %v284
    %v355 = vmul.f32 %v216, %v280
    %v356 = vmul.f32 %v216, %v284
    %361 = vrot.lane.b32.xlu0 %v353, 124
    %v362 = vpop.permute.xlu0 %361
    %363 = vrot.lane.b32.xlu0 %v354, 124
    %v364 = vpop.permute.xlu0 %363
    %365 = vrot.lane.b32.xlu0 %v355, 124
    %v366 = vpop.permute.xlu0 %365
    %367 = vrot.lane.b32.xlu0 %v356, 124
    %v368 = vpop.permute.xlu0 %367
    %v369 = vsel %vm234, %v362, %v364
    %v370 = vsel %vm234, %v366, %v368
    %v373 = vadd.f32 %v351, %v369
    %v374 = vadd.f32 %v352, %v370
    %v375 = vadd.f32 %v373, %v244
    %v376 = vadd.f32 %v374, %v249
    %v377 = vmax.f32 %v375, 0.0
    %v378 = vmax.f32 %v376, 0.0
    %v379 = vpack.c.bf16 %v378, %v377
    %381 = vrot.lane.b32.xlu0 %v379, 4
    %v382 = vpop.permute.xlu0 %381
    %384 = vst.msk [vmem:[#allocation3 + $0x10] sm:$0xff] %vm260, %v382
    %385 = vst.msk [vmem:[#allocation3 + $0x18] sm:$0xff] %vm262, %v382
    %v386 = vld [vmem:[#allocation3] sm:$0xff]
    %387 = vst [vmem:[#allocation4] sm:$0xff] %v386
    %v388 = vld [vmem:[#allocation3] sm:$0xff]
    %v389 = vld [vmem:[#allocation3 + $0x8] sm:$0xff]
    %392 = vrot.lane.b32.xlu0 %v388, 127
    %v393 = vpop.permute.xlu0 %392
    %394 = vrot.lane.b32.xlu0 %v389, 127
    %v395 = vpop.permute.xlu0 %394
    %vm396 = vcmask 1039360
    %v397 = vsel %vm396, %v393, %v395
    %399 = vst [vmem:[#allocation4 + $0x10] sm:$0xff] %v397
    %v400 = vld [vmem:[#allocation3] sm:$0xff]
    %v401 = vld [vmem:[#allocation3 + $0x8] sm:$0xff]
    %404 = vrot.lane.b32.xlu0 %v400, 126
    %v405 = vpop.permute.xlu0 %404
    %406 = vrot.lane.b32.xlu0 %v401, 126
    %v407 = vpop.permute.xlu0 %406
    %vm408 = vcmask 1031168
    %v409 = vsel %vm408, %v405, %v407
    %411 = vst [vmem:[#allocation4 + $0x20] sm:$0xff] %v409
    %v412 = vld [vmem:[#allocation3] sm:$0xff]
    %v413 = vld [vmem:[#allocation3 + $0x8] sm:$0xff]
    %416 = vrot.lane.b32.xlu0 %v412, 125
    %v417 = vpop.permute.xlu0 %416
    %418 = vrot.lane.b32.xlu0 %v413, 125
    %v419 = vpop.permute.xlu0 %418
    %vm420 = vcmask 1022976
    %v421 = vsel %vm420, %v417, %v419
    %423 = vst [vmem:[#allocation4 + $0x30] sm:$0xff] %v421
    %v424 = vld [vmem:[#allocation3] sm:$0xff]
    %v425 = vld [vmem:[#allocation3 + $0x8] sm:$0xff]
    %428 = vrot.lane.b32.xlu0 %v424, 124
    %v429 = vpop.permute.xlu0 %428
    %430 = vrot.lane.b32.xlu0 %v425, 124
    %v431 = vpop.permute.xlu0 %430
    %vm432 = vcmask 1014784
    %v433 = vsel %vm432, %v429, %v431
    %435 = vst [vmem:[#allocation4 + $0x40] sm:$0xff] %v433
    %v436 = vld [vmem:[#allocation3] sm:$0xff]
    %v437 = vld [vmem:[#allocation3 + $0x8] sm:$0xff]
    %440 = vrot.lane.b32.xlu0 %v436, 123
    %v441 = vpop.permute.xlu0 %440
    %442 = vrot.lane.b32.xlu0 %v437, 123
    %v443 = vpop.permute.xlu0 %442
    %vm444 = vcmask 1006592
    %v445 = vsel %vm444, %v441, %v443
    %447 = vst [vmem:[#allocation4 + $0x50] sm:$0xff] %v445
    %v448 = vld [vmem:[#allocation3] sm:$0xff]
    %v449 = vld [vmem:[#allocation3 + $0x8] sm:$0xff]
    %452 = vrot.lane.b32.xlu0 %v448, 122
    %v453 = vpop.permute.xlu0 %452
    %454 = vrot.lane.b32.xlu0 %v449, 122
    %v455 = vpop.permute.xlu0 %454
    %vm456 = vcmask 998400
    %v457 = vsel %vm456, %v453, %v455
    %459 = vst [vmem:[#allocation4 + $0x60] sm:$0xff] %v457
    %v460 = vld [vmem:[#allocation3] sm:$0xff]
    %v461 = vld [vmem:[#allocation3 + $0x8] sm:$0xff]
    %464 = vrot.lane.b32.xlu0 %v460, 121
    %v465 = vpop.permute.xlu0 %464
    %466 = vrot.lane.b32.xlu0 %v461, 121
    %v467 = vpop.permute.xlu0 %466
    %vm468 = vcmask 990208
    %v469 = vsel %vm468, %v465, %v467
    %471 = vst [vmem:[#allocation4 + $0x70] sm:$0xff] %v469
    %v472 = vld [vmem:[#allocation3] sm:$0xff]
    %v473 = vld [vmem:[#allocation3 + $0x8] sm:$0xff]
    %476 = vrot.lane.b32.xlu0 %v472, 120
    %v477 = vpop.permute.xlu0 %476
    %478 = vrot.lane.b32.xlu0 %v473, 120
    %v479 = vpop.permute.xlu0 %478
    %vm480 = vcmask 982016
    %v481 = vsel %vm480, %v477, %v479
    %483 = vst [vmem:[#allocation4 + $0x80] sm:$0xff] %v481
    %v484 = vld [vmem:[#allocation3 + $0x10] sm:$0xff]
    %485 = vst [vmem:[#allocation4 + $0x8] sm:$0xff] %v484
    %v486 = vld [vmem:[#allocation3 + $0x10] sm:$0xff]
    %v487 = vld [vmem:[#allocation3 + $0x18] sm:$0xff]
    %490 = vrot.lane.b32.xlu0 %v486, 127
    %v491 = vpop.permute.xlu0 %490
    %492 = vrot.lane.b32.xlu0 %v487, 127
    %v493 = vpop.permute.xlu0 %492
    %v494 = vsel %vm396, %v491, %v493
    %496 = vst [vmem:[#allocation4 + $0x18] sm:$0xff] %v494
    %v497 = vld [vmem:[#allocation3 + $0x10] sm:$0xff]
    %v498 = vld [vmem:[#allocation3 + $0x18] sm:$0xff]
    %501 = vrot.lane.b32.xlu0 %v497, 126
    %v502 = vpop.permute.xlu0 %501
    %503 = vrot.lane.b32.xlu0 %v498, 126
    %v504 = vpop.permute.xlu0 %503
    %v505 = vsel %vm408, %v502, %v504
    %507 = vst [vmem:[#allocation4 + $0x28] sm:$0xff] %v505
    %v508 = vld [vmem:[#allocation3 + $0x10] sm:$0xff]
    %v509 = vld [vmem:[#allocation3 + $0x18] sm:$0xff]
    %512 = vrot.lane.b32.xlu0 %v508, 125
    %v513 = vpop.permute.xlu0 %512
    %514 = vrot.lane.b32.xlu0 %v509, 125
    %v515 = vpop.permute.xlu0 %514
    %v516 = vsel %vm420, %v513, %v515
    %518 = vst [vmem:[#allocation4 + $0x38] sm:$0xff] %v516
    %v519 = vld [vmem:[#allocation3 + $0x10] sm:$0xff]
    %v520 = vld [vmem:[#allocation3 + $0x18] sm:$0xff]
    %523 = vrot.lane.b32.xlu0 %v519, 124
    %v524 = vpop.permute.xlu0 %523
    %525 = vrot.lane.b32.xlu0 %v520, 124
    %v526 = vpop.permute.xlu0 %525
    %v527 = vsel %vm432, %v524, %v526
    %529 = vst [vmem:[#allocation4 + $0x48] sm:$0xff] %v527
    %v530 = vld [vmem:[#allocation3 + $0x10] sm:$0xff]
    %v531 = vld [vmem:[#allocation3 + $0x18] sm:$0xff]
    %534 = vrot.lane.b32.xlu0 %v530, 123
    %v535 = vpop.permute.xlu0 %534
    %536 = vrot.lane.b32.xlu0 %v531, 123
    %v537 = vpop.permute.xlu0 %536
    %v538 = vsel %vm444, %v535, %v537
    %540 = vst [vmem:[#allocation4 + $0x58] sm:$0xff] %v538
    %v541 = vld [vmem:[#allocation3 + $0x10] sm:$0xff]
    %v542 = vld [vmem:[#allocation3 + $0x18] sm:$0xff]
    %545 = vrot.lane.b32.xlu0 %v541, 122
    %v546 = vpop.permute.xlu0 %545
    %547 = vrot.lane.b32.xlu0 %v542, 122
    %v548 = vpop.permute.xlu0 %547
    %v549 = vsel %vm456, %v546, %v548
    %551 = vst [vmem:[#allocation4 + $0x68] sm:$0xff] %v549
    %v552 = vld [vmem:[#allocation3 + $0x10] sm:$0xff]
    %v553 = vld [vmem:[#allocation3 + $0x18] sm:$0xff]
    %556 = vrot.lane.b32.xlu0 %v552, 121
    %v557 = vpop.permute.xlu0 %556
    %558 = vrot.lane.b32.xlu0 %v553, 121
    %v559 = vpop.permute.xlu0 %558
    %v560 = vsel %vm468, %v557, %v559
    %562 = vst [vmem:[#allocation4 + $0x78] sm:$0xff] %v560
    %v563 = vld [vmem:[#allocation3 + $0x10] sm:$0xff]
    %v564 = vld [vmem:[#allocation3 + $0x18] sm:$0xff]
    %567 = vrot.lane.b32.xlu0 %v563, 120
    %v568 = vpop.permute.xlu0 %567
    %569 = vrot.lane.b32.xlu0 %v564, 120
    %v570 = vpop.permute.xlu0 %569
    %v571 = vsel %vm480, %v568, %v570
    %573 = vst [vmem:[#allocation4 + $0x88] sm:$0xff] %v571
    %v574 = vld [vmem:[%s3] sm:$0xff]
    %v575 = vld [vmem:[%s3 + $0x8] sm:$0xff]
    %v576 = vld [vmem:[%s3 + $0x10] sm:$0xff]
    %v577 = vld [vmem:[%s3 + $0x18] sm:$0xff]
    %v578 = vld [vmem:[%s3 + $0x20] sm:$0xff]
    %v579 = vld [vmem:[%s3 + $0x28] sm:$0xff]
    %v580 = vld [vmem:[%s3 + $0x30] sm:$0xff]
    %v581 = vld [vmem:[%s3 + $0x38] sm:$0xff]
    %v582 = vld [vmem:[#allocation4] sm:$0xff]
    %v583 = vld [vmem:[#allocation4 + $0x8] sm:$0xff]
    %v584 = vld [vmem:[#allocation4 + $0x10] sm:$0xff]
    %v585 = vld [vmem:[#allocation4 + $0x18] sm:$0xff]
    %v586 = vld [vmem:[#allocation4 + $0x20] sm:$0xff]
    %v587 = vld [vmem:[#allocation4 + $0x28] sm:$0xff]
    %v588 = vld [vmem:[#allocation4 + $0x30] sm:$0xff]
    %v589 = vld [vmem:[#allocation4 + $0x38] sm:$0xff]
    %v590 = vld [vmem:[#allocation4 + $0x40] sm:$0xff]
    %v591 = vld [vmem:[#allocation4 + $0x48] sm:$0xff]
    %v592 = vld [vmem:[#allocation4 + $0x50] sm:$0xff]
    %v593 = vld [vmem:[#allocation4 + $0x58] sm:$0xff]
    %v594 = vld [vmem:[#allocation4 + $0x60] sm:$0xff]
    %v595 = vld [vmem:[#allocation4 + $0x68] sm:$0xff]
    %v596 = vld [vmem:[#allocation4 + $0x70] sm:$0xff]
    %v597 = vld [vmem:[#allocation4 + $0x78] sm:$0xff]
    %v598 = vld [vmem:[#allocation4 + $0x80] sm:$0xff]
    %v599 = vld [vmem:[#allocation4 + $0x88] sm:$0xff]
    %v600 = vld [vmem:[%s4] sm:$0xff]
    %v601 = vld [vmem:[%s4 + $0x8] sm:$0xff]
    %v602 = vld [vmem:[%s4 + $0x10] sm:$0xff]
    %v603 = vld [vmem:[%s4 + $0x18] sm:$0xff]
    %v604 = vld [vmem:[%s4 + $0x20] sm:$0xff]
    %v605 = vld [vmem:[%s4 + $0x28] sm:$0xff]
    %v606 = vld [vmem:[%s4 + $0x30] sm:$0xff]
    %v607 = vld [vmem:[%s4 + $0x38] sm:$0xff]
    %609 = vset.pattern.permute.xlu0 0
    %610 = vperm.xlu0 %609, %v600
    %v611 = vpop.permute.xlu0 %610
    %614 = vset.pattern.permute.xlu0 0
    %615 = vperm.xlu0 %614, %v601
    %v616 = vpop.permute.xlu0 %615
    %619 = vset.pattern.permute.xlu0 0
    %620 = vperm.xlu0 %619, %v602
    %v621 = vpop.permute.xlu0 %620
    %624 = vset.pattern.permute.xlu0 0
    %625 = vperm.xlu0 %624, %v603
    %v626 = vpop.permute.xlu0 %625
    %629 = vset.pattern.permute.xlu0 0
    %630 = vperm.xlu0 %629, %v604
    %v631 = vpop.permute.xlu0 %630
    %634 = vset.pattern.permute.xlu0 0
    %635 = vperm.xlu0 %634, %v605
    %v636 = vpop.permute.xlu0 %635
    %639 = vset.pattern.permute.xlu0 0
    %640 = vperm.xlu0 %639, %v606
    %v641 = vpop.permute.xlu0 %640
    %644 = vset.pattern.permute.xlu0 0
    %645 = vperm.xlu0 %644, %v607
    %v646 = vpop.permute.xlu0 %645
    %v656 = vunpack.c.l.b16 %v574
    %v657 = vunpack.c.h.b16 %v574
    %v658 = vunpack.c.l.b16 %v575
    %v659 = vunpack.c.h.b16 %v575
    %v660 = vunpack.c.l.b16 %v576
    %v661 = vunpack.c.h.b16 %v576
    %v662 = vunpack.c.l.b16 %v577
    %v663 = vunpack.c.h.b16 %v577
    %v664 = vunpack.c.l.b16 %v578
    %v665 = vunpack.c.h.b16 %v578
    %v666 = vunpack.c.l.b16 %v579
    %v667 = vunpack.c.h.b16 %v579
    %v668 = vunpack.c.l.b16 %v580
    %v669 = vunpack.c.h.b16 %v580
    %v670 = vunpack.c.l.b16 %v581
    %v671 = vunpack.c.h.b16 %v581
    %v672 = vpack.c.b16 %v658, %v656
    %v673 = vpack.c.b16 %v659, %v657
    %v674 = vpack.c.b16 %v662, %v660
    %v675 = vpack.c.b16 %v663, %v661
    %v676 = vpack.c.b16 %v666, %v664
    %v677 = vpack.c.b16 %v667, %v665
    %v678 = vpack.c.b16 %v670, %v668
    %v679 = vpack.c.b16 %v671, %v669
    %vm684 = vcmask 130048
    %v686 = vsel %vm684, %v673, 0
    %v689 = vsel %vm684, %v675, 0
    %v692 = vsel %vm684, %v677, 0
    %v695 = vsel %vm684, %v679, 0
    %697 = vmatprep.subr.bf16.mxu0 %v583
    %698 = vmatpush1.bf16.msra.mxu0 %v582
    %699 = vmatprep.subr.bf16.mxu0 %v585
    %700 = vmatpush1.bf16.msra.mxu0 %v584
    %701 = vmatprep.subr.bf16.mxu0 %v587
    %702 = vmatpush1.bf16.msra.mxu0 %v586
    %703 = vmatprep.subr.bf16.mxu0 %v589
    %704 = vmatpush1.bf16.msra.mxu0 %v588
    %705 = vmatprep.subr.bf16.mxu0 %v591
    %706 = vmatpush1.bf16.msra.mxu0 %v590
    %707 = vmatprep.subr.bf16.mxu0 %v593
    %708 = vmatpush1.bf16.msra.mxu0 %v592
    %709 = vmatprep.subr.bf16.mxu0 %v595
    %710 = vmatpush1.bf16.msra.mxu0 %v594
    %711 = vmatprep.subr.bf16.mxu0 %v597
    %712 = vmatpush1.bf16.msra.mxu0 %v596
    %713 = vmatprep.subr.bf16.mxu0 %v599
    %714 = vmatpush1.bf16.msra.mxu0 %v598
    %715 = vmatprep.subr.bf16.mxu0 0
    %716 = vmatpush1.bf16.msra.mxu0 0
    %717 = vmatprep.subr.bf16.mxu0 0
    %718 = vmatpush1.bf16.msra.mxu0 0
    %719 = vmatprep.subr.bf16.mxu0 0
    %720 = vmatpush1.bf16.msra.mxu0 0
    %721 = vmatprep.subr.bf16.mxu0 0
    %722 = vmatpush1.bf16.msra.mxu0 0
    %723 = vmatprep.subr.bf16.mxu0 0
    %724 = vmatpush1.bf16.msra.mxu0 0
    %725 = vmatprep.subr.bf16.mxu0 0
    %726 = vmatpush1.bf16.msra.mxu0 0
    %727 = vmatprep.subr.bf16.mxu0 0
    %728 = vmatpush1.bf16.msra.mxu0 0
    %729 = vmatprep.mubr.bf16.mxu0 %v686
    %730 = vmatmul.mubr.bf16.gmra.mrb[0].mxu0 %v672
    %v731 = vpop.f32.mrb[0].mxu0
    %v732 = vadd.f32 %v611, %v731
    %v733 = vpop.f32.mrb[0].mxu0
    %v734 = vadd.f32 %v611, %v733
    %v735 = vpop.f32.mrb[0].mxu0
    %v736 = vadd.f32 %v616, %v735
    %v737 = vpop.f32.mrb[0].mxu0
    %v738 = vadd.f32 %v616, %v737
    %739 = vmatprep.mubr.bf16.mxu0 %v689
    %740 = vmatmul.mubr.bf16.gmra.mrb[0].mxu0 %v674
    %v741 = vpop.f32.mrb[0].mxu0
    %v742 = vadd.f32 %v621, %v741
    %v743 = vpop.f32.mrb[0].mxu0
    %v744 = vadd.f32 %v621, %v743
    %v745 = vpop.f32.mrb[0].mxu0
    %v746 = vadd.f32 %v626, %v745
    %v747 = vpop.f32.mrb[0].mxu0
    %v748 = vadd.f32 %v626, %v747
    %749 = vmatprep.mubr.bf16.mxu0 %v692
    %750 = vmatmul.mubr.bf16.gmra.mrb[0].mxu0 %v676
    %v751 = vpop.f32.mrb[0].mxu0
    %v752 = vadd.f32 %v631, %v751
    %v753 = vpop.f32.mrb[0].mxu0
    %v754 = vadd.f32 %v631, %v753
    %v755 = vpop.f32.mrb[0].mxu0
    %v756 = vadd.f32 %v636, %v755
    %v757 = vpop.f32.mrb[0].mxu0
    %v758 = vadd.f32 %v636, %v757
    %759 = vmatprep.mubr.bf16.mxu0 %v695
    %760 = vmatmul.mubr.bf16.gmra.mrb[0].mxu0 %v678
    %v761 = vpop.f32.mrb[0].mxu0
    %v762 = vadd.f32 %v641, %v761
    %v763 = vpop.f32.mrb[0].mxu0
    %v764 = vadd.f32 %v641, %v763
    %v765 = vpop.f32.mrb[0].mxu0
    %v766 = vadd.f32 %v646, %v765
    %v767 = vpop.f32.mrb[0].mxu0
    %v768 = vadd.f32 %v646, %v767
    %769 = vdwg.mxu0
    %v770 = vmax.f32 %v732, 0.0
    %v771 = vmax.f32 %v734, 0.0
    %v772 = vmax.f32 %v736, 0.0
    %v773 = vmax.f32 %v738, 0.0
    %v774 = vmax.f32 %v742, 0.0
    %v775 = vmax.f32 %v744, 0.0
    %v776 = vmax.f32 %v746, 0.0
    %v777 = vmax.f32 %v748, 0.0
    %v778 = vmax.f32 %v752, 0.0
    %v779 = vmax.f32 %v754, 0.0
    %v780 = vmax.f32 %v756, 0.0
    %v781 = vmax.f32 %v758, 0.0
    %v782 = vmax.f32 %v762, 0.0
    %v783 = vmax.f32 %v764, 0.0
    %v784 = vmax.f32 %v766, 0.0
    %v785 = vmax.f32 %v768, 0.0
    %v786 = vpack.c.bf16 %v772, %v770
    %v787 = vpack.c.bf16 %v773, %v771
    %v788 = vpack.c.bf16 %v776, %v774
    %v789 = vpack.c.bf16 %v777, %v775
    %v790 = vpack.c.bf16 %v780, %v778
    %v791 = vpack.c.bf16 %v781, %v779
    %v792 = vpack.c.bf16 %v784, %v782
    %v793 = vpack.c.bf16 %v785, %v783
    %798 = vrot.lane.b32.xlu0 %v786, 16
    %v799 = vpop.permute.xlu0 %798
    %800 = vrot.lane.b32.xlu0 %v788, 16
    %v801 = vpop.permute.xlu0 %800
    %802 = vrot.lane.b32.xlu0 %v790, 16
    %v803 = vpop.permute.xlu0 %802
    %804 = vrot.lane.b32.xlu0 %v792, 16
    %v805 = vpop.permute.xlu0 %804
    %vm810 = vcmask 1047680
    %811 = vst.msk [vmem:[#allocation5] sm:$0xff] %vm810, %v799
    %812 = vst.msk [vmem:[#allocation5 + $0x8] sm:$0xff] %vm684, %v799
    %813 = vst.msk [vmem:[#allocation5 + $0x20] sm:$0xff] %vm810, %v801
    %814 = vst.msk [vmem:[#allocation5 + $0x28] sm:$0xff] %vm684, %v801
    %815 = vst.msk [vmem:[#allocation5 + $0x40] sm:$0xff] %vm810, %v803
    %816 = vst.msk [vmem:[#allocation5 + $0x48] sm:$0xff] %vm684, %v803
    %817 = vst.msk [vmem:[#allocation5 + $0x60] sm:$0xff] %vm810, %v805
    %818 = vst.msk [vmem:[#allocation5 + $0x68] sm:$0xff] %vm684, %v805
    %823 = vrot.lane.b32.xlu0 %v787, 16
    %v824 = vpop.permute.xlu0 %823
    %825 = vrot.lane.b32.xlu0 %v789, 16
    %v826 = vpop.permute.xlu0 %825
    %827 = vrot.lane.b32.xlu0 %v791, 16
    %v828 = vpop.permute.xlu0 %827
    %829 = vrot.lane.b32.xlu0 %v793, 16
    %v830 = vpop.permute.xlu0 %829
    %835 = vst.msk [vmem:[#allocation5 + $0x10] sm:$0xff] %vm810, %v824
    %836 = vst.msk [vmem:[#allocation5 + $0x18] sm:$0xff] %vm684, %v824
    %837 = vst.msk [vmem:[#allocation5 + $0x30] sm:$0xff] %vm810, %v826
    %838 = vst.msk [vmem:[#allocation5 + $0x38] sm:$0xff] %vm684, %v826
    %839 = vst.msk [vmem:[#allocation5 + $0x50] sm:$0xff] %vm810, %v828
    %840 = vst.msk [vmem:[#allocation5 + $0x58] sm:$0xff] %vm684, %v828
    %841 = vst.msk [vmem:[#allocation5 + $0x70] sm:$0xff] %vm810, %v830
    %842 = vst.msk [vmem:[#allocation5 + $0x78] sm:$0xff] %vm684, %v830
    %v843 = vld [vmem:[#allocation5] sm:$0xff]
    %v844 = vld [vmem:[#allocation5 + $0x20] sm:$0xff]
    %v845 = vld [vmem:[#allocation5 + $0x40] sm:$0xff]
    %v846 = vld [vmem:[#allocation5 + $0x60] sm:$0xff]
    %847 = vst [vmem:[#allocation6] sm:$0xff] %v843
    %848 = vst [vmem:[#allocation6 + $0x10] sm:$0xff] %v844
    %849 = vst [vmem:[#allocation6 + $0x20] sm:$0xff] %v845
    %850 = vst [vmem:[#allocation6 + $0x30] sm:$0xff] %v846
    %v851 = vld [vmem:[#allocation5] sm:$0xff]
    %v852 = vld [vmem:[#allocation5 + $0x8] sm:$0xff]
    %v853 = vld [vmem:[#allocation5 + $0x20] sm:$0xff]
    %v854 = vld [vmem:[#allocation5 + $0x28] sm:$0xff]
    %v855 = vld [vmem:[#allocation5 + $0x40] sm:$0xff]
    %v856 = vld [vmem:[#allocation5 + $0x48] sm:$0xff]
    %v857 = vld [vmem:[#allocation5 + $0x60] sm:$0xff]
    %v858 = vld [vmem:[#allocation5 + $0x68] sm:$0xff]
    %867 = vrot.lane.b32.xlu0 %v851, 127
    %v868 = vpop.permute.xlu0 %867
    %869 = vrot.lane.b32.xlu0 %v852, 127
    %v870 = vpop.permute.xlu0 %869
    %871 = vrot.lane.b32.xlu0 %v853, 127
    %v872 = vpop.permute.xlu0 %871
    %873 = vrot.lane.b32.xlu0 %v854, 127
    %v874 = vpop.permute.xlu0 %873
    %875 = vrot.lane.b32.xlu0 %v855, 127
    %v876 = vpop.permute.xlu0 %875
    %877 = vrot.lane.b32.xlu0 %v856, 127
    %v878 = vpop.permute.xlu0 %877
    %879 = vrot.lane.b32.xlu0 %v857, 127
    %v880 = vpop.permute.xlu0 %879
    %881 = vrot.lane.b32.xlu0 %v858, 127
    %v882 = vpop.permute.xlu0 %881
    %v883 = vsel %vm396, %v868, %v870
    %v884 = vsel %vm396, %v872, %v874
    %v885 = vsel %vm396, %v876, %v878
    %v886 = vsel %vm396, %v880, %v882
    %891 = vst [vmem:[#allocation6 + $0x40] sm:$0xff] %v883
    %892 = vst [vmem:[#allocation6 + $0x50] sm:$0xff] %v884
    %893 = vst [vmem:[#allocation6 + $0x60] sm:$0xff] %v885
    %894 = vst [vmem:[#allocation6 + $0x70] sm:$0xff] %v886
    %v895 = vld [vmem:[#allocation5] sm:$0xff]
    %v896 = vld [vmem:[#allocation5 + $0x8] sm:$0xff]
    %v897 = vld [vmem:[#allocation5 + $0x20] sm:$0xff]
    %v898 = vld [vmem:[#allocation5 + $0x28] sm:$0xff]
    %v899 = vld [vmem:[#allocation5 + $0x40] sm:$0xff]
    %v900 = vld [vmem:[#allocation5 + $0x48] sm:$0xff]
    %v901 = vld [vmem:[#allocation5 + $0x60] sm:$0xff]
    %v902 = vld [vmem:[#allocation5 + $0x68] sm:$0xff]
    %911 = vrot.lane.b32.xlu0 %v895, 126
    %v912 = vpop.permute.xlu0 %911
    %913 = vrot.lane.b32.xlu0 %v896, 126
    %v914 = vpop.permute.xlu0 %913
    %915 = vrot.lane.b32.xlu0 %v897, 126
    %v916 = vpop.permute.xlu0 %915
    %917 = vrot.lane.b32.xlu0 %v898, 126
    %v918 = vpop.permute.xlu0 %917
    %919 = vrot.lane.b32.xlu0 %v899, 126
    %v920 = vpop.permute.xlu0 %919
    %921 = vrot.lane.b32.xlu0 %v900, 126
    %v922 = vpop.permute.xlu0 %921
    %923 = vrot.lane.b32.xlu0 %v901, 126
    %v924 = vpop.permute.xlu0 %923
    %925 = vrot.lane.b32.xlu0 %v902, 126
    %v926 = vpop.permute.xlu0 %925
    %v927 = vsel %vm408, %v912, %v914
    %v928 = vsel %vm408, %v916, %v918
    %v929 = vsel %vm408, %v920, %v922
    %v930 = vsel %vm408, %v924, %v926
    %935 = vst [vmem:[#allocation6 + $0x80] sm:$0xff] %v927
    %936 = vst [vmem:[#allocation6 + $0x90] sm:$0xff] %v928
    %937 = vst [vmem:[#allocation6 + $0xa0] sm:$0xff] %v929
    %938 = vst [vmem:[#allocation6 + $0xb0] sm:$0xff] %v930
    %v939 = vld [vmem:[#allocation5] sm:$0xff]
    %v940 = vld [vmem:[#allocation5 + $0x8] sm:$0xff]
    %v941 = vld [vmem:[#allocation5 + $0x20] sm:$0xff]
    %v942 = vld [vmem:[#allocation5 + $0x28] sm:$0xff]
    %v943 = vld [vmem:[#allocation5 + $0x40] sm:$0xff]
    %v944 = vld [vmem:[#allocation5 + $0x48] sm:$0xff]
    %v945 = vld [vmem:[#allocation5 + $0x60] sm:$0xff]
    %v946 = vld [vmem:[#allocation5 + $0x68] sm:$0xff]
    %955 = vrot.lane.b32.xlu0 %v939, 125
    %v956 = vpop.permute.xlu0 %955
    %957 = vrot.lane.b32.xlu0 %v940, 125
    %v958 = vpop.permute.xlu0 %957
    %959 = vrot.lane.b32.xlu0 %v941, 125
    %v960 = vpop.permute.xlu0 %959
    %961 = vrot.lane.b32.xlu0 %v942, 125
    %v962 = vpop.permute.xlu0 %961
    %963 = vrot.lane.b32.xlu0 %v943, 125
    %v964 = vpop.permute.xlu0 %963
    %965 = vrot.lane.b32.xlu0 %v944, 125
    %v966 = vpop.permute.xlu0 %965
    %967 = vrot.lane.b32.xlu0 %v945, 125
    %v968 = vpop.permute.xlu0 %967
    %969 = vrot.lane.b32.xlu0 %v946, 125
    %v970 = vpop.permute.xlu0 %969
    %v971 = vsel %vm420, %v956, %v958
    %v972 = vsel %vm420, %v960, %v962
    %v973 = vsel %vm420, %v964, %v966
    %v974 = vsel %vm420, %v968, %v970
    %979 = vst [vmem:[#allocation6 + $0xc0] sm:$0xff] %v971
    %980 = vst [vmem:[#allocation6 + $0xd0] sm:$0xff] %v972
    %981 = vst [vmem:[#allocation6 + $0xe0] sm:$0xff] %v973
    %982 = vst [vmem:[#allocation6 + $0xf0] sm:$0xff] %v974
    %v983 = vld [vmem:[#allocation5 + $0x10] sm:$0xff]
    %v984 = vld [vmem:[#allocation5 + $0x30] sm:$0xff]
    %v985 = vld [vmem:[#allocation5 + $0x50] sm:$0xff]
    %v986 = vld [vmem:[#allocation5 + $0x70] sm:$0xff]
    %987 = vst [vmem:[#allocation6 + $0x8] sm:$0xff] %v983
    %988 = vst [vmem:[#allocation6 + $0x18] sm:$0xff] %v984
    %989 = vst [vmem:[#allocation6 + $0x28] sm:$0xff] %v985
    %990 = vst [vmem:[#allocation6 + $0x38] sm:$0xff] %v986
    %v991 = vld [vmem:[#allocation5 + $0x10] sm:$0xff]
    %v992 = vld [vmem:[#allocation5 + $0x18] sm:$0xff]
    %v993 = vld [vmem:[#allocation5 + $0x30] sm:$0xff]
    %v994 = vld [vmem:[#allocation5 + $0x38] sm:$0xff]
    %v995 = vld [vmem:[#allocation5 + $0x50] sm:$0xff]
    %v996 = vld [vmem:[#allocation5 + $0x58] sm:$0xff]
    %v997 = vld [vmem:[#allocation5 + $0x70] sm:$0xff]
    %v998 = vld [vmem:[#allocation5 + $0x78] sm:$0xff]
    %1007 = vrot.lane.b32.xlu0 %v991, 127
    %v1008 = vpop.permute.xlu0 %1007
    %1009 = vrot.lane.b32.xlu0 %v992, 127
    %v1010 = vpop.permute.xlu0 %1009
    %1011 = vrot.lane.b32.xlu0 %v993, 127
    %v1012 = vpop.permute.xlu0 %1011
    %1013 = vrot.lane.b32.xlu0 %v994, 127
    %v1014 = vpop.permute.xlu0 %1013
    %1015 = vrot.lane.b32.xlu0 %v995, 127
    %v1016 = vpop.permute.xlu0 %1015
    %1017 = vrot.lane.b32.xlu0 %v996, 127
    %v1018 = vpop.permute.xlu0 %1017
    %1019 = vrot.lane.b32.xlu0 %v997, 127
    %v1020 = vpop.permute.xlu0 %1019
    %1021 = vrot.lane.b32.xlu0 %v998, 127
    %v1022 = vpop.permute.xlu0 %1021
    %v1023 = vsel %vm396, %v1008, %v1010
    %v1024 = vsel %vm396, %v1012, %v1014
    %v1025 = vsel %vm396, %v1016, %v1018
    %v1026 = vsel %vm396, %v1020, %v1022
    %1031 = vst [vmem:[#allocation6 + $0x48] sm:$0xff] %v1023
    %1032 = vst [vmem:[#allocation6 + $0x58] sm:$0xff] %v1024
    %1033 = vst [vmem:[#allocation6 + $0x68] sm:$0xff] %v1025
    %1034 = vst [vmem:[#allocation6 + $0x78] sm:$0xff] %v1026
    %v1035 = vld [vmem:[#allocation5 + $0x10] sm:$0xff]
    %v1036 = vld [vmem:[#allocation5 + $0x18] sm:$0xff]
    %v1037 = vld [vmem:[#allocation5 + $0x30] sm:$0xff]
    %v1038 = vld [vmem:[#allocation5 + $0x38] sm:$0xff]
    %v1039 = vld [vmem:[#allocation5 + $0x50] sm:$0xff]
    %v1040 = vld [vmem:[#allocation5 + $0x58] sm:$0xff]
    %v1041 = vld [vmem:[#allocation5 + $0x70] sm:$0xff]
    %v1042 = vld [vmem:[#allocation5 + $0x78] sm:$0xff]
    %1051 = vrot.lane.b32.xlu0 %v1035, 126
    %v1052 = vpop.permute.xlu0 %1051
    %1053 = vrot.lane.b32.xlu0 %v1036, 126
    %v1054 = vpop.permute.xlu0 %1053
    %1055 = vrot.lane.b32.xlu0 %v1037, 126
    %v1056 = vpop.permute.xlu0 %1055
    %1057 = vrot.lane.b32.xlu0 %v1038, 126
    %v1058 = vpop.permute.xlu0 %1057
    %1059 = vrot.lane.b32.xlu0 %v1039, 126
    %v1060 = vpop.permute.xlu0 %1059
    %1061 = vrot.lane.b32.xlu0 %v1040, 126
    %v1062 = vpop.permute.xlu0 %1061
    %1063 = vrot.lane.b32.xlu0 %v1041, 126
    %v1064 = vpop.permute.xlu0 %1063
    %1065 = vrot.lane.b32.xlu0 %v1042, 126
    %v1066 = vpop.permute.xlu0 %1065
    %v1067 = vsel %vm408, %v1052, %v1054
    %v1068 = vsel %vm408, %v1056, %v1058
    %v1069 = vsel %vm408, %v1060, %v1062
    %v1070 = vsel %vm408, %v1064, %v1066
    %1075 = vst [vmem:[#allocation6 + $0x88] sm:$0xff] %v1067
    %1076 = vst [vmem:[#allocation6 + $0x98] sm:$0xff] %v1068
    %1077 = vst [vmem:[#allocation6 + $0xa8] sm:$0xff] %v1069
    %1078 = vst [vmem:[#allocation6 + $0xb8] sm:$0xff] %v1070
    %v1079 = vld [vmem:[#allocation5 + $0x10] sm:$0xff]
    %v1080 = vld [vmem:[#allocation5 + $0x18] sm:$0xff]
    %v1081 = vld [vmem:[#allocation5 + $0x30] sm:$0xff]
    %v1082 = vld [vmem:[#allocation5 + $0x38] sm:$0xff]
    %v1083 = vld [vmem:[#allocation5 + $0x50] sm:$0xff]
    %v1084 = vld [vmem:[#allocation5 + $0x58] sm:$0xff]
    %v1085 = vld [vmem:[#allocation5 + $0x70] sm:$0xff]
    %v1086 = vld [vmem:[#allocation5 + $0x78] sm:$0xff]
    %1095 = vrot.lane.b32.xlu0 %v1079, 125
    %v1096 = vpop.permute.xlu0 %1095
    %1097 = vrot.lane.b32.xlu0 %v1080, 125
    %v1098 = vpop.permute.xlu0 %1097
    %1099 = vrot.lane.b32.xlu0 %v1081, 125
    %v1100 = vpop.permute.xlu0 %1099
    %1101 = vrot.lane.b32.xlu0 %v1082, 125
    %v1102 = vpop.permute.xlu0 %1101
    %1103 = vrot.lane.b32.xlu0 %v1083, 125
    %v1104 = vpop.permute.xlu0 %1103
    %1105 = vrot.lane.b32.xlu0 %v1084, 125
    %v1106 = vpop.permute.xlu0 %1105
    %1107 = vrot.lane.b32.xlu0 %v1085, 125
    %v1108 = vpop.permute.xlu0 %1107
    %1109 = vrot.lane.b32.xlu0 %v1086, 125
    %v1110 = vpop.permute.xlu0 %1109
    %v1111 = vsel %vm420, %v1096, %v1098
    %v1112 = vsel %vm420, %v1100, %v1102
    %v1113 = vsel %vm420, %v1104, %v1106
    %v1114 = vsel %vm420, %v1108, %v1110
    %1119 = vst [vmem:[#allocation6 + $0xc8] sm:$0xff] %v1111
    %1120 = vst [vmem:[#allocation6 + $0xd8] sm:$0xff] %v1112
    %1121 = vst [vmem:[#allocation6 + $0xe8] sm:$0xff] %v1113
    %1122 = vst [vmem:[#allocation6 + $0xf8] sm:$0xff] %v1114
    %v1123 = vld [vmem:[%s5] sm:$0xff]
    %v1124 = vld [vmem:[%s5 + $0x44] sm:$0xff]
    %v1125 = vld [vmem:[%s5 + $0x88] sm:$0xff]
    %v1126 = vld [vmem:[%s5 + $0xcc] sm:$0xff]
    %v1127 = vld [vmem:[%s5 + $0x110] sm:$0xff]
    %v1128 = vld [vmem:[%s5 + $0x154] sm:$0xff]
    %v1129 = vld [vmem:[%s5 + $0x198] sm:$0xff]
    %v1130 = vld [vmem:[%s5 + $0x1dc] sm:$0xff]
    %v1131 = vld [vmem:[%s5 + $0x220] sm:$0xff]
    %v1132 = vld [vmem:[%s5 + $0x264] sm:$0xff]
    %v1133 = vld [vmem:[%s5 + $0x2a8] sm:$0xff]
    %v1134 = vld [vmem:[%s5 + $0x2ec] sm:$0xff]
    %v1135 = vld [vmem:[%s5 + $0x330] sm:$0xff]
    %v1136 = vld [vmem:[%s5 + $0x374] sm:$0xff]
    %v1137 = vld [vmem:[%s5 + $0x3b8] sm:$0xff]
    %v1138 = vld [vmem:[%s5 + $0x3fc] sm:$0xff]
    %v1139 = vld [vmem:[#allocation6] sm:$0xff]
    %v1140 = vld [vmem:[#allocation6 + $0x8] sm:$0xff]
    %v1141 = vld [vmem:[#allocation6 + $0x10] sm:$0xff]
    %v1142 = vld [vmem:[#allocation6 + $0x18] sm:$0xff]
    %v1143 = vld [vmem:[#allocation6 + $0x20] sm:$0xff]
    %v1144 = vld [vmem:[#allocation6 + $0x28] sm:$0xff]
    %v1145 = vld [vmem:[#allocation6 + $0x30] sm:$0xff]
    %v1146 = vld [vmem:[#allocation6 + $0x38] sm:$0xff]
    %v1147 = vld [vmem:[#allocation6 + $0x40] sm:$0xff]
    %v1148 = vld [vmem:[#allocation6 + $0x48] sm:$0xff]
    %v1149 = vld [vmem:[#allocation6 + $0x50] sm:$0xff]
    %v1150 = vld [vmem:[#allocation6 + $0x58] sm:$0xff]
    %v1151 = vld [vmem:[#allocation6 + $0x60] sm:$0xff]
    %v1152 = vld [vmem:[#allocation6 + $0x68] sm:$0xff]
    %v1153 = vld [vmem:[#allocation6 + $0x70] sm:$0xff]
    %v1154 = vld [vmem:[#allocation6 + $0x78] sm:$0xff]
    %v1155 = vld [vmem:[#allocation6 + $0x80] sm:$0xff]
    %v1156 = vld [vmem:[#allocation6 + $0x88] sm:$0xff]
    %v1157 = vld [vmem:[#allocation6 + $0x90] sm:$0xff]
    %v1158 = vld [vmem:[#allocation6 + $0x98] sm:$0xff]
    %v1159 = vld [vmem:[#allocation6 + $0xa0] sm:$0xff]
    %v1160 = vld [vmem:[#allocation6 + $0xa8] sm:$0xff]
    %v1161 = vld [vmem:[#allocation6 + $0xb0] sm:$0xff]
    %v1162 = vld [vmem:[#allocation6 + $0xb8] sm:$0xff]
    %v1163 = vld [vmem:[#allocation6 + $0xc0] sm:$0xff]
    %v1164 = vld [vmem:[#allocation6 + $0xc8] sm:$0xff]
    %v1165 = vld [vmem:[#allocation6 + $0xd0] sm:$0xff]
    %v1166 = vld [vmem:[#allocation6 + $0xd8] sm:$0xff]
    %v1167 = vld [vmem:[#allocation6 + $0xe0] sm:$0xff]
    %v1168 = vld [vmem:[#allocation6 + $0xe8] sm:$0xff]
    %v1169 = vld [vmem:[#allocation6 + $0xf0] sm:$0xff]
    %v1170 = vld [vmem:[#allocation6 + $0xf8] sm:$0xff]
    %v1171 = vld [vmem:[#allocation5] sm:$0xff]
    %v1172 = vld [vmem:[#allocation5 + $0x8] sm:$0xff]
    %v1173 = vld [vmem:[#allocation5 + $0x20] sm:$0xff]
    %v1174 = vld [vmem:[#allocation5 + $0x28] sm:$0xff]
    %v1175 = vld [vmem:[#allocation5 + $0x40] sm:$0xff]
    %v1176 = vld [vmem:[#allocation5 + $0x48] sm:$0xff]
    %v1177 = vld [vmem:[#allocation5 + $0x60] sm:$0xff]
    %v1178 = vld [vmem:[#allocation5 + $0x68] sm:$0xff]
    %1187 = vrot.lane.b32.xlu0 %v1171, 124
    %v1188 = vpop.permute.xlu0 %1187
    %1189 = vrot.lane.b32.xlu0 %v1172, 124
    %v1190 = vpop.permute.xlu0 %1189
    %1191 = vrot.lane.b32.xlu0 %v1173, 124
    %v1192 = vpop.permute.xlu0 %1191
    %1193 = vrot.lane.b32.xlu0 %v1174, 124
    %v1194 = vpop.permute.xlu0 %1193
    %1195 = vrot.lane.b32.xlu0 %v1175, 124
    %v1196 = vpop.permute.xlu0 %1195
    %1197 = vrot.lane.b32.xlu0 %v1176, 124
    %v1198 = vpop.permute.xlu0 %1197
    %1199 = vrot.lane.b32.xlu0 %v1177, 124
    %v1200 = vpop.permute.xlu0 %1199
    %1201 = vrot.lane.b32.xlu0 %v1178, 124
    %v1202 = vpop.permute.xlu0 %1201
    %v1203 = vsel %vm432, %v1188, %v1190
    %v1204 = vsel %vm432, %v1192, %v1194
    %v1205 = vsel %vm432, %v1196, %v1198
    %v1206 = vsel %vm432, %v1200, %v1202
    %1211 = vst [vmem:[#allocation7] sm:$0xff] %v1203
    %1212 = vst [vmem:[#allocation7 + $0x10] sm:$0xff] %v1204
    %1213 = vst [vmem:[#allocation7 + $0x20] sm:$0xff] %v1205
    %1214 = vst [vmem:[#allocation7 + $0x30] sm:$0xff] %v1206
    %v1215 = vld [vmem:[#allocation5] sm:$0xff]
    %v1216 = vld [vmem:[#allocation5 + $0x8] sm:$0xff]
    %v1217 = vld [vmem:[#allocation5 + $0x20] sm:$0xff]
    %v1218 = vld [vmem:[#allocation5 + $0x28] sm:$0xff]
    %v1219 = vld [vmem:[#allocation5 + $0x40] sm:$0xff]
    %v1220 = vld [vmem:[#allocation5 + $0x48] sm:$0xff]
    %v1221 = vld [vmem:[#allocation5 + $0x60] sm:$0xff]
    %v1222 = vld [vmem:[#allocation5 + $0x68] sm:$0xff]
    %1231 = vrot.lane.b32.xlu0 %v1215, 123
    %v1232 = vpop.permute.xlu0 %1231
    %1233 = vrot.lane.b32.xlu0 %v1216, 123
    %v1234 = vpop.permute.xlu0 %1233
    %1235 = vrot.lane.b32.xlu0 %v1217, 123
    %v1236 = vpop.permute.xlu0 %1235
    %1237 = vrot.lane.b32.xlu0 %v1218, 123
    %v1238 = vpop.permute.xlu0 %1237
    %1239 = vrot.lane.b32.xlu0 %v1219, 123
    %v1240 = vpop.permute.xlu0 %1239
    %1241 = vrot.lane.b32.xlu0 %v1220, 123
    %v1242 = vpop.permute.xlu0 %1241
    %1243 = vrot.lane.b32.xlu0 %v1221, 123
    %v1244 = vpop.permute.xlu0 %1243
    %1245 = vrot.lane.b32.xlu0 %v1222, 123
    %v1246 = vpop.permute.xlu0 %1245
    %v1247 = vsel %vm444, %v1232, %v1234
    %v1248 = vsel %vm444, %v1236, %v1238
    %v1249 = vsel %vm444, %v1240, %v1242
    %v1250 = vsel %vm444, %v1244, %v1246
    %1255 = vst [vmem:[#allocation7 + $0x40] sm:$0xff] %v1247
    %1256 = vst [vmem:[#allocation7 + $0x50] sm:$0xff] %v1248
    %1257 = vst [vmem:[#allocation7 + $0x60] sm:$0xff] %v1249
    %1258 = vst [vmem:[#allocation7 + $0x70] sm:$0xff] %v1250
    %v1259 = vld [vmem:[#allocation5] sm:$0xff]
    %v1260 = vld [vmem:[#allocation5 + $0x8] sm:$0xff]
    %v1261 = vld [vmem:[#allocation5 + $0x20] sm:$0xff]
    %v1262 = vld [vmem:[#allocation5 + $0x28] sm:$0xff]
    %v1263 = vld [vmem:[#allocation5 + $0x40] sm:$0xff]
    %v1264 = vld [vmem:[#allocation5 + $0x48] sm:$0xff]
    %v1265 = vld [vmem:[#allocation5 + $0x60] sm:$0xff]
    %v1266 = vld [vmem:[#allocation5 + $0x68] sm:$0xff]
    %1275 = vrot.lane.b32.xlu0 %v1259, 122
    %v1276 = vpop.permute.xlu0 %1275
    %1277 = vrot.lane.b32.xlu0 %v1260, 122
    %v1278 = vpop.permute.xlu0 %1277
    %1279 = vrot.lane.b32.xlu0 %v1261, 122
    %v1280 = vpop.permute.xlu0 %1279
    %1281 = vrot.lane.b32.xlu0 %v1262, 122
    %v1282 = vpop.permute.xlu0 %1281
    %1283 = vrot.lane.b32.xlu0 %v1263, 122
    %v1284 = vpop.permute.xlu0 %1283
    %1285 = vrot.lane.b32.xlu0 %v1264, 122
    %v1286 = vpop.permute.xlu0 %1285
    %1287 = vrot.lane.b32.xlu0 %v1265, 122
    %v1288 = vpop.permute.xlu0 %1287
    %1289 = vrot.lane.b32.xlu0 %v1266, 122
    %v1290 = vpop.permute.xlu0 %1289
    %v1291 = vsel %vm456, %v1276, %v1278
    %v1292 = vsel %vm456, %v1280, %v1282
    %v1293 = vsel %vm456, %v1284, %v1286
    %v1294 = vsel %vm456, %v1288, %v1290
    %1299 = vst [vmem:[#allocation7 + $0x80] sm:$0xff] %v1291
    %1300 = vst [vmem:[#allocation7 + $0x90] sm:$0xff] %v1292
    %1301 = vst [vmem:[#allocation7 + $0xa0] sm:$0xff] %v1293
    %1302 = vst [vmem:[#allocation7 + $0xb0] sm:$0xff] %v1294
    %v1303 = vld [vmem:[#allocation5] sm:$0xff]
    %v1304 = vld [vmem:[#allocation5 + $0x8] sm:$0xff]
    %v1305 = vld [vmem:[#allocation5 + $0x20] sm:$0xff]
    %v1306 = vld [vmem:[#allocation5 + $0x28] sm:$0xff]
    %v1307 = vld [vmem:[#allocation5 + $0x40] sm:$0xff]
    %v1308 = vld [vmem:[#allocation5 + $0x48] sm:$0xff]
    %v1309 = vld [vmem:[#allocation5 + $0x60] sm:$0xff]
    %v1310 = vld [vmem:[#allocation5 + $0x68] sm:$0xff]
    %1319 = vrot.lane.b32.xlu0 %v1303, 121
    %v1320 = vpop.permute.xlu0 %1319
    %1321 = vrot.lane.b32.xlu0 %v1304, 121
    %v1322 = vpop.permute.xlu0 %1321
    %1323 = vrot.lane.b32.xlu0 %v1305, 121
    %v1324 = vpop.permute.xlu0 %1323
    %1325 = vrot.lane.b32.xlu0 %v1306, 121
    %v1326 = vpop.permute.xlu0 %1325
    %1327 = vrot.lane.b32.xlu0 %v1307, 121
    %v1328 = vpop.permute.xlu0 %1327
    %1329 = vrot.lane.b32.xlu0 %v1308, 121
    %v1330 = vpop.permute.xlu0 %1329
    %1331 = vrot.lane.b32.xlu0 %v1309, 121
    %v1332 = vpop.permute.xlu0 %1331
    %1333 = vrot.lane.b32.xlu0 %v1310, 121
    %v1334 = vpop.permute.xlu0 %1333
    %v1335 = vsel %vm468, %v1320, %v1322
    %v1336 = vsel %vm468, %v1324, %v1326
    %v1337 = vsel %vm468, %v1328, %v1330
    %v1338 = vsel %vm468, %v1332, %v1334
    %1343 = vst [vmem:[#allocation7 + $0xc0] sm:$0xff] %v1335
    %1344 = vst [vmem:[#allocation7 + $0xd0] sm:$0xff] %v1336
    %1345 = vst [vmem:[#allocation7 + $0xe0] sm:$0xff] %v1337
    %1346 = vst [vmem:[#allocation7 + $0xf0] sm:$0xff] %v1338
    %v1347 = vld [vmem:[#allocation5 + $0x10] sm:$0xff]
    %v1348 = vld [vmem:[#allocation5 + $0x18] sm:$0xff]
    %v1349 = vld [vmem:[#allocation5 + $0x30] sm:$0xff]
    %v1350 = vld [vmem:[#allocation5 + $0x38] sm:$0xff]
    %v1351 = vld [vmem:[#allocation5 + $0x50] sm:$0xff]
    %v1352 = vld [vmem:[#allocation5 + $0x58] sm:$0xff]
    %v1353 = vld [vmem:[#allocation5 + $0x70] sm:$0xff]
    %v1354 = vld [vmem:[#allocation5 + $0x78] sm:$0xff]
    %1363 = vrot.lane.b32.xlu0 %v1347, 124
    %v1364 = vpop.permute.xlu0 %1363
    %1365 = vrot.lane.b32.xlu0 %v1348, 124
    %v1366 = vpop.permute.xlu0 %1365
    %1367 = vrot.lane.b32.xlu0 %v1349, 124
    %v1368 = vpop.permute.xlu0 %1367
    %1369 = vrot.lane.b32.xlu0 %v1350, 124
    %v1370 = vpop.permute.xlu0 %1369
    %1371 = vrot.lane.b32.xlu0 %v1351, 124
    %v1372 = vpop.permute.xlu0 %1371
    %1373 = vrot.lane.b32.xlu0 %v1352, 124
    %v1374 = vpop.permute.xlu0 %1373
    %1375 = vrot.lane.b32.xlu0 %v1353, 124
    %v1376 = vpop.permute.xlu0 %1375
    %1377 = vrot.lane.b32.xlu0 %v1354, 124
    %v1378 = vpop.permute.xlu0 %1377
    %v1379 = vsel %vm432, %v1364, %v1366
    %v1380 = vsel %vm432, %v1368, %v1370
    %v1381 = vsel %vm432, %v1372, %v1374
    %v1382 = vsel %vm432, %v1376, %v1378
    %1387 = vst [vmem:[#allocation7 + $0x8] sm:$0xff] %v1379
    %1388 = vst [vmem:[#allocation7 + $0x18] sm:$0xff] %v1380
    %1389 = vst [vmem:[#allocation7 + $0x28] sm:$0xff] %v1381
    %1390 = vst [vmem:[#allocation7 + $0x38] sm:$0xff] %v1382
    %v1391 = vld [vmem:[#allocation5 + $0x10] sm:$0xff]
    %v1392 = vld [vmem:[#allocation5 + $0x18] sm:$0xff]
    %v1393 = vld [vmem:[#allocation5 + $0x30] sm:$0xff]
    %v1394 = vld [vmem:[#allocation5 + $0x38] sm:$0xff]
    %v1395 = vld [vmem:[#allocation5 + $0x50] sm:$0xff]
    %v1396 = vld [vmem:[#allocation5 + $0x58] sm:$0xff]
    %v1397 = vld [vmem:[#allocation5 + $0x70] sm:$0xff]
    %v1398 = vld [vmem:[#allocation5 + $0x78] sm:$0xff]
    %1407 = vrot.lane.b32.xlu0 %v1391, 123
    %v1408 = vpop.permute.xlu0 %1407
    %1409 = vrot.lane.b32.xlu0 %v1392, 123
    %v1410 = vpop.permute.xlu0 %1409
    %1411 = vrot.lane.b32.xlu0 %v1393, 123
    %v1412 = vpop.permute.xlu0 %1411
    %1413 = vrot.lane.b32.xlu0 %v1394, 123
    %v1414 = vpop.permute.xlu0 %1413
    %1415 = vrot.lane.b32.xlu0 %v1395, 123
    %v1416 = vpop.permute.xlu0 %1415
    %1417 = vrot.lane.b32.xlu0 %v1396, 123
    %v1418 = vpop.permute.xlu0 %1417
    %1419 = vrot.lane.b32.xlu0 %v1397, 123
    %v1420 = vpop.permute.xlu0 %1419
    %1421 = vrot.lane.b32.xlu0 %v1398, 123
    %v1422 = vpop.permute.xlu0 %1421
    %v1423 = vsel %vm444, %v1408, %v1410
    %v1424 = vsel %vm444, %v1412, %v1414
    %v1425 = vsel %vm444, %v1416, %v1418
    %v1426 = vsel %vm444, %v1420, %v1422
    %1431 = vst [vmem:[#allocation7 + $0x48] sm:$0xff] %v1423
    %1432 = vst [vmem:[#allocation7 + $0x58] sm:$0xff] %v1424
    %1433 = vst [vmem:[#allocation7 + $0x68] sm:$0xff] %v1425
    %1434 = vst [vmem:[#allocation7 + $0x78] sm:$0xff] %v1426
    %v1435 = vld [vmem:[#allocation5 + $0x10] sm:$0xff]
    %v1436 = vld [vmem:[#allocation5 + $0x18] sm:$0xff]
    %v1437 = vld [vmem:[#allocation5 + $0x30] sm:$0xff]
    %v1438 = vld [vmem:[#allocation5 + $0x38] sm:$0xff]
    %v1439 = vld [vmem:[#allocation5 + $0x50] sm:$0xff]
    %v1440 = vld [vmem:[#allocation5 + $0x58] sm:$0xff]
    %v1441 = vld [vmem:[#allocation5 + $0x70] sm:$0xff]
    %v1442 = vld [vmem:[#allocation5 + $0x78] sm:$0xff]
    %1451 = vrot.lane.b32.xlu0 %v1435, 122
    %v1452 = vpop.permute.xlu0 %1451
    %1453 = vrot.lane.b32.xlu0 %v1436, 122
    %v1454 = vpop.permute.xlu0 %1453
    %1455 = vrot.lane.b32.xlu0 %v1437, 122
    %v1456 = vpop.permute.xlu0 %1455
    %1457 = vrot.lane.b32.xlu0 %v1438, 122
    %v1458 = vpop.permute.xlu0 %1457
    %1459 = vrot.lane.b32.xlu0 %v1439, 122
    %v1460 = vpop.permute.xlu0 %1459
    %1461 = vrot.lane.b32.xlu0 %v1440, 122
    %v1462 = vpop.permute.xlu0 %1461
    %1463 = vrot.lane.b32.xlu0 %v1441, 122
    %v1464 = vpop.permute.xlu0 %1463
    %1465 = vrot.lane.b32.xlu0 %v1442, 122
    %v1466 = vpop.permute.xlu0 %1465
    %v1467 = vsel %vm456, %v1452, %v1454
    %v1468 = vsel %vm456, %v1456, %v1458
    %v1469 = vsel %vm456, %v1460, %v1462
    %v1470 = vsel %vm456, %v1464, %v1466
    %1475 = vst [vmem:[#allocation7 + $0x88] sm:$0xff] %v1467
    %1476 = vst [vmem:[#allocation7 + $0x98] sm:$0xff] %v1468
    %1477 = vst [vmem:[#allocation7 + $0xa8] sm:$0xff] %v1469
    %1478 = vst [vmem:[#allocation7 + $0xb8] sm:$0xff] %v1470
    %v1479 = vld [vmem:[#allocation5 + $0x10] sm:$0xff]
    %v1480 = vld [vmem:[#allocation5 + $0x18] sm:$0xff]
    %v1481 = vld [vmem:[#allocation5 + $0x30] sm:$0xff]
    %v1482 = vld [vmem:[#allocation5 + $0x38] sm:$0xff]
    %v1483 = vld [vmem:[#allocation5 + $0x50] sm:$0xff]
    %v1484 = vld [vmem:[#allocation5 + $0x58] sm:$0xff]
    %v1485 = vld [vmem:[#allocation5 + $0x70] sm:$0xff]
    %v1486 = vld [vmem:[#allocation5 + $0x78] sm:$0xff]
    %1495 = vrot.lane.b32.xlu0 %v1479, 121
    %v1496 = vpop.permute.xlu0 %1495
    %1497 = vrot.lane.b32.xlu0 %v1480, 121
    %v1498 = vpop.permute.xlu0 %1497
    %1499 = vrot.lane.b32.xlu0 %v1481, 121
    %v1500 = vpop.permute.xlu0 %1499
    %1501 = vrot.lane.b32.xlu0 %v1482, 121
    %v1502 = vpop.permute.xlu0 %1501
    %1503 = vrot.lane.b32.xlu0 %v1483, 121
    %v1504 = vpop.permute.xlu0 %1503
    %1505 = vrot.lane.b32.xlu0 %v1484, 121
    %v1506 = vpop.permute.xlu0 %1505
    %1507 = vrot.lane.b32.xlu0 %v1485, 121
    %v1508 = vpop.permute.xlu0 %1507
    %1509 = vrot.lane.b32.xlu0 %v1486, 121
    %v1510 = vpop.permute.xlu0 %1509
    %v1511 = vsel %vm468, %v1496, %v1498
    %v1512 = vsel %vm468, %v1500, %v1502
    %v1513 = vsel %vm468, %v1504, %v1506
    %v1514 = vsel %vm468, %v1508, %v1510
    %1519 = vst [vmem:[#allocation7 + $0xc8] sm:$0xff] %v1511
    %1520 = vst [vmem:[#allocation7 + $0xd8] sm:$0xff] %v1512
    %1521 = vst [vmem:[#allocation7 + $0xe8] sm:$0xff] %v1513
    %1522 = vst [vmem:[#allocation7 + $0xf8] sm:$0xff] %v1514
    %v1523 = vld [vmem:[%s5 + $0x8] sm:$0xff]
    %v1524 = vld [vmem:[%s5 + $0x4c] sm:$0xff]
    %v1525 = vld [vmem:[%s5 + $0x90] sm:$0xff]
    %v1526 = vld [vmem:[%s5 + $0xd4] sm:$0xff]
    %v1527 = vld [vmem:[%s5 + $0x118] sm:$0xff]
    %v1528 = vld [vmem:[%s5 + $0x15c] sm:$0xff]
    %v1529 = vld [vmem:[%s5 + $0x1a0] sm:$0xff]
    %v1530 = vld [vmem:[%s5 + $0x1e4] sm:$0xff]
    %v1531 = vld [vmem:[%s5 + $0x228] sm:$0xff]
    %v1532 = vld [vmem:[%s5 + $0x26c] sm:$0xff]
    %v1533 = vld [vmem:[%s5 + $0x2b0] sm:$0xff]
    %v1534 = vld [vmem:[%s5 + $0x2f4] sm:$0xff]
    %v1535 = vld [vmem:[%s5 + $0x338] sm:$0xff]
    %v1536 = vld [vmem:[%s5 + $0x37c] sm:$0xff]
    %v1537 = vld [vmem:[%s5 + $0x3c0] sm:$0xff]
    %v1538 = vld [vmem:[%s5 + $0x404] sm:$0xff]
    %v1539 = vld [vmem:[#allocation7] sm:$0xff]
    %v1540 = vld [vmem:[#allocation7 + $0x8] sm:$0xff]
    %v1541 = vld [vmem:[#allocation7 + $0x10] sm:$0xff]
    %v1542 = vld [vmem:[#allocation7 + $0x18] sm:$0xff]
    %v1543 = vld [vmem:[#allocation7 + $0x20] sm:$0xff]
    %v1544 = vld [vmem:[#allocation7 + $0x28] sm:$0xff]
    %v1545 = vld [vmem:[#allocation7 + $0x30] sm:$0xff]
    %v1546 = vld [vmem:[#allocation7 + $0x38] sm:$0xff]
    %v1547 = vld [vmem:[#allocation7 + $0x40] sm:$0xff]
    %v1548 = vld [vmem:[#allocation7 + $0x48] sm:$0xff]
    %v1549 = vld [vmem:[#allocation7 + $0x50] sm:$0xff]
    %v1550 = vld [vmem:[#allocation7 + $0x58] sm:$0xff]
    %v1551 = vld [vmem:[#allocation7 + $0x60] sm:$0xff]
    %v1552 = vld [vmem:[#allocation7 + $0x68] sm:$0xff]
    %v1553 = vld [vmem:[#allocation7 + $0x70] sm:$0xff]
    %v1554 = vld [vmem:[#allocation7 + $0x78] sm:$0xff]
    %v1555 = vld [vmem:[#allocation7 + $0x80] sm:$0xff]
    %v1556 = vld [vmem:[#allocation7 + $0x88] sm:$0xff]
    %v1557 = vld [vmem:[#allocation7 + $0x90] sm:$0xff]
    %v1558 = vld [vmem:[#allocation7 + $0x98] sm:$0xff]
    %v1559 = vld [vmem:[#allocation7 + $0xa0] sm:$0xff]
    %v1560 = vld [vmem:[#allocation7 + $0xa8] sm:$0xff]
    %v1561 = vld [vmem:[#allocation7 + $0xb0] sm:$0xff]
    %v1562 = vld [vmem:[#allocation7 + $0xb8] sm:$0xff]
    %v1563 = vld [vmem:[#allocation7 + $0xc0] sm:$0xff]
    %v1564 = vld [vmem:[#allocation7 + $0xc8] sm:$0xff]
    %v1565 = vld [vmem:[#allocation7 + $0xd0] sm:$0xff]
    %v1566 = vld [vmem:[#allocation7 + $0xd8] sm:$0xff]
    %v1567 = vld [vmem:[#allocation7 + $0xe0] sm:$0xff]
    %v1568 = vld [vmem:[#allocation7 + $0xe8] sm:$0xff]
    %v1569 = vld [vmem:[#allocation7 + $0xf0] sm:$0xff]
    %v1570 = vld [vmem:[#allocation7 + $0xf8] sm:$0xff]
    %v1587 = vunpack.c.l.b16 %v1523
    %v1588 = vunpack.c.h.b16 %v1523
    %v1589 = vunpack.c.l.b16 %v1524
    %v1590 = vunpack.c.h.b16 %v1524
    %v1591 = vunpack.c.l.b16 %v1525
    %v1592 = vunpack.c.h.b16 %v1525
    %v1593 = vunpack.c.l.b16 %v1526
    %v1594 = vunpack.c.h.b16 %v1526
    %v1595 = vunpack.c.l.b16 %v1527
    %v1596 = vunpack.c.h.b16 %v1527
    %v1597 = vunpack.c.l.b16 %v1528
    %v1598 = vunpack.c.h.b16 %v1528
    %v1599 = vunpack.c.l.b16 %v1529
    %v1600 = vunpack.c.h.b16 %v1529
    %v1601 = vunpack.c.l.b16 %v1530
    %v1602 = vunpack.c.h.b16 %v1530
    %v1603 = vunpack.c.l.b16 %v1531
    %v1604 = vunpack.c.h.b16 %v1531
    %v1605 = vunpack.c.l.b16 %v1532
    %v1606 = vunpack.c.h.b16 %v1532
    %v1607 = vunpack.c.l.b16 %v1533
    %v1608 = vunpack.c.h.b16 %v1533
    %v1609 = vunpack.c.l.b16 %v1534
    %v1610 = vunpack.c.h.b16 %v1534
    %v1611 = vunpack.c.l.b16 %v1535
    %v1612 = vunpack.c.h.b16 %v1535
    %v1613 = vunpack.c.l.b16 %v1536
    %v1614 = vunpack.c.h.b16 %v1536
    %v1615 = vunpack.c.l.b16 %v1537
    %v1616 = vunpack.c.h.b16 %v1537
    %v1617 = vunpack.c.l.b16 %v1538
    %v1618 = vunpack.c.h.b16 %v1538
    %v1619 = vpack.c.b16 %v1589, %v1587
    %v1620 = vpack.c.b16 %v1590, %v1588
    %v1621 = vpack.c.b16 %v1593, %v1591
    %v1622 = vpack.c.b16 %v1594, %v1592
    %v1623 = vpack.c.b16 %v1597, %v1595
    %v1624 = vpack.c.b16 %v1598, %v1596
    %v1625 = vpack.c.b16 %v1601, %v1599
    %v1626 = vpack.c.b16 %v1602, %v1600
    %v1627 = vpack.c.b16 %v1605, %v1603
    %v1628 = vpack.c.b16 %v1606, %v1604
    %v1629 = vpack.c.b16 %v1609, %v1607
    %v1630 = vpack.c.b16 %v1610, %v1608
    %v1631 = vpack.c.b16 %v1613, %v1611
    %v1632 = vpack.c.b16 %v1614, %v1612
    %v1633 = vpack.c.b16 %v1617, %v1615
    %v1634 = vpack.c.b16 %v1618, %v1616
    %1651 = vmatprep.subr.bf16.mxu0 %v1540
    %1652 = vmatpush1.bf16.msra.mxu0 %v1539
    %1653 = vmatprep.subr.bf16.mxu0 %v1542
    %1654 = vmatpush1.bf16.msra.mxu0 %v1541
    %1655 = vmatprep.subr.bf16.mxu0 %v1544
    %1656 = vmatpush1.bf16.msra.mxu0 %v1543
    %1657 = vmatprep.subr.bf16.mxu0 %v1546
    %1658 = vmatpush1.bf16.msra.mxu0 %v1545
    %1659 = vmatprep.subr.bf16.mxu0 %v1548
    %1660 = vmatpush1.bf16.msra.mxu0 %v1547
    %1661 = vmatprep.subr.bf16.mxu0 %v1550
    %1662 = vmatpush1.bf16.msra.mxu0 %v1549
    %1663 = vmatprep.subr.bf16.mxu0 %v1552
    %1664 = vmatpush1.bf16.msra.mxu0 %v1551
    %1665 = vmatprep.subr.bf16.mxu0 %v1554
    %1666 = vmatpush1.bf16.msra.mxu0 %v1553
    %1667 = vmatprep.subr.bf16.mxu0 %v1556
    %1668 = vmatpush1.bf16.msra.mxu0 %v1555
    %1669 = vmatprep.subr.bf16.mxu0 %v1558
    %1670 = vmatpush1.bf16.msra.mxu0 %v1557
    %1671 = vmatprep.subr.bf16.mxu0 %v1560
    %1672 = vmatpush1.bf16.msra.mxu0 %v1559
    %1673 = vmatprep.subr.bf16.mxu0 %v1562
    %1674 = vmatpush1.bf16.msra.mxu0 %v1561
    %1675 = vmatprep.subr.bf16.mxu0 %v1564
    %1676 = vmatpush1.bf16.msra.mxu0 %v1563
    %1677 = vmatprep.subr.bf16.mxu0 %v1566
    %1678 = vmatpush1.bf16.msra.mxu0 %v1565
    %1679 = vmatprep.subr.bf16.mxu0 %v1568
    %1680 = vmatpush1.bf16.msra.mxu0 %v1567
    %1681 = vmatprep.subr.bf16.mxu0 %v1570
    %1682 = vmatpush1.bf16.msra.mxu0 %v1569
    %1683 = vmatprep.mubr.bf16.mxu0 %v1620
    %1684 = vmatmul.mubr.bf16.gmra.mrb[0].mxu0 %v1619
    %v1685 = vpop.f32.mrb[0].mxu0
    %v1686 = vadd.f32 0.0, %v1685
    %v1687 = vpop.f32.mrb[0].mxu0
    %v1688 = vadd.f32 0.0, %v1687
    %v1689 = vpop.f32.mrb[0].mxu0
    %v1690 = vadd.f32 0.0, %v1689
    %v1691 = vpop.f32.mrb[0].mxu0
    %v1692 = vadd.f32 0.0, %v1691
    %1693 = vmatprep.mubr.bf16.mxu0 %v1622
    %1694 = vmatmul.mubr.bf16.gmra.mrb[0].mxu0 %v1621
    %v1695 = vpop.f32.mrb[0].mxu0
    %v1696 = vadd.f32 0.0, %v1695
    %v1697 = vpop.f32.mrb[0].mxu0
    %v1698 = vadd.f32 0.0, %v1697
    %v1699 = vpop.f32.mrb[0].mxu0
    %v1700 = vadd.f32 0.0, %v1699
    %v1701 = vpop.f32.mrb[0].mxu0
    %v1702 = vadd.f32 0.0, %v1701
    %1703 = vmatprep.mubr.bf16.mxu0 %v1624
    %1704 = vmatmul.mubr.bf16.gmra.mrb[0].mxu0 %v1623
    %v1705 = vpop.f32.mrb[0].mxu0
    %v1706 = vadd.f32 0.0, %v1705
    %v1707 = vpop.f32.mrb[0].mxu0
    %v1708 = vadd.f32 0.0, %v1707
    %v1709 = vpop.f32.mrb[0].mxu0
    %v1710 = vadd.f32 0.0, %v1709
    %v1711 = vpop.f32.mrb[0].mxu0
    %v1712 = vadd.f32 0.0, %v1711
    %1713 = vmatprep.mubr.bf16.mxu0 %v1626
    %1714 = vmatmul.mubr.bf16.gmra.mrb[0].mxu0 %v1625
    %v1715 = vpop.f32.mrb[0].mxu0
    %v1716 = vadd.f32 0.0, %v1715
    %v1717 = vpop.f32.mrb[0].mxu0
    %v1718 = vadd.f32 0.0, %v1717
    %v1719 = vpop.f32.mrb[0].mxu0
    %v1720 = vadd.f32 0.0, %v1719
    %v1721 = vpop.f32.mrb[0].mxu0
    %v1722 = vadd.f32 0.0, %v1721
    %1723 = vmatprep.mubr.bf16.mxu0 %v1628
    %1724 = vmatmul.mubr.bf16.gmra.mrb[0].mxu0 %v1627
    %v1725 = vpop.f32.mrb[0].mxu0
    %v1726 = vadd.f32 0.0, %v1725
    %v1727 = vpop.f32.mrb[0].mxu0
    %v1728 = vadd.f32 0.0, %v1727
    %v1729 = vpop.f32.mrb[0].mxu0
    %v1730 = vadd.f32 0.0, %v1729
    %v1731 = vpop.f32.mrb[0].mxu0
    %v1732 = vadd.f32 0.0, %v1731
    %1733 = vmatprep.mubr.bf16.mxu0 %v1630
    %1734 = vmatmul.mubr.bf16.gmra.mrb[0].mxu0 %v1629
    %v1735 = vpop.f32.mrb[0].mxu0
    %v1736 = vadd.f32 0.0, %v1735
    %v1737 = vpop.f32.mrb[0].mxu0
    %v1738 = vadd.f32 0.0, %v1737
    %v1739 = vpop.f32.mrb[0].mxu0
    %v1740 = vadd.f32 0.0, %v1739
    %v1741 = vpop.f32.mrb[0].mxu0
    %v1742 = vadd.f32 0.0, %v1741
    %1743 = vmatprep.mubr.bf16.mxu0 %v1632
    %1744 = vmatmul.mubr.bf16.gmra.mrb[0].mxu0 %v1631
    %v1745 = vpop.f32.mrb[0].mxu0
    %v1746 = vadd.f32 0.0, %v1745
    %v1747 = vpop.f32.mrb[0].mxu0
    %v1748 = vadd.f32 0.0, %v1747
    %v1749 = vpop.f32.mrb[0].mxu0
    %v1750 = vadd.f32 0.0, %v1749
    %v1751 = vpop.f32.mrb[0].mxu0
    %v1752 = vadd.f32 0.0, %v1751
    %1753 = vmatprep.mubr.bf16.mxu0 %v1634
    %1754 = vmatmul.mubr.bf16.gmra.mrb[0].mxu0 %v1633
    %v1755 = vpop.f32.mrb[0].mxu0
    %v1756 = vadd.f32 0.0, %v1755
    %v1757 = vpop.f32.mrb[0].mxu0
    %v1758 = vadd.f32 0.0, %v1757
    %v1759 = vpop.f32.mrb[0].mxu0
    %v1760 = vadd.f32 0.0, %v1759
    %v1761 = vpop.f32.mrb[0].mxu0
    %v1762 = vadd.f32 0.0, %v1761
    %1763 = vdwg.mxu0
    %v1780 = vunpack.c.l.b16 %v1123
    %v1781 = vunpack.c.h.b16 %v1123
    %v1782 = vunpack.c.l.b16 %v1124
    %v1783 = vunpack.c.h.b16 %v1124
    %v1784 = vunpack.c.l.b16 %v1125
    %v1785 = vunpack.c.h.b16 %v1125
    %v1786 = vunpack.c.l.b16 %v1126
    %v1787 = vunpack.c.h.b16 %v1126
    %v1788 = vunpack.c.l.b16 %v1127
    %v1789 = vunpack.c.h.b16 %v1127
    %v1790 = vunpack.c.l.b16 %v1128
    %v1791 = vunpack.c.h.b16 %v1128
    %v1792 = vunpack.c.l.b16 %v1129
    %v1793 = vunpack.c.h.b16 %v1129
    %v1794 = vunpack.c.l.b16 %v1130
    %v1795 = vunpack.c.h.b16 %v1130
    %v1796 = vunpack.c.l.b16 %v1131
    %v1797 = vunpack.c.h.b16 %v1131
    %v1798 = vunpack.c.l.b16 %v1132
    %v1799 = vunpack.c.h.b16 %v1132
    %v1800 = vunpack.c.l.b16 %v1133
    %v1801 = vunpack.c.h.b16 %v1133
    %v1802 = vunpack.c.l.b16 %v1134
    %v1803 = vunpack.c.h.b16 %v1134
    %v1804 = vunpack.c.l.b16 %v1135
    %v1805 = vunpack.c.h.b16 %v1135
    %v1806 = vunpack.c.l.b16 %v1136
    %v1807 = vunpack.c.h.b16 %v1136
    %v1808 = vunpack.c.l.b16 %v1137
    %v1809 = vunpack.c.h.b16 %v1137
    %v1810 = vunpack.c.l.b16 %v1138
    %v1811 = vunpack.c.h.b16 %v1138
    %v1812 = vpack.c.b16 %v1782, %v1780
    %v1813 = vpack.c.b16 %v1783, %v1781
    %v1814 = vpack.c.b16 %v1786, %v1784
    %v1815 = vpack.c.b16 %v1787, %v1785
    %v1816 = vpack.c.b16 %v1790, %v1788
    %v1817 = vpack.c.b16 %v1791, %v1789
    %v1818 = vpack.c.b16 %v1794, %v1792
    %v1819 = vpack.c.b16 %v1795, %v1793
    %v1820 = vpack.c.b16 %v1798, %v1796
    %v1821 = vpack.c.b16 %v1799, %v1797
    %v1822 = vpack.c.b16 %v1802, %v1800
    %v1823 = vpack.c.b16 %v1803, %v1801
    %v1824 = vpack.c.b16 %v1806, %v1804
    %v1825 = vpack.c.b16 %v1807, %v1805
    %v1826 = vpack.c.b16 %v1810, %v1808
    %v1827 = vpack.c.b16 %v1811, %v1809
    %1844 = vmatprep.subr.bf16.mxu0 %v1140
    %1845 = vmatpush1.bf16.msra.mxu0 %v1139
    %1846 = vmatprep.subr.bf16.mxu0 %v1142
    %1847 = vmatpush1.bf16.msra.mxu0 %v1141
    %1848 = vmatprep.subr.bf16.mxu0 %v1144
    %1849 = vmatpush1.bf16.msra.mxu0 %v1143
    %1850 = vmatprep.subr.bf16.mxu0 %v1146
    %1851 = vmatpush1.bf16.msra.mxu0 %v1145
    %1852 = vmatprep.subr.bf16.mxu0 %v1148
    %1853 = vmatpush1.bf16.msra.mxu0 %v1147
    %1854 = vmatprep.subr.bf16.mxu0 %v1150
    %1855 = vmatpush1.bf16.msra.mxu0 %v1149
    %1856 = vmatprep.subr.bf16.mxu0 %v1152
    %1857 = vmatpush1.bf16.msra.mxu0 %v1151
    %1858 = vmatprep.subr.bf16.mxu0 %v1154
    %1859 = vmatpush1.bf16.msra.mxu0 %v1153
    %1860 = vmatprep.subr.bf16.mxu0 %v1156
    %1861 = vmatpush1.bf16.msra.mxu0 %v1155
    %1862 = vmatprep.subr.bf16.mxu0 %v1158
    %1863 = vmatpush1.bf16.msra.mxu0 %v1157
    %1864 = vmatprep.subr.bf16.mxu0 %v1160
    %1865 = vmatpush1.bf16.msra.mxu0 %v1159
    %1866 = vmatprep.subr.bf16.mxu0 %v1162
    %1867 = vmatpush1.bf16.msra.mxu0 %v1161
    %1868 = vmatprep.subr.bf16.mxu0 %v1164
    %1869 = vmatpush1.bf16.msra.mxu0 %v1163
    %1870 = vmatprep.subr.bf16.mxu0 %v1166
    %1871 = vmatpush1.bf16.msra.mxu0 %v1165
    %1872 = vmatprep.subr.bf16.mxu0 %v1168
    %1873 = vmatpush1.bf16.msra.mxu0 %v1167
    %1874 = vmatprep.subr.bf16.mxu0 %v1170
    %1875 = vmatpush1.bf16.msra.mxu0 %v1169
    %1876 = vmatprep.mubr.bf16.mxu0 %v1813
    %1877 = vmatmul.mubr.bf16.gmra.mrb[0].mxu0 %v1812
    %v1878 = vpop.f32.mrb[0].mxu0
    %v1879 = vadd.f32 %v1686, %v1878
    %v1880 = vpop.f32.mrb[0].mxu0
    %v1881 = vadd.f32 %v1688, %v1880
    %v1882 = vpop.f32.mrb[0].mxu0
    %v1883 = vadd.f32 %v1690, %v1882
    %v1884 = vpop.f32.mrb[0].mxu0
    %v1885 = vadd.f32 %v1692, %v1884
    %1886 = vmatprep.mubr.bf16.mxu0 %v1815
    %1887 = vmatmul.mubr.bf16.gmra.mrb[0].mxu0 %v1814
    %v1888 = vpop.f32.mrb[0].mxu0
    %v1889 = vadd.f32 %v1696, %v1888
    %v1890 = vpop.f32.mrb[0].mxu0
    %v1891 = vadd.f32 %v1698, %v1890
    %v1892 = vpop.f32.mrb[0].mxu0
    %v1893 = vadd.f32 %v1700, %v1892
    %v1894 = vpop.f32.mrb[0].mxu0
    %v1895 = vadd.f32 %v1702, %v1894
    %1896 = vmatprep.mubr.bf16.mxu0 %v1817
    %1897 = vmatmul.mubr.bf16.gmra.mrb[0].mxu0 %v1816
    %v1898 = vpop.f32.mrb[0].mxu0
    %v1899 = vadd.f32 %v1706, %v1898
    %v1900 = vpop.f32.mrb[0].mxu0
    %v1901 = vadd.f32 %v1708, %v1900
    %v1902 = vpop.f32.mrb[0].mxu0
    %v1903 = vadd.f32 %v1710, %v1902
    %v1904 = vpop.f32.mrb[0].mxu0
    %v1905 = vadd.f32 %v1712, %v1904
    %1906 = vmatprep.mubr.bf16.mxu0 %v1819
    %1907 = vmatmul.mubr.bf16.gmra.mrb[0].mxu0 %v1818
    %v1908 = vpop.f32.mrb[0].mxu0
    %v1909 = vadd.f32 %v1716, %v1908
    %v1910 = vpop.f32.mrb[0].mxu0
    %v1911 = vadd.f32 %v1718, %v1910
    %v1912 = vpop.f32.mrb[0].mxu0
    %v1913 = vadd.f32 %v1720, %v1912
    %v1914 = vpop.f32.mrb[0].mxu0
    %v1915 = vadd.f32 %v1722, %v1914
    %1916 = vmatprep.mubr.bf16.mxu0 %v1821
    %1917 = vmatmul.mubr.bf16.gmra.mrb[0].mxu0 %v1820
    %v1918 = vpop.f32.mrb[0].mxu0
    %v1919 = vadd.f32 %v1726, %v1918
    %v1920 = vpop.f32.mrb[0].mxu0
    %v1921 = vadd.f32 %v1728, %v1920
    %v1922 = vpop.f32.mrb[0].mxu0
    %v1923 = vadd.f32 %v1730, %v1922
    %v1924 = vpop.f32.mrb[0].mxu0
    %v1925 = vadd.f32 %v1732, %v1924
    %1926 = vmatprep.mubr.bf16.mxu0 %v1823
    %1927 = vmatmul.mubr.bf16.gmra.mrb[0].mxu0 %v1822
    %v1928 = vpop.f32.mrb[0].mxu0
    %v1929 = vadd.f32 %v1736, %v1928
    %v1930 = vpop.f32.mrb[0].mxu0
    %v1931 = vadd.f32 %v1738, %v1930
    %v1932 = vpop.f32.mrb[0].mxu0
    %v1933 = vadd.f32 %v1740, %v1932
    %v1934 = vpop.f32.mrb[0].mxu0
    %v1935 = vadd.f32 %v1742, %v1934
    %1936 = vmatprep.mubr.bf16.mxu0 %v1825
    %1937 = vmatmul.mubr.bf16.gmra.mrb[0].mxu0 %v1824
    %v1938 = vpop.f32.mrb[0].mxu0
    %v1939 = vadd.f32 %v1746, %v1938
    %v1940 = vpop.f32.mrb[0].mxu0
    %v1941 = vadd.f32 %v1748, %v1940
    %v1942 = vpop.f32.mrb[0].mxu0
    %v1943 = vadd.f32 %v1750, %v1942
    %v1944 = vpop.f32.mrb[0].mxu0
    %v1945 = vadd.f32 %v1752, %v1944
    %1946 = vmatprep.mubr.bf16.mxu0 %v1827
    %1947 = vmatmul.mubr.bf16.gmra.mrb[0].mxu0 %v1826
    %v1948 = vpop.f32.mrb[0].mxu0
    %v1949 = vadd.f32 %v1756, %v1948
    %v1950 = vpop.f32.mrb[0].mxu0
    %v1951 = vadd.f32 %v1758, %v1950
    %v1952 = vpop.f32.mrb[0].mxu0
    %v1953 = vadd.f32 %v1760, %v1952
    %v1954 = vpop.f32.mrb[0].mxu0
    %v1955 = vadd.f32 %v1762, %v1954
    %1956 = vdwg.mxu0
    %v1957 = vld [vmem:[#allocation5] sm:$0xff]
    %v1958 = vld [vmem:[#allocation5 + $0x8] sm:$0xff]
    %v1959 = vld [vmem:[#allocation5 + $0x20] sm:$0xff]
    %v1960 = vld [vmem:[#allocation5 + $0x28] sm:$0xff]
    %v1961 = vld [vmem:[#allocation5 + $0x40] sm:$0xff]
    %v1962 = vld [vmem:[#allocation5 + $0x48] sm:$0xff]
    %v1963 = vld [vmem:[#allocation5 + $0x60] sm:$0xff]
    %v1964 = vld [vmem:[#allocation5 + $0x68] sm:$0xff]
    %1973 = vrot.lane.b32.xlu0 %v1957, 120
    %v1974 = vpop.permute.xlu0 %1973
    %1975 = vrot.lane.b32.xlu0 %v1958, 120
    %v1976 = vpop.permute.xlu0 %1975
    %1977 = vrot.lane.b32.xlu0 %v1959, 120
    %v1978 = vpop.permute.xlu0 %1977
    %1979 = vrot.lane.b32.xlu0 %v1960, 120
    %v1980 = vpop.permute.xlu0 %1979
    %1981 = vrot.lane.b32.xlu0 %v1961, 120
    %v1982 = vpop.permute.xlu0 %1981
    %1983 = vrot.lane.b32.xlu0 %v1962, 120
    %v1984 = vpop.permute.xlu0 %1983
    %1985 = vrot.lane.b32.xlu0 %v1963, 120
    %v1986 = vpop.permute.xlu0 %1985
    %1987 = vrot.lane.b32.xlu0 %v1964, 120
    %v1988 = vpop.permute.xlu0 %1987
    %v1989 = vsel %vm480, %v1974, %v1976
    %v1990 = vsel %vm480, %v1978, %v1980
    %v1991 = vsel %vm480, %v1982, %v1984
    %v1992 = vsel %vm480, %v1986, %v1988
    %1997 = vst [vmem:[#allocation6] sm:$0xff] %v1989
    %1998 = vst [vmem:[#allocation6 + $0x10] sm:$0xff] %v1990
    %1999 = vst [vmem:[#allocation6 + $0x20] sm:$0xff] %v1991
    %2000 = vst [vmem:[#allocation6 + $0x30] sm:$0xff] %v1992
    %v2001 = vld [vmem:[#allocation5] sm:$0xff]
    %v2002 = vld [vmem:[#allocation5 + $0x8] sm:$0xff]
    %v2003 = vld [vmem:[#allocation5 + $0x20] sm:$0xff]
    %v2004 = vld [vmem:[#allocation5 + $0x28] sm:$0xff]
    %v2005 = vld [vmem:[#allocation5 + $0x40] sm:$0xff]
    %v2006 = vld [vmem:[#allocation5 + $0x48] sm:$0xff]
    %v2007 = vld [vmem:[#allocation5 + $0x60] sm:$0xff]
    %v2008 = vld [vmem:[#allocation5 + $0x68] sm:$0xff]
    %2017 = vrot.lane.b32.xlu0 %v2001, 119
    %v2018 = vpop.permute.xlu0 %2017
    %2019 = vrot.lane.b32.xlu0 %v2002, 119
    %v2020 = vpop.permute.xlu0 %2019
    %2021 = vrot.lane.b32.xlu0 %v2003, 119
    %v2022 = vpop.permute.xlu0 %2021
    %2023 = vrot.lane.b32.xlu0 %v2004, 119
    %v2024 = vpop.permute.xlu0 %2023
    %2025 = vrot.lane.b32.xlu0 %v2005, 119
    %v2026 = vpop.permute.xlu0 %2025
    %2027 = vrot.lane.b32.xlu0 %v2006, 119
    %v2028 = vpop.permute.xlu0 %2027
    %2029 = vrot.lane.b32.xlu0 %v2007, 119
    %v2030 = vpop.permute.xlu0 %2029
    %2031 = vrot.lane.b32.xlu0 %v2008, 119
    %v2032 = vpop.permute.xlu0 %2031
    %vm2033 = vcmask 973824
    %v2034 = vsel %vm2033, %v2018, %v2020
    %v2035 = vsel %vm2033, %v2022, %v2024
    %v2036 = vsel %vm2033, %v2026, %v2028
    %v2037 = vsel %vm2033, %v2030, %v2032
    %2042 = vst [vmem:[#allocation6 + $0x40] sm:$0xff] %v2034
    %2043 = vst [vmem:[#allocation6 + $0x50] sm:$0xff] %v2035
    %2044 = vst [vmem:[#allocation6 + $0x60] sm:$0xff] %v2036
    %2045 = vst [vmem:[#allocation6 + $0x70] sm:$0xff] %v2037
    %v2046 = vld [vmem:[#allocation5] sm:$0xff]
    %v2047 = vld [vmem:[#allocation5 + $0x8] sm:$0xff]
    %v2048 = vld [vmem:[#allocation5 + $0x20] sm:$0xff]
    %v2049 = vld [vmem:[#allocation5 + $0x28] sm:$0xff]
    %v2050 = vld [vmem:[#allocation5 + $0x40] sm:$0xff]
    %v2051 = vld [vmem:[#allocation5 + $0x48] sm:$0xff]
    %v2052 = vld [vmem:[#allocation5 + $0x60] sm:$0xff]
    %v2053 = vld [vmem:[#allocation5 + $0x68] sm:$0xff]
    %2062 = vrot.lane.b32.xlu0 %v2046, 118
    %v2063 = vpop.permute.xlu0 %2062
    %2064 = vrot.lane.b32.xlu0 %v2047, 118
    %v2065 = vpop.permute.xlu0 %2064
    %2066 = vrot.lane.b32.xlu0 %v2048, 118
    %v2067 = vpop.permute.xlu0 %2066
    %2068 = vrot.lane.b32.xlu0 %v2049, 118
    %v2069 = vpop.permute.xlu0 %2068
    %2070 = vrot.lane.b32.xlu0 %v2050, 118
    %v2071 = vpop.permute.xlu0 %2070
    %2072 = vrot.lane.b32.xlu0 %v2051, 118
    %v2073 = vpop.permute.xlu0 %2072
    %2074 = vrot.lane.b32.xlu0 %v2052, 118
    %v2075 = vpop.permute.xlu0 %2074
    %2076 = vrot.lane.b32.xlu0 %v2053, 118
    %v2077 = vpop.permute.xlu0 %2076
    %vm2078 = vcmask 965632
    %v2079 = vsel %vm2078, %v2063, %v2065
    %v2080 = vsel %vm2078, %v2067, %v2069
    %v2081 = vsel %vm2078, %v2071, %v2073
    %v2082 = vsel %vm2078, %v2075, %v2077
    %2087 = vst [vmem:[#allocation6 + $0x80] sm:$0xff] %v2079
    %2088 = vst [vmem:[#allocation6 + $0x90] sm:$0xff] %v2080
    %2089 = vst [vmem:[#allocation6 + $0xa0] sm:$0xff] %v2081
    %2090 = vst [vmem:[#allocation6 + $0xb0] sm:$0xff] %v2082
    %v2091 = vld [vmem:[#allocation5] sm:$0xff]
    %v2092 = vld [vmem:[#allocation5 + $0x8] sm:$0xff]
    %v2093 = vld [vmem:[#allocation5 + $0x20] sm:$0xff]
    %v2094 = vld [vmem:[#allocation5 + $0x28] sm:$0xff]
    %v2095 = vld [vmem:[#allocation5 + $0x40] sm:$0xff]
    %v2096 = vld [vmem:[#allocation5 + $0x48] sm:$0xff]
    %v2097 = vld [vmem:[#allocation5 + $0x60] sm:$0xff]
    %v2098 = vld [vmem:[#allocation5 + $0x68] sm:$0xff]
    %2107 = vrot.lane.b32.xlu0 %v2091, 117
    %v2108 = vpop.permute.xlu0 %2107
    %2109 = vrot.lane.b32.xlu0 %v2092, 117
    %v2110 = vpop.permute.xlu0 %2109
    %2111 = vrot.lane.b32.xlu0 %v2093, 117
    %v2112 = vpop.permute.xlu0 %2111
    %2113 = vrot.lane.b32.xlu0 %v2094, 117
    %v2114 = vpop.permute.xlu0 %2113
    %2115 = vrot.lane.b32.xlu0 %v2095, 117
    %v2116 = vpop.permute.xlu0 %2115
    %2117 = vrot.lane.b32.xlu0 %v2096, 117
    %v2118 = vpop.permute.xlu0 %2117
    %2119 = vrot.lane.b32.xlu0 %v2097, 117
    %v2120 = vpop.permute.xlu0 %2119
    %2121 = vrot.lane.b32.xlu0 %v2098, 117
    %v2122 = vpop.permute.xlu0 %2121
    %vm2123 = vcmask 957440
    %v2124 = vsel %vm2123, %v2108, %v2110
    %v2125 = vsel %vm2123, %v2112, %v2114
    %v2126 = vsel %vm2123, %v2116, %v2118
    %v2127 = vsel %vm2123, %v2120, %v2122
    %2132 = vst [vmem:[#allocation6 + $0xc0] sm:$0xff] %v2124
    %2133 = vst [vmem:[#allocation6 + $0xd0] sm:$0xff] %v2125
    %2134 = vst [vmem:[#allocation6 + $0xe0] sm:$0xff] %v2126
    %2135 = vst [vmem:[#allocation6 + $0xf0] sm:$0xff] %v2127
    %v2136 = vld [vmem:[#allocation5 + $0x10] sm:$0xff]
    %v2137 = vld [vmem:[#allocation5 + $0x18] sm:$0xff]
    %v2138 = vld [vmem:[#allocation5 + $0x30] sm:$0xff]
    %v2139 = vld [vmem:[#allocation5 + $0x38] sm:$0xff]
    %v2140 = vld [vmem:[#allocation5 + $0x50] sm:$0xff]
    %v2141 = vld [vmem:[#allocation5 + $0x58] sm:$0xff]
    %v2142 = vld [vmem:[#allocation5 + $0x70] sm:$0xff]
    %v2143 = vld [vmem:[#allocation5 + $0x78] sm:$0xff]
    %2152 = vrot.lane.b32.xlu0 %v2136, 120
    %v2153 = vpop.permute.xlu0 %2152
    %2154 = vrot.lane.b32.xlu0 %v2137, 120
    %v2155 = vpop.permute.xlu0 %2154
    %2156 = vrot.lane.b32.xlu0 %v2138, 120
    %v2157 = vpop.permute.xlu0 %2156
    %2158 = vrot.lane.b32.xlu0 %v2139, 120
    %v2159 = vpop.permute.xlu0 %2158
    %2160 = vrot.lane.b32.xlu0 %v2140, 120
    %v2161 = vpop.permute.xlu0 %2160
    %2162 = vrot.lane.b32.xlu0 %v2141, 120
    %v2163 = vpop.permute.xlu0 %2162
    %2164 = vrot.lane.b32.xlu0 %v2142, 120
    %v2165 = vpop.permute.xlu0 %2164
    %2166 = vrot.lane.b32.xlu0 %v2143, 120
    %v2167 = vpop.permute.xlu0 %2166
    %v2168 = vsel %vm480, %v2153, %v2155
    %v2169 = vsel %vm480, %v2157, %v2159
    %v2170 = vsel %vm480, %v2161, %v2163
    %v2171 = vsel %vm480, %v2165, %v2167
    %2176 = vst [vmem:[#allocation6 + $0x8] sm:$0xff] %v2168
    %2177 = vst [vmem:[#allocation6 + $0x18] sm:$0xff] %v2169
    %2178 = vst [vmem:[#allocation6 + $0x28] sm:$0xff] %v2170
    %2179 = vst [vmem:[#allocation6 + $0x38] sm:$0xff] %v2171
    %v2180 = vld [vmem:[#allocation5 + $0x10] sm:$0xff]
    %v2181 = vld [vmem:[#allocation5 + $0x18] sm:$0xff]
    %v2182 = vld [vmem:[#allocation5 + $0x30] sm:$0xff]
    %v2183 = vld [vmem:[#allocation5 + $0x38] sm:$0xff]
    %v2184 = vld [vmem:[#allocation5 + $0x50] sm:$0xff]
    %v2185 = vld [vmem:[#allocation5 + $0x58] sm:$0xff]
    %v2186 = vld [vmem:[#allocation5 + $0x70] sm:$0xff]
    %v2187 = vld [vmem:[#allocation5 + $0x78] sm:$0xff]
    %2196 = vrot.lane.b32.xlu0 %v2180, 119
    %v2197 = vpop.permute.xlu0 %2196
    %2198 = vrot.lane.b32.xlu0 %v2181, 119
    %v2199 = vpop.permute.xlu0 %2198
    %2200 = vrot.lane.b32.xlu0 %v2182, 119
    %v2201 = vpop.permute.xlu0 %2200
    %2202 = vrot.lane.b32.xlu0 %v2183, 119
    %v2203 = vpop.permute.xlu0 %2202
    %2204 = vrot.lane.b32.xlu0 %v2184, 119
    %v2205 = vpop.permute.xlu0 %2204
    %2206 = vrot.lane.b32.xlu0 %v2185, 119
    %v2207 = vpop.permute.xlu0 %2206
    %2208 = vrot.lane.b32.xlu0 %v2186, 119
    %v2209 = vpop.permute.xlu0 %2208
    %2210 = vrot.lane.b32.xlu0 %v2187, 119
    %v2211 = vpop.permute.xlu0 %2210
    %v2212 = vsel %vm2033, %v2197, %v2199
    %v2213 = vsel %vm2033, %v2201, %v2203
    %v2214 = vsel %vm2033, %v2205, %v2207
    %v2215 = vsel %vm2033, %v2209, %v2211
    %2220 = vst [vmem:[#allocation6 + $0x48] sm:$0xff] %v2212
    %2221 = vst [vmem:[#allocation6 + $0x58] sm:$0xff] %v2213
    %2222 = vst [vmem:[#allocation6 + $0x68] sm:$0xff] %v2214
    %2223 = vst [vmem:[#allocation6 + $0x78] sm:$0xff] %v2215
    %v2224 = vld [vmem:[#allocation5 + $0x10] sm:$0xff]
    %v2225 = vld [vmem:[#allocation5 + $0x18] sm:$0xff]
    %v2226 = vld [vmem:[#allocation5 + $0x30] sm:$0xff]
    %v2227 = vld [vmem:[#allocation5 + $0x38] sm:$0xff]
    %v2228 = vld [vmem:[#allocation5 + $0x50] sm:$0xff]
    %v2229 = vld [vmem:[#allocation5 + $0x58] sm:$0xff]
    %v2230 = vld [vmem:[#allocation5 + $0x70] sm:$0xff]
    %v2231 = vld [vmem:[#allocation5 + $0x78] sm:$0xff]
    %2240 = vrot.lane.b32.xlu0 %v2224, 118
    %v2241 = vpop.permute.xlu0 %2240
    %2242 = vrot.lane.b32.xlu0 %v2225, 118
    %v2243 = vpop.permute.xlu0 %2242
    %2244 = vrot.lane.b32.xlu0 %v2226, 118
    %v2245 = vpop.permute.xlu0 %2244
    %2246 = vrot.lane.b32.xlu0 %v2227, 118
    %v2247 = vpop.permute.xlu0 %2246
    %2248 = vrot.lane.b32.xlu0 %v2228, 118
    %v2249 = vpop.permute.xlu0 %2248
    %2250 = vrot.lane.b32.xlu0 %v2229, 118
    %v2251 = vpop.permute.xlu0 %2250
    %2252 = vrot.lane.b32.xlu0 %v2230, 118
    %v2253 = vpop.permute.xlu0 %2252
    %2254 = vrot.lane.b32.xlu0 %v2231, 118
    %v2255 = vpop.permute.xlu0 %2254
    %v2256 = vsel %vm2078, %v2241, %v2243
    %v2257 = vsel %vm2078, %v2245, %v2247
    %v2258 = vsel %vm2078, %v2249, %v2251
    %v2259 = vsel %vm2078, %v2253, %v2255
    %2264 = vst [vmem:[#allocation6 + $0x88] sm:$0xff] %v2256
    %2265 = vst [vmem:[#allocation6 + $0x98] sm:$0xff] %v2257
    %2266 = vst [vmem:[#allocation6 + $0xa8] sm:$0xff] %v2258
    %2267 = vst [vmem:[#allocation6 + $0xb8] sm:$0xff] %v2259
    %v2268 = vld [vmem:[#allocation5 + $0x10] sm:$0xff]
    %v2269 = vld [vmem:[#allocation5 + $0x18] sm:$0xff]
    %v2270 = vld [vmem:[#allocation5 + $0x30] sm:$0xff]
    %v2271 = vld [vmem:[#allocation5 + $0x38] sm:$0xff]
    %v2272 = vld [vmem:[#allocation5 + $0x50] sm:$0xff]
    %v2273 = vld [vmem:[#allocation5 + $0x58] sm:$0xff]
    %v2274 = vld [vmem:[#allocation5 + $0x70] sm:$0xff]
    %v2275 = vld [vmem:[#allocation5 + $0x78] sm:$0xff]
    %2284 = vrot.lane.b32.xlu0 %v2268, 117
    %v2285 = vpop.permute.xlu0 %2284
    %2286 = vrot.lane.b32.xlu0 %v2269, 117
    %v2287 = vpop.permute.xlu0 %2286
    %2288 = vrot.lane.b32.xlu0 %v2270, 117
    %v2289 = vpop.permute.xlu0 %2288
    %2290 = vrot.lane.b32.xlu0 %v2271, 117
    %v2291 = vpop.permute.xlu0 %2290
    %2292 = vrot.lane.b32.xlu0 %v2272, 117
    %v2293 = vpop.permute.xlu0 %2292
    %2294 = vrot.lane.b32.xlu0 %v2273, 117
    %v2295 = vpop.permute.xlu0 %2294
    %2296 = vrot.lane.b32.xlu0 %v2274, 117
    %v2297 = vpop.permute.xlu0 %2296
    %2298 = vrot.lane.b32.xlu0 %v2275, 117
    %v2299 = vpop.permute.xlu0 %2298
    %v2300 = vsel %vm2123, %v2285, %v2287
    %v2301 = vsel %vm2123, %v2289, %v2291
    %v2302 = vsel %vm2123, %v2293, %v2295
    %v2303 = vsel %vm2123, %v2297, %v2299
    %2308 = vst [vmem:[#allocation6 + $0xc8] sm:$0xff] %v2300
    %2309 = vst [vmem:[#allocation6 + $0xd8] sm:$0xff] %v2301
    %2310 = vst [vmem:[#allocation6 + $0xe8] sm:$0xff] %v2302
    %2311 = vst [vmem:[#allocation6 + $0xf8] sm:$0xff] %v2303
    %v2312 = vld [vmem:[%s5 + $0x10] sm:$0xff]
    %v2313 = vld [vmem:[%s5 + $0x54] sm:$0xff]
    %v2314 = vld [vmem:[%s5 + $0x98] sm:$0xff]
    %v2315 = vld [vmem:[%s5 + $0xdc] sm:$0xff]
    %v2316 = vld [vmem:[%s5 + $0x120] sm:$0xff]
    %v2317 = vld [vmem:[%s5 + $0x164] sm:$0xff]
    %v2318 = vld [vmem:[%s5 + $0x1a8] sm:$0xff]
    %v2319 = vld [vmem:[%s5 + $0x1ec] sm:$0xff]
    %v2320 = vld [vmem:[%s5 + $0x230] sm:$0xff]
    %v2321 = vld [vmem:[%s5 + $0x274] sm:$0xff]
    %v2322 = vld [vmem:[%s5 + $0x2b8] sm:$0xff]
    %v2323 = vld [vmem:[%s5 + $0x2fc] sm:$0xff]
    %v2324 = vld [vmem:[%s5 + $0x340] sm:$0xff]
    %v2325 = vld [vmem:[%s5 + $0x384] sm:$0xff]
    %v2326 = vld [vmem:[%s5 + $0x3c8] sm:$0xff]
    %v2327 = vld [vmem:[%s5 + $0x40c] sm:$0xff]
    %v2328 = vld [vmem:[#allocation6] sm:$0xff]
    %v2329 = vld [vmem:[#allocation6 + $0x8] sm:$0xff]
    %v2330 = vld [vmem:[#allocation6 + $0x10] sm:$0xff]
    %v2331 = vld [vmem:[#allocation6 + $0x18] sm:$0xff]
    %v2332 = vld [vmem:[#allocation6 + $0x20] sm:$0xff]
    %v2333 = vld [vmem:[#allocation6 + $0x28] sm:$0xff]
    %v2334 = vld [vmem:[#allocation6 + $0x30] sm:$0xff]
    %v2335 = vld [vmem:[#allocation6 + $0x38] sm:$0xff]
    %v2336 = vld [vmem:[#allocation6 + $0x40] sm:$0xff]
    %v2337 = vld [vmem:[#allocation6 + $0x48] sm:$0xff]
    %v2338 = vld [vmem:[#allocation6 + $0x50] sm:$0xff]
    %v2339 = vld [vmem:[#allocation6 + $0x58] sm:$0xff]
    %v2340 = vld [vmem:[#allocation6 + $0x60] sm:$0xff]
    %v2341 = vld [vmem:[#allocation6 + $0x68] sm:$0xff]
    %v2342 = vld [vmem:[#allocation6 + $0x70] sm:$0xff]
    %v2343 = vld [vmem:[#allocation6 + $0x78] sm:$0xff]
    %v2344 = vld [vmem:[#allocation6 + $0x80] sm:$0xff]
    %v2345 = vld [vmem:[#allocation6 + $0x88] sm:$0xff]
    %v2346 = vld [vmem:[#allocation6 + $0x90] sm:$0xff]
    %v2347 = vld [vmem:[#allocation6 + $0x98] sm:$0xff]
    %v2348 = vld [vmem:[#allocation6 + $0xa0] sm:$0xff]
    %v2349 = vld [vmem:[#allocation6 + $0xa8] sm:$0xff]
    %v2350 = vld [vmem:[#allocation6 + $0xb0] sm:$0xff]
    %v2351 = vld [vmem:[#allocation6 + $0xb8] sm:$0xff]
    %v2352 = vld [vmem:[#allocation6 + $0xc0] sm:$0xff]
    %v2353 = vld [vmem:[#allocation6 + $0xc8] sm:$0xff]
    %v2354 = vld [vmem:[#allocation6 + $0xd0] sm:$0xff]
    %v2355 = vld [vmem:[#allocation6 + $0xd8] sm:$0xff]
    %v2356 = vld [vmem:[#allocation6 + $0xe0] sm:$0xff]
    %v2357 = vld [vmem:[#allocation6 + $0xe8] sm:$0xff]
    %v2358 = vld [vmem:[#allocation6 + $0xf0] sm:$0xff]
    %v2359 = vld [vmem:[#allocation6 + $0xf8] sm:$0xff]
    %v2376 = vunpack.c.l.b16 %v2312
    %v2377 = vunpack.c.h.b16 %v2312
    %v2378 = vunpack.c.l.b16 %v2313
    %v2379 = vunpack.c.h.b16 %v2313
    %v2380 = vunpack.c.l.b16 %v2314
    %v2381 = vunpack.c.h.b16 %v2314
    %v2382 = vunpack.c.l.b16 %v2315
    %v2383 = vunpack.c.h.b16 %v2315
    %v2384 = vunpack.c.l.b16 %v2316
    %v2385 = vunpack.c.h.b16 %v2316
    %v2386 = vunpack.c.l.b16 %v2317
    %v2387 = vunpack.c.h.b16 %v2317
    %v2388 = vunpack.c.l.b16 %v2318
    %v2389 = vunpack.c.h.b16 %v2318
    %v2390 = vunpack.c.l.b16 %v2319
    %v2391 = vunpack.c.h.b16 %v2319
    %v2392 = vunpack.c.l.b16 %v2320
    %v2393 = vunpack.c.h.b16 %v2320
    %v2394 = vunpack.c.l.b16 %v2321
    %v2395 = vunpack.c.h.b16 %v2321
    %v2396 = vunpack.c.l.b16 %v2322
    %v2397 = vunpack.c.h.b16 %v2322
    %v2398 = vunpack.c.l.b16 %v2323
    %v2399 = vunpack.c.h.b16 %v2323
    %v2400 = vunpack.c.l.b16 %v2324
    %v2401 = vunpack.c.h.b16 %v2324
    %v2402 = vunpack.c.l.b16 %v2325
    %v2403 = vunpack.c.h.b16 %v2325
    %v2404 = vunpack.c.l.b16 %v2326
    %v2405 = vunpack.c.h.b16 %v2326
    %v2406 = vunpack.c.l.b16 %v2327
    %v2407 = vunpack.c.h.b16 %v2327
    %v2408 = vpack.c.b16 %v2378, %v2376
    %v2409 = vpack.c.b16 %v2379, %v2377
    %v2410 = vpack.c.b16 %v2382, %v2380
    %v2411 = vpack.c.b16 %v2383, %v2381
    %v2412 = vpack.c.b16 %v2386, %v2384
    %v2413 = vpack.c.b16 %v2387, %v2385
    %v2414 = vpack.c.b16 %v2390, %v2388
    %v2415 = vpack.c.b16 %v2391, %v2389
    %v2416 = vpack.c.b16 %v2394, %v2392
    %v2417 = vpack.c.b16 %v2395, %v2393
    %v2418 = vpack.c.b16 %v2398, %v2396
    %v2419 = vpack.c.b16 %v2399, %v2397
    %v2420 = vpack.c.b16 %v2402, %v2400
    %v2421 = vpack.c.b16 %v2403, %v2401
    %v2422 = vpack.c.b16 %v2406, %v2404
    %v2423 = vpack.c.b16 %v2407, %v2405
    %2440 = vmatprep.subr.bf16.mxu0 %v2329
    %2441 = vmatpush1.bf16.msra.mxu0 %v2328
    %2442 = vmatprep.subr.bf16.mxu0 %v2331
    %2443 = vmatpush1.bf16.msra.mxu0 %v2330
    %2444 = vmatprep.subr.bf16.mxu0 %v2333
    %2445 = vmatpush1.bf16.msra.mxu0 %v2332
    %2446 = vmatprep.subr.bf16.mxu0 %v2335
    %2447 = vmatpush1.bf16.msra.mxu0 %v2334
    %2448 = vmatprep.subr.bf16.mxu0 %v2337
    %2449 = vmatpush1.bf16.msra.mxu0 %v2336
    %2450 = vmatprep.subr.bf16.mxu0 %v2339
    %2451 = vmatpush1.bf16.msra.mxu0 %v2338
    %2452 = vmatprep.subr.bf16.mxu0 %v2341
    %2453 = vmatpush1.bf16.msra.mxu0 %v2340
    %2454 = vmatprep.subr.bf16.mxu0 %v2343
    %2455 = vmatpush1.bf16.msra.mxu0 %v2342
    %2456 = vmatprep.subr.bf16.mxu0 %v2345
    %2457 = vmatpush1.bf16.msra.mxu0 %v2344
    %2458 = vmatprep.subr.bf16.mxu0 %v2347
    %2459 = vmatpush1.bf16.msra.mxu0 %v2346
    %2460 = vmatprep.subr.bf16.mxu0 %v2349
    %2461 = vmatpush1.bf16.msra.mxu0 %v2348
    %2462 = vmatprep.subr.bf16.mxu0 %v2351
    %2463 = vmatpush1.bf16.msra.mxu0 %v2350
    %2464 = vmatprep.subr.bf16.mxu0 %v2353
    %2465 = vmatpush1.bf16.msra.mxu0 %v2352
    %2466 = vmatprep.subr.bf16.mxu0 %v2355
    %2467 = vmatpush1.bf16.msra.mxu0 %v2354
    %2468 = vmatprep.subr.bf16.mxu0 %v2357
    %2469 = vmatpush1.bf16.msra.mxu0 %v2356
    %2470 = vmatprep.subr.bf16.mxu0 %v2359
    %2471 = vmatpush1.bf16.msra.mxu0 %v2358
    %2472 = vmatprep.mubr.bf16.mxu0 %v2409
    %2473 = vmatmul.mubr.bf16.gmra.mrb[0].mxu0 %v2408
    %v2474 = vpop.f32.mrb[0].mxu0
    %v2475 = vadd.f32 0.0, %v2474
    %v2476 = vpop.f32.mrb[0].mxu0
    %v2477 = vadd.f32 0.0, %v2476
    %v2478 = vpop.f32.mrb[0].mxu0
    %v2479 = vadd.f32 0.0, %v2478
    %v2480 = vpop.f32.mrb[0].mxu0
    %v2481 = vadd.f32 0.0, %v2480
    %2482 = vmatprep.mubr.bf16.mxu0 %v2411
    %2483 = vmatmul.mubr.bf16.gmra.mrb[0].mxu0 %v2410
    %v2484 = vpop.f32.mrb[0].mxu0
    %v2485 = vadd.f32 0.0, %v2484
    %v2486 = vpop.f32.mrb[0].mxu0
    %v2487 = vadd.f32 0.0, %v2486
    %v2488 = vpop.f32.mrb[0].mxu0
    %v2489 = vadd.f32 0.0, %v2488
    %v2490 = vpop.f32.mrb[0].mxu0
    %v2491 = vadd.f32 0.0, %v2490
    %2492 = vmatprep.mubr.bf16.mxu0 %v2413
    %2493 = vmatmul.mubr.bf16.gmra.mrb[0].mxu0 %v2412
    %v2494 = vpop.f32.mrb[0].mxu0
    %v2495 = vadd.f32 0.0, %v2494
    %v2496 = vpop.f32.mrb[0].mxu0
    %v2497 = vadd.f32 0.0, %v2496
    %v2498 = vpop.f32.mrb[0].mxu0
    %v2499 = vadd.f32 0.0, %v2498
    %v2500 = vpop.f32.mrb[0].mxu0
    %v2501 = vadd.f32 0.0, %v2500
    %2502 = vmatprep.mubr.bf16.mxu0 %v2415
    %2503 = vmatmul.mubr.bf16.gmra.mrb[0].mxu0 %v2414
    %v2504 = vpop.f32.mrb[0].mxu0
    %v2505 = vadd.f32 0.0, %v2504
    %v2506 = vpop.f32.mrb[0].mxu0
    %v2507 = vadd.f32 0.0, %v2506
    %v2508 = vpop.f32.mrb[0].mxu0
    %v2509 = vadd.f32 0.0, %v2508
    %v2510 = vpop.f32.mrb[0].mxu0
    %v2511 = vadd.f32 0.0, %v2510
    %2512 = vmatprep.mubr.bf16.mxu0 %v2417
    %2513 = vmatmul.mubr.bf16.gmra.mrb[0].mxu0 %v2416
    %v2514 = vpop.f32.mrb[0].mxu0
    %v2515 = vadd.f32 0.0, %v2514
    %v2516 = vpop.f32.mrb[0].mxu0
    %v2517 = vadd.f32 0.0, %v2516
    %v2518 = vpop.f32.mrb[0].mxu0
    %v2519 = vadd.f32 0.0, %v2518
    %v2520 = vpop.f32.mrb[0].mxu0
    %v2521 = vadd.f32 0.0, %v2520
    %2522 = vmatprep.mubr.bf16.mxu0 %v2419
    %2523 = vmatmul.mubr.bf16.gmra.mrb[0].mxu0 %v2418
    %v2524 = vpop.f32.mrb[0].mxu0
    %v2525 = vadd.f32 0.0, %v2524
    %v2526 = vpop.f32.mrb[0].mxu0
    %v2527 = vadd.f32 0.0, %v2526
    %v2528 = vpop.f32.mrb[0].mxu0
    %v2529 = vadd.f32 0.0, %v2528
    %v2530 = vpop.f32.mrb[0].mxu0
    %v2531 = vadd.f32 0.0, %v2530
    %2532 = vmatprep.mubr.bf16.mxu0 %v2421
    %2533 = vmatmul.mubr.bf16.gmra.mrb[0].mxu0 %v2420
    %v2534 = vpop.f32.mrb[0].mxu0
    %v2535 = vadd.f32 0.0, %v2534
    %v2536 = vpop.f32.mrb[0].mxu0
    %v2537 = vadd.f32 0.0, %v2536
    %v2538 = vpop.f32.mrb[0].mxu0
    %v2539 = vadd.f32 0.0, %v2538
    %v2540 = vpop.f32.mrb[0].mxu0
    %v2541 = vadd.f32 0.0, %v2540
    %2542 = vmatprep.mubr.bf16.mxu0 %v2423
    %2543 = vmatmul.mubr.bf16.gmra.mrb[0].mxu0 %v2422
    %v2544 = vpop.f32.mrb[0].mxu0
    %v2545 = vadd.f32 0.0, %v2544
    %v2546 = vpop.f32.mrb[0].mxu0
    %v2547 = vadd.f32 0.0, %v2546
    %v2548 = vpop.f32.mrb[0].mxu0
    %v2549 = vadd.f32 0.0, %v2548
    %v2550 = vpop.f32.mrb[0].mxu0
    %v2551 = vadd.f32 0.0, %v2550
    %2552 = vdwg.mxu0
    %v2553 = vadd.f32 %v1879, %v2475
    %v2554 = vadd.f32 %v1881, %v2477
    %v2555 = vadd.f32 %v1883, %v2479
    %v2556 = vadd.f32 %v1885, %v2481
    %v2557 = vadd.f32 %v1889, %v2485
    %v2558 = vadd.f32 %v1891, %v2487
    %v2559 = vadd.f32 %v1893, %v2489
    %v2560 = vadd.f32 %v1895, %v2491
    %v2561 = vadd.f32 %v1899, %v2495
    %v2562 = vadd.f32 %v1901, %v2497
    %v2563 = vadd.f32 %v1903, %v2499
    %v2564 = vadd.f32 %v1905, %v2501
    %v2565 = vadd.f32 %v1909, %v2505
    %v2566 = vadd.f32 %v1911, %v2507
    %v2567 = vadd.f32 %v1913, %v2509
    %v2568 = vadd.f32 %v1915, %v2511
    %v2569 = vadd.f32 %v1919, %v2515
    %v2570 = vadd.f32 %v1921, %v2517
    %v2571 = vadd.f32 %v1923, %v2519
    %v2572 = vadd.f32 %v1925, %v2521
    %v2573 = vadd.f32 %v1929, %v2525
    %v2574 = vadd.f32 %v1931, %v2527
    %v2575 = vadd.f32 %v1933, %v2529
    %v2576 = vadd.f32 %v1935, %v2531
    %v2577 = vadd.f32 %v1939, %v2535
    %v2578 = vadd.f32 %v1941, %v2537
    %v2579 = vadd.f32 %v1943, %v2539
    %v2580 = vadd.f32 %v1945, %v2541
    %v2581 = vadd.f32 %v1949, %v2545
    %v2582 = vadd.f32 %v1951, %v2547
    %v2583 = vadd.f32 %v1953, %v2549
    %v2584 = vadd.f32 %v1955, %v2551
    %v2585 = vld [vmem:[#allocation5] sm:$0xff]
    %v2586 = vld [vmem:[#allocation5 + $0x8] sm:$0xff]
    %v2587 = vld [vmem:[#allocation5 + $0x20] sm:$0xff]
    %v2588 = vld [vmem:[#allocation5 + $0x28] sm:$0xff]
    %v2589 = vld [vmem:[#allocation5 + $0x40] sm:$0xff]
    %v2590 = vld [vmem:[#allocation5 + $0x48] sm:$0xff]
    %v2591 = vld [vmem:[#allocation5 + $0x60] sm:$0xff]
    %v2592 = vld [vmem:[#allocation5 + $0x68] sm:$0xff]
    %2601 = vrot.lane.b32.xlu0 %v2585, 116
    %v2602 = vpop.permute.xlu0 %2601
    %2603 = vrot.lane.b32.xlu0 %v2586, 116
    %v2604 = vpop.permute.xlu0 %2603
    %2605 = vrot.lane.b32.xlu0 %v2587, 116
    %v2606 = vpop.permute.xlu0 %2605
    %2607 = vrot.lane.b32.xlu0 %v2588, 116
    %v2608 = vpop.permute.xlu0 %2607
    %2609 = vrot.lane.b32.xlu0 %v2589, 116
    %v2610 = vpop.permute.xlu0 %2609
    %2611 = vrot.lane.b32.xlu0 %v2590, 116
    %v2612 = vpop.permute.xlu0 %2611
    %2613 = vrot.lane.b32.xlu0 %v2591, 116
    %v2614 = vpop.permute.xlu0 %2613
    %2615 = vrot.lane.b32.xlu0 %v2592, 116
    %v2616 = vpop.permute.xlu0 %2615
    %vm2617 = vcmask 949248
    %v2618 = vsel %vm2617, %v2602, %v2604
    %v2619 = vsel %vm2617, %v2606, %v2608
    %v2620 = vsel %vm2617, %v2610, %v2612
    %v2621 = vsel %vm2617, %v2614, %v2616
    %2626 = vst [vmem:[#allocation7] sm:$0xff] %v2618
    %2627 = vst [vmem:[#allocation7 + $0x10] sm:$0xff] %v2619
    %2628 = vst [vmem:[#allocation7 + $0x20] sm:$0xff] %v2620
    %2629 = vst [vmem:[#allocation7 + $0x30] sm:$0xff] %v2621
    %v2630 = vld [vmem:[#allocation5] sm:$0xff]
    %v2631 = vld [vmem:[#allocation5 + $0x8] sm:$0xff]
    %v2632 = vld [vmem:[#allocation5 + $0x20] sm:$0xff]
    %v2633 = vld [vmem:[#allocation5 + $0x28] sm:$0xff]
    %v2634 = vld [vmem:[#allocation5 + $0x40] sm:$0xff]
    %v2635 = vld [vmem:[#allocation5 + $0x48] sm:$0xff]
    %v2636 = vld [vmem:[#allocation5 + $0x60] sm:$0xff]
    %v2637 = vld [vmem:[#allocation5 + $0x68] sm:$0xff]
    %2646 = vrot.lane.b32.xlu0 %v2630, 115
    %v2647 = vpop.permute.xlu0 %2646
    %2648 = vrot.lane.b32.xlu0 %v2631, 115
    %v2649 = vpop.permute.xlu0 %2648
    %2650 = vrot.lane.b32.xlu0 %v2632, 115
    %v2651 = vpop.permute.xlu0 %2650
    %2652 = vrot.lane.b32.xlu0 %v2633, 115
    %v2653 = vpop.permute.xlu0 %2652
    %2654 = vrot.lane.b32.xlu0 %v2634, 115
    %v2655 = vpop.permute.xlu0 %2654
    %2656 = vrot.lane.b32.xlu0 %v2635, 115
    %v2657 = vpop.permute.xlu0 %2656
    %2658 = vrot.lane.b32.xlu0 %v2636, 115
    %v2659 = vpop.permute.xlu0 %2658
    %2660 = vrot.lane.b32.xlu0 %v2637, 115
    %v2661 = vpop.permute.xlu0 %2660
    %vm2662 = vcmask 941056
    %v2663 = vsel %vm2662, %v2647, %v2649
    %v2664 = vsel %vm2662, %v2651, %v2653
    %v2665 = vsel %vm2662, %v2655, %v2657
    %v2666 = vsel %vm2662, %v2659, %v2661
    %2671 = vst [vmem:[#allocation7 + $0x40] sm:$0xff] %v2663
    %2672 = vst [vmem:[#allocation7 + $0x50] sm:$0xff] %v2664
    %2673 = vst [vmem:[#allocation7 + $0x60] sm:$0xff] %v2665
    %2674 = vst [vmem:[#allocation7 + $0x70] sm:$0xff] %v2666
    %v2675 = vld [vmem:[#allocation5] sm:$0xff]
    %v2676 = vld [vmem:[#allocation5 + $0x8] sm:$0xff]
    %v2677 = vld [vmem:[#allocation5 + $0x20] sm:$0xff]
    %v2678 = vld [vmem:[#allocation5 + $0x28] sm:$0xff]
    %v2679 = vld [vmem:[#allocation5 + $0x40] sm:$0xff]
    %v2680 = vld [vmem:[#allocation5 + $0x48] sm:$0xff]
    %v2681 = vld [vmem:[#allocation5 + $0x60] sm:$0xff]
    %v2682 = vld [vmem:[#allocation5 + $0x68] sm:$0xff]
    %2691 = vrot.lane.b32.xlu0 %v2675, 114
    %v2692 = vpop.permute.xlu0 %2691
    %2693 = vrot.lane.b32.xlu0 %v2676, 114
    %v2694 = vpop.permute.xlu0 %2693
    %2695 = vrot.lane.b32.xlu0 %v2677, 114
    %v2696 = vpop.permute.xlu0 %2695
    %2697 = vrot.lane.b32.xlu0 %v2678, 114
    %v2698 = vpop.permute.xlu0 %2697
    %2699 = vrot.lane.b32.xlu0 %v2679, 114
    %v2700 = vpop.permute.xlu0 %2699
    %2701 = vrot.lane.b32.xlu0 %v2680, 114
    %v2702 = vpop.permute.xlu0 %2701
    %2703 = vrot.lane.b32.xlu0 %v2681, 114
    %v2704 = vpop.permute.xlu0 %2703
    %2705 = vrot.lane.b32.xlu0 %v2682, 114
    %v2706 = vpop.permute.xlu0 %2705
    %vm2707 = vcmask 932864
    %v2708 = vsel %vm2707, %v2692, %v2694
    %v2709 = vsel %vm2707, %v2696, %v2698
    %v2710 = vsel %vm2707, %v2700, %v2702
    %v2711 = vsel %vm2707, %v2704, %v2706
    %2716 = vst [vmem:[#allocation7 + $0x80] sm:$0xff] %v2708
    %2717 = vst [vmem:[#allocation7 + $0x90] sm:$0xff] %v2709
    %2718 = vst [vmem:[#allocation7 + $0xa0] sm:$0xff] %v2710
    %2719 = vst [vmem:[#allocation7 + $0xb0] sm:$0xff] %v2711
    %v2720 = vld [vmem:[#allocation5] sm:$0xff]
    %v2721 = vld [vmem:[#allocation5 + $0x8] sm:$0xff]
    %v2722 = vld [vmem:[#allocation5 + $0x20] sm:$0xff]
    %v2723 = vld [vmem:[#allocation5 + $0x28] sm:$0xff]
    %v2724 = vld [vmem:[#allocation5 + $0x40] sm:$0xff]
    %v2725 = vld [vmem:[#allocation5 + $0x48] sm:$0xff]
    %v2726 = vld [vmem:[#allocation5 + $0x60] sm:$0xff]
    %v2727 = vld [vmem:[#allocation5 + $0x68] sm:$0xff]
    %2736 = vrot.lane.b32.xlu0 %v2720, 113
    %v2737 = vpop.permute.xlu0 %2736
    %2738 = vrot.lane.b32.xlu0 %v2721, 113
    %v2739 = vpop.permute.xlu0 %2738
    %2740 = vrot.lane.b32.xlu0 %v2722, 113
    %v2741 = vpop.permute.xlu0 %2740
    %2742 = vrot.lane.b32.xlu0 %v2723, 113
    %v2743 = vpop.permute.xlu0 %2742
    %2744 = vrot.lane.b32.xlu0 %v2724, 113
    %v2745 = vpop.permute.xlu0 %2744
    %2746 = vrot.lane.b32.xlu0 %v2725, 113
    %v2747 = vpop.permute.xlu0 %2746
    %2748 = vrot.lane.b32.xlu0 %v2726, 113
    %v2749 = vpop.permute.xlu0 %2748
    %2750 = vrot.lane.b32.xlu0 %v2727, 113
    %v2751 = vpop.permute.xlu0 %2750
    %vm2752 = vcmask 924672
    %v2753 = vsel %vm2752, %v2737, %v2739
    %v2754 = vsel %vm2752, %v2741, %v2743
    %v2755 = vsel %vm2752, %v2745, %v2747
    %v2756 = vsel %vm2752, %v2749, %v2751
    %2761 = vst [vmem:[#allocation7 + $0xc0] sm:$0xff] %v2753
    %2762 = vst [vmem:[#allocation7 + $0xd0] sm:$0xff] %v2754
    %2763 = vst [vmem:[#allocation7 + $0xe0] sm:$0xff] %v2755
    %2764 = vst [vmem:[#allocation7 + $0xf0] sm:$0xff] %v2756
    %v2765 = vld [vmem:[#allocation5 + $0x10] sm:$0xff]
    %v2766 = vld [vmem:[#allocation5 + $0x18] sm:$0xff]
    %v2767 = vld [vmem:[#allocation5 + $0x30] sm:$0xff]
    %v2768 = vld [vmem:[#allocation5 + $0x38] sm:$0xff]
    %v2769 = vld [vmem:[#allocation5 + $0x50] sm:$0xff]
    %v2770 = vld [vmem:[#allocation5 + $0x58] sm:$0xff]
    %v2771 = vld [vmem:[#allocation5 + $0x70] sm:$0xff]
    %v2772 = vld [vmem:[#allocation5 + $0x78] sm:$0xff]
    %2781 = vrot.lane.b32.xlu0 %v2765, 116
    %v2782 = vpop.permute.xlu0 %2781
    %2783 = vrot.lane.b32.xlu0 %v2766, 116
    %v2784 = vpop.permute.xlu0 %2783
    %2785 = vrot.lane.b32.xlu0 %v2767, 116
    %v2786 = vpop.permute.xlu0 %2785
    %2787 = vrot.lane.b32.xlu0 %v2768, 116
    %v2788 = vpop.permute.xlu0 %2787
    %2789 = vrot.lane.b32.xlu0 %v2769, 116
    %v2790 = vpop.permute.xlu0 %2789
    %2791 = vrot.lane.b32.xlu0 %v2770, 116
    %v2792 = vpop.permute.xlu0 %2791
    %2793 = vrot.lane.b32.xlu0 %v2771, 116
    %v2794 = vpop.permute.xlu0 %2793
    %2795 = vrot.lane.b32.xlu0 %v2772, 116
    %v2796 = vpop.permute.xlu0 %2795
    %v2797 = vsel %vm2617, %v2782, %v2784
    %v2798 = vsel %vm2617, %v2786, %v2788
    %v2799 = vsel %vm2617, %v2790, %v2792
    %v2800 = vsel %vm2617, %v2794, %v2796
    %2805 = vst [vmem:[#allocation7 + $0x8] sm:$0xff] %v2797
    %2806 = vst [vmem:[#allocation7 + $0x18] sm:$0xff] %v2798
    %2807 = vst [vmem:[#allocation7 + $0x28] sm:$0xff] %v2799
    %2808 = vst [vmem:[#allocation7 + $0x38] sm:$0xff] %v2800
    %v2809 = vld [vmem:[#allocation5 + $0x10] sm:$0xff]
    %v2810 = vld [vmem:[#allocation5 + $0x18] sm:$0xff]
    %v2811 = vld [vmem:[#allocation5 + $0x30] sm:$0xff]
    %v2812 = vld [vmem:[#allocation5 + $0x38] sm:$0xff]
    %v2813 = vld [vmem:[#allocation5 + $0x50] sm:$0xff]
    %v2814 = vld [vmem:[#allocation5 + $0x58] sm:$0xff]
    %v2815 = vld [vmem:[#allocation5 + $0x70] sm:$0xff]
    %v2816 = vld [vmem:[#allocation5 + $0x78] sm:$0xff]
    %2825 = vrot.lane.b32.xlu0 %v2809, 115
    %v2826 = vpop.permute.xlu0 %2825
    %2827 = vrot.lane.b32.xlu0 %v2810, 115
    %v2828 = vpop.permute.xlu0 %2827
    %2829 = vrot.lane.b32.xlu0 %v2811, 115
    %v2830 = vpop.permute.xlu0 %2829
    %2831 = vrot.lane.b32.xlu0 %v2812, 115
    %v2832 = vpop.permute.xlu0 %2831
    %2833 = vrot.lane.b32.xlu0 %v2813, 115
    %v2834 = vpop.permute.xlu0 %2833
    %2835 = vrot.lane.b32.xlu0 %v2814, 115
    %v2836 = vpop.permute.xlu0 %2835
    %2837 = vrot.lane.b32.xlu0 %v2815, 115
    %v2838 = vpop.permute.xlu0 %2837
    %2839 = vrot.lane.b32.xlu0 %v2816, 115
    %v2840 = vpop.permute.xlu0 %2839
    %v2841 = vsel %vm2662, %v2826, %v2828
    %v2842 = vsel %vm2662, %v2830, %v2832
    %v2843 = vsel %vm2662, %v2834, %v2836
    %v2844 = vsel %vm2662, %v2838, %v2840
    %2849 = vst [vmem:[#allocation7 + $0x48] sm:$0xff] %v2841
    %2850 = vst [vmem:[#allocation7 + $0x58] sm:$0xff] %v2842
    %2851 = vst [vmem:[#allocation7 + $0x68] sm:$0xff] %v2843
    %2852 = vst [vmem:[#allocation7 + $0x78] sm:$0xff] %v2844
    %v2853 = vld [vmem:[#allocation5 + $0x10] sm:$0xff]
    %v2854 = vld [vmem:[#allocation5 + $0x18] sm:$0xff]
    %v2855 = vld [vmem:[#allocation5 + $0x30] sm:$0xff]
    %v2856 = vld [vmem:[#allocation5 + $0x38] sm:$0xff]
    %v2857 = vld [vmem:[#allocation5 + $0x50] sm:$0xff]
    %v2858 = vld [vmem:[#allocation5 + $0x58] sm:$0xff]
    %v2859 = vld [vmem:[#allocation5 + $0x70] sm:$0xff]
    %v2860 = vld [vmem:[#allocation5 + $0x78] sm:$0xff]
    %2869 = vrot.lane.b32.xlu0 %v2853, 114
    %v2870 = vpop.permute.xlu0 %2869
    %2871 = vrot.lane.b32.xlu0 %v2854, 114
    %v2872 = vpop.permute.xlu0 %2871
    %2873 = vrot.lane.b32.xlu0 %v2855, 114
    %v2874 = vpop.permute.xlu0 %2873
    %2875 = vrot.lane.b32.xlu0 %v2856, 114
    %v2876 = vpop.permute.xlu0 %2875
    %2877 = vrot.lane.b32.xlu0 %v2857, 114
    %v2878 = vpop.permute.xlu0 %2877
    %2879 = vrot.lane.b32.xlu0 %v2858, 114
    %v2880 = vpop.permute.xlu0 %2879
    %2881 = vrot.lane.b32.xlu0 %v2859, 114
    %v2882 = vpop.permute.xlu0 %2881
    %2883 = vrot.lane.b32.xlu0 %v2860, 114
    %v2884 = vpop.permute.xlu0 %2883
    %v2885 = vsel %vm2707, %v2870, %v2872
    %v2886 = vsel %vm2707, %v2874, %v2876
    %v2887 = vsel %vm2707, %v2878, %v2880
    %v2888 = vsel %vm2707, %v2882, %v2884
    %2893 = vst [vmem:[#allocation7 + $0x88] sm:$0xff] %v2885
    %2894 = vst [vmem:[#allocation7 + $0x98] sm:$0xff] %v2886
    %2895 = vst [vmem:[#allocation7 + $0xa8] sm:$0xff] %v2887
    %2896 = vst [vmem:[#allocation7 + $0xb8] sm:$0xff] %v2888
    %v2897 = vld [vmem:[#allocation5 + $0x10] sm:$0xff]
    %v2898 = vld [vmem:[#allocation5 + $0x18] sm:$0xff]
    %v2899 = vld [vmem:[#allocation5 + $0x30] sm:$0xff]
    %v2900 = vld [vmem:[#allocation5 + $0x38] sm:$0xff]
    %v2901 = vld [vmem:[#allocation5 + $0x50] sm:$0xff]
    %v2902 = vld [vmem:[#allocation5 + $0x58] sm:$0xff]
    %v2903 = vld [vmem:[#allocation5 + $0x70] sm:$0xff]
    %v2904 = vld [vmem:[#allocation5 + $0x78] sm:$0xff]
    %2913 = vrot.lane.b32.xlu0 %v2897, 113
    %v2914 = vpop.permute.xlu0 %2913
    %2915 = vrot.lane.b32.xlu0 %v2898, 113
    %v2916 = vpop.permute.xlu0 %2915
    %2917 = vrot.lane.b32.xlu0 %v2899, 113
    %v2918 = vpop.permute.xlu0 %2917
    %2919 = vrot.lane.b32.xlu0 %v2900, 113
    %v2920 = vpop.permute.xlu0 %2919
    %2921 = vrot.lane.b32.xlu0 %v2901, 113
    %v2922 = vpop.permute.xlu0 %2921
    %2923 = vrot.lane.b32.xlu0 %v2902, 113
    %v2924 = vpop.permute.xlu0 %2923
    %2925 = vrot.lane.b32.xlu0 %v2903, 113
    %v2926 = vpop.permute.xlu0 %2925
    %2927 = vrot.lane.b32.xlu0 %v2904, 113
    %v2928 = vpop.permute.xlu0 %2927
    %v2929 = vsel %vm2752, %v2914, %v2916
    %v2930 = vsel %vm2752, %v2918, %v2920
    %v2931 = vsel %vm2752, %v2922, %v2924
    %v2932 = vsel %vm2752, %v2926, %v2928
    %2937 = vst [vmem:[#allocation7 + $0xc8] sm:$0xff] %v2929
    %2938 = vst [vmem:[#allocation7 + $0xd8] sm:$0xff] %v2930
    %2939 = vst [vmem:[#allocation7 + $0xe8] sm:$0xff] %v2931
    %2940 = vst [vmem:[#allocation7 + $0xf8] sm:$0xff] %v2932
    %v2941 = vld [vmem:[%s5 + $0x18] sm:$0xff]
    %v2942 = vld [vmem:[%s5 + $0x5c] sm:$0xff]
    %v2943 = vld [vmem:[%s5 + $0xa0] sm:$0xff]
    %v2944 = vld [vmem:[%s5 + $0xe4] sm:$0xff]
    %v2945 = vld [vmem:[%s5 + $0x128] sm:$0xff]
    %v2946 = vld [vmem:[%s5 + $0x16c] sm:$0xff]
    %v2947 = vld [vmem:[%s5 + $0x1b0] sm:$0xff]
    %v2948 = vld [vmem:[%s5 + $0x1f4] sm:$0xff]
    %v2949 = vld [vmem:[%s5 + $0x238] sm:$0xff]
    %v2950 = vld [vmem:[%s5 + $0x27c] sm:$0xff]
    %v2951 = vld [vmem:[%s5 + $0x2c0] sm:$0xff]
    %v2952 = vld [vmem:[%s5 + $0x304] sm:$0xff]
    %v2953 = vld [vmem:[%s5 + $0x348] sm:$0xff]
    %v2954 = vld [vmem:[%s5 + $0x38c] sm:$0xff]
    %v2955 = vld [vmem:[%s5 + $0x3d0] sm:$0xff]
    %v2956 = vld [vmem:[%s5 + $0x414] sm:$0xff]
    %v2957 = vld [vmem:[#allocation7] sm:$0xff]
    %v2958 = vld [vmem:[#allocation7 + $0x8] sm:$0xff]
    %v2959 = vld [vmem:[#allocation7 + $0x10] sm:$0xff]
    %v2960 = vld [vmem:[#allocation7 + $0x18] sm:$0xff]
    %v2961 = vld [vmem:[#allocation7 + $0x20] sm:$0xff]
    %v2962 = vld [vmem:[#allocation7 + $0x28] sm:$0xff]
    %v2963 = vld [vmem:[#allocation7 + $0x30] sm:$0xff]
    %v2964 = vld [vmem:[#allocation7 + $0x38] sm:$0xff]
    %v2965 = vld [vmem:[#allocation7 + $0x40] sm:$0xff]
    %v2966 = vld [vmem:[#allocation7 + $0x48] sm:$0xff]
    %v2967 = vld [vmem:[#allocation7 + $0x50] sm:$0xff]
    %v2968 = vld [vmem:[#allocation7 + $0x58] sm:$0xff]
    %v2969 = vld [vmem:[#allocation7 + $0x60] sm:$0xff]
    %v2970 = vld [vmem:[#allocation7 + $0x68] sm:$0xff]
    %v2971 = vld [vmem:[#allocation7 + $0x70] sm:$0xff]
    %v2972 = vld [vmem:[#allocation7 + $0x78] sm:$0xff]
    %v2973 = vld [vmem:[#allocation7 + $0x80] sm:$0xff]
    %v2974 = vld [vmem:[#allocation7 + $0x88] sm:$0xff]
    %v2975 = vld [vmem:[#allocation7 + $0x90] sm:$0xff]
    %v2976 = vld [vmem:[#allocation7 + $0x98] sm:$0xff]
    %v2977 = vld [vmem:[#allocation7 + $0xa0] sm:$0xff]
    %v2978 = vld [vmem:[#allocation7 + $0xa8] sm:$0xff]
    %v2979 = vld [vmem:[#allocation7 + $0xb0] sm:$0xff]
    %v2980 = vld [vmem:[#allocation7 + $0xb8] sm:$0xff]
    %v2981 = vld [vmem:[#allocation7 + $0xc0] sm:$0xff]
    %v2982 = vld [vmem:[#allocation7 + $0xc8] sm:$0xff]
    %v2983 = vld [vmem:[#allocation7 + $0xd0] sm:$0xff]
    %v2984 = vld [vmem:[#allocation7 + $0xd8] sm:$0xff]
    %v2985 = vld [vmem:[#allocation7 + $0xe0] sm:$0xff]
    %v2986 = vld [vmem:[#allocation7 + $0xe8] sm:$0xff]
    %v2987 = vld [vmem:[#allocation7 + $0xf0] sm:$0xff]
    %v2988 = vld [vmem:[#allocation7 + $0xf8] sm:$0xff]
    %v3005 = vunpack.c.l.b16 %v2941
    %v3006 = vunpack.c.h.b16 %v2941
    %v3007 = vunpack.c.l.b16 %v2942
    %v3008 = vunpack.c.h.b16 %v2942
    %v3009 = vunpack.c.l.b16 %v2943
    %v3010 = vunpack.c.h.b16 %v2943
    %v3011 = vunpack.c.l.b16 %v2944
    %v3012 = vunpack.c.h.b16 %v2944
    %v3013 = vunpack.c.l.b16 %v2945
    %v3014 = vunpack.c.h.b16 %v2945
    %v3015 = vunpack.c.l.b16 %v2946
    %v3016 = vunpack.c.h.b16 %v2946
    %v3017 = vunpack.c.l.b16 %v2947
    %v3018 = vunpack.c.h.b16 %v2947
    %v3019 = vunpack.c.l.b16 %v2948
    %v3020 = vunpack.c.h.b16 %v2948
    %v3021 = vunpack.c.l.b16 %v2949
    %v3022 = vunpack.c.h.b16 %v2949
    %v3023 = vunpack.c.l.b16 %v2950
    %v3024 = vunpack.c.h.b16 %v2950
    %v3025 = vunpack.c.l.b16 %v2951
    %v3026 = vunpack.c.h.b16 %v2951
    %v3027 = vunpack.c.l.b16 %v2952
    %v3028 = vunpack.c.h.b16 %v2952
    %v3029 = vunpack.c.l.b16 %v2953
    %v3030 = vunpack.c.h.b16 %v2953
    %v3031 = vunpack.c.l.b16 %v2954
    %v3032 = vunpack.c.h.b16 %v2954
    %v3033 = vunpack.c.l.b16 %v2955
    %v3034 = vunpack.c.h.b16 %v2955
    %v3035 = vunpack.c.l.b16 %v2956
    %v3036 = vunpack.c.h.b16 %v2956
    %v3037 = vpack.c.b16 %v3007, %v3005
    %v3038 = vpack.c.b16 %v3008, %v3006
    %v3039 = vpack.c.b16 %v3011, %v3009
    %v3040 = vpack.c.b16 %v3012, %v3010
    %v3041 = vpack.c.b16 %v3015, %v3013
    %v3042 = vpack.c.b16 %v3016, %v3014
    %v3043 = vpack.c.b16 %v3019, %v3017
    %v3044 = vpack.c.b16 %v3020, %v3018
    %v3045 = vpack.c.b16 %v3023, %v3021
    %v3046 = vpack.c.b16 %v3024, %v3022
    %v3047 = vpack.c.b16 %v3027, %v3025
    %v3048 = vpack.c.b16 %v3028, %v3026
    %v3049 = vpack.c.b16 %v3031, %v3029
    %v3050 = vpack.c.b16 %v3032, %v3030
    %v3051 = vpack.c.b16 %v3035, %v3033
    %v3052 = vpack.c.b16 %v3036, %v3034
    %3069 = vmatprep.subr.bf16.mxu0 %v2958
    %3070 = vmatpush1.bf16.msra.mxu0 %v2957
    %3071 = vmatprep.subr.bf16.mxu0 %v2960
    %3072 = vmatpush1.bf16.msra.mxu0 %v2959
    %3073 = vmatprep.subr.bf16.mxu0 %v2962
    %3074 = vmatpush1.bf16.msra.mxu0 %v2961
    %3075 = vmatprep.subr.bf16.mxu0 %v2964
    %3076 = vmatpush1.bf16.msra.mxu0 %v2963
    %3077 = vmatprep.subr.bf16.mxu0 %v2966
    %3078 = vmatpush1.bf16.msra.mxu0 %v2965
    %3079 = vmatprep.subr.bf16.mxu0 %v2968
    %3080 = vmatpush1.bf16.msra.mxu0 %v2967
    %3081 = vmatprep.subr.bf16.mxu0 %v2970
    %3082 = vmatpush1.bf16.msra.mxu0 %v2969
    %3083 = vmatprep.subr.bf16.mxu0 %v2972
    %3084 = vmatpush1.bf16.msra.mxu0 %v2971
    %3085 = vmatprep.subr.bf16.mxu0 %v2974
    %3086 = vmatpush1.bf16.msra.mxu0 %v2973
    %3087 = vmatprep.subr.bf16.mxu0 %v2976
    %3088 = vmatpush1.bf16.msra.mxu0 %v2975
    %3089 = vmatprep.subr.bf16.mxu0 %v2978
    %3090 = vmatpush1.bf16.msra.mxu0 %v2977
    %3091 = vmatprep.subr.bf16.mxu0 %v2980
    %3092 = vmatpush1.bf16.msra.mxu0 %v2979
    %3093 = vmatprep.subr.bf16.mxu0 %v2982
    %3094 = vmatpush1.bf16.msra.mxu0 %v2981
    %3095 = vmatprep.subr.bf16.mxu0 %v2984
    %3096 = vmatpush1.bf16.msra.mxu0 %v2983
    %3097 = vmatprep.subr.bf16.mxu0 %v2986
    %3098 = vmatpush1.bf16.msra.mxu0 %v2985
    %3099 = vmatprep.subr.bf16.mxu0 %v2988
    %3100 = vmatpush1.bf16.msra.mxu0 %v2987
    %3101 = vmatprep.mubr.bf16.mxu0 %v3038
    %3102 = vmatmul.mubr.bf16.gmra.mrb[0].mxu0 %v3037
    %v3103 = vpop.f32.mrb[0].mxu0
    %v3104 = vadd.f32 0.0, %v3103
    %v3105 = vpop.f32.mrb[0].mxu0
    %v3106 = vadd.f32 0.0, %v3105
    %v3107 = vpop.f32.mrb[0].mxu0
    %v3108 = vadd.f32 0.0, %v3107
    %v3109 = vpop.f32.mrb[0].mxu0
    %v3110 = vadd.f32 0.0, %v3109
    %3111 = vmatprep.mubr.bf16.mxu0 %v3040
    %3112 = vmatmul.mubr.bf16.gmra.mrb[0].mxu0 %v3039
    %v3113 = vpop.f32.mrb[0].mxu0
    %v3114 = vadd.f32 0.0, %v3113
    %v3115 = vpop.f32.mrb[0].mxu0
    %v3116 = vadd.f32 0.0, %v3115
    %v3117 = vpop.f32.mrb[0].mxu0
    %v3118 = vadd.f32 0.0, %v3117
    %v3119 = vpop.f32.mrb[0].mxu0
    %v3120 = vadd.f32 0.0, %v3119
    %3121 = vmatprep.mubr.bf16.mxu0 %v3042
    %3122 = vmatmul.mubr.bf16.gmra.mrb[0].mxu0 %v3041
    %v3123 = vpop.f32.mrb[0].mxu0
    %v3124 = vadd.f32 0.0, %v3123
    %v3125 = vpop.f32.mrb[0].mxu0
    %v3126 = vadd.f32 0.0, %v3125
    %v3127 = vpop.f32.mrb[0].mxu0
    %v3128 = vadd.f32 0.0, %v3127
    %v3129 = vpop.f32.mrb[0].mxu0
    %v3130 = vadd.f32 0.0, %v3129
    %3131 = vmatprep.mubr.bf16.mxu0 %v3044
    %3132 = vmatmul.mubr.bf16.gmra.mrb[0].mxu0 %v3043
    %v3133 = vpop.f32.mrb[0].mxu0
    %v3134 = vadd.f32 0.0, %v3133
    %v3135 = vpop.f32.mrb[0].mxu0
    %v3136 = vadd.f32 0.0, %v3135
    %v3137 = vpop.f32.mrb[0].mxu0
    %v3138 = vadd.f32 0.0, %v3137
    %v3139 = vpop.f32.mrb[0].mxu0
    %v3140 = vadd.f32 0.0, %v3139
    %3141 = vmatprep.mubr.bf16.mxu0 %v3046
    %3142 = vmatmul.mubr.bf16.gmra.mrb[0].mxu0 %v3045
    %v3143 = vpop.f32.mrb[0].mxu0
    %v3144 = vadd.f32 0.0, %v3143
    %v3145 = vpop.f32.mrb[0].mxu0
    %v3146 = vadd.f32 0.0, %v3145
    %v3147 = vpop.f32.mrb[0].mxu0
    %v3148 = vadd.f32 0.0, %v3147
    %v3149 = vpop.f32.mrb[0].mxu0
    %v3150 = vadd.f32 0.0, %v3149
    %3151 = vmatprep.mubr.bf16.mxu0 %v3048
    %3152 = vmatmul.mubr.bf16.gmra.mrb[0].mxu0 %v3047
    %v3153 = vpop.f32.mrb[0].mxu0
    %v3154 = vadd.f32 0.0, %v3153
    %v3155 = vpop.f32.mrb[0].mxu0
    %v3156 = vadd.f32 0.0, %v3155
    %v3157 = vpop.f32.mrb[0].mxu0
    %v3158 = vadd.f32 0.0, %v3157
    %v3159 = vpop.f32.mrb[0].mxu0
    %v3160 = vadd.f32 0.0, %v3159
    %3161 = vmatprep.mubr.bf16.mxu0 %v3050
    %3162 = vmatmul.mubr.bf16.gmra.mrb[0].mxu0 %v3049
    %v3163 = vpop.f32.mrb[0].mxu0
    %v3164 = vadd.f32 0.0, %v3163
    %v3165 = vpop.f32.mrb[0].mxu0
    %v3166 = vadd.f32 0.0, %v3165
    %v3167 = vpop.f32.mrb[0].mxu0
    %v3168 = vadd.f32 0.0, %v3167
    %v3169 = vpop.f32.mrb[0].mxu0
    %v3170 = vadd.f32 0.0, %v3169
    %3171 = vmatprep.mubr.bf16.mxu0 %v3052
    %3172 = vmatmul.mubr.bf16.gmra.mrb[0].mxu0 %v3051
    %v3173 = vpop.f32.mrb[0].mxu0
    %v3174 = vadd.f32 0.0, %v3173
    %v3175 = vpop.f32.mrb[0].mxu0
    %v3176 = vadd.f32 0.0, %v3175
    %v3177 = vpop.f32.mrb[0].mxu0
    %v3178 = vadd.f32 0.0, %v3177
    %v3179 = vpop.f32.mrb[0].mxu0
    %v3180 = vadd.f32 0.0, %v3179
    %3181 = vdwg.mxu0
    %v3182 = vadd.f32 %v2553, %v3104
    %v3183 = vadd.f32 %v2554, %v3106
    %v3184 = vadd.f32 %v2555, %v3108
    %v3185 = vadd.f32 %v2556, %v3110
    %v3186 = vadd.f32 %v2557, %v3114
    %v3187 = vadd.f32 %v2558, %v3116
    %v3188 = vadd.f32 %v2559, %v3118
    %v3189 = vadd.f32 %v2560, %v3120
    %v3190 = vadd.f32 %v2561, %v3124
    %v3191 = vadd.f32 %v2562, %v3126
    %v3192 = vadd.f32 %v2563, %v3128
    %v3193 = vadd.f32 %v2564, %v3130
    %v3194 = vadd.f32 %v2565, %v3134
    %v3195 = vadd.f32 %v2566, %v3136
    %v3196 = vadd.f32 %v2567, %v3138
    %v3197 = vadd.f32 %v2568, %v3140
    %v3198 = vadd.f32 %v2569, %v3144
    %v3199 = vadd.f32 %v2570, %v3146
    %v3200 = vadd.f32 %v2571, %v3148
    %v3201 = vadd.f32 %v2572, %v3150
    %v3202 = vadd.f32 %v2573, %v3154
    %v3203 = vadd.f32 %v2574, %v3156
    %v3204 = vadd.f32 %v2575, %v3158
    %v3205 = vadd.f32 %v2576, %v3160
    %v3206 = vadd.f32 %v2577, %v3164
    %v3207 = vadd.f32 %v2578, %v3166
    %v3208 = vadd.f32 %v2579, %v3168
    %v3209 = vadd.f32 %v2580, %v3170
    %v3210 = vadd.f32 %v2581, %v3174
    %v3211 = vadd.f32 %v2582, %v3176
    %v3212 = vadd.f32 %v2583, %v3178
    %v3213 = vadd.f32 %v2584, %v3180
    %v3214 = vld [vmem:[#allocation5] sm:$0xff]
    %v3215 = vld [vmem:[#allocation5 + $0x8] sm:$0xff]
    %v3216 = vld [vmem:[#allocation5 + $0x20] sm:$0xff]
    %v3217 = vld [vmem:[#allocation5 + $0x28] sm:$0xff]
    %v3218 = vld [vmem:[#allocation5 + $0x40] sm:$0xff]
    %v3219 = vld [vmem:[#allocation5 + $0x48] sm:$0xff]
    %v3220 = vld [vmem:[#allocation5 + $0x60] sm:$0xff]
    %v3221 = vld [vmem:[#allocation5 + $0x68] sm:$0xff]
    %3230 = vrot.lane.b32.xlu0 %v3214, 112
    %v3231 = vpop.permute.xlu0 %3230
    %3232 = vrot.lane.b32.xlu0 %v3215, 112
    %v3233 = vpop.permute.xlu0 %3232
    %3234 = vrot.lane.b32.xlu0 %v3216, 112
    %v3235 = vpop.permute.xlu0 %3234
    %3236 = vrot.lane.b32.xlu0 %v3217, 112
    %v3237 = vpop.permute.xlu0 %3236
    %3238 = vrot.lane.b32.xlu0 %v3218, 112
    %v3239 = vpop.permute.xlu0 %3238
    %3240 = vrot.lane.b32.xlu0 %v3219, 112
    %v3241 = vpop.permute.xlu0 %3240
    %3242 = vrot.lane.b32.xlu0 %v3220, 112
    %v3243 = vpop.permute.xlu0 %3242
    %3244 = vrot.lane.b32.xlu0 %v3221, 112
    %v3245 = vpop.permute.xlu0 %3244
    %vm3246 = vcmask 916480
    %v3247 = vsel %vm3246, %v3231, %v3233
    %v3248 = vsel %vm3246, %v3235, %v3237
    %v3249 = vsel %vm3246, %v3239, %v3241
    %v3250 = vsel %vm3246, %v3243, %v3245
    %3255 = vst [vmem:[#allocation6] sm:$0xff] %v3247
    %3256 = vst [vmem:[#allocation6 + $0x10] sm:$0xff] %v3248
    %3257 = vst [vmem:[#allocation6 + $0x20] sm:$0xff] %v3249
    %3258 = vst [vmem:[#allocation6 + $0x30] sm:$0xff] %v3250
    %v3259 = vld [vmem:[#allocation5] sm:$0xff]
    %v3260 = vld [vmem:[#allocation5 + $0x8] sm:$0xff]
    %v3261 = vld [vmem:[#allocation5 + $0x20] sm:$0xff]
    %v3262 = vld [vmem:[#allocation5 + $0x28] sm:$0xff]
    %v3263 = vld [vmem:[#allocation5 + $0x40] sm:$0xff]
    %v3264 = vld [vmem:[#allocation5 + $0x48] sm:$0xff]
    %v3265 = vld [vmem:[#allocation5 + $0x60] sm:$0xff]
    %v3266 = vld [vmem:[#allocation5 + $0x68] sm:$0xff]
    %3275 = vrot.lane.b32.xlu0 %v3259, 111
    %v3276 = vpop.permute.xlu0 %3275
    %3277 = vrot.lane.b32.xlu0 %v3260, 111
    %v3278 = vpop.permute.xlu0 %3277
    %3279 = vrot.lane.b32.xlu0 %v3261, 111
    %v3280 = vpop.permute.xlu0 %3279
    %3281 = vrot.lane.b32.xlu0 %v3262, 111
    %v3282 = vpop.permute.xlu0 %3281
    %3283 = vrot.lane.b32.xlu0 %v3263, 111
    %v3284 = vpop.permute.xlu0 %3283
    %3285 = vrot.lane.b32.xlu0 %v3264, 111
    %v3286 = vpop.permute.xlu0 %3285
    %3287 = vrot.lane.b32.xlu0 %v3265, 111
    %v3288 = vpop.permute.xlu0 %3287
    %3289 = vrot.lane.b32.xlu0 %v3266, 111
    %v3290 = vpop.permute.xlu0 %3289
    %vm3291 = vcmask 908288
    %v3292 = vsel %vm3291, %v3276, %v3278
    %v3293 = vsel %vm3291, %v3280, %v3282
    %v3294 = vsel %vm3291, %v3284, %v3286
    %v3295 = vsel %vm3291, %v3288, %v3290
    %3300 = vst [vmem:[#allocation6 + $0x40] sm:$0xff] %v3292
    %3301 = vst [vmem:[#allocation6 + $0x50] sm:$0xff] %v3293
    %3302 = vst [vmem:[#allocation6 + $0x60] sm:$0xff] %v3294
    %3303 = vst [vmem:[#allocation6 + $0x70] sm:$0xff] %v3295
    %v3304 = vld [vmem:[#allocation5] sm:$0xff]
    %v3305 = vld [vmem:[#allocation5 + $0x8] sm:$0xff]
    %v3306 = vld [vmem:[#allocation5 + $0x20] sm:$0xff]
    %v3307 = vld [vmem:[#allocation5 + $0x28] sm:$0xff]
    %v3308 = vld [vmem:[#allocation5 + $0x40] sm:$0xff]
    %v3309 = vld [vmem:[#allocation5 + $0x48] sm:$0xff]
    %v3310 = vld [vmem:[#allocation5 + $0x60] sm:$0xff]
    %v3311 = vld [vmem:[#allocation5 + $0x68] sm:$0xff]
    %3320 = vrot.lane.b32.xlu0 %v3304, 110
    %v3321 = vpop.permute.xlu0 %3320
    %3322 = vrot.lane.b32.xlu0 %v3305, 110
    %v3323 = vpop.permute.xlu0 %3322
    %3324 = vrot.lane.b32.xlu0 %v3306, 110
    %v3325 = vpop.permute.xlu0 %3324
    %3326 = vrot.lane.b32.xlu0 %v3307, 110
    %v3327 = vpop.permute.xlu0 %3326
    %3328 = vrot.lane.b32.xlu0 %v3308, 110
    %v3329 = vpop.permute.xlu0 %3328
    %3330 = vrot.lane.b32.xlu0 %v3309, 110
    %v3331 = vpop.permute.xlu0 %3330
    %3332 = vrot.lane.b32.xlu0 %v3310, 110
    %v3333 = vpop.permute.xlu0 %3332
    %3334 = vrot.lane.b32.xlu0 %v3311, 110
    %v3335 = vpop.permute.xlu0 %3334
    %vm3336 = vcmask 900096
    %v3337 = vsel %vm3336, %v3321, %v3323
    %v3338 = vsel %vm3336, %v3325, %v3327
    %v3339 = vsel %vm3336, %v3329, %v3331
    %v3340 = vsel %vm3336, %v3333, %v3335
    %3345 = vst [vmem:[#allocation6 + $0x80] sm:$0xff] %v3337
    %3346 = vst [vmem:[#allocation6 + $0x90] sm:$0xff] %v3338
    %3347 = vst [vmem:[#allocation6 + $0xa0] sm:$0xff] %v3339
    %3348 = vst [vmem:[#allocation6 + $0xb0] sm:$0xff] %v3340
    %v3349 = vld [vmem:[#allocation5] sm:$0xff]
    %v3350 = vld [vmem:[#allocation5 + $0x8] sm:$0xff]
    %v3351 = vld [vmem:[#allocation5 + $0x20] sm:$0xff]
    %v3352 = vld [vmem:[#allocation5 + $0x28] sm:$0xff]
    %v3353 = vld [vmem:[#allocation5 + $0x40] sm:$0xff]
    %v3354 = vld [vmem:[#allocation5 + $0x48] sm:$0xff]
    %v3355 = vld [vmem:[#allocation5 + $0x60] sm:$0xff]
    %v3356 = vld [vmem:[#allocation5 + $0x68] sm:$0xff]
    %3365 = vrot.lane.b32.xlu0 %v3349, 109
    %v3366 = vpop.permute.xlu0 %3365
    %3367 = vrot.lane.b32.xlu0 %v3350, 109
    %v3368 = vpop.permute.xlu0 %3367
    %3369 = vrot.lane.b32.xlu0 %v3351, 109
    %v3370 = vpop.permute.xlu0 %3369
    %3371 = vrot.lane.b32.xlu0 %v3352, 109
    %v3372 = vpop.permute.xlu0 %3371
    %3373 = vrot.lane.b32.xlu0 %v3353, 109
    %v3374 = vpop.permute.xlu0 %3373
    %3375 = vrot.lane.b32.xlu0 %v3354, 109
    %v3376 = vpop.permute.xlu0 %3375
    %3377 = vrot.lane.b32.xlu0 %v3355, 109
    %v3378 = vpop.permute.xlu0 %3377
    %3379 = vrot.lane.b32.xlu0 %v3356, 109
    %v3380 = vpop.permute.xlu0 %3379
    %vm3381 = vcmask 891904
    %v3382 = vsel %vm3381, %v3366, %v3368
    %v3383 = vsel %vm3381, %v3370, %v3372
    %v3384 = vsel %vm3381, %v3374, %v3376
    %v3385 = vsel %vm3381, %v3378, %v3380
    %3390 = vst [vmem:[#allocation6 + $0xc0] sm:$0xff] %v3382
    %3391 = vst [vmem:[#allocation6 + $0xd0] sm:$0xff] %v3383
    %3392 = vst [vmem:[#allocation6 + $0xe0] sm:$0xff] %v3384
    %3393 = vst [vmem:[#allocation6 + $0xf0] sm:$0xff] %v3385
    %v3394 = vld [vmem:[#allocation5 + $0x10] sm:$0xff]
    %v3395 = vld [vmem:[#allocation5 + $0x18] sm:$0xff]
    %v3396 = vld [vmem:[#allocation5 + $0x30] sm:$0xff]
    %v3397 = vld [vmem:[#allocation5 + $0x38] sm:$0xff]
    %v3398 = vld [vmem:[#allocation5 + $0x50] sm:$0xff]
    %v3399 = vld [vmem:[#allocation5 + $0x58] sm:$0xff]
    %v3400 = vld [vmem:[#allocation5 + $0x70] sm:$0xff]
    %v3401 = vld [vmem:[#allocation5 + $0x78] sm:$0xff]
    %3410 = vrot.lane.b32.xlu0 %v3394, 112
    %v3411 = vpop.permute.xlu0 %3410
    %3412 = vrot.lane.b32.xlu0 %v3395, 112
    %v3413 = vpop.permute.xlu0 %3412
    %3414 = vrot.lane.b32.xlu0 %v3396, 112
    %v3415 = vpop.permute.xlu0 %3414
    %3416 = vrot.lane.b32.xlu0 %v3397, 112
    %v3417 = vpop.permute.xlu0 %3416
    %3418 = vrot.lane.b32.xlu0 %v3398, 112
    %v3419 = vpop.permute.xlu0 %3418
    %3420 = vrot.lane.b32.xlu0 %v3399, 112
    %v3421 = vpop.permute.xlu0 %3420
    %3422 = vrot.lane.b32.xlu0 %v3400, 112
    %v3423 = vpop.permute.xlu0 %3422
    %3424 = vrot.lane.b32.xlu0 %v3401, 112
    %v3425 = vpop.permute.xlu0 %3424
    %v3426 = vsel %vm3246, %v3411, %v3413
    %v3427 = vsel %vm3246, %v3415, %v3417
    %v3428 = vsel %vm3246, %v3419, %v3421
    %v3429 = vsel %vm3246, %v3423, %v3425
    %3434 = vst [vmem:[#allocation6 + $0x8] sm:$0xff] %v3426
    %3435 = vst [vmem:[#allocation6 + $0x18] sm:$0xff] %v3427
    %3436 = vst [vmem:[#allocation6 + $0x28] sm:$0xff] %v3428
    %3437 = vst [vmem:[#allocation6 + $0x38] sm:$0xff] %v3429
    %v3438 = vld [vmem:[#allocation5 + $0x10] sm:$0xff]
    %v3439 = vld [vmem:[#allocation5 + $0x18] sm:$0xff]
    %v3440 = vld [vmem:[#allocation5 + $0x30] sm:$0xff]
    %v3441 = vld [vmem:[#allocation5 + $0x38] sm:$0xff]
    %v3442 = vld [vmem:[#allocation5 + $0x50] sm:$0xff]
    %v3443 = vld [vmem:[#allocation5 + $0x58] sm:$0xff]
    %v3444 = vld [vmem:[#allocation5 + $0x70] sm:$0xff]
    %v3445 = vld [vmem:[#allocation5 + $0x78] sm:$0xff]
    %3454 = vrot.lane.b32.xlu0 %v3438, 111
    %v3455 = vpop.permute.xlu0 %3454
    %3456 = vrot.lane.b32.xlu0 %v3439, 111
    %v3457 = vpop.permute.xlu0 %3456
    %3458 = vrot.lane.b32.xlu0 %v3440, 111
    %v3459 = vpop.permute.xlu0 %3458
    %3460 = vrot.lane.b32.xlu0 %v3441, 111
    %v3461 = vpop.permute.xlu0 %3460
    %3462 = vrot.lane.b32.xlu0 %v3442, 111
    %v3463 = vpop.permute.xlu0 %3462
    %3464 = vrot.lane.b32.xlu0 %v3443, 111
    %v3465 = vpop.permute.xlu0 %3464
    %3466 = vrot.lane.b32.xlu0 %v3444, 111
    %v3467 = vpop.permute.xlu0 %3466
    %3468 = vrot.lane.b32.xlu0 %v3445, 111
    %v3469 = vpop.permute.xlu0 %3468
    %v3470 = vsel %vm3291, %v3455, %v3457
    %v3471 = vsel %vm3291, %v3459, %v3461
    %v3472 = vsel %vm3291, %v3463, %v3465
    %v3473 = vsel %vm3291, %v3467, %v3469
    %3478 = vst [vmem:[#allocation6 + $0x48] sm:$0xff] %v3470
    %3479 = vst [vmem:[#allocation6 + $0x58] sm:$0xff] %v3471
    %3480 = vst [vmem:[#allocation6 + $0x68] sm:$0xff] %v3472
    %3481 = vst [vmem:[#allocation6 + $0x78] sm:$0xff] %v3473
    %v3482 = vld [vmem:[#allocation5 + $0x10] sm:$0xff]
    %v3483 = vld [vmem:[#allocation5 + $0x18] sm:$0xff]
    %v3484 = vld [vmem:[#allocation5 + $0x30] sm:$0xff]
    %v3485 = vld [vmem:[#allocation5 + $0x38] sm:$0xff]
    %v3486 = vld [vmem:[#allocation5 + $0x50] sm:$0xff]
    %v3487 = vld [vmem:[#allocation5 + $0x58] sm:$0xff]
    %v3488 = vld [vmem:[#allocation5 + $0x70] sm:$0xff]
    %v3489 = vld [vmem:[#allocation5 + $0x78] sm:$0xff]
    %3498 = vrot.lane.b32.xlu0 %v3482, 110
    %v3499 = vpop.permute.xlu0 %3498
    %3500 = vrot.lane.b32.xlu0 %v3483, 110
    %v3501 = vpop.permute.xlu0 %3500
    %3502 = vrot.lane.b32.xlu0 %v3484, 110
    %v3503 = vpop.permute.xlu0 %3502
    %3504 = vrot.lane.b32.xlu0 %v3485, 110
    %v3505 = vpop.permute.xlu0 %3504
    %3506 = vrot.lane.b32.xlu0 %v3486, 110
    %v3507 = vpop.permute.xlu0 %3506
    %3508 = vrot.lane.b32.xlu0 %v3487, 110
    %v3509 = vpop.permute.xlu0 %3508
    %3510 = vrot.lane.b32.xlu0 %v3488, 110
    %v3511 = vpop.permute.xlu0 %3510
    %3512 = vrot.lane.b32.xlu0 %v3489, 110
    %v3513 = vpop.permute.xlu0 %3512
    %v3514 = vsel %vm3336, %v3499, %v3501
    %v3515 = vsel %vm3336, %v3503, %v3505
    %v3516 = vsel %vm3336, %v3507, %v3509
    %v3517 = vsel %vm3336, %v3511, %v3513
    %3522 = vst [vmem:[#allocation6 + $0x88] sm:$0xff] %v3514
    %3523 = vst [vmem:[#allocation6 + $0x98] sm:$0xff] %v3515
    %3524 = vst [vmem:[#allocation6 + $0xa8] sm:$0xff] %v3516
    %3525 = vst [vmem:[#allocation6 + $0xb8] sm:$0xff] %v3517
    %v3526 = vld [vmem:[#allocation5 + $0x10] sm:$0xff]
    %v3527 = vld [vmem:[#allocation5 + $0x18] sm:$0xff]
    %v3528 = vld [vmem:[#allocation5 + $0x30] sm:$0xff]
    %v3529 = vld [vmem:[#allocation5 + $0x38] sm:$0xff]
    %v3530 = vld [vmem:[#allocation5 + $0x50] sm:$0xff]
    %v3531 = vld [vmem:[#allocation5 + $0x58] sm:$0xff]
    %v3532 = vld [vmem:[#allocation5 + $0x70] sm:$0xff]
    %v3533 = vld [vmem:[#allocation5 + $0x78] sm:$0xff]
    %3542 = vrot.lane.b32.xlu0 %v3526, 109
    %v3543 = vpop.permute.xlu0 %3542
    %3544 = vrot.lane.b32.xlu0 %v3527, 109
    %v3545 = vpop.permute.xlu0 %3544
    %3546 = vrot.lane.b32.xlu0 %v3528, 109
    %v3547 = vpop.permute.xlu0 %3546
    %3548 = vrot.lane.b32.xlu0 %v3529, 109
    %v3549 = vpop.permute.xlu0 %3548
    %3550 = vrot.lane.b32.xlu0 %v3530, 109
    %v3551 = vpop.permute.xlu0 %3550
    %3552 = vrot.lane.b32.xlu0 %v3531, 109
    %v3553 = vpop.permute.xlu0 %3552
    %3554 = vrot.lane.b32.xlu0 %v3532, 109
    %v3555 = vpop.permute.xlu0 %3554
    %3556 = vrot.lane.b32.xlu0 %v3533, 109
    %v3557 = vpop.permute.xlu0 %3556
    %v3558 = vsel %vm3381, %v3543, %v3545
    %v3559 = vsel %vm3381, %v3547, %v3549
    %v3560 = vsel %vm3381, %v3551, %v3553
    %v3561 = vsel %vm3381, %v3555, %v3557
    %3566 = vst [vmem:[#allocation6 + $0xc8] sm:$0xff] %v3558
    %3567 = vst [vmem:[#allocation6 + $0xd8] sm:$0xff] %v3559
    %3568 = vst [vmem:[#allocation6 + $0xe8] sm:$0xff] %v3560
    %3569 = vst [vmem:[#allocation6 + $0xf8] sm:$0xff] %v3561
    %v3570 = vld [vmem:[%s5 + $0x20] sm:$0xff]
    %v3571 = vld [vmem:[%s5 + $0x64] sm:$0xff]
    %v3572 = vld [vmem:[%s5 + $0xa8] sm:$0xff]
    %v3573 = vld [vmem:[%s5 + $0xec] sm:$0xff]
    %v3574 = vld [vmem:[%s5 + $0x130] sm:$0xff]
    %v3575 = vld [vmem:[%s5 + $0x174] sm:$0xff]
    %v3576 = vld [vmem:[%s5 + $0x1b8] sm:$0xff]
    %v3577 = vld [vmem:[%s5 + $0x1fc] sm:$0xff]
    %v3578 = vld [vmem:[%s5 + $0x240] sm:$0xff]
    %v3579 = vld [vmem:[%s5 + $0x284] sm:$0xff]
    %v3580 = vld [vmem:[%s5 + $0x2c8] sm:$0xff]
    %v3581 = vld [vmem:[%s5 + $0x30c] sm:$0xff]
    %v3582 = vld [vmem:[%s5 + $0x350] sm:$0xff]
    %v3583 = vld [vmem:[%s5 + $0x394] sm:$0xff]
    %v3584 = vld [vmem:[%s5 + $0x3d8] sm:$0xff]
    %v3585 = vld [vmem:[%s5 + $0x41c] sm:$0xff]
    %v3586 = vld [vmem:[#allocation6] sm:$0xff]
    %v3587 = vld [vmem:[#allocation6 + $0x8] sm:$0xff]
    %v3588 = vld [vmem:[#allocation6 + $0x10] sm:$0xff]
    %v3589 = vld [vmem:[#allocation6 + $0x18] sm:$0xff]
    %v3590 = vld [vmem:[#allocation6 + $0x20] sm:$0xff]
    %v3591 = vld [vmem:[#allocation6 + $0x28] sm:$0xff]
    %v3592 = vld [vmem:[#allocation6 + $0x30] sm:$0xff]
    %v3593 = vld [vmem:[#allocation6 + $0x38] sm:$0xff]
    %v3594 = vld [vmem:[#allocation6 + $0x40] sm:$0xff]
    %v3595 = vld [vmem:[#allocation6 + $0x48] sm:$0xff]
    %v3596 = vld [vmem:[#allocation6 + $0x50] sm:$0xff]
    %v3597 = vld [vmem:[#allocation6 + $0x58] sm:$0xff]
    %v3598 = vld [vmem:[#allocation6 + $0x60] sm:$0xff]
    %v3599 = vld [vmem:[#allocation6 + $0x68] sm:$0xff]
    %v3600 = vld [vmem:[#allocation6 + $0x70] sm:$0xff]
    %v3601 = vld [vmem:[#allocation6 + $0x78] sm:$0xff]
    %v3602 = vld [vmem:[#allocation6 + $0x80] sm:$0xff]
    %v3603 = vld [vmem:[#allocation6 + $0x88] sm:$0xff]
    %v3604 = vld [vmem:[#allocation6 + $0x90] sm:$0xff]
    %v3605 = vld [vmem:[#allocation6 + $0x98] sm:$0xff]
    %v3606 = vld [vmem:[#allocation6 + $0xa0] sm:$0xff]
    %v3607 = vld [vmem:[#allocation6 + $0xa8] sm:$0xff]
    %v3608 = vld [vmem:[#allocation6 + $0xb0] sm:$0xff]
    %v3609 = vld [vmem:[#allocation6 + $0xb8] sm:$0xff]
    %v3610 = vld [vmem:[#allocation6 + $0xc0] sm:$0xff]
    %v3611 = vld [vmem:[#allocation6 + $0xc8] sm:$0xff]
    %v3612 = vld [vmem:[#allocation6 + $0xd0] sm:$0xff]
    %v3613 = vld [vmem:[#allocation6 + $0xd8] sm:$0xff]
    %v3614 = vld [vmem:[#allocation6 + $0xe0] sm:$0xff]
    %v3615 = vld [vmem:[#allocation6 + $0xe8] sm:$0xff]
    %v3616 = vld [vmem:[#allocation6 + $0xf0] sm:$0xff]
    %v3617 = vld [vmem:[#allocation6 + $0xf8] sm:$0xff]
    %v3634 = vunpack.c.l.b16 %v3570
    %v3635 = vunpack.c.h.b16 %v3570
    %v3636 = vunpack.c.l.b16 %v3571
    %v3637 = vunpack.c.h.b16 %v3571
    %v3638 = vunpack.c.l.b16 %v3572
    %v3639 = vunpack.c.h.b16 %v3572
    %v3640 = vunpack.c.l.b16 %v3573
    %v3641 = vunpack.c.h.b16 %v3573
    %v3642 = vunpack.c.l.b16 %v3574
    %v3643 = vunpack.c.h.b16 %v3574
    %v3644 = vunpack.c.l.b16 %v3575
    %v3645 = vunpack.c.h.b16 %v3575
    %v3646 = vunpack.c.l.b16 %v3576
    %v3647 = vunpack.c.h.b16 %v3576
    %v3648 = vunpack.c.l.b16 %v3577
    %v3649 = vunpack.c.h.b16 %v3577
    %v3650 = vunpack.c.l.b16 %v3578
    %v3651 = vunpack.c.h.b16 %v3578
    %v3652 = vunpack.c.l.b16 %v3579
    %v3653 = vunpack.c.h.b16 %v3579
    %v3654 = vunpack.c.l.b16 %v3580
    %v3655 = vunpack.c.h.b16 %v3580
    %v3656 = vunpack.c.l.b16 %v3581
    %v3657 = vunpack.c.h.b16 %v3581
    %v3658 = vunpack.c.l.b16 %v3582
    %v3659 = vunpack.c.h.b16 %v3582
    %v3660 = vunpack.c.l.b16 %v3583
    %v3661 = vunpack.c.h.b16 %v3583
    %v3662 = vunpack.c.l.b16 %v3584
    %v3663 = vunpack.c.h.b16 %v3584
    %v3664 = vunpack.c.l.b16 %v3585
    %v3665 = vunpack.c.h.b16 %v3585
    %v3666 = vpack.c.b16 %v3636, %v3634
    %v3667 = vpack.c.b16 %v3637, %v3635
    %v3668 = vpack.c.b16 %v3640, %v3638
    %v3669 = vpack.c.b16 %v3641, %v3639
    %v3670 = vpack.c.b16 %v3644, %v3642
    %v3671 = vpack.c.b16 %v3645, %v3643
    %v3672 = vpack.c.b16 %v3648, %v3646
    %v3673 = vpack.c.b16 %v3649, %v3647
    %v3674 = vpack.c.b16 %v3652, %v3650
    %v3675 = vpack.c.b16 %v3653, %v3651
    %v3676 = vpack.c.b16 %v3656, %v3654
    %v3677 = vpack.c.b16 %v3657, %v3655
    %v3678 = vpack.c.b16 %v3660, %v3658
    %v3679 = vpack.c.b16 %v3661, %v3659
    %v3680 = vpack.c.b16 %v3664, %v3662
    %v3681 = vpack.c.b16 %v3665, %v3663
    %3698 = vmatprep.subr.bf16.mxu0 %v3587
    %3699 = vmatpush1.bf16.msra.mxu0 %v3586
    %3700 = vmatprep.subr.bf16.mxu0 %v3589
    %3701 = vmatpush1.bf16.msra.mxu0 %v3588
    %3702 = vmatprep.subr.bf16.mxu0 %v3591
    %3703 = vmatpush1.bf16.msra.mxu0 %v3590
    %3704 = vmatprep.subr.bf16.mxu0 %v3593
    %3705 = vmatpush1.bf16.msra.mxu0 %v3592
    %3706 = vmatprep.subr.bf16.mxu0 %v3595
    %3707 = vmatpush1.bf16.msra.mxu0 %v3594
    %3708 = vmatprep.subr.bf16.mxu0 %v3597
    %3709 = vmatpush1.bf16.msra.mxu0 %v3596
    %3710 = vmatprep.subr.bf16.mxu0 %v3599
    %3711 = vmatpush1.bf16.msra.mxu0 %v3598
    %3712 = vmatprep.subr.bf16.mxu0 %v3601
    %3713 = vmatpush1.bf16.msra.mxu0 %v3600
    %3714 = vmatprep.subr.bf16.mxu0 %v3603
    %3715 = vmatpush1.bf16.msra.mxu0 %v3602
    %3716 = vmatprep.subr.bf16.mxu0 %v3605
    %3717 = vmatpush1.bf16.msra.mxu0 %v3604
    %3718 = vmatprep.subr.bf16.mxu0 %v3607
    %3719 = vmatpush1.bf16.msra.mxu0 %v3606
    %3720 = vmatprep.subr.bf16.mxu0 %v3609
    %3721 = vmatpush1.bf16.msra.mxu0 %v3608
    %3722 = vmatprep.subr.bf16.mxu0 %v3611
    %3723 = vmatpush1.bf16.msra.mxu0 %v3610
    %3724 = vmatprep.subr.bf16.mxu0 %v3613
    %3725 = vmatpush1.bf16.msra.mxu0 %v3612
    %3726 = vmatprep.subr.bf16.mxu0 %v3615
    %3727 = vmatpush1.bf16.msra.mxu0 %v3614
    %3728 = vmatprep.subr.bf16.mxu0 %v3617
    %3729 = vmatpush1.bf16.msra.mxu0 %v3616
    %3730 = vmatprep.mubr.bf16.mxu0 %v3667
    %3731 = vmatmul.mubr.bf16.gmra.mrb[0].mxu0 %v3666
    %v3732 = vpop.f32.mrb[0].mxu0
    %v3733 = vadd.f32 0.0, %v3732
    %v3734 = vpop.f32.mrb[0].mxu0
    %v3735 = vadd.f32 0.0, %v3734
    %v3736 = vpop.f32.mrb[0].mxu0
    %v3737 = vadd.f32 0.0, %v3736
    %v3738 = vpop.f32.mrb[0].mxu0
    %v3739 = vadd.f32 0.0, %v3738
    %3740 = vmatprep.mubr.bf16.mxu0 %v3669
    %3741 = vmatmul.mubr.bf16.gmra.mrb[0].mxu0 %v3668
    %v3742 = vpop.f32.mrb[0].mxu0
    %v3743 = vadd.f32 0.0, %v3742
    %v3744 = vpop.f32.mrb[0].mxu0
    %v3745 = vadd.f32 0.0, %v3744
    %v3746 = vpop.f32.mrb[0].mxu0
    %v3747 = vadd.f32 0.0, %v3746
    %v3748 = vpop.f32.mrb[0].mxu0
    %v3749 = vadd.f32 0.0, %v3748
    %3750 = vmatprep.mubr.bf16.mxu0 %v3671
    %3751 = vmatmul.mubr.bf16.gmra.mrb[0].mxu0 %v3670
    %v3752 = vpop.f32.mrb[0].mxu0
    %v3753 = vadd.f32 0.0, %v3752
    %v3754 = vpop.f32.mrb[0].mxu0
    %v3755 = vadd.f32 0.0, %v3754
    %v3756 = vpop.f32.mrb[0].mxu0
    %v3757 = vadd.f32 0.0, %v3756
    %v3758 = vpop.f32.mrb[0].mxu0
    %v3759 = vadd.f32 0.0, %v3758
    %3760 = vmatprep.mubr.bf16.mxu0 %v3673
    %3761 = vmatmul.mubr.bf16.gmra.mrb[0].mxu0 %v3672
    %v3762 = vpop.f32.mrb[0].mxu0
    %v3763 = vadd.f32 0.0, %v3762
    %v3764 = vpop.f32.mrb[0].mxu0
    %v3765 = vadd.f32 0.0, %v3764
    %v3766 = vpop.f32.mrb[0].mxu0
    %v3767 = vadd.f32 0.0, %v3766
    %v3768 = vpop.f32.mrb[0].mxu0
    %v3769 = vadd.f32 0.0, %v3768
    %3770 = vmatprep.mubr.bf16.mxu0 %v3675
    %3771 = vmatmul.mubr.bf16.gmra.mrb[0].mxu0 %v3674
    %v3772 = vpop.f32.mrb[0].mxu0
    %v3773 = vadd.f32 0.0, %v3772
    %v3774 = vpop.f32.mrb[0].mxu0
    %v3775 = vadd.f32 0.0, %v3774
    %v3776 = vpop.f32.mrb[0].mxu0
    %v3777 = vadd.f32 0.0, %v3776
    %v3778 = vpop.f32.mrb[0].mxu0
    %v3779 = vadd.f32 0.0, %v3778
    %3780 = vmatprep.mubr.bf16.mxu0 %v3677
    %3781 = vmatmul.mubr.bf16.gmra.mrb[0].mxu0 %v3676
    %v3782 = vpop.f32.mrb[0].mxu0
    %v3783 = vadd.f32 0.0, %v3782
    %v3784 = vpop.f32.mrb[0].mxu0
    %v3785 = vadd.f32 0.0, %v3784
    %v3786 = vpop.f32.mrb[0].mxu0
    %v3787 = vadd.f32 0.0, %v3786
    %v3788 = vpop.f32.mrb[0].mxu0
    %v3789 = vadd.f32 0.0, %v3788
    %3790 = vmatprep.mubr.bf16.mxu0 %v3679
    %3791 = vmatmul.mubr.bf16.gmra.mrb[0].mxu0 %v3678
    %v3792 = vpop.f32.mrb[0].mxu0
    %v3793 = vadd.f32 0.0, %v3792
    %v3794 = vpop.f32.mrb[0].mxu0
    %v3795 = vadd.f32 0.0, %v3794
    %v3796 = vpop.f32.mrb[0].mxu0
    %v3797 = vadd.f32 0.0, %v3796
    %v3798 = vpop.f32.mrb[0].mxu0
    %v3799 = vadd.f32 0.0, %v3798
    %3800 = vmatprep.mubr.bf16.mxu0 %v3681
    %3801 = vmatmul.mubr.bf16.gmra.mrb[0].mxu0 %v3680
    %v3802 = vpop.f32.mrb[0].mxu0
    %v3803 = vadd.f32 0.0, %v3802
    %v3804 = vpop.f32.mrb[0].mxu0
    %v3805 = vadd.f32 0.0, %v3804
    %v3806 = vpop.f32.mrb[0].mxu0
    %v3807 = vadd.f32 0.0, %v3806
    %v3808 = vpop.f32.mrb[0].mxu0
    %v3809 = vadd.f32 0.0, %v3808
    %3810 = vdwg.mxu0
    %v3811 = vadd.f32 %v3182, %v3733
    %v3812 = vadd.f32 %v3183, %v3735
    %v3813 = vadd.f32 %v3184, %v3737
    %v3814 = vadd.f32 %v3185, %v3739
    %v3815 = vadd.f32 %v3186, %v3743
    %v3816 = vadd.f32 %v3187, %v3745
    %v3817 = vadd.f32 %v3188, %v3747
    %v3818 = vadd.f32 %v3189, %v3749
    %v3819 = vadd.f32 %v3190, %v3753
    %v3820 = vadd.f32 %v3191, %v3755
    %v3821 = vadd.f32 %v3192, %v3757
    %v3822 = vadd.f32 %v3193, %v3759
    %v3823 = vadd.f32 %v3194, %v3763
    %v3824 = vadd.f32 %v3195, %v3765
    %v3825 = vadd.f32 %v3196, %v3767
    %v3826 = vadd.f32 %v3197, %v3769
    %v3827 = vadd.f32 %v3198, %v3773
    %v3828 = vadd.f32 %v3199, %v3775
    %v3829 = vadd.f32 %v3200, %v3777
    %v3830 = vadd.f32 %v3201, %v3779
    %v3831 = vadd.f32 %v3202, %v3783
    %v3832 = vadd.f32 %v3203, %v3785
    %v3833 = vadd.f32 %v3204, %v3787
    %v3834 = vadd.f32 %v3205, %v3789
    %v3835 = vadd.f32 %v3206, %v3793
    %v3836 = vadd.f32 %v3207, %v3795
    %v3837 = vadd.f32 %v3208, %v3797
    %v3838 = vadd.f32 %v3209, %v3799
    %v3839 = vadd.f32 %v3210, %v3803
    %v3840 = vadd.f32 %v3211, %v3805
    %v3841 = vadd.f32 %v3212, %v3807
    %v3842 = vadd.f32 %v3213, %v3809
    %v3843 = vld [vmem:[#allocation5] sm:$0xff]
    %v3844 = vld [vmem:[#allocation5 + $0x8] sm:$0xff]
    %v3845 = vld [vmem:[#allocation5 + $0x20] sm:$0xff]
    %v3846 = vld [vmem:[#allocation5 + $0x28] sm:$0xff]
    %v3847 = vld [vmem:[#allocation5 + $0x40] sm:$0xff]
    %v3848 = vld [vmem:[#allocation5 + $0x48] sm:$0xff]
    %v3849 = vld [vmem:[#allocation5 + $0x60] sm:$0xff]
    %v3850 = vld [vmem:[#allocation5 + $0x68] sm:$0xff]
    %3859 = vrot.lane.b32.xlu0 %v3843, 108
    %v3860 = vpop.permute.xlu0 %3859
    %3861 = vrot.lane.b32.xlu0 %v3844, 108
    %v3862 = vpop.permute.xlu0 %3861
    %3863 = vrot.lane.b32.xlu0 %v3845, 108
    %v3864 = vpop.permute.xlu0 %3863
    %3865 = vrot.lane.b32.xlu0 %v3846, 108
    %v3866 = vpop.permute.xlu0 %3865
    %3867 = vrot.lane.b32.xlu0 %v3847, 108
    %v3868 = vpop.permute.xlu0 %3867
    %3869 = vrot.lane.b32.xlu0 %v3848, 108
    %v3870 = vpop.permute.xlu0 %3869
    %3871 = vrot.lane.b32.xlu0 %v3849, 108
    %v3872 = vpop.permute.xlu0 %3871
    %3873 = vrot.lane.b32.xlu0 %v3850, 108
    %v3874 = vpop.permute.xlu0 %3873
    %vm3875 = vcmask 883712
    %v3876 = vsel %vm3875, %v3860, %v3862
    %v3877 = vsel %vm3875, %v3864, %v3866
    %v3878 = vsel %vm3875, %v3868, %v3870
    %v3879 = vsel %vm3875, %v3872, %v3874
    %3884 = vst [vmem:[#allocation7] sm:$0xff] %v3876
    %3885 = vst [vmem:[#allocation7 + $0x10] sm:$0xff] %v3877
    %3886 = vst [vmem:[#allocation7 + $0x20] sm:$0xff] %v3878
    %3887 = vst [vmem:[#allocation7 + $0x30] sm:$0xff] %v3879
    %v3888 = vld [vmem:[#allocation5] sm:$0xff]
    %v3889 = vld [vmem:[#allocation5 + $0x8] sm:$0xff]
    %v3890 = vld [vmem:[#allocation5 + $0x20] sm:$0xff]
    %v3891 = vld [vmem:[#allocation5 + $0x28] sm:$0xff]
    %v3892 = vld [vmem:[#allocation5 + $0x40] sm:$0xff]
    %v3893 = vld [vmem:[#allocation5 + $0x48] sm:$0xff]
    %v3894 = vld [vmem:[#allocation5 + $0x60] sm:$0xff]
    %v3895 = vld [vmem:[#allocation5 + $0x68] sm:$0xff]
    %3904 = vrot.lane.b32.xlu0 %v3888, 107
    %v3905 = vpop.permute.xlu0 %3904
    %3906 = vrot.lane.b32.xlu0 %v3889, 107
    %v3907 = vpop.permute.xlu0 %3906
    %3908 = vrot.lane.b32.xlu0 %v3890, 107
    %v3909 = vpop.permute.xlu0 %3908
    %3910 = vrot.lane.b32.xlu0 %v3891, 107
    %v3911 = vpop.permute.xlu0 %3910
    %3912 = vrot.lane.b32.xlu0 %v3892, 107
    %v3913 = vpop.permute.xlu0 %3912
    %3914 = vrot.lane.b32.xlu0 %v3893, 107
    %v3915 = vpop.permute.xlu0 %3914
    %3916 = vrot.lane.b32.xlu0 %v3894, 107
    %v3917 = vpop.permute.xlu0 %3916
    %3918 = vrot.lane.b32.xlu0 %v3895, 107
    %v3919 = vpop.permute.xlu0 %3918
    %vm3920 = vcmask 875520
    %v3921 = vsel %vm3920, %v3905, %v3907
    %v3922 = vsel %vm3920, %v3909, %v3911
    %v3923 = vsel %vm3920, %v3913, %v3915
    %v3924 = vsel %vm3920, %v3917, %v3919
    %3929 = vst [vmem:[#allocation7 + $0x40] sm:$0xff] %v3921
    %3930 = vst [vmem:[#allocation7 + $0x50] sm:$0xff] %v3922
    %3931 = vst [vmem:[#allocation7 + $0x60] sm:$0xff] %v3923
    %3932 = vst [vmem:[#allocation7 + $0x70] sm:$0xff] %v3924
    %v3933 = vld [vmem:[#allocation5] sm:$0xff]
    %v3934 = vld [vmem:[#allocation5 + $0x8] sm:$0xff]
    %v3935 = vld [vmem:[#allocation5 + $0x20] sm:$0xff]
    %v3936 = vld [vmem:[#allocation5 + $0x28] sm:$0xff]
    %v3937 = vld [vmem:[#allocation5 + $0x40] sm:$0xff]
    %v3938 = vld [vmem:[#allocation5 + $0x48] sm:$0xff]
    %v3939 = vld [vmem:[#allocation5 + $0x60] sm:$0xff]
    %v3940 = vld [vmem:[#allocation5 + $0x68] sm:$0xff]
    %3949 = vrot.lane.b32.xlu0 %v3933, 106
    %v3950 = vpop.permute.xlu0 %3949
    %3951 = vrot.lane.b32.xlu0 %v3934, 106
    %v3952 = vpop.permute.xlu0 %3951
    %3953 = vrot.lane.b32.xlu0 %v3935, 106
    %v3954 = vpop.permute.xlu0 %3953
    %3955 = vrot.lane.b32.xlu0 %v3936, 106
    %v3956 = vpop.permute.xlu0 %3955
    %3957 = vrot.lane.b32.xlu0 %v3937, 106
    %v3958 = vpop.permute.xlu0 %3957
    %3959 = vrot.lane.b32.xlu0 %v3938, 106
    %v3960 = vpop.permute.xlu0 %3959
    %3961 = vrot.lane.b32.xlu0 %v3939, 106
    %v3962 = vpop.permute.xlu0 %3961
    %3963 = vrot.lane.b32.xlu0 %v3940, 106
    %v3964 = vpop.permute.xlu0 %3963
    %vm3965 = vcmask 867328
    %v3966 = vsel %vm3965, %v3950, %v3952
    %v3967 = vsel %vm3965, %v3954, %v3956
    %v3968 = vsel %vm3965, %v3958, %v3960
    %v3969 = vsel %vm3965, %v3962, %v3964
    %3974 = vst [vmem:[#allocation7 + $0x80] sm:$0xff] %v3966
    %3975 = vst [vmem:[#allocation7 + $0x90] sm:$0xff] %v3967
    %3976 = vst [vmem:[#allocation7 + $0xa0] sm:$0xff] %v3968
    %3977 = vst [vmem:[#allocation7 + $0xb0] sm:$0xff] %v3969
    %v3978 = vld [vmem:[#allocation5] sm:$0xff]
    %v3979 = vld [vmem:[#allocation5 + $0x8] sm:$0xff]
    %v3980 = vld [vmem:[#allocation5 + $0x20] sm:$0xff]
    %v3981 = vld [vmem:[#allocation5 + $0x28] sm:$0xff]
    %v3982 = vld [vmem:[#allocation5 + $0x40] sm:$0xff]
    %v3983 = vld [vmem:[#allocation5 + $0x48] sm:$0xff]
    %v3984 = vld [vmem:[#allocation5 + $0x60] sm:$0xff]
    %v3985 = vld [vmem:[#allocation5 + $0x68] sm:$0xff]
    %3994 = vrot.lane.b32.xlu0 %v3978, 105
    %v3995 = vpop.permute.xlu0 %3994
    %3996 = vrot.lane.b32.xlu0 %v3979, 105
    %v3997 = vpop.permute.xlu0 %3996
    %3998 = vrot.lane.b32.xlu0 %v3980, 105
    %v3999 = vpop.permute.xlu0 %3998
    %4000 = vrot.lane.b32.xlu0 %v3981, 105
    %v4001 = vpop.permute.xlu0 %4000
    %4002 = vrot.lane.b32.xlu0 %v3982, 105
    %v4003 = vpop.permute.xlu0 %4002
    %4004 = vrot.lane.b32.xlu0 %v3983, 105
    %v4005 = vpop.permute.xlu0 %4004
    %4006 = vrot.lane.b32.xlu0 %v3984, 105
    %v4007 = vpop.permute.xlu0 %4006
    %4008 = vrot.lane.b32.xlu0 %v3985, 105
    %v4009 = vpop.permute.xlu0 %4008
    %vm4010 = vcmask 859136
    %v4011 = vsel %vm4010, %v3995, %v3997
    %v4012 = vsel %vm4010, %v3999, %v4001
    %v4013 = vsel %vm4010, %v4003, %v4005
    %v4014 = vsel %vm4010, %v4007, %v4009
    %4019 = vst [vmem:[#allocation7 + $0xc0] sm:$0xff] %v4011
    %4020 = vst [vmem:[#allocation7 + $0xd0] sm:$0xff] %v4012
    %4021 = vst [vmem:[#allocation7 + $0xe0] sm:$0xff] %v4013
    %4022 = vst [vmem:[#allocation7 + $0xf0] sm:$0xff] %v4014
    %v4023 = vld [vmem:[#allocation5 + $0x10] sm:$0xff]
    %v4024 = vld [vmem:[#allocation5 + $0x18] sm:$0xff]
    %v4025 = vld [vmem:[#allocation5 + $0x30] sm:$0xff]
    %v4026 = vld [vmem:[#allocation5 + $0x38] sm:$0xff]
    %v4027 = vld [vmem:[#allocation5 + $0x50] sm:$0xff]
    %v4028 = vld [vmem:[#allocation5 + $0x58] sm:$0xff]
    %v4029 = vld [vmem:[#allocation5 + $0x70] sm:$0xff]
    %v4030 = vld [vmem:[#allocation5 + $0x78] sm:$0xff]
    %4039 = vrot.lane.b32.xlu0 %v4023, 108
    %v4040 = vpop.permute.xlu0 %4039
    %4041 = vrot.lane.b32.xlu0 %v4024, 108
    %v4042 = vpop.permute.xlu0 %4041
    %4043 = vrot.lane.b32.xlu0 %v4025, 108
    %v4044 = vpop.permute.xlu0 %4043
    %4045 = vrot.lane.b32.xlu0 %v4026, 108
    %v4046 = vpop.permute.xlu0 %4045
    %4047 = vrot.lane.b32.xlu0 %v4027, 108
    %v4048 = vpop.permute.xlu0 %4047
    %4049 = vrot.lane.b32.xlu0 %v4028, 108
    %v4050 = vpop.permute.xlu0 %4049
    %4051 = vrot.lane.b32.xlu0 %v4029, 108
    %v4052 = vpop.permute.xlu0 %4051
    %4053 = vrot.lane.b32.xlu0 %v4030, 108
    %v4054 = vpop.permute.xlu0 %4053
    %v4055 = vsel %vm3875, %v4040, %v4042
    %v4056 = vsel %vm3875, %v4044, %v4046
    %v4057 = vsel %vm3875, %v4048, %v4050
    %v4058 = vsel %vm3875, %v4052, %v4054
    %4063 = vst [vmem:[#allocation7 + $0x8] sm:$0xff] %v4055
    %4064 = vst [vmem:[#allocation7 + $0x18] sm:$0xff] %v4056
    %4065 = vst [vmem:[#allocation7 + $0x28] sm:$0xff] %v4057
    %4066 = vst [vmem:[#allocation7 + $0x38] sm:$0xff] %v4058
    %v4067 = vld [vmem:[#allocation5 + $0x10] sm:$0xff]
    %v4068 = vld [vmem:[#allocation5 + $0x18] sm:$0xff]
    %v4069 = vld [vmem:[#allocation5 + $0x30] sm:$0xff]
    %v4070 = vld [vmem:[#allocation5 + $0x38] sm:$0xff]
    %v4071 = vld [vmem:[#allocation5 + $0x50] sm:$0xff]
    %v4072 = vld [vmem:[#allocation5 + $0x58] sm:$0xff]
    %v4073 = vld [vmem:[#allocation5 + $0x70] sm:$0xff]
    %v4074 = vld [vmem:[#allocation5 + $0x78] sm:$0xff]
    %4083 = vrot.lane.b32.xlu0 %v4067, 107
    %v4084 = vpop.permute.xlu0 %4083
    %4085 = vrot.lane.b32.xlu0 %v4068, 107
    %v4086 = vpop.permute.xlu0 %4085
    %4087 = vrot.lane.b32.xlu0 %v4069, 107
    %v4088 = vpop.permute.xlu0 %4087
    %4089 = vrot.lane.b32.xlu0 %v4070, 107
    %v4090 = vpop.permute.xlu0 %4089
    %4091 = vrot.lane.b32.xlu0 %v4071, 107
    %v4092 = vpop.permute.xlu0 %4091
    %4093 = vrot.lane.b32.xlu0 %v4072, 107
    %v4094 = vpop.permute.xlu0 %4093
    %4095 = vrot.lane.b32.xlu0 %v4073, 107
    %v4096 = vpop.permute.xlu0 %4095
    %4097 = vrot.lane.b32.xlu0 %v4074, 107
    %v4098 = vpop.permute.xlu0 %4097
    %v4099 = vsel %vm3920, %v4084, %v4086
    %v4100 = vsel %vm3920, %v4088, %v4090
    %v4101 = vsel %vm3920, %v4092, %v4094
    %v4102 = vsel %vm3920, %v4096, %v4098
    %4107 = vst [vmem:[#allocation7 + $0x48] sm:$0xff] %v4099
    %4108 = vst [vmem:[#allocation7 + $0x58] sm:$0xff] %v4100
    %4109 = vst [vmem:[#allocation7 + $0x68] sm:$0xff] %v4101
    %4110 = vst [vmem:[#allocation7 + $0x78] sm:$0xff] %v4102
    %v4111 = vld [vmem:[#allocation5 + $0x10] sm:$0xff]
    %v4112 = vld [vmem:[#allocation5 + $0x18] sm:$0xff]
    %v4113 = vld [vmem:[#allocation5 + $0x30] sm:$0xff]
    %v4114 = vld [vmem:[#allocation5 + $0x38] sm:$0xff]
    %v4115 = vld [vmem:[#allocation5 + $0x50] sm:$0xff]
    %v4116 = vld [vmem:[#allocation5 + $0x58] sm:$0xff]
    %v4117 = vld [vmem:[#allocation5 + $0x70] sm:$0xff]
    %v4118 = vld [vmem:[#allocation5 + $0x78] sm:$0xff]
    %4127 = vrot.lane.b32.xlu0 %v4111, 106
    %v4128 = vpop.permute.xlu0 %4127
    %4129 = vrot.lane.b32.xlu0 %v4112, 106
    %v4130 = vpop.permute.xlu0 %4129
    %4131 = vrot.lane.b32.xlu0 %v4113, 106
    %v4132 = vpop.permute.xlu0 %4131
    %4133 = vrot.lane.b32.xlu0 %v4114, 106
    %v4134 = vpop.permute.xlu0 %4133
    %4135 = vrot.lane.b32.xlu0 %v4115, 106
    %v4136 = vpop.permute.xlu0 %4135
    %4137 = vrot.lane.b32.xlu0 %v4116, 106
    %v4138 = vpop.permute.xlu0 %4137
    %4139 = vrot.lane.b32.xlu0 %v4117, 106
    %v4140 = vpop.permute.xlu0 %4139
    %4141 = vrot.lane.b32.xlu0 %v4118, 106
    %v4142 = vpop.permute.xlu0 %4141
    %v4143 = vsel %vm3965, %v4128, %v4130
    %v4144 = vsel %vm3965, %v4132, %v4134
    %v4145 = vsel %vm3965, %v4136, %v4138
    %v4146 = vsel %vm3965, %v4140, %v4142
    %4151 = vst [vmem:[#allocation7 + $0x88] sm:$0xff] %v4143
    %4152 = vst [vmem:[#allocation7 + $0x98] sm:$0xff] %v4144
    %4153 = vst [vmem:[#allocation7 + $0xa8] sm:$0xff] %v4145
    %4154 = vst [vmem:[#allocation7 + $0xb8] sm:$0xff] %v4146
    %v4155 = vld [vmem:[#allocation5 + $0x10] sm:$0xff]
    %v4156 = vld [vmem:[#allocation5 + $0x18] sm:$0xff]
    %v4157 = vld [vmem:[#allocation5 + $0x30] sm:$0xff]
    %v4158 = vld [vmem:[#allocation5 + $0x38] sm:$0xff]
    %v4159 = vld [vmem:[#allocation5 + $0x50] sm:$0xff]
    %v4160 = vld [vmem:[#allocation5 + $0x58] sm:$0xff]
    %v4161 = vld [vmem:[#allocation5 + $0x70] sm:$0xff]
    %v4162 = vld [vmem:[#allocation5 + $0x78] sm:$0xff]
    %4171 = vrot.lane.b32.xlu0 %v4155, 105
    %v4172 = vpop.permute.xlu0 %4171
    %4173 = vrot.lane.b32.xlu0 %v4156, 105
    %v4174 = vpop.permute.xlu0 %4173
    %4175 = vrot.lane.b32.xlu0 %v4157, 105
    %v4176 = vpop.permute.xlu0 %4175
    %4177 = vrot.lane.b32.xlu0 %v4158, 105
    %v4178 = vpop.permute.xlu0 %4177
    %4179 = vrot.lane.b32.xlu0 %v4159, 105
    %v4180 = vpop.permute.xlu0 %4179
    %4181 = vrot.lane.b32.xlu0 %v4160, 105
    %v4182 = vpop.permute.xlu0 %4181
    %4183 = vrot.lane.b32.xlu0 %v4161, 105
    %v4184 = vpop.permute.xlu0 %4183
    %4185 = vrot.lane.b32.xlu0 %v4162, 105
    %v4186 = vpop.permute.xlu0 %4185
    %v4187 = vsel %vm4010, %v4172, %v4174
    %v4188 = vsel %vm4010, %v4176, %v4178
    %v4189 = vsel %vm4010, %v4180, %v4182
    %v4190 = vsel %vm4010, %v4184, %v4186
    %4195 = vst [vmem:[#allocation7 + $0xc8] sm:$0xff] %v4187
    %4196 = vst [vmem:[#allocation7 + $0xd8] sm:$0xff] %v4188
    %4197 = vst [vmem:[#allocation7 + $0xe8] sm:$0xff] %v4189
    %4198 = vst [vmem:[#allocation7 + $0xf8] sm:$0xff] %v4190
    %v4199 = vld [vmem:[%s5 + $0x28] sm:$0xff]
    %v4200 = vld [vmem:[%s5 + $0x6c] sm:$0xff]
    %v4201 = vld [vmem:[%s5 + $0xb0] sm:$0xff]
    %v4202 = vld [vmem:[%s5 + $0xf4] sm:$0xff]
    %v4203 = vld [vmem:[%s5 + $0x138] sm:$0xff]
    %v4204 = vld [vmem:[%s5 + $0x17c] sm:$0xff]
    %v4205 = vld [vmem:[%s5 + $0x1c0] sm:$0xff]
    %v4206 = vld [vmem:[%s5 + $0x204] sm:$0xff]
    %v4207 = vld [vmem:[%s5 + $0x248] sm:$0xff]
    %v4208 = vld [vmem:[%s5 + $0x28c] sm:$0xff]
    %v4209 = vld [vmem:[%s5 + $0x2d0] sm:$0xff]
    %v4210 = vld [vmem:[%s5 + $0x314] sm:$0xff]
    %v4211 = vld [vmem:[%s5 + $0x358] sm:$0xff]
    %v4212 = vld [vmem:[%s5 + $0x39c] sm:$0xff]
    %v4213 = vld [vmem:[%s5 + $0x3e0] sm:$0xff]
    %v4214 = vld [vmem:[%s5 + $0x424] sm:$0xff]
    %v4215 = vld [vmem:[#allocation7] sm:$0xff]
    %v4216 = vld [vmem:[#allocation7 + $0x8] sm:$0xff]
    %v4217 = vld [vmem:[#allocation7 + $0x10] sm:$0xff]
    %v4218 = vld [vmem:[#allocation7 + $0x18] sm:$0xff]
    %v4219 = vld [vmem:[#allocation7 + $0x20] sm:$0xff]
    %v4220 = vld [vmem:[#allocation7 + $0x28] sm:$0xff]
    %v4221 = vld [vmem:[#allocation7 + $0x30] sm:$0xff]
    %v4222 = vld [vmem:[#allocation7 + $0x38] sm:$0xff]
    %v4223 = vld [vmem:[#allocation7 + $0x40] sm:$0xff]
    %v4224 = vld [vmem:[#allocation7 + $0x48] sm:$0xff]
    %v4225 = vld [vmem:[#allocation7 + $0x50] sm:$0xff]
    %v4226 = vld [vmem:[#allocation7 + $0x58] sm:$0xff]
    %v4227 = vld [vmem:[#allocation7 + $0x60] sm:$0xff]
    %v4228 = vld [vmem:[#allocation7 + $0x68] sm:$0xff]
    %v4229 = vld [vmem:[#allocation7 + $0x70] sm:$0xff]
    %v4230 = vld [vmem:[#allocation7 + $0x78] sm:$0xff]
    %v4231 = vld [vmem:[#allocation7 + $0x80] sm:$0xff]
    %v4232 = vld [vmem:[#allocation7 + $0x88] sm:$0xff]
    %v4233 = vld [vmem:[#allocation7 + $0x90] sm:$0xff]
    %v4234 = vld [vmem:[#allocation7 + $0x98] sm:$0xff]
    %v4235 = vld [vmem:[#allocation7 + $0xa0] sm:$0xff]
    %v4236 = vld [vmem:[#allocation7 + $0xa8] sm:$0xff]
    %v4237 = vld [vmem:[#allocation7 + $0xb0] sm:$0xff]
    %v4238 = vld [vmem:[#allocation7 + $0xb8] sm:$0xff]
    %v4239 = vld [vmem:[#allocation7 + $0xc0] sm:$0xff]
    %v4240 = vld [vmem:[#allocation7 + $0xc8] sm:$0xff]
    %v4241 = vld [vmem:[#allocation7 + $0xd0] sm:$0xff]
    %v4242 = vld [vmem:[#allocation7 + $0xd8] sm:$0xff]
    %v4243 = vld [vmem:[#allocation7 + $0xe0] sm:$0xff]
    %v4244 = vld [vmem:[#allocation7 + $0xe8] sm:$0xff]
    %v4245 = vld [vmem:[#allocation7 + $0xf0] sm:$0xff]
    %v4246 = vld [vmem:[#allocation7 + $0xf8] sm:$0xff]
    %v4263 = vunpack.c.l.b16 %v4199
    %v4264 = vunpack.c.h.b16 %v4199
    %v4265 = vunpack.c.l.b16 %v4200
    %v4266 = vunpack.c.h.b16 %v4200
    %v4267 = vunpack.c.l.b16 %v4201
    %v4268 = vunpack.c.h.b16 %v4201
    %v4269 = vunpack.c.l.b16 %v4202
    %v4270 = vunpack.c.h.b16 %v4202
    %v4271 = vunpack.c.l.b16 %v4203
    %v4272 = vunpack.c.h.b16 %v4203
    %v4273 = vunpack.c.l.b16 %v4204
    %v4274 = vunpack.c.h.b16 %v4204
    %v4275 = vunpack.c.l.b16 %v4205
    %v4276 = vunpack.c.h.b16 %v4205
    %v4277 = vunpack.c.l.b16 %v4206
    %v4278 = vunpack.c.h.b16 %v4206
    %v4279 = vunpack.c.l.b16 %v4207
    %v4280 = vunpack.c.h.b16 %v4207
    %v4281 = vunpack.c.l.b16 %v4208
    %v4282 = vunpack.c.h.b16 %v4208
    %v4283 = vunpack.c.l.b16 %v4209
    %v4284 = vunpack.c.h.b16 %v4209
    %v4285 = vunpack.c.l.b16 %v4210
    %v4286 = vunpack.c.h.b16 %v4210
    %v4287 = vunpack.c.l.b16 %v4211
    %v4288 = vunpack.c.h.b16 %v4211
    %v4289 = vunpack.c.l.b16 %v4212
    %v4290 = vunpack.c.h.b16 %v4212
    %v4291 = vunpack.c.l.b16 %v4213
    %v4292 = vunpack.c.h.b16 %v4213
    %v4293 = vunpack.c.l.b16 %v4214
    %v4294 = vunpack.c.h.b16 %v4214
    %v4295 = vpack.c.b16 %v4265, %v4263
    %v4296 = vpack.c.b16 %v4266, %v4264
    %v4297 = vpack.c.b16 %v4269, %v4267
    %v4298 = vpack.c.b16 %v4270, %v4268
    %v4299 = vpack.c.b16 %v4273, %v4271
    %v4300 = vpack.c.b16 %v4274, %v4272
    %v4301 = vpack.c.b16 %v4277, %v4275
    %v4302 = vpack.c.b16 %v4278, %v4276
    %v4303 = vpack.c.b16 %v4281, %v4279
    %v4304 = vpack.c.b16 %v4282, %v4280
    %v4305 = vpack.c.b16 %v4285, %v4283
    %v4306 = vpack.c.b16 %v4286, %v4284
    %v4307 = vpack.c.b16 %v4289, %v4287
    %v4308 = vpack.c.b16 %v4290, %v4288
    %v4309 = vpack.c.b16 %v4293, %v4291
    %v4310 = vpack.c.b16 %v4294, %v4292
    %4327 = vmatprep.subr.bf16.mxu0 %v4216
    %4328 = vmatpush1.bf16.msra.mxu0 %v4215
    %4329 = vmatprep.subr.bf16.mxu0 %v4218
    %4330 = vmatpush1.bf16.msra.mxu0 %v4217
    %4331 = vmatprep.subr.bf16.mxu0 %v4220
    %4332 = vmatpush1.bf16.msra.mxu0 %v4219
    %4333 = vmatprep.subr.bf16.mxu0 %v4222
    %4334 = vmatpush1.bf16.msra.mxu0 %v4221
    %4335 = vmatprep.subr.bf16.mxu0 %v4224
    %4336 = vmatpush1.bf16.msra.mxu0 %v4223
    %4337 = vmatprep.subr.bf16.mxu0 %v4226
    %4338 = vmatpush1.bf16.msra.mxu0 %v4225
    %4339 = vmatprep.subr.bf16.mxu0 %v4228
    %4340 = vmatpush1.bf16.msra.mxu0 %v4227
    %4341 = vmatprep.subr.bf16.mxu0 %v4230
    %4342 = vmatpush1.bf16.msra.mxu0 %v4229
    %4343 = vmatprep.subr.bf16.mxu0 %v4232
    %4344 = vmatpush1.bf16.msra.mxu0 %v4231
    %4345 = vmatprep.subr.bf16.mxu0 %v4234
    %4346 = vmatpush1.bf16.msra.mxu0 %v4233
    %4347 = vmatprep.subr.bf16.mxu0 %v4236
    %4348 = vmatpush1.bf16.msra.mxu0 %v4235
    %4349 = vmatprep.subr.bf16.mxu0 %v4238
    %4350 = vmatpush1.bf16.msra.mxu0 %v4237
    %4351 = vmatprep.subr.bf16.mxu0 %v4240
    %4352 = vmatpush1.bf16.msra.mxu0 %v4239
    %4353 = vmatprep.subr.bf16.mxu0 %v4242
    %4354 = vmatpush1.bf16.msra.mxu0 %v4241
    %4355 = vmatprep.subr.bf16.mxu0 %v4244
    %4356 = vmatpush1.bf16.msra.mxu0 %v4243
    %4357 = vmatprep.subr.bf16.mxu0 %v4246
    %4358 = vmatpush1.bf16.msra.mxu0 %v4245
    %4359 = vmatprep.mubr.bf16.mxu0 %v4296
    %4360 = vmatmul.mubr.bf16.gmra.mrb[0].mxu0 %v4295
    %v4361 = vpop.f32.mrb[0].mxu0
    %v4362 = vadd.f32 0.0, %v4361
    %v4363 = vpop.f32.mrb[0].mxu0
    %v4364 = vadd.f32 0.0, %v4363
    %v4365 = vpop.f32.mrb[0].mxu0
    %v4366 = vadd.f32 0.0, %v4365
    %v4367 = vpop.f32.mrb[0].mxu0
    %v4368 = vadd.f32 0.0, %v4367
    %4369 = vmatprep.mubr.bf16.mxu0 %v4298
    %4370 = vmatmul.mubr.bf16.gmra.mrb[0].mxu0 %v4297
    %v4371 = vpop.f32.mrb[0].mxu0
    %v4372 = vadd.f32 0.0, %v4371
    %v4373 = vpop.f32.mrb[0].mxu0
    %v4374 = vadd.f32 0.0, %v4373
    %v4375 = vpop.f32.mrb[0].mxu0
    %v4376 = vadd.f32 0.0, %v4375
    %v4377 = vpop.f32.mrb[0].mxu0
    %v4378 = vadd.f32 0.0, %v4377
    %4379 = vmatprep.mubr.bf16.mxu0 %v4300
    %4380 = vmatmul.mubr.bf16.gmra.mrb[0].mxu0 %v4299
    %v4381 = vpop.f32.mrb[0].mxu0
    %v4382 = vadd.f32 0.0, %v4381
    %v4383 = vpop.f32.mrb[0].mxu0
    %v4384 = vadd.f32 0.0, %v4383
    %v4385 = vpop.f32.mrb[0].mxu0
    %v4386 = vadd.f32 0.0, %v4385
    %v4387 = vpop.f32.mrb[0].mxu0
    %v4388 = vadd.f32 0.0, %v4387
    %4389 = vmatprep.mubr.bf16.mxu0 %v4302
    %4390 = vmatmul.mubr.bf16.gmra.mrb[0].mxu0 %v4301
    %v4391 = vpop.f32.mrb[0].mxu0
    %v4392 = vadd.f32 0.0, %v4391
    %v4393 = vpop.f32.mrb[0].mxu0
    %v4394 = vadd.f32 0.0, %v4393
    %v4395 = vpop.f32.mrb[0].mxu0
    %v4396 = vadd.f32 0.0, %v4395
    %v4397 = vpop.f32.mrb[0].mxu0
    %v4398 = vadd.f32 0.0, %v4397
    %4399 = vmatprep.mubr.bf16.mxu0 %v4304
    %4400 = vmatmul.mubr.bf16.gmra.mrb[0].mxu0 %v4303
    %v4401 = vpop.f32.mrb[0].mxu0
    %v4402 = vadd.f32 0.0, %v4401
    %v4403 = vpop.f32.mrb[0].mxu0
    %v4404 = vadd.f32 0.0, %v4403
    %v4405 = vpop.f32.mrb[0].mxu0
    %v4406 = vadd.f32 0.0, %v4405
    %v4407 = vpop.f32.mrb[0].mxu0
    %v4408 = vadd.f32 0.0, %v4407
    %4409 = vmatprep.mubr.bf16.mxu0 %v4306
    %4410 = vmatmul.mubr.bf16.gmra.mrb[0].mxu0 %v4305
    %v4411 = vpop.f32.mrb[0].mxu0
    %v4412 = vadd.f32 0.0, %v4411
    %v4413 = vpop.f32.mrb[0].mxu0
    %v4414 = vadd.f32 0.0, %v4413
    %v4415 = vpop.f32.mrb[0].mxu0
    %v4416 = vadd.f32 0.0, %v4415
    %v4417 = vpop.f32.mrb[0].mxu0
    %v4418 = vadd.f32 0.0, %v4417
    %4419 = vmatprep.mubr.bf16.mxu0 %v4308
    %4420 = vmatmul.mubr.bf16.gmra.mrb[0].mxu0 %v4307
    %v4421 = vpop.f32.mrb[0].mxu0
    %v4422 = vadd.f32 0.0, %v4421
    %v4423 = vpop.f32.mrb[0].mxu0
    %v4424 = vadd.f32 0.0, %v4423
    %v4425 = vpop.f32.mrb[0].mxu0
    %v4426 = vadd.f32 0.0, %v4425
    %v4427 = vpop.f32.mrb[0].mxu0
    %v4428 = vadd.f32 0.0, %v4427
    %4429 = vmatprep.mubr.bf16.mxu0 %v4310
    %4430 = vmatmul.mubr.bf16.gmra.mrb[0].mxu0 %v4309
    %v4431 = vpop.f32.mrb[0].mxu0
    %v4432 = vadd.f32 0.0, %v4431
    %v4433 = vpop.f32.mrb[0].mxu0
    %v4434 = vadd.f32 0.0, %v4433
    %v4435 = vpop.f32.mrb[0].mxu0
    %v4436 = vadd.f32 0.0, %v4435
    %v4437 = vpop.f32.mrb[0].mxu0
    %v4438 = vadd.f32 0.0, %v4437
    %4439 = vdwg.mxu0
    %v4440 = vadd.f32 %v3811, %v4362
    %v4441 = vadd.f32 %v3812, %v4364
    %v4442 = vadd.f32 %v3813, %v4366
    %v4443 = vadd.f32 %v3814, %v4368
    %v4444 = vadd.f32 %v3815, %v4372
    %v4445 = vadd.f32 %v3816, %v4374
    %v4446 = vadd.f32 %v3817, %v4376
    %v4447 = vadd.f32 %v3818, %v4378
    %v4448 = vadd.f32 %v3819, %v4382
    %v4449 = vadd.f32 %v3820, %v4384
    %v4450 = vadd.f32 %v3821, %v4386
    %v4451 = vadd.f32 %v3822, %v4388
    %v4452 = vadd.f32 %v3823, %v4392
    %v4453 = vadd.f32 %v3824, %v4394
    %v4454 = vadd.f32 %v3825, %v4396
    %v4455 = vadd.f32 %v3826, %v4398
    %v4456 = vadd.f32 %v3827, %v4402
    %v4457 = vadd.f32 %v3828, %v4404
    %v4458 = vadd.f32 %v3829, %v4406
    %v4459 = vadd.f32 %v3830, %v4408
    %v4460 = vadd.f32 %v3831, %v4412
    %v4461 = vadd.f32 %v3832, %v4414
    %v4462 = vadd.f32 %v3833, %v4416
    %v4463 = vadd.f32 %v3834, %v4418
    %v4464 = vadd.f32 %v3835, %v4422
    %v4465 = vadd.f32 %v3836, %v4424
    %v4466 = vadd.f32 %v3837, %v4426
    %v4467 = vadd.f32 %v3838, %v4428
    %v4468 = vadd.f32 %v3839, %v4432
    %v4469 = vadd.f32 %v3840, %v4434
    %v4470 = vadd.f32 %v3841, %v4436
    %v4471 = vadd.f32 %v3842, %v4438
    %v4472 = vld [vmem:[#allocation5] sm:$0xff]
    %v4473 = vld [vmem:[#allocation5 + $0x8] sm:$0xff]
    %v4474 = vld [vmem:[#allocation5 + $0x20] sm:$0xff]
    %v4475 = vld [vmem:[#allocation5 + $0x28] sm:$0xff]
    %v4476 = vld [vmem:[#allocation5 + $0x40] sm:$0xff]
    %v4477 = vld [vmem:[#allocation5 + $0x48] sm:$0xff]
    %v4478 = vld [vmem:[#allocation5 + $0x60] sm:$0xff]
    %v4479 = vld [vmem:[#allocation5 + $0x68] sm:$0xff]
    %4488 = vrot.lane.b32.xlu0 %v4472, 104
    %v4489 = vpop.permute.xlu0 %4488
    %4490 = vrot.lane.b32.xlu0 %v4473, 104
    %v4491 = vpop.permute.xlu0 %4490
    %4492 = vrot.lane.b32.xlu0 %v4474, 104
    %v4493 = vpop.permute.xlu0 %4492
    %4494 = vrot.lane.b32.xlu0 %v4475, 104
    %v4495 = vpop.permute.xlu0 %4494
    %4496 = vrot.lane.b32.xlu0 %v4476, 104
    %v4497 = vpop.permute.xlu0 %4496
    %4498 = vrot.lane.b32.xlu0 %v4477, 104
    %v4499 = vpop.permute.xlu0 %4498
    %4500 = vrot.lane.b32.xlu0 %v4478, 104
    %v4501 = vpop.permute.xlu0 %4500
    %4502 = vrot.lane.b32.xlu0 %v4479, 104
    %v4503 = vpop.permute.xlu0 %4502
    %vm4504 = vcmask 850944
    %v4505 = vsel %vm4504, %v4489, %v4491
    %v4506 = vsel %vm4504, %v4493, %v4495
    %v4507 = vsel %vm4504, %v4497, %v4499
    %v4508 = vsel %vm4504, %v4501, %v4503
    %4513 = vst [vmem:[#allocation6] sm:$0xff] %v4505
    %4514 = vst [vmem:[#allocation6 + $0x10] sm:$0xff] %v4506
    %4515 = vst [vmem:[#allocation6 + $0x20] sm:$0xff] %v4507
    %4516 = vst [vmem:[#allocation6 + $0x30] sm:$0xff] %v4508
    %v4517 = vld [vmem:[#allocation5] sm:$0xff]
    %v4518 = vld [vmem:[#allocation5 + $0x8] sm:$0xff]
    %v4519 = vld [vmem:[#allocation5 + $0x20] sm:$0xff]
    %v4520 = vld [vmem:[#allocation5 + $0x28] sm:$0xff]
    %v4521 = vld [vmem:[#allocation5 + $0x40] sm:$0xff]
    %v4522 = vld [vmem:[#allocation5 + $0x48] sm:$0xff]
    %v4523 = vld [vmem:[#allocation5 + $0x60] sm:$0xff]
    %v4524 = vld [vmem:[#allocation5 + $0x68] sm:$0xff]
    %4533 = vrot.lane.b32.xlu0 %v4517, 103
    %v4534 = vpop.permute.xlu0 %4533
    %4535 = vrot.lane.b32.xlu0 %v4518, 103
    %v4536 = vpop.permute.xlu0 %4535
    %4537 = vrot.lane.b32.xlu0 %v4519, 103
    %v4538 = vpop.permute.xlu0 %4537
    %4539 = vrot.lane.b32.xlu0 %v4520, 103
    %v4540 = vpop.permute.xlu0 %4539
    %4541 = vrot.lane.b32.xlu0 %v4521, 103
    %v4542 = vpop.permute.xlu0 %4541
    %4543 = vrot.lane.b32.xlu0 %v4522, 103
    %v4544 = vpop.permute.xlu0 %4543
    %4545 = vrot.lane.b32.xlu0 %v4523, 103
    %v4546 = vpop.permute.xlu0 %4545
    %4547 = vrot.lane.b32.xlu0 %v4524, 103
    %v4548 = vpop.permute.xlu0 %4547
    %vm4549 = vcmask 842752
    %v4550 = vsel %vm4549, %v4534, %v4536
    %v4551 = vsel %vm4549, %v4538, %v4540
    %v4552 = vsel %vm4549, %v4542, %v4544
    %v4553 = vsel %vm4549, %v4546, %v4548
    %4558 = vst [vmem:[#allocation6 + $0x40] sm:$0xff] %v4550
    %4559 = vst [vmem:[#allocation6 + $0x50] sm:$0xff] %v4551
    %4560 = vst [vmem:[#allocation6 + $0x60] sm:$0xff] %v4552
    %4561 = vst [vmem:[#allocation6 + $0x70] sm:$0xff] %v4553
    %v4562 = vld [vmem:[#allocation5] sm:$0xff]
    %v4563 = vld [vmem:[#allocation5 + $0x8] sm:$0xff]
    %v4564 = vld [vmem:[#allocation5 + $0x20] sm:$0xff]
    %v4565 = vld [vmem:[#allocation5 + $0x28] sm:$0xff]
    %v4566 = vld [vmem:[#allocation5 + $0x40] sm:$0xff]
    %v4567 = vld [vmem:[#allocation5 + $0x48] sm:$0xff]
    %v4568 = vld [vmem:[#allocation5 + $0x60] sm:$0xff]
    %v4569 = vld [vmem:[#allocation5 + $0x68] sm:$0xff]
    %4578 = vrot.lane.b32.xlu0 %v4562, 102
    %v4579 = vpop.permute.xlu0 %4578
    %4580 = vrot.lane.b32.xlu0 %v4563, 102
    %v4581 = vpop.permute.xlu0 %4580
    %4582 = vrot.lane.b32.xlu0 %v4564, 102
    %v4583 = vpop.permute.xlu0 %4582
    %4584 = vrot.lane.b32.xlu0 %v4565, 102
    %v4585 = vpop.permute.xlu0 %4584
    %4586 = vrot.lane.b32.xlu0 %v4566, 102
    %v4587 = vpop.permute.xlu0 %4586
    %4588 = vrot.lane.b32.xlu0 %v4567, 102
    %v4589 = vpop.permute.xlu0 %4588
    %4590 = vrot.lane.b32.xlu0 %v4568, 102
    %v4591 = vpop.permute.xlu0 %4590
    %4592 = vrot.lane.b32.xlu0 %v4569, 102
    %v4593 = vpop.permute.xlu0 %4592
    %vm4594 = vcmask 834560
    %v4595 = vsel %vm4594, %v4579, %v4581
    %v4596 = vsel %vm4594, %v4583, %v4585
    %v4597 = vsel %vm4594, %v4587, %v4589
    %v4598 = vsel %vm4594, %v4591, %v4593
    %4603 = vst [vmem:[#allocation6 + $0x80] sm:$0xff] %v4595
    %4604 = vst [vmem:[#allocation6 + $0x90] sm:$0xff] %v4596
    %4605 = vst [vmem:[#allocation6 + $0xa0] sm:$0xff] %v4597
    %4606 = vst [vmem:[#allocation6 + $0xb0] sm:$0xff] %v4598
    %v4607 = vld [vmem:[#allocation5] sm:$0xff]
    %v4608 = vld [vmem:[#allocation5 + $0x8] sm:$0xff]
    %v4609 = vld [vmem:[#allocation5 + $0x20] sm:$0xff]
    %v4610 = vld [vmem:[#allocation5 + $0x28] sm:$0xff]
    %v4611 = vld [vmem:[#allocation5 + $0x40] sm:$0xff]
    %v4612 = vld [vmem:[#allocation5 + $0x48] sm:$0xff]
    %v4613 = vld [vmem:[#allocation5 + $0x60] sm:$0xff]
    %v4614 = vld [vmem:[#allocation5 + $0x68] sm:$0xff]
    %4623 = vrot.lane.b32.xlu0 %v4607, 101
    %v4624 = vpop.permute.xlu0 %4623
    %4625 = vrot.lane.b32.xlu0 %v4608, 101
    %v4626 = vpop.permute.xlu0 %4625
    %4627 = vrot.lane.b32.xlu0 %v4609, 101
    %v4628 = vpop.permute.xlu0 %4627
    %4629 = vrot.lane.b32.xlu0 %v4610, 101
    %v4630 = vpop.permute.xlu0 %4629
    %4631 = vrot.lane.b32.xlu0 %v4611, 101
    %v4632 = vpop.permute.xlu0 %4631
    %4633 = vrot.lane.b32.xlu0 %v4612, 101
    %v4634 = vpop.permute.xlu0 %4633
    %4635 = vrot.lane.b32.xlu0 %v4613, 101
    %v4636 = vpop.permute.xlu0 %4635
    %4637 = vrot.lane.b32.xlu0 %v4614, 101
    %v4638 = vpop.permute.xlu0 %4637
    %vm4639 = vcmask 826368
    %v4640 = vsel %vm4639, %v4624, %v4626
    %v4641 = vsel %vm4639, %v4628, %v4630
    %v4642 = vsel %vm4639, %v4632, %v4634
    %v4643 = vsel %vm4639, %v4636, %v4638
    %4648 = vst [vmem:[#allocation6 + $0xc0] sm:$0xff] %v4640
    %4649 = vst [vmem:[#allocation6 + $0xd0] sm:$0xff] %v4641
    %4650 = vst [vmem:[#allocation6 + $0xe0] sm:$0xff] %v4642
    %4651 = vst [vmem:[#allocation6 + $0xf0] sm:$0xff] %v4643
    %v4652 = vld [vmem:[#allocation5 + $0x10] sm:$0xff]
    %v4653 = vld [vmem:[#allocation5 + $0x18] sm:$0xff]
    %v4654 = vld [vmem:[#allocation5 + $0x30] sm:$0xff]
    %v4655 = vld [vmem:[#allocation5 + $0x38] sm:$0xff]
    %v4656 = vld [vmem:[#allocation5 + $0x50] sm:$0xff]
    %v4657 = vld [vmem:[#allocation5 + $0x58] sm:$0xff]
    %v4658 = vld [vmem:[#allocation5 + $0x70] sm:$0xff]
    %v4659 = vld [vmem:[#allocation5 + $0x78] sm:$0xff]
    %4668 = vrot.lane.b32.xlu0 %v4652, 104
    %v4669 = vpop.permute.xlu0 %4668
    %4670 = vrot.lane.b32.xlu0 %v4653, 104
    %v4671 = vpop.permute.xlu0 %4670
    %4672 = vrot.lane.b32.xlu0 %v4654, 104
    %v4673 = vpop.permute.xlu0 %4672
    %4674 = vrot.lane.b32.xlu0 %v4655, 104
    %v4675 = vpop.permute.xlu0 %4674
    %4676 = vrot.lane.b32.xlu0 %v4656, 104
    %v4677 = vpop.permute.xlu0 %4676
    %4678 = vrot.lane.b32.xlu0 %v4657, 104
    %v4679 = vpop.permute.xlu0 %4678
    %4680 = vrot.lane.b32.xlu0 %v4658, 104
    %v4681 = vpop.permute.xlu0 %4680
    %4682 = vrot.lane.b32.xlu0 %v4659, 104
    %v4683 = vpop.permute.xlu0 %4682
    %v4684 = vsel %vm4504, %v4669, %v4671
    %v4685 = vsel %vm4504, %v4673, %v4675
    %v4686 = vsel %vm4504, %v4677, %v4679
    %v4687 = vsel %vm4504, %v4681, %v4683
    %4692 = vst [vmem:[#allocation6 + $0x8] sm:$0xff] %v4684
    %4693 = vst [vmem:[#allocation6 + $0x18] sm:$0xff] %v4685
    %4694 = vst [vmem:[#allocation6 + $0x28] sm:$0xff] %v4686
    %4695 = vst [vmem:[#allocation6 + $0x38] sm:$0xff] %v4687
    %v4696 = vld [vmem:[#allocation5 + $0x10] sm:$0xff]
    %v4697 = vld [vmem:[#allocation5 + $0x18] sm:$0xff]
    %v4698 = vld [vmem:[#allocation5 + $0x30] sm:$0xff]
    %v4699 = vld [vmem:[#allocation5 + $0x38] sm:$0xff]
    %v4700 = vld [vmem:[#allocation5 + $0x50] sm:$0xff]
    %v4701 = vld [vmem:[#allocation5 + $0x58] sm:$0xff]
    %v4702 = vld [vmem:[#allocation5 + $0x70] sm:$0xff]
    %v4703 = vld [vmem:[#allocation5 + $0x78] sm:$0xff]
    %4712 = vrot.lane.b32.xlu0 %v4696, 103
    %v4713 = vpop.permute.xlu0 %4712
    %4714 = vrot.lane.b32.xlu0 %v4697, 103
    %v4715 = vpop.permute.xlu0 %4714
    %4716 = vrot.lane.b32.xlu0 %v4698, 103
    %v4717 = vpop.permute.xlu0 %4716
    %4718 = vrot.lane.b32.xlu0 %v4699, 103
    %v4719 = vpop.permute.xlu0 %4718
    %4720 = vrot.lane.b32.xlu0 %v4700, 103
    %v4721 = vpop.permute.xlu0 %4720
    %4722 = vrot.lane.b32.xlu0 %v4701, 103
    %v4723 = vpop.permute.xlu0 %4722
    %4724 = vrot.lane.b32.xlu0 %v4702, 103
    %v4725 = vpop.permute.xlu0 %4724
    %4726 = vrot.lane.b32.xlu0 %v4703, 103
    %v4727 = vpop.permute.xlu0 %4726
    %v4728 = vsel %vm4549, %v4713, %v4715
    %v4729 = vsel %vm4549, %v4717, %v4719
    %v4730 = vsel %vm4549, %v4721, %v4723
    %v4731 = vsel %vm4549, %v4725, %v4727
    %4736 = vst [vmem:[#allocation6 + $0x48] sm:$0xff] %v4728
    %4737 = vst [vmem:[#allocation6 + $0x58] sm:$0xff] %v4729
    %4738 = vst [vmem:[#allocation6 + $0x68] sm:$0xff] %v4730
    %4739 = vst [vmem:[#allocation6 + $0x78] sm:$0xff] %v4731
    %v4740 = vld [vmem:[#allocation5 + $0x10] sm:$0xff]
    %v4741 = vld [vmem:[#allocation5 + $0x18] sm:$0xff]
    %v4742 = vld [vmem:[#allocation5 + $0x30] sm:$0xff]
    %v4743 = vld [vmem:[#allocation5 + $0x38] sm:$0xff]
    %v4744 = vld [vmem:[#allocation5 + $0x50] sm:$0xff]
    %v4745 = vld [vmem:[#allocation5 + $0x58] sm:$0xff]
    %v4746 = vld [vmem:[#allocation5 + $0x70] sm:$0xff]
    %v4747 = vld [vmem:[#allocation5 + $0x78] sm:$0xff]
    %4756 = vrot.lane.b32.xlu0 %v4740, 102
    %v4757 = vpop.permute.xlu0 %4756
    %4758 = vrot.lane.b32.xlu0 %v4741, 102
    %v4759 = vpop.permute.xlu0 %4758
    %4760 = vrot.lane.b32.xlu0 %v4742, 102
    %v4761 = vpop.permute.xlu0 %4760
    %4762 = vrot.lane.b32.xlu0 %v4743, 102
    %v4763 = vpop.permute.xlu0 %4762
    %4764 = vrot.lane.b32.xlu0 %v4744, 102
    %v4765 = vpop.permute.xlu0 %4764
    %4766 = vrot.lane.b32.xlu0 %v4745, 102
    %v4767 = vpop.permute.xlu0 %4766
    %4768 = vrot.lane.b32.xlu0 %v4746, 102
    %v4769 = vpop.permute.xlu0 %4768
    %4770 = vrot.lane.b32.xlu0 %v4747, 102
    %v4771 = vpop.permute.xlu0 %4770
    %v4772 = vsel %vm4594, %v4757, %v4759
    %v4773 = vsel %vm4594, %v4761, %v4763
    %v4774 = vsel %vm4594, %v4765, %v4767
    %v4775 = vsel %vm4594, %v4769, %v4771
    %4780 = vst [vmem:[#allocation6 + $0x88] sm:$0xff] %v4772
    %4781 = vst [vmem:[#allocation6 + $0x98] sm:$0xff] %v4773
    %4782 = vst [vmem:[#allocation6 + $0xa8] sm:$0xff] %v4774
    %4783 = vst [vmem:[#allocation6 + $0xb8] sm:$0xff] %v4775
    %v4784 = vld [vmem:[#allocation5 + $0x10] sm:$0xff]
    %v4785 = vld [vmem:[#allocation5 + $0x18] sm:$0xff]
    %v4786 = vld [vmem:[#allocation5 + $0x30] sm:$0xff]
    %v4787 = vld [vmem:[#allocation5 + $0x38] sm:$0xff]
    %v4788 = vld [vmem:[#allocation5 + $0x50] sm:$0xff]
    %v4789 = vld [vmem:[#allocation5 + $0x58] sm:$0xff]
    %v4790 = vld [vmem:[#allocation5 + $0x70] sm:$0xff]
    %v4791 = vld [vmem:[#allocation5 + $0x78] sm:$0xff]
    %4800 = vrot.lane.b32.xlu0 %v4784, 101
    %v4801 = vpop.permute.xlu0 %4800
    %4802 = vrot.lane.b32.xlu0 %v4785, 101
    %v4803 = vpop.permute.xlu0 %4802
    %4804 = vrot.lane.b32.xlu0 %v4786, 101
    %v4805 = vpop.permute.xlu0 %4804
    %4806 = vrot.lane.b32.xlu0 %v4787, 101
    %v4807 = vpop.permute.xlu0 %4806
    %4808 = vrot.lane.b32.xlu0 %v4788, 101
    %v4809 = vpop.permute.xlu0 %4808
    %4810 = vrot.lane.b32.xlu0 %v4789, 101
    %v4811 = vpop.permute.xlu0 %4810
    %4812 = vrot.lane.b32.xlu0 %v4790, 101
    %v4813 = vpop.permute.xlu0 %4812
    %4814 = vrot.lane.b32.xlu0 %v4791, 101
    %v4815 = vpop.permute.xlu0 %4814
    %v4816 = vsel %vm4639, %v4801, %v4803
    %v4817 = vsel %vm4639, %v4805, %v4807
    %v4818 = vsel %vm4639, %v4809, %v4811
    %v4819 = vsel %vm4639, %v4813, %v4815
    %4824 = vst [vmem:[#allocation6 + $0xc8] sm:$0xff] %v4816
    %4825 = vst [vmem:[#allocation6 + $0xd8] sm:$0xff] %v4817
    %4826 = vst [vmem:[#allocation6 + $0xe8] sm:$0xff] %v4818
    %4827 = vst [vmem:[#allocation6 + $0xf8] sm:$0xff] %v4819
    %v4828 = vld [vmem:[%s5 + $0x30] sm:$0xff]
    %v4829 = vld [vmem:[%s5 + $0x74] sm:$0xff]
    %v4830 = vld [vmem:[%s5 + $0xb8] sm:$0xff]
    %v4831 = vld [vmem:[%s5 + $0xfc] sm:$0xff]
    %v4832 = vld [vmem:[%s5 + $0x140] sm:$0xff]
    %v4833 = vld [vmem:[%s5 + $0x184] sm:$0xff]
    %v4834 = vld [vmem:[%s5 + $0x1c8] sm:$0xff]
    %v4835 = vld [vmem:[%s5 + $0x20c] sm:$0xff]
    %v4836 = vld [vmem:[%s5 + $0x250] sm:$0xff]
    %v4837 = vld [vmem:[%s5 + $0x294] sm:$0xff]
    %v4838 = vld [vmem:[%s5 + $0x2d8] sm:$0xff]
    %v4839 = vld [vmem:[%s5 + $0x31c] sm:$0xff]
    %v4840 = vld [vmem:[%s5 + $0x360] sm:$0xff]
    %v4841 = vld [vmem:[%s5 + $0x3a4] sm:$0xff]
    %v4842 = vld [vmem:[%s5 + $0x3e8] sm:$0xff]
    %v4843 = vld [vmem:[%s5 + $0x42c] sm:$0xff]
    %v4844 = vld [vmem:[#allocation6] sm:$0xff]
    %v4845 = vld [vmem:[#allocation6 + $0x8] sm:$0xff]
    %v4846 = vld [vmem:[#allocation6 + $0x10] sm:$0xff]
    %v4847 = vld [vmem:[#allocation6 + $0x18] sm:$0xff]
    %v4848 = vld [vmem:[#allocation6 + $0x20] sm:$0xff]
    %v4849 = vld [vmem:[#allocation6 + $0x28] sm:$0xff]
    %v4850 = vld [vmem:[#allocation6 + $0x30] sm:$0xff]
    %v4851 = vld [vmem:[#allocation6 + $0x38] sm:$0xff]
    %v4852 = vld [vmem:[#allocation6 + $0x40] sm:$0xff]
    %v4853 = vld [vmem:[#allocation6 + $0x48] sm:$0xff]
    %v4854 = vld [vmem:[#allocation6 + $0x50] sm:$0xff]
    %v4855 = vld [vmem:[#allocation6 + $0x58] sm:$0xff]
    %v4856 = vld [vmem:[#allocation6 + $0x60] sm:$0xff]
    %v4857 = vld [vmem:[#allocation6 + $0x68] sm:$0xff]
    %v4858 = vld [vmem:[#allocation6 + $0x70] sm:$0xff]
    %v4859 = vld [vmem:[#allocation6 + $0x78] sm:$0xff]
    %v4860 = vld [vmem:[#allocation6 + $0x80] sm:$0xff]
    %v4861 = vld [vmem:[#allocation6 + $0x88] sm:$0xff]
    %v4862 = vld [vmem:[#allocation6 + $0x90] sm:$0xff]
    %v4863 = vld [vmem:[#allocation6 + $0x98] sm:$0xff]
    %v4864 = vld [vmem:[#allocation6 + $0xa0] sm:$0xff]
    %v4865 = vld [vmem:[#allocation6 + $0xa8] sm:$0xff]
    %v4866 = vld [vmem:[#allocation6 + $0xb0] sm:$0xff]
    %v4867 = vld [vmem:[#allocation6 + $0xb8] sm:$0xff]
    %v4868 = vld [vmem:[#allocation6 + $0xc0] sm:$0xff]
    %v4869 = vld [vmem:[#allocation6 + $0xc8] sm:$0xff]
    %v4870 = vld [vmem:[#allocation6 + $0xd0] sm:$0xff]
    %v4871 = vld [vmem:[#allocation6 + $0xd8] sm:$0xff]
    %v4872 = vld [vmem:[#allocation6 + $0xe0] sm:$0xff]
    %v4873 = vld [vmem:[#allocation6 + $0xe8] sm:$0xff]
    %v4874 = vld [vmem:[#allocation6 + $0xf0] sm:$0xff]
    %v4875 = vld [vmem:[#allocation6 + $0xf8] sm:$0xff]
    %v4892 = vunpack.c.l.b16 %v4828
    %v4893 = vunpack.c.h.b16 %v4828
    %v4894 = vunpack.c.l.b16 %v4829
    %v4895 = vunpack.c.h.b16 %v4829
    %v4896 = vunpack.c.l.b16 %v4830
    %v4897 = vunpack.c.h.b16 %v4830
    %v4898 = vunpack.c.l.b16 %v4831
    %v4899 = vunpack.c.h.b16 %v4831
    %v4900 = vunpack.c.l.b16 %v4832
    %v4901 = vunpack.c.h.b16 %v4832
    %v4902 = vunpack.c.l.b16 %v4833
    %v4903 = vunpack.c.h.b16 %v4833
    %v4904 = vunpack.c.l.b16 %v4834
    %v4905 = vunpack.c.h.b16 %v4834
    %v4906 = vunpack.c.l.b16 %v4835
    %v4907 = vunpack.c.h.b16 %v4835
    %v4908 = vunpack.c.l.b16 %v4836
    %v4909 = vunpack.c.h.b16 %v4836
    %v4910 = vunpack.c.l.b16 %v4837
    %v4911 = vunpack.c.h.b16 %v4837
    %v4912 = vunpack.c.l.b16 %v4838
    %v4913 = vunpack.c.h.b16 %v4838
    %v4914 = vunpack.c.l.b16 %v4839
    %v4915 = vunpack.c.h.b16 %v4839
    %v4916 = vunpack.c.l.b16 %v4840
    %v4917 = vunpack.c.h.b16 %v4840
    %v4918 = vunpack.c.l.b16 %v4841
    %v4919 = vunpack.c.h.b16 %v4841
    %v4920 = vunpack.c.l.b16 %v4842
    %v4921 = vunpack.c.h.b16 %v4842
    %v4922 = vunpack.c.l.b16 %v4843
    %v4923 = vunpack.c.h.b16 %v4843
    %v4924 = vpack.c.b16 %v4894, %v4892
    %v4925 = vpack.c.b16 %v4895, %v4893
    %v4926 = vpack.c.b16 %v4898, %v4896
    %v4927 = vpack.c.b16 %v4899, %v4897
    %v4928 = vpack.c.b16 %v4902, %v4900
    %v4929 = vpack.c.b16 %v4903, %v4901
    %v4930 = vpack.c.b16 %v4906, %v4904
    %v4931 = vpack.c.b16 %v4907, %v4905
    %v4932 = vpack.c.b16 %v4910, %v4908
    %v4933 = vpack.c.b16 %v4911, %v4909
    %v4934 = vpack.c.b16 %v4914, %v4912
    %v4935 = vpack.c.b16 %v4915, %v4913
    %v4936 = vpack.c.b16 %v4918, %v4916
    %v4937 = vpack.c.b16 %v4919, %v4917
    %v4938 = vpack.c.b16 %v4922, %v4920
    %v4939 = vpack.c.b16 %v4923, %v4921
    %4956 = vmatprep.subr.bf16.mxu0 %v4845
    %4957 = vmatpush1.bf16.msra.mxu0 %v4844
    %4958 = vmatprep.subr.bf16.mxu0 %v4847
    %4959 = vmatpush1.bf16.msra.mxu0 %v4846
    %4960 = vmatprep.subr.bf16.mxu0 %v4849
    %4961 = vmatpush1.bf16.msra.mxu0 %v4848
    %4962 = vmatprep.subr.bf16.mxu0 %v4851
    %4963 = vmatpush1.bf16.msra.mxu0 %v4850
    %4964 = vmatprep.subr.bf16.mxu0 %v4853
    %4965 = vmatpush1.bf16.msra.mxu0 %v4852
    %4966 = vmatprep.subr.bf16.mxu0 %v4855
    %4967 = vmatpush1.bf16.msra.mxu0 %v4854
    %4968 = vmatprep.subr.bf16.mxu0 %v4857
    %4969 = vmatpush1.bf16.msra.mxu0 %v4856
    %4970 = vmatprep.subr.bf16.mxu0 %v4859
    %4971 = vmatpush1.bf16.msra.mxu0 %v4858
    %4972 = vmatprep.subr.bf16.mxu0 %v4861
    %4973 = vmatpush1.bf16.msra.mxu0 %v4860
    %4974 = vmatprep.subr.bf16.mxu0 %v4863
    %4975 = vmatpush1.bf16.msra.mxu0 %v4862
    %4976 = vmatprep.subr.bf16.mxu0 %v4865
    %4977 = vmatpush1.bf16.msra.mxu0 %v4864
    %4978 = vmatprep.subr.bf16.mxu0 %v4867
    %4979 = vmatpush1.bf16.msra.mxu0 %v4866
    %4980 = vmatprep.subr.bf16.mxu0 %v4869
    %4981 = vmatpush1.bf16.msra.mxu0 %v4868
    %4982 = vmatprep.subr.bf16.mxu0 %v4871
    %4983 = vmatpush1.bf16.msra.mxu0 %v4870
    %4984 = vmatprep.subr.bf16.mxu0 %v4873
    %4985 = vmatpush1.bf16.msra.mxu0 %v4872
    %4986 = vmatprep.subr.bf16.mxu0 %v4875
    %4987 = vmatpush1.bf16.msra.mxu0 %v4874
    %4988 = vmatprep.mubr.bf16.mxu0 %v4925
    %4989 = vmatmul.mubr.bf16.gmra.mrb[0].mxu0 %v4924
    %v4990 = vpop.f32.mrb[0].mxu0
    %v4991 = vadd.f32 0.0, %v4990
    %v4992 = vpop.f32.mrb[0].mxu0
    %v4993 = vadd.f32 0.0, %v4992
    %v4994 = vpop.f32.mrb[0].mxu0
    %v4995 = vadd.f32 0.0, %v4994
    %v4996 = vpop.f32.mrb[0].mxu0
    %v4997 = vadd.f32 0.0, %v4996
    %4998 = vmatprep.mubr.bf16.mxu0 %v4927
    %4999 = vmatmul.mubr.bf16.gmra.mrb[0].mxu0 %v4926
    %v5000 = vpop.f32.mrb[0].mxu0
    %v5001 = vadd.f32 0.0, %v5000
    %v5002 = vpop.f32.mrb[0].mxu0
    %v5003 = vadd.f32 0.0, %v5002
    %v5004 = vpop.f32.mrb[0].mxu0
    %v5005 = vadd.f32 0.0, %v5004
    %v5006 = vpop.f32.mrb[0].mxu0
    %v5007 = vadd.f32 0.0, %v5006
    %5008 = vmatprep.mubr.bf16.mxu0 %v4929
    %5009 = vmatmul.mubr.bf16.gmra.mrb[0].mxu0 %v4928
    %v5010 = vpop.f32.mrb[0].mxu0
    %v5011 = vadd.f32 0.0, %v5010
    %v5012 = vpop.f32.mrb[0].mxu0
    %v5013 = vadd.f32 0.0, %v5012
    %v5014 = vpop.f32.mrb[0].mxu0
    %v5015 = vadd.f32 0.0, %v5014
    %v5016 = vpop.f32.mrb[0].mxu0
    %v5017 = vadd.f32 0.0, %v5016
    %5018 = vmatprep.mubr.bf16.mxu0 %v4931
    %5019 = vmatmul.mubr.bf16.gmra.mrb[0].mxu0 %v4930
    %v5020 = vpop.f32.mrb[0].mxu0
    %v5021 = vadd.f32 0.0, %v5020
    %v5022 = vpop.f32.mrb[0].mxu0
    %v5023 = vadd.f32 0.0, %v5022
    %v5024 = vpop.f32.mrb[0].mxu0
    %v5025 = vadd.f32 0.0, %v5024
    %v5026 = vpop.f32.mrb[0].mxu0
    %v5027 = vadd.f32 0.0, %v5026
    %5028 = vmatprep.mubr.bf16.mxu0 %v4933
    %5029 = vmatmul.mubr.bf16.gmra.mrb[0].mxu0 %v4932
    %v5030 = vpop.f32.mrb[0].mxu0
    %v5031 = vadd.f32 0.0, %v5030
    %v5032 = vpop.f32.mrb[0].mxu0
    %v5033 = vadd.f32 0.0, %v5032
    %v5034 = vpop.f32.mrb[0].mxu0
    %v5035 = vadd.f32 0.0, %v5034
    %v5036 = vpop.f32.mrb[0].mxu0
    %v5037 = vadd.f32 0.0, %v5036
    %5038 = vmatprep.mubr.bf16.mxu0 %v4935
    %5039 = vmatmul.mubr.bf16.gmra.mrb[0].mxu0 %v4934
    %v5040 = vpop.f32.mrb[0].mxu0
    %v5041 = vadd.f32 0.0, %v5040
    %v5042 = vpop.f32.mrb[0].mxu0
    %v5043 = vadd.f32 0.0, %v5042
    %v5044 = vpop.f32.mrb[0].mxu0
    %v5045 = vadd.f32 0.0, %v5044
    %v5046 = vpop.f32.mrb[0].mxu0
    %v5047 = vadd.f32 0.0, %v5046
    %5048 = vmatprep.mubr.bf16.mxu0 %v4937
    %5049 = vmatmul.mubr.bf16.gmra.mrb[0].mxu0 %v4936
    %v5050 = vpop.f32.mrb[0].mxu0
    %v5051 = vadd.f32 0.0, %v5050
    %v5052 = vpop.f32.mrb[0].mxu0
    %v5053 = vadd.f32 0.0, %v5052
    %v5054 = vpop.f32.mrb[0].mxu0
    %v5055 = vadd.f32 0.0, %v5054
    %v5056 = vpop.f32.mrb[0].mxu0
    %v5057 = vadd.f32 0.0, %v5056
    %5058 = vmatprep.mubr.bf16.mxu0 %v4939
    %5059 = vmatmul.mubr.bf16.gmra.mrb[0].mxu0 %v4938
    %v5060 = vpop.f32.mrb[0].mxu0
    %v5061 = vadd.f32 0.0, %v5060
    %v5062 = vpop.f32.mrb[0].mxu0
    %v5063 = vadd.f32 0.0, %v5062
    %v5064 = vpop.f32.mrb[0].mxu0
    %v5065 = vadd.f32 0.0, %v5064
    %v5066 = vpop.f32.mrb[0].mxu0
    %v5067 = vadd.f32 0.0, %v5066
    %5068 = vdwg.mxu0
    %v5069 = vadd.f32 %v4440, %v4991
    %v5070 = vadd.f32 %v4441, %v4993
    %v5071 = vadd.f32 %v4442, %v4995
    %v5072 = vadd.f32 %v4443, %v4997
    %v5073 = vadd.f32 %v4444, %v5001
    %v5074 = vadd.f32 %v4445, %v5003
    %v5075 = vadd.f32 %v4446, %v5005
    %v5076 = vadd.f32 %v4447, %v5007
    %v5077 = vadd.f32 %v4448, %v5011
    %v5078 = vadd.f32 %v4449, %v5013
    %v5079 = vadd.f32 %v4450, %v5015
    %v5080 = vadd.f32 %v4451, %v5017
    %v5081 = vadd.f32 %v4452, %v5021
    %v5082 = vadd.f32 %v4453, %v5023
    %v5083 = vadd.f32 %v4454, %v5025
    %v5084 = vadd.f32 %v4455, %v5027
    %v5085 = vadd.f32 %v4456, %v5031
    %v5086 = vadd.f32 %v4457, %v5033
    %v5087 = vadd.f32 %v4458, %v5035
    %v5088 = vadd.f32 %v4459, %v5037
    %v5089 = vadd.f32 %v4460, %v5041
    %v5090 = vadd.f32 %v4461, %v5043
    %v5091 = vadd.f32 %v4462, %v5045
    %v5092 = vadd.f32 %v4463, %v5047
    %v5093 = vadd.f32 %v4464, %v5051
    %v5094 = vadd.f32 %v4465, %v5053
    %v5095 = vadd.f32 %v4466, %v5055
    %v5096 = vadd.f32 %v4467, %v5057
    %v5097 = vadd.f32 %v4468, %v5061
    %v5098 = vadd.f32 %v4469, %v5063
    %v5099 = vadd.f32 %v4470, %v5065
    %v5100 = vadd.f32 %v4471, %v5067
    %v5101 = vld [vmem:[#allocation5] sm:$0xff]
    %v5102 = vld [vmem:[#allocation5 + $0x8] sm:$0xff]
    %v5103 = vld [vmem:[#allocation5 + $0x20] sm:$0xff]
    %v5104 = vld [vmem:[#allocation5 + $0x28] sm:$0xff]
    %v5105 = vld [vmem:[#allocation5 + $0x40] sm:$0xff]
    %v5106 = vld [vmem:[#allocation5 + $0x48] sm:$0xff]
    %v5107 = vld [vmem:[#allocation5 + $0x60] sm:$0xff]
    %v5108 = vld [vmem:[#allocation5 + $0x68] sm:$0xff]
    %5117 = vrot.lane.b32.xlu0 %v5101, 100
    %v5118 = vpop.permute.xlu0 %5117
    %5119 = vrot.lane.b32.xlu0 %v5102, 100
    %v5120 = vpop.permute.xlu0 %5119
    %5121 = vrot.lane.b32.xlu0 %v5103, 100
    %v5122 = vpop.permute.xlu0 %5121
    %5123 = vrot.lane.b32.xlu0 %v5104, 100
    %v5124 = vpop.permute.xlu0 %5123
    %5125 = vrot.lane.b32.xlu0 %v5105, 100
    %v5126 = vpop.permute.xlu0 %5125
    %5127 = vrot.lane.b32.xlu0 %v5106, 100
    %v5128 = vpop.permute.xlu0 %5127
    %5129 = vrot.lane.b32.xlu0 %v5107, 100
    %v5130 = vpop.permute.xlu0 %5129
    %5131 = vrot.lane.b32.xlu0 %v5108, 100
    %v5132 = vpop.permute.xlu0 %5131
    %vm5133 = vcmask 818176
    %v5134 = vsel %vm5133, %v5118, %v5120
    %v5135 = vsel %vm5133, %v5122, %v5124
    %v5136 = vsel %vm5133, %v5126, %v5128
    %v5137 = vsel %vm5133, %v5130, %v5132
    %5142 = vst [vmem:[#allocation7] sm:$0xff] %v5134
    %5143 = vst [vmem:[#allocation7 + $0x10] sm:$0xff] %v5135
    %5144 = vst [vmem:[#allocation7 + $0x20] sm:$0xff] %v5136
    %5145 = vst [vmem:[#allocation7 + $0x30] sm:$0xff] %v5137
    %v5146 = vld [vmem:[#allocation5] sm:$0xff]
    %v5147 = vld [vmem:[#allocation5 + $0x8] sm:$0xff]
    %v5148 = vld [vmem:[#allocation5 + $0x20] sm:$0xff]
    %v5149 = vld [vmem:[#allocation5 + $0x28] sm:$0xff]
    %v5150 = vld [vmem:[#allocation5 + $0x40] sm:$0xff]
    %v5151 = vld [vmem:[#allocation5 + $0x48] sm:$0xff]
    %v5152 = vld [vmem:[#allocation5 + $0x60] sm:$0xff]
    %v5153 = vld [vmem:[#allocation5 + $0x68] sm:$0xff]
    %5162 = vrot.lane.b32.xlu0 %v5146, 99
    %v5163 = vpop.permute.xlu0 %5162
    %5164 = vrot.lane.b32.xlu0 %v5147, 99
    %v5165 = vpop.permute.xlu0 %5164
    %5166 = vrot.lane.b32.xlu0 %v5148, 99
    %v5167 = vpop.permute.xlu0 %5166
    %5168 = vrot.lane.b32.xlu0 %v5149, 99
    %v5169 = vpop.permute.xlu0 %5168
    %5170 = vrot.lane.b32.xlu0 %v5150, 99
    %v5171 = vpop.permute.xlu0 %5170
    %5172 = vrot.lane.b32.xlu0 %v5151, 99
    %v5173 = vpop.permute.xlu0 %5172
    %5174 = vrot.lane.b32.xlu0 %v5152, 99
    %v5175 = vpop.permute.xlu0 %5174
    %5176 = vrot.lane.b32.xlu0 %v5153, 99
    %v5177 = vpop.permute.xlu0 %5176
    %vm5178 = vcmask 809984
    %v5179 = vsel %vm5178, %v5163, %v5165
    %v5180 = vsel %vm5178, %v5167, %v5169
    %v5181 = vsel %vm5178, %v5171, %v5173
    %v5182 = vsel %vm5178, %v5175, %v5177
    %5187 = vst [vmem:[#allocation7 + $0x40] sm:$0xff] %v5179
    %5188 = vst [vmem:[#allocation7 + $0x50] sm:$0xff] %v5180
    %5189 = vst [vmem:[#allocation7 + $0x60] sm:$0xff] %v5181
    %5190 = vst [vmem:[#allocation7 + $0x70] sm:$0xff] %v5182
    %v5191 = vld [vmem:[#allocation5] sm:$0xff]
    %v5192 = vld [vmem:[#allocation5 + $0x8] sm:$0xff]
    %v5193 = vld [vmem:[#allocation5 + $0x20] sm:$0xff]
    %v5194 = vld [vmem:[#allocation5 + $0x28] sm:$0xff]
    %v5195 = vld [vmem:[#allocation5 + $0x40] sm:$0xff]
    %v5196 = vld [vmem:[#allocation5 + $0x48] sm:$0xff]
    %v5197 = vld [vmem:[#allocation5 + $0x60] sm:$0xff]
    %v5198 = vld [vmem:[#allocation5 + $0x68] sm:$0xff]
    %5207 = vrot.lane.b32.xlu0 %v5191, 98
    %v5208 = vpop.permute.xlu0 %5207
    %5209 = vrot.lane.b32.xlu0 %v5192, 98
    %v5210 = vpop.permute.xlu0 %5209
    %5211 = vrot.lane.b32.xlu0 %v5193, 98
    %v5212 = vpop.permute.xlu0 %5211
    %5213 = vrot.lane.b32.xlu0 %v5194, 98
    %v5214 = vpop.permute.xlu0 %5213
    %5215 = vrot.lane.b32.xlu0 %v5195, 98
    %v5216 = vpop.permute.xlu0 %5215
    %5217 = vrot.lane.b32.xlu0 %v5196, 98
    %v5218 = vpop.permute.xlu0 %5217
    %5219 = vrot.lane.b32.xlu0 %v5197, 98
    %v5220 = vpop.permute.xlu0 %5219
    %5221 = vrot.lane.b32.xlu0 %v5198, 98
    %v5222 = vpop.permute.xlu0 %5221
    %vm5223 = vcmask 801792
    %v5224 = vsel %vm5223, %v5208, %v5210
    %v5225 = vsel %vm5223, %v5212, %v5214
    %v5226 = vsel %vm5223, %v5216, %v5218
    %v5227 = vsel %vm5223, %v5220, %v5222
    %5232 = vst [vmem:[#allocation7 + $0x80] sm:$0xff] %v5224
    %5233 = vst [vmem:[#allocation7 + $0x90] sm:$0xff] %v5225
    %5234 = vst [vmem:[#allocation7 + $0xa0] sm:$0xff] %v5226
    %5235 = vst [vmem:[#allocation7 + $0xb0] sm:$0xff] %v5227
    %v5236 = vld [vmem:[#allocation5] sm:$0xff]
    %v5237 = vld [vmem:[#allocation5 + $0x8] sm:$0xff]
    %v5238 = vld [vmem:[#allocation5 + $0x20] sm:$0xff]
    %v5239 = vld [vmem:[#allocation5 + $0x28] sm:$0xff]
    %v5240 = vld [vmem:[#allocation5 + $0x40] sm:$0xff]
    %v5241 = vld [vmem:[#allocation5 + $0x48] sm:$0xff]
    %v5242 = vld [vmem:[#allocation5 + $0x60] sm:$0xff]
    %v5243 = vld [vmem:[#allocation5 + $0x68] sm:$0xff]
    %5252 = vrot.lane.b32.xlu0 %v5236, 97
    %v5253 = vpop.permute.xlu0 %5252
    %5254 = vrot.lane.b32.xlu0 %v5237, 97
    %v5255 = vpop.permute.xlu0 %5254
    %5256 = vrot.lane.b32.xlu0 %v5238, 97
    %v5257 = vpop.permute.xlu0 %5256
    %5258 = vrot.lane.b32.xlu0 %v5239, 97
    %v5259 = vpop.permute.xlu0 %5258
    %5260 = vrot.lane.b32.xlu0 %v5240, 97
    %v5261 = vpop.permute.xlu0 %5260
    %5262 = vrot.lane.b32.xlu0 %v5241, 97
    %v5263 = vpop.permute.xlu0 %5262
    %5264 = vrot.lane.b32.xlu0 %v5242, 97
    %v5265 = vpop.permute.xlu0 %5264
    %5266 = vrot.lane.b32.xlu0 %v5243, 97
    %v5267 = vpop.permute.xlu0 %5266
    %vm5268 = vcmask 793600
    %v5269 = vsel %vm5268, %v5253, %v5255
    %v5270 = vsel %vm5268, %v5257, %v5259
    %v5271 = vsel %vm5268, %v5261, %v5263
    %v5272 = vsel %vm5268, %v5265, %v5267
    %5277 = vst [vmem:[#allocation7 + $0xc0] sm:$0xff] %v5269
    %5278 = vst [vmem:[#allocation7 + $0xd0] sm:$0xff] %v5270
    %5279 = vst [vmem:[#allocation7 + $0xe0] sm:$0xff] %v5271
    %5280 = vst [vmem:[#allocation7 + $0xf0] sm:$0xff] %v5272
    %v5281 = vld [vmem:[#allocation5 + $0x10] sm:$0xff]
    %v5282 = vld [vmem:[#allocation5 + $0x18] sm:$0xff]
    %v5283 = vld [vmem:[#allocation5 + $0x30] sm:$0xff]
    %v5284 = vld [vmem:[#allocation5 + $0x38] sm:$0xff]
    %v5285 = vld [vmem:[#allocation5 + $0x50] sm:$0xff]
    %v5286 = vld [vmem:[#allocation5 + $0x58] sm:$0xff]
    %v5287 = vld [vmem:[#allocation5 + $0x70] sm:$0xff]
    %v5288 = vld [vmem:[#allocation5 + $0x78] sm:$0xff]
    %5297 = vrot.lane.b32.xlu0 %v5281, 100
    %v5298 = vpop.permute.xlu0 %5297
    %5299 = vrot.lane.b32.xlu0 %v5282, 100
    %v5300 = vpop.permute.xlu0 %5299
    %5301 = vrot.lane.b32.xlu0 %v5283, 100
    %v5302 = vpop.permute.xlu0 %5301
    %5303 = vrot.lane.b32.xlu0 %v5284, 100
    %v5304 = vpop.permute.xlu0 %5303
    %5305 = vrot.lane.b32.xlu0 %v5285, 100
    %v5306 = vpop.permute.xlu0 %5305
    %5307 = vrot.lane.b32.xlu0 %v5286, 100
    %v5308 = vpop.permute.xlu0 %5307
    %5309 = vrot.lane.b32.xlu0 %v5287, 100
    %v5310 = vpop.permute.xlu0 %5309
    %5311 = vrot.lane.b32.xlu0 %v5288, 100
    %v5312 = vpop.permute.xlu0 %5311
    %v5313 = vsel %vm5133, %v5298, %v5300
    %v5314 = vsel %vm5133, %v5302, %v5304
    %v5315 = vsel %vm5133, %v5306, %v5308
    %v5316 = vsel %vm5133, %v5310, %v5312
    %5321 = vst [vmem:[#allocation7 + $0x8] sm:$0xff] %v5313
    %5322 = vst [vmem:[#allocation7 + $0x18] sm:$0xff] %v5314
    %5323 = vst [vmem:[#allocation7 + $0x28] sm:$0xff] %v5315
    %5324 = vst [vmem:[#allocation7 + $0x38] sm:$0xff] %v5316
    %v5325 = vld [vmem:[#allocation5 + $0x10] sm:$0xff]
    %v5326 = vld [vmem:[#allocation5 + $0x18] sm:$0xff]
    %v5327 = vld [vmem:[#allocation5 + $0x30] sm:$0xff]
    %v5328 = vld [vmem:[#allocation5 + $0x38] sm:$0xff]
    %v5329 = vld [vmem:[#allocation5 + $0x50] sm:$0xff]
    %v5330 = vld [vmem:[#allocation5 + $0x58] sm:$0xff]
    %v5331 = vld [vmem:[#allocation5 + $0x70] sm:$0xff]
    %v5332 = vld [vmem:[#allocation5 + $0x78] sm:$0xff]
    %5341 = vrot.lane.b32.xlu0 %v5325, 99
    %v5342 = vpop.permute.xlu0 %5341
    %5343 = vrot.lane.b32.xlu0 %v5326, 99
    %v5344 = vpop.permute.xlu0 %5343
    %5345 = vrot.lane.b32.xlu0 %v5327, 99
    %v5346 = vpop.permute.xlu0 %5345
    %5347 = vrot.lane.b32.xlu0 %v5328, 99
    %v5348 = vpop.permute.xlu0 %5347
    %5349 = vrot.lane.b32.xlu0 %v5329, 99
    %v5350 = vpop.permute.xlu0 %5349
    %5351 = vrot.lane.b32.xlu0 %v5330, 99
    %v5352 = vpop.permute.xlu0 %5351
    %5353 = vrot.lane.b32.xlu0 %v5331, 99
    %v5354 = vpop.permute.xlu0 %5353
    %5355 = vrot.lane.b32.xlu0 %v5332, 99
    %v5356 = vpop.permute.xlu0 %5355
    %v5357 = vsel %vm5178, %v5342, %v5344
    %v5358 = vsel %vm5178, %v5346, %v5348
    %v5359 = vsel %vm5178, %v5350, %v5352
    %v5360 = vsel %vm5178, %v5354, %v5356
    %5365 = vst [vmem:[#allocation7 + $0x48] sm:$0xff] %v5357
    %5366 = vst [vmem:[#allocation7 + $0x58] sm:$0xff] %v5358
    %5367 = vst [vmem:[#allocation7 + $0x68] sm:$0xff] %v5359
    %5368 = vst [vmem:[#allocation7 + $0x78] sm:$0xff] %v5360
    %v5369 = vld [vmem:[#allocation5 + $0x10] sm:$0xff]
    %v5370 = vld [vmem:[#allocation5 + $0x18] sm:$0xff]
    %v5371 = vld [vmem:[#allocation5 + $0x30] sm:$0xff]
    %v5372 = vld [vmem:[#allocation5 + $0x38] sm:$0xff]
    %v5373 = vld [vmem:[#allocation5 + $0x50] sm:$0xff]
    %v5374 = vld [vmem:[#allocation5 + $0x58] sm:$0xff]
    %v5375 = vld [vmem:[#allocation5 + $0x70] sm:$0xff]
    %v5376 = vld [vmem:[#allocation5 + $0x78] sm:$0xff]
    %5385 = vrot.lane.b32.xlu0 %v5369, 98
    %v5386 = vpop.permute.xlu0 %5385
    %5387 = vrot.lane.b32.xlu0 %v5370, 98
    %v5388 = vpop.permute.xlu0 %5387
    %5389 = vrot.lane.b32.xlu0 %v5371, 98
    %v5390 = vpop.permute.xlu0 %5389
    %5391 = vrot.lane.b32.xlu0 %v5372, 98
    %v5392 = vpop.permute.xlu0 %5391
    %5393 = vrot.lane.b32.xlu0 %v5373, 98
    %v5394 = vpop.permute.xlu0 %5393
    %5395 = vrot.lane.b32.xlu0 %v5374, 98
    %v5396 = vpop.permute.xlu0 %5395
    %5397 = vrot.lane.b32.xlu0 %v5375, 98
    %v5398 = vpop.permute.xlu0 %5397
    %5399 = vrot.lane.b32.xlu0 %v5376, 98
    %v5400 = vpop.permute.xlu0 %5399
    %v5401 = vsel %vm5223, %v5386, %v5388
    %v5402 = vsel %vm5223, %v5390, %v5392
    %v5403 = vsel %vm5223, %v5394, %v5396
    %v5404 = vsel %vm5223, %v5398, %v5400
    %5409 = vst [vmem:[#allocation7 + $0x88] sm:$0xff] %v5401
    %5410 = vst [vmem:[#allocation7 + $0x98] sm:$0xff] %v5402
    %5411 = vst [vmem:[#allocation7 + $0xa8] sm:$0xff] %v5403
    %5412 = vst [vmem:[#allocation7 + $0xb8] sm:$0xff] %v5404
    %v5413 = vld [vmem:[#allocation5 + $0x10] sm:$0xff]
    %v5414 = vld [vmem:[#allocation5 + $0x18] sm:$0xff]
    %v5415 = vld [vmem:[#allocation5 + $0x30] sm:$0xff]
    %v5416 = vld [vmem:[#allocation5 + $0x38] sm:$0xff]
    %v5417 = vld [vmem:[#allocation5 + $0x50] sm:$0xff]
    %v5418 = vld [vmem:[#allocation5 + $0x58] sm:$0xff]
    %v5419 = vld [vmem:[#allocation5 + $0x70] sm:$0xff]
    %v5420 = vld [vmem:[#allocation5 + $0x78] sm:$0xff]
    %5429 = vrot.lane.b32.xlu0 %v5413, 97
    %v5430 = vpop.permute.xlu0 %5429
    %5431 = vrot.lane.b32.xlu0 %v5414, 97
    %v5432 = vpop.permute.xlu0 %5431
    %5433 = vrot.lane.b32.xlu0 %v5415, 97
    %v5434 = vpop.permute.xlu0 %5433
    %5435 = vrot.lane.b32.xlu0 %v5416, 97
    %v5436 = vpop.permute.xlu0 %5435
    %5437 = vrot.lane.b32.xlu0 %v5417, 97
    %v5438 = vpop.permute.xlu0 %5437
    %5439 = vrot.lane.b32.xlu0 %v5418, 97
    %v5440 = vpop.permute.xlu0 %5439
    %5441 = vrot.lane.b32.xlu0 %v5419, 97
    %v5442 = vpop.permute.xlu0 %5441
    %5443 = vrot.lane.b32.xlu0 %v5420, 97
    %v5444 = vpop.permute.xlu0 %5443
    %v5445 = vsel %vm5268, %v5430, %v5432
    %v5446 = vsel %vm5268, %v5434, %v5436
    %v5447 = vsel %vm5268, %v5438, %v5440
    %v5448 = vsel %vm5268, %v5442, %v5444
    %5453 = vst [vmem:[#allocation7 + $0xc8] sm:$0xff] %v5445
    %5454 = vst [vmem:[#allocation7 + $0xd8] sm:$0xff] %v5446
    %5455 = vst [vmem:[#allocation7 + $0xe8] sm:$0xff] %v5447
    %5456 = vst [vmem:[#allocation7 + $0xf8] sm:$0xff] %v5448
    %v5457 = vld [vmem:[%s5 + $0x38] sm:$0xff]
    %v5458 = vld [vmem:[%s5 + $0x7c] sm:$0xff]
    %v5459 = vld [vmem:[%s5 + $0xc0] sm:$0xff]
    %v5460 = vld [vmem:[%s5 + $0x104] sm:$0xff]
    %v5461 = vld [vmem:[%s5 + $0x148] sm:$0xff]
    %v5462 = vld [vmem:[%s5 + $0x18c] sm:$0xff]
    %v5463 = vld [vmem:[%s5 + $0x1d0] sm:$0xff]
    %v5464 = vld [vmem:[%s5 + $0x214] sm:$0xff]
    %v5465 = vld [vmem:[%s5 + $0x258] sm:$0xff]
    %v5466 = vld [vmem:[%s5 + $0x29c] sm:$0xff]
    %v5467 = vld [vmem:[%s5 + $0x2e0] sm:$0xff]
    %v5468 = vld [vmem:[%s5 + $0x324] sm:$0xff]
    %v5469 = vld [vmem:[%s5 + $0x368] sm:$0xff]
    %v5470 = vld [vmem:[%s5 + $0x3ac] sm:$0xff]
    %v5471 = vld [vmem:[%s5 + $0x3f0] sm:$0xff]
    %v5472 = vld [vmem:[%s5 + $0x434] sm:$0xff]
    %v5473 = vld [vmem:[#allocation7] sm:$0xff]
    %v5474 = vld [vmem:[#allocation7 + $0x8] sm:$0xff]
    %v5475 = vld [vmem:[#allocation7 + $0x10] sm:$0xff]
    %v5476 = vld [vmem:[#allocation7 + $0x18] sm:$0xff]
    %v5477 = vld [vmem:[#allocation7 + $0x20] sm:$0xff]
    %v5478 = vld [vmem:[#allocation7 + $0x28] sm:$0xff]
    %v5479 = vld [vmem:[#allocation7 + $0x30] sm:$0xff]
    %v5480 = vld [vmem:[#allocation7 + $0x38] sm:$0xff]
    %v5481 = vld [vmem:[#allocation7 + $0x40] sm:$0xff]
    %v5482 = vld [vmem:[#allocation7 + $0x48] sm:$0xff]
    %v5483 = vld [vmem:[#allocation7 + $0x50] sm:$0xff]
    %v5484 = vld [vmem:[#allocation7 + $0x58] sm:$0xff]
    %v5485 = vld [vmem:[#allocation7 + $0x60] sm:$0xff]
    %v5486 = vld [vmem:[#allocation7 + $0x68] sm:$0xff]
    %v5487 = vld [vmem:[#allocation7 + $0x70] sm:$0xff]
    %v5488 = vld [vmem:[#allocation7 + $0x78] sm:$0xff]
    %v5489 = vld [vmem:[#allocation7 + $0x80] sm:$0xff]
    %v5490 = vld [vmem:[#allocation7 + $0x88] sm:$0xff]
    %v5491 = vld [vmem:[#allocation7 + $0x90] sm:$0xff]
    %v5492 = vld [vmem:[#allocation7 + $0x98] sm:$0xff]
    %v5493 = vld [vmem:[#allocation7 + $0xa0] sm:$0xff]
    %v5494 = vld [vmem:[#allocation7 + $0xa8] sm:$0xff]
    %v5495 = vld [vmem:[#allocation7 + $0xb0] sm:$0xff]
    %v5496 = vld [vmem:[#allocation7 + $0xb8] sm:$0xff]
    %v5497 = vld [vmem:[#allocation7 + $0xc0] sm:$0xff]
    %v5498 = vld [vmem:[#allocation7 + $0xc8] sm:$0xff]
    %v5499 = vld [vmem:[#allocation7 + $0xd0] sm:$0xff]
    %v5500 = vld [vmem:[#allocation7 + $0xd8] sm:$0xff]
    %v5501 = vld [vmem:[#allocation7 + $0xe0] sm:$0xff]
    %v5502 = vld [vmem:[#allocation7 + $0xe8] sm:$0xff]
    %v5503 = vld [vmem:[#allocation7 + $0xf0] sm:$0xff]
    %v5504 = vld [vmem:[#allocation7 + $0xf8] sm:$0xff]
    %v5521 = vunpack.c.l.b16 %v5457
    %v5522 = vunpack.c.h.b16 %v5457
    %v5523 = vunpack.c.l.b16 %v5458
    %v5524 = vunpack.c.h.b16 %v5458
    %v5525 = vunpack.c.l.b16 %v5459
    %v5526 = vunpack.c.h.b16 %v5459
    %v5527 = vunpack.c.l.b16 %v5460
    %v5528 = vunpack.c.h.b16 %v5460
    %v5529 = vunpack.c.l.b16 %v5461
    %v5530 = vunpack.c.h.b16 %v5461
    %v5531 = vunpack.c.l.b16 %v5462
    %v5532 = vunpack.c.h.b16 %v5462
    %v5533 = vunpack.c.l.b16 %v5463
    %v5534 = vunpack.c.h.b16 %v5463
    %v5535 = vunpack.c.l.b16 %v5464
    %v5536 = vunpack.c.h.b16 %v5464
    %v5537 = vunpack.c.l.b16 %v5465
    %v5538 = vunpack.c.h.b16 %v5465
    %v5539 = vunpack.c.l.b16 %v5466
    %v5540 = vunpack.c.h.b16 %v5466
    %v5541 = vunpack.c.l.b16 %v5467
    %v5542 = vunpack.c.h.b16 %v5467
    %v5543 = vunpack.c.l.b16 %v5468
    %v5544 = vunpack.c.h.b16 %v5468
    %v5545 = vunpack.c.l.b16 %v5469
    %v5546 = vunpack.c.h.b16 %v5469
    %v5547 = vunpack.c.l.b16 %v5470
    %v5548 = vunpack.c.h.b16 %v5470
    %v5549 = vunpack.c.l.b16 %v5471
    %v5550 = vunpack.c.h.b16 %v5471
    %v5551 = vunpack.c.l.b16 %v5472
    %v5552 = vunpack.c.h.b16 %v5472
    %v5553 = vpack.c.b16 %v5523, %v5521
    %v5554 = vpack.c.b16 %v5524, %v5522
    %v5555 = vpack.c.b16 %v5527, %v5525
    %v5556 = vpack.c.b16 %v5528, %v5526
    %v5557 = vpack.c.b16 %v5531, %v5529
    %v5558 = vpack.c.b16 %v5532, %v5530
    %v5559 = vpack.c.b16 %v5535, %v5533
    %v5560 = vpack.c.b16 %v5536, %v5534
    %v5561 = vpack.c.b16 %v5539, %v5537
    %v5562 = vpack.c.b16 %v5540, %v5538
    %v5563 = vpack.c.b16 %v5543, %v5541
    %v5564 = vpack.c.b16 %v5544, %v5542
    %v5565 = vpack.c.b16 %v5547, %v5545
    %v5566 = vpack.c.b16 %v5548, %v5546
    %v5567 = vpack.c.b16 %v5551, %v5549
    %v5568 = vpack.c.b16 %v5552, %v5550
    %5585 = vmatprep.subr.bf16.mxu0 %v5474
    %5586 = vmatpush1.bf16.msra.mxu0 %v5473
    %5587 = vmatprep.subr.bf16.mxu0 %v5476
    %5588 = vmatpush1.bf16.msra.mxu0 %v5475
    %5589 = vmatprep.subr.bf16.mxu0 %v5478
    %5590 = vmatpush1.bf16.msra.mxu0 %v5477
    %5591 = vmatprep.subr.bf16.mxu0 %v5480
    %5592 = vmatpush1.bf16.msra.mxu0 %v5479
    %5593 = vmatprep.subr.bf16.mxu0 %v5482
    %5594 = vmatpush1.bf16.msra.mxu0 %v5481
    %5595 = vmatprep.subr.bf16.mxu0 %v5484
    %5596 = vmatpush1.bf16.msra.mxu0 %v5483
    %5597 = vmatprep.subr.bf16.mxu0 %v5486
    %5598 = vmatpush1.bf16.msra.mxu0 %v5485
    %5599 = vmatprep.subr.bf16.mxu0 %v5488
    %5600 = vmatpush1.bf16.msra.mxu0 %v5487
    %5601 = vmatprep.subr.bf16.mxu0 %v5490
    %5602 = vmatpush1.bf16.msra.mxu0 %v5489
    %5603 = vmatprep.subr.bf16.mxu0 %v5492
    %5604 = vmatpush1.bf16.msra.mxu0 %v5491
    %5605 = vmatprep.subr.bf16.mxu0 %v5494
    %5606 = vmatpush1.bf16.msra.mxu0 %v5493
    %5607 = vmatprep.subr.bf16.mxu0 %v5496
    %5608 = vmatpush1.bf16.msra.mxu0 %v5495
    %5609 = vmatprep.subr.bf16.mxu0 %v5498
    %5610 = vmatpush1.bf16.msra.mxu0 %v5497
    %5611 = vmatprep.subr.bf16.mxu0 %v5500
    %5612 = vmatpush1.bf16.msra.mxu0 %v5499
    %5613 = vmatprep.subr.bf16.mxu0 %v5502
    %5614 = vmatpush1.bf16.msra.mxu0 %v5501
    %5615 = vmatprep.subr.bf16.mxu0 %v5504
    %5616 = vmatpush1.bf16.msra.mxu0 %v5503
    %5617 = vmatprep.mubr.bf16.mxu0 %v5554
    %5618 = vmatmul.mubr.bf16.gmra.mrb[0].mxu0 %v5553
    %v5619 = vpop.f32.mrb[0].mxu0
    %v5620 = vadd.f32 0.0, %v5619
    %v5621 = vpop.f32.mrb[0].mxu0
    %v5622 = vadd.f32 0.0, %v5621
    %v5623 = vpop.f32.mrb[0].mxu0
    %v5624 = vadd.f32 0.0, %v5623
    %v5625 = vpop.f32.mrb[0].mxu0
    %v5626 = vadd.f32 0.0, %v5625
    %5627 = vmatprep.mubr.bf16.mxu0 %v5556
    %5628 = vmatmul.mubr.bf16.gmra.mrb[0].mxu0 %v5555
    %v5629 = vpop.f32.mrb[0].mxu0
    %v5630 = vadd.f32 0.0, %v5629
    %v5631 = vpop.f32.mrb[0].mxu0
    %v5632 = vadd.f32 0.0, %v5631
    %v5633 = vpop.f32.mrb[0].mxu0
    %v5634 = vadd.f32 0.0, %v5633
    %v5635 = vpop.f32.mrb[0].mxu0
    %v5636 = vadd.f32 0.0, %v5635
    %5637 = vmatprep.mubr.bf16.mxu0 %v5558
    %5638 = vmatmul.mubr.bf16.gmra.mrb[0].mxu0 %v5557
    %v5639 = vpop.f32.mrb[0].mxu0
    %v5640 = vadd.f32 0.0, %v5639
    %v5641 = vpop.f32.mrb[0].mxu0
    %v5642 = vadd.f32 0.0, %v5641
    %v5643 = vpop.f32.mrb[0].mxu0
    %v5644 = vadd.f32 0.0, %v5643
    %v5645 = vpop.f32.mrb[0].mxu0
    %v5646 = vadd.f32 0.0, %v5645
    %5647 = vmatprep.mubr.bf16.mxu0 %v5560
    %5648 = vmatmul.mubr.bf16.gmra.mrb[0].mxu0 %v5559
    %v5649 = vpop.f32.mrb[0].mxu0
    %v5650 = vadd.f32 0.0, %v5649
    %v5651 = vpop.f32.mrb[0].mxu0
    %v5652 = vadd.f32 0.0, %v5651
    %v5653 = vpop.f32.mrb[0].mxu0
    %v5654 = vadd.f32 0.0, %v5653
    %v5655 = vpop.f32.mrb[0].mxu0
    %v5656 = vadd.f32 0.0, %v5655
    %5657 = vmatprep.mubr.bf16.mxu0 %v5562
    %5658 = vmatmul.mubr.bf16.gmra.mrb[0].mxu0 %v5561
    %v5659 = vpop.f32.mrb[0].mxu0
    %v5660 = vadd.f32 0.0, %v5659
    %v5661 = vpop.f32.mrb[0].mxu0
    %v5662 = vadd.f32 0.0, %v5661
    %v5663 = vpop.f32.mrb[0].mxu0
    %v5664 = vadd.f32 0.0, %v5663
    %v5665 = vpop.f32.mrb[0].mxu0
    %v5666 = vadd.f32 0.0, %v5665
    %5667 = vmatprep.mubr.bf16.mxu0 %v5564
    %5668 = vmatmul.mubr.bf16.gmra.mrb[0].mxu0 %v5563
    %v5669 = vpop.f32.mrb[0].mxu0
    %v5670 = vadd.f32 0.0, %v5669
    %v5671 = vpop.f32.mrb[0].mxu0
    %v5672 = vadd.f32 0.0, %v5671
    %v5673 = vpop.f32.mrb[0].mxu0
    %v5674 = vadd.f32 0.0, %v5673
    %v5675 = vpop.f32.mrb[0].mxu0
    %v5676 = vadd.f32 0.0, %v5675
    %5677 = vmatprep.mubr.bf16.mxu0 %v5566
    %5678 = vmatmul.mubr.bf16.gmra.mrb[0].mxu0 %v5565
    %v5679 = vpop.f32.mrb[0].mxu0
    %v5680 = vadd.f32 0.0, %v5679
    %v5681 = vpop.f32.mrb[0].mxu0
    %v5682 = vadd.f32 0.0, %v5681
    %v5683 = vpop.f32.mrb[0].mxu0
    %v5684 = vadd.f32 0.0, %v5683
    %v5685 = vpop.f32.mrb[0].mxu0
    %v5686 = vadd.f32 0.0, %v5685
    %5687 = vmatprep.mubr.bf16.mxu0 %v5568
    %5688 = vmatmul.mubr.bf16.gmra.mrb[0].mxu0 %v5567
    %v5689 = vpop.f32.mrb[0].mxu0
    %v5690 = vadd.f32 0.0, %v5689
    %v5691 = vpop.f32.mrb[0].mxu0
    %v5692 = vadd.f32 0.0, %v5691
    %v5693 = vpop.f32.mrb[0].mxu0
    %v5694 = vadd.f32 0.0, %v5693
    %v5695 = vpop.f32.mrb[0].mxu0
    %v5696 = vadd.f32 0.0, %v5695
    %5697 = vdwg.mxu0
    %v5698 = vadd.f32 %v5069, %v5620
    %v5699 = vadd.f32 %v5070, %v5622
    %v5700 = vadd.f32 %v5071, %v5624
    %v5701 = vadd.f32 %v5072, %v5626
    %v5702 = vadd.f32 %v5073, %v5630
    %v5703 = vadd.f32 %v5074, %v5632
    %v5704 = vadd.f32 %v5075, %v5634
    %v5705 = vadd.f32 %v5076, %v5636
    %v5706 = vadd.f32 %v5077, %v5640
    %v5707 = vadd.f32 %v5078, %v5642
    %v5708 = vadd.f32 %v5079, %v5644
    %v5709 = vadd.f32 %v5080, %v5646
    %v5710 = vadd.f32 %v5081, %v5650
    %v5711 = vadd.f32 %v5082, %v5652
    %v5712 = vadd.f32 %v5083, %v5654
    %v5713 = vadd.f32 %v5084, %v5656
    %v5714 = vadd.f32 %v5085, %v5660
    %v5715 = vadd.f32 %v5086, %v5662
    %v5716 = vadd.f32 %v5087, %v5664
    %v5717 = vadd.f32 %v5088, %v5666
    %v5718 = vadd.f32 %v5089, %v5670
    %v5719 = vadd.f32 %v5090, %v5672
    %v5720 = vadd.f32 %v5091, %v5674
    %v5721 = vadd.f32 %v5092, %v5676
    %v5722 = vadd.f32 %v5093, %v5680
    %v5723 = vadd.f32 %v5094, %v5682
    %v5724 = vadd.f32 %v5095, %v5684
    %v5725 = vadd.f32 %v5096, %v5686
    %v5726 = vadd.f32 %v5097, %v5690
    %v5727 = vadd.f32 %v5098, %v5692
    %v5728 = vadd.f32 %v5099, %v5694
    %v5729 = vadd.f32 %v5100, %v5696
    %v5730 = vld [vmem:[#allocation5] sm:$0xff]
    %v5731 = vld [vmem:[#allocation5 + $0x8] sm:$0xff]
    %v5732 = vld [vmem:[#allocation5 + $0x20] sm:$0xff]
    %v5733 = vld [vmem:[#allocation5 + $0x28] sm:$0xff]
    %v5734 = vld [vmem:[#allocation5 + $0x40] sm:$0xff]
    %v5735 = vld [vmem:[#allocation5 + $0x48] sm:$0xff]
    %v5736 = vld [vmem:[#allocation5 + $0x60] sm:$0xff]
    %v5737 = vld [vmem:[#allocation5 + $0x68] sm:$0xff]
    %5746 = vrot.lane.b32.xlu0 %v5730, 96
    %v5747 = vpop.permute.xlu0 %5746
    %5748 = vrot.lane.b32.xlu0 %v5731, 96
    %v5749 = vpop.permute.xlu0 %5748
    %5750 = vrot.lane.b32.xlu0 %v5732, 96
    %v5751 = vpop.permute.xlu0 %5750
    %5752 = vrot.lane.b32.xlu0 %v5733, 96
    %v5753 = vpop.permute.xlu0 %5752
    %5754 = vrot.lane.b32.xlu0 %v5734, 96
    %v5755 = vpop.permute.xlu0 %5754
    %5756 = vrot.lane.b32.xlu0 %v5735, 96
    %v5757 = vpop.permute.xlu0 %5756
    %5758 = vrot.lane.b32.xlu0 %v5736, 96
    %v5759 = vpop.permute.xlu0 %5758
    %5760 = vrot.lane.b32.xlu0 %v5737, 96
    %v5761 = vpop.permute.xlu0 %5760
    %vm5762 = vcmask 785408
    %v5763 = vsel %vm5762, %v5747, %v5749
    %v5764 = vsel %vm5762, %v5751, %v5753
    %v5765 = vsel %vm5762, %v5755, %v5757
    %v5766 = vsel %vm5762, %v5759, %v5761
    %5771 = vst [vmem:[#allocation6] sm:$0xff] %v5763
    %5772 = vst [vmem:[#allocation6 + $0x10] sm:$0xff] %v5764
    %5773 = vst [vmem:[#allocation6 + $0x20] sm:$0xff] %v5765
    %5774 = vst [vmem:[#allocation6 + $0x30] sm:$0xff] %v5766
    %v5775 = vld [vmem:[#allocation5 + $0x10] sm:$0xff]
    %v5776 = vld [vmem:[#allocation5 + $0x18] sm:$0xff]
    %v5777 = vld [vmem:[#allocation5 + $0x30] sm:$0xff]
    %v5778 = vld [vmem:[#allocation5 + $0x38] sm:$0xff]
    %v5779 = vld [vmem:[#allocation5 + $0x50] sm:$0xff]
    %v5780 = vld [vmem:[#allocation5 + $0x58] sm:$0xff]
    %v5781 = vld [vmem:[#allocation5 + $0x70] sm:$0xff]
    %v5782 = vld [vmem:[#allocation5 + $0x78] sm:$0xff]
    %5791 = vrot.lane.b32.xlu0 %v5775, 96
    %v5792 = vpop.permute.xlu0 %5791
    %5793 = vrot.lane.b32.xlu0 %v5776, 96
    %v5794 = vpop.permute.xlu0 %5793
    %5795 = vrot.lane.b32.xlu0 %v5777, 96
    %v5796 = vpop.permute.xlu0 %5795
    %5797 = vrot.lane.b32.xlu0 %v5778, 96
    %v5798 = vpop.permute.xlu0 %5797
    %5799 = vrot.lane.b32.xlu0 %v5779, 96
    %v5800 = vpop.permute.xlu0 %5799
    %5801 = vrot.lane.b32.xlu0 %v5780, 96
    %v5802 = vpop.permute.xlu0 %5801
    %5803 = vrot.lane.b32.xlu0 %v5781, 96
    %v5804 = vpop.permute.xlu0 %5803
    %5805 = vrot.lane.b32.xlu0 %v5782, 96
    %v5806 = vpop.permute.xlu0 %5805
    %v5807 = vsel %vm5762, %v5792, %v5794
    %v5808 = vsel %vm5762, %v5796, %v5798
    %v5809 = vsel %vm5762, %v5800, %v5802
    %v5810 = vsel %vm5762, %v5804, %v5806
    %5815 = vst [vmem:[#allocation6 + $0x8] sm:$0xff] %v5807
    %5816 = vst [vmem:[#allocation6 + $0x18] sm:$0xff] %v5808
    %5817 = vst [vmem:[#allocation6 + $0x28] sm:$0xff] %v5809
    %5818 = vst [vmem:[#allocation6 + $0x38] sm:$0xff] %v5810
    %v5819 = vld [vmem:[%s5 + $0x40] sm:$0xf]
    %v5820 = vld [vmem:[%s5 + $0x84] sm:$0xf]
    %v5821 = vld [vmem:[%s5 + $0xc8] sm:$0xf]
    %v5822 = vld [vmem:[%s5 + $0x10c] sm:$0xf]
    %v5823 = vld [vmem:[%s5 + $0x150] sm:$0xf]
    %v5824 = vld [vmem:[%s5 + $0x194] sm:$0xf]
    %v5825 = vld [vmem:[%s5 + $0x1d8] sm:$0xf]
    %v5826 = vld [vmem:[%s5 + $0x21c] sm:$0xf]
    %v5827 = vld [vmem:[%s5 + $0x260] sm:$0xf]
    %v5828 = vld [vmem:[%s5 + $0x2a4] sm:$0xf]
    %v5829 = vld [vmem:[%s5 + $0x2e8] sm:$0xf]
    %v5830 = vld [vmem:[%s5 + $0x32c] sm:$0xf]
    %v5831 = vld [vmem:[%s5 + $0x370] sm:$0xf]
    %v5832 = vld [vmem:[%s5 + $0x3b4] sm:$0xf]
    %v5833 = vld [vmem:[%s5 + $0x3f8] sm:$0xf]
    %v5834 = vld [vmem:[%s5 + $0x43c] sm:$0xf]
    %v5835 = vld [vmem:[#allocation6] sm:$0xff]
    %v5836 = vld [vmem:[#allocation6 + $0x8] sm:$0xff]
    %v5837 = vld [vmem:[#allocation6 + $0x10] sm:$0xff]
    %v5838 = vld [vmem:[#allocation6 + $0x18] sm:$0xff]
    %v5839 = vld [vmem:[#allocation6 + $0x20] sm:$0xff]
    %v5840 = vld [vmem:[#allocation6 + $0x28] sm:$0xff]
    %v5841 = vld [vmem:[#allocation6 + $0x30] sm:$0xff]
    %v5842 = vld [vmem:[#allocation6 + $0x38] sm:$0xff]
    %v5859 = vunpack.c.l.b16 %v5819
    %v5860 = vunpack.c.l.b16 %v5820
    %v5861 = vunpack.c.l.b16 %v5821
    %v5862 = vunpack.c.l.b16 %v5822
    %v5863 = vunpack.c.l.b16 %v5823
    %v5864 = vunpack.c.l.b16 %v5824
    %v5865 = vunpack.c.l.b16 %v5825
    %v5866 = vunpack.c.l.b16 %v5826
    %v5867 = vunpack.c.l.b16 %v5827
    %v5868 = vunpack.c.l.b16 %v5828
    %v5869 = vunpack.c.l.b16 %v5829
    %v5870 = vunpack.c.l.b16 %v5830
    %v5871 = vunpack.c.l.b16 %v5831
    %v5872 = vunpack.c.l.b16 %v5832
    %v5873 = vunpack.c.l.b16 %v5833
    %v5874 = vunpack.c.l.b16 %v5834
    %v5875 = vpack.c.b16 %v5860, %v5859
    %v5876 = vpack.c.b16 %v5862, %v5861
    %v5877 = vpack.c.b16 %v5864, %v5863
    %v5878 = vpack.c.b16 %v5866, %v5865
    %v5879 = vpack.c.b16 %v5868, %v5867
    %v5880 = vpack.c.b16 %v5870, %v5869
    %v5881 = vpack.c.b16 %v5872, %v5871
    %v5882 = vpack.c.b16 %v5874, %v5873
    %vm5883 = vcmask 523264
    %v5885 = vsel %vm5883, %v5875, 0
    %v5888 = vsel %vm5883, %v5876, 0
    %v5891 = vsel %vm5883, %v5877, 0
    %v5894 = vsel %vm5883, %v5878, 0
    %v5897 = vsel %vm5883, %v5879, 0
    %v5900 = vsel %vm5883, %v5880, 0
    %v5903 = vsel %vm5883, %v5881, 0
    %v5906 = vsel %vm5883, %v5882, 0
    %5908 = vmatprep.subr.bf16.mxu0 %v5836
    %5909 = vmatpush1.bf16.msra.mxu0 %v5835
    %5910 = vmatprep.subr.bf16.mxu0 %v5838
    %5911 = vmatpush1.bf16.msra.mxu0 %v5837
    %5912 = vmatprep.subr.bf16.mxu0 %v5840
    %5913 = vmatpush1.bf16.msra.mxu0 %v5839
    %5914 = vmatprep.subr.bf16.mxu0 %v5842
    %5915 = vmatpush1.bf16.msra.mxu0 %v5841
    %5916 = vmatprep.subr.bf16.mxu0 0
    %5917 = vmatpush1.bf16.msra.mxu0 0
    %5918 = vmatprep.subr.bf16.mxu0 0
    %5919 = vmatpush1.bf16.msra.mxu0 0
    %5920 = vmatprep.subr.bf16.mxu0 0
    %5921 = vmatpush1.bf16.msra.mxu0 0
    %5922 = vmatprep.subr.bf16.mxu0 0
    %5923 = vmatpush1.bf16.msra.mxu0 0
    %5924 = vmatprep.subr.bf16.mxu0 0
    %5925 = vmatpush1.bf16.msra.mxu0 0
    %5926 = vmatprep.subr.bf16.mxu0 0
    %5927 = vmatpush1.bf16.msra.mxu0 0
    %5928 = vmatprep.subr.bf16.mxu0 0
    %5929 = vmatpush1.bf16.msra.mxu0 0
    %5930 = vmatprep.subr.bf16.mxu0 0
    %5931 = vmatpush1.bf16.msra.mxu0 0
    %5932 = vmatprep.subr.bf16.mxu0 0
    %5933 = vmatpush1.bf16.msra.mxu0 0
    %5934 = vmatprep.subr.bf16.mxu0 0
    %5935 = vmatpush1.bf16.msra.mxu0 0
    %5936 = vmatprep.subr.bf16.mxu0 0
    %5937 = vmatpush1.bf16.msra.mxu0 0
    %5938 = vmatprep.subr.bf16.mxu0 0
    %5939 = vmatpush1.bf16.msra.mxu0 0
    %5940 = vmatprep.mubr.bf16.mxu0 0
    %5941 = vmatmul.mubr.bf16.gmra.mrb[0].mxu0 %v5885
    %v5942 = vpop.f32.mrb[0].mxu0
    %v5943 = vadd.f32 0.0, %v5942
    %v5944 = vpop.f32.mrb[0].mxu0
    %v5945 = vadd.f32 0.0, %v5944
    %v5946 = vpop.f32.mrb[0].mxu0
    %v5947 = vadd.f32 0.0, %v5946
    %v5948 = vpop.f32.mrb[0].mxu0
    %v5949 = vadd.f32 0.0, %v5948
    %5950 = vmatprep.mubr.bf16.mxu0 0
    %5951 = vmatmul.mubr.bf16.gmra.mrb[0].mxu0 %v5888
    %v5952 = vpop.f32.mrb[0].mxu0
    %v5953 = vadd.f32 0.0, %v5952
    %v5954 = vpop.f32.mrb[0].mxu0
    %v5955 = vadd.f32 0.0, %v5954
    %v5956 = vpop.f32.mrb[0].mxu0
    %v5957 = vadd.f32 0.0, %v5956
    %v5958 = vpop.f32.mrb[0].mxu0
    %v5959 = vadd.f32 0.0, %v5958
    %5960 = vmatprep.mubr.bf16.mxu0 0
    %5961 = vmatmul.mubr.bf16.gmra.mrb[0].mxu0 %v5891
    %v5962 = vpop.f32.mrb[0].mxu0
    %v5963 = vadd.f32 0.0, %v5962
    %v5964 = vpop.f32.mrb[0].mxu0
    %v5965 = vadd.f32 0.0, %v5964
    %v5966 = vpop.f32.mrb[0].mxu0
    %v5967 = vadd.f32 0.0, %v5966
    %v5968 = vpop.f32.mrb[0].mxu0
    %v5969 = vadd.f32 0.0, %v5968
    %5970 = vmatprep.mubr.bf16.mxu0 0
    %5971 = vmatmul.mubr.bf16.gmra.mrb[0].mxu0 %v5894
    %v5972 = vpop.f32.mrb[0].mxu0
    %v5973 = vadd.f32 0.0, %v5972
    %v5974 = vpop.f32.mrb[0].mxu0
    %v5975 = vadd.f32 0.0, %v5974
    %v5976 = vpop.f32.mrb[0].mxu0
    %v5977 = vadd.f32 0.0, %v5976
    %v5978 = vpop.f32.mrb[0].mxu0
    %v5979 = vadd.f32 0.0, %v5978
    %5980 = vmatprep.mubr.bf16.mxu0 0
    %5981 = vmatmul.mubr.bf16.gmra.mrb[0].mxu0 %v5897
    %v5982 = vpop.f32.mrb[0].mxu0
    %v5983 = vadd.f32 0.0, %v5982
    %v5984 = vpop.f32.mrb[0].mxu0
    %v5985 = vadd.f32 0.0, %v5984
    %v5986 = vpop.f32.mrb[0].mxu0
    %v5987 = vadd.f32 0.0, %v5986
    %v5988 = vpop.f32.mrb[0].mxu0
    %v5989 = vadd.f32 0.0, %v5988
    %5990 = vmatprep.mubr.bf16.mxu0 0
    %5991 = vmatmul.mubr.bf16.gmra.mrb[0].mxu0 %v5900
    %v5992 = vpop.f32.mrb[0].mxu0
    %v5993 = vadd.f32 0.0, %v5992
    %v5994 = vpop.f32.mrb[0].mxu0
    %v5995 = vadd.f32 0.0, %v5994
    %v5996 = vpop.f32.mrb[0].mxu0
    %v5997 = vadd.f32 0.0, %v5996
    %v5998 = vpop.f32.mrb[0].mxu0
    %v5999 = vadd.f32 0.0, %v5998
    %6000 = vmatprep.mubr.bf16.mxu0 0
    %6001 = vmatmul.mubr.bf16.gmra.mrb[0].mxu0 %v5903
    %v6002 = vpop.f32.mrb[0].mxu0
    %v6003 = vadd.f32 0.0, %v6002
    %v6004 = vpop.f32.mrb[0].mxu0
    %v6005 = vadd.f32 0.0, %v6004
    %v6006 = vpop.f32.mrb[0].mxu0
    %v6007 = vadd.f32 0.0, %v6006
    %v6008 = vpop.f32.mrb[0].mxu0
    %v6009 = vadd.f32 0.0, %v6008
    %6010 = vmatprep.mubr.bf16.mxu0 0
    %6011 = vmatmul.mubr.bf16.gmra.mrb[0].mxu0 %v5906
    %v6012 = vpop.f32.mrb[0].mxu0
    %v6013 = vadd.f32 0.0, %v6012
    %v6014 = vpop.f32.mrb[0].mxu0
    %v6015 = vadd.f32 0.0, %v6014
    %v6016 = vpop.f32.mrb[0].mxu0
    %v6017 = vadd.f32 0.0, %v6016
    %v6018 = vpop.f32.mrb[0].mxu0
    %v6019 = vadd.f32 0.0, %v6018
    %6020 = vdwg.mxu0
    %v6021 = vadd.f32 %v5698, %v5943
    %v6022 = vadd.f32 %v5699, %v5945
    %v6023 = vadd.f32 %v5700, %v5947
    %v6024 = vadd.f32 %v5701, %v5949
    %v6025 = vadd.f32 %v5702, %v5953
    %v6026 = vadd.f32 %v5703, %v5955
    %v6027 = vadd.f32 %v5704, %v5957
    %v6028 = vadd.f32 %v5705, %v5959
    %v6029 = vadd.f32 %v5706, %v5963
    %v6030 = vadd.f32 %v5707, %v5965
    %v6031 = vadd.f32 %v5708, %v5967
    %v6032 = vadd.f32 %v5709, %v5969
    %v6033 = vadd.f32 %v5710, %v5973
    %v6034 = vadd.f32 %v5711, %v5975
    %v6035 = vadd.f32 %v5712, %v5977
    %v6036 = vadd.f32 %v5713, %v5979
    %v6037 = vadd.f32 %v5714, %v5983
    %v6038 = vadd.f32 %v5715, %v5985
    %v6039 = vadd.f32 %v5716, %v5987
    %v6040 = vadd.f32 %v5717, %v5989
    %v6041 = vadd.f32 %v5718, %v5993
    %v6042 = vadd.f32 %v5719, %v5995
    %v6043 = vadd.f32 %v5720, %v5997
    %v6044 = vadd.f32 %v5721, %v5999
    %v6045 = vadd.f32 %v5722, %v6003
    %v6046 = vadd.f32 %v5723, %v6005
    %v6047 = vadd.f32 %v5724, %v6007
    %v6048 = vadd.f32 %v5725, %v6009
    %v6049 = vadd.f32 %v5726, %v6013
    %v6050 = vadd.f32 %v5727, %v6015
    %v6051 = vadd.f32 %v5728, %v6017
    %v6052 = vadd.f32 %v5729, %v6019
    %v6053 = vld [vmem:[%s6] sm:$0xff]
    %v6054 = vld [vmem:[%s6 + $0x8] sm:$0xff]
    %v6055 = vld [vmem:[%s6 + $0x10] sm:$0xff]
    %v6056 = vld [vmem:[%s6 + $0x18] sm:$0xff]
    %v6057 = vld [vmem:[%s6 + $0x20] sm:$0xff]
    %v6058 = vld [vmem:[%s6 + $0x28] sm:$0xff]
    %v6059 = vld [vmem:[%s6 + $0x30] sm:$0xff]
    %v6060 = vld [vmem:[%s6 + $0x38] sm:$0xff]
    %v6061 = vld [vmem:[%s6 + $0x40] sm:$0xff]
    %v6062 = vld [vmem:[%s6 + $0x48] sm:$0xff]
    %v6063 = vld [vmem:[%s6 + $0x50] sm:$0xff]
    %v6064 = vld [vmem:[%s6 + $0x58] sm:$0xff]
    %v6065 = vld [vmem:[%s6 + $0x60] sm:$0xff]
    %v6066 = vld [vmem:[%s6 + $0x68] sm:$0xff]
    %v6067 = vld [vmem:[%s6 + $0x70] sm:$0xff]
    %v6068 = vld [vmem:[%s6 + $0x78] sm:$0xff]
    %6070 = vset.pattern.permute.xlu0 0
    %6071 = vperm.xlu0 %6070, %v6053
    %v6072 = vpop.permute.xlu0 %6071
    %6075 = vset.pattern.permute.xlu0 0
    %6076 = vperm.xlu0 %6075, %v6054
    %v6077 = vpop.permute.xlu0 %6076
    %6080 = vset.pattern.permute.xlu0 0
    %6081 = vperm.xlu0 %6080, %v6055
    %v6082 = vpop.permute.xlu0 %6081
    %6085 = vset.pattern.permute.xlu0 0
    %6086 = vperm.xlu0 %6085, %v6056
    %v6087 = vpop.permute.xlu0 %6086
    %6090 = vset.pattern.permute.xlu0 0
    %6091 = vperm.xlu0 %6090, %v6057
    %v6092 = vpop.permute.xlu0 %6091
    %6095 = vset.pattern.permute.xlu0 0
    %6096 = vperm.xlu0 %6095, %v6058
    %v6097 = vpop.permute.xlu0 %6096
    %6100 = vset.pattern.permute.xlu0 0
    %6101 = vperm.xlu0 %6100, %v6059
    %v6102 = vpop.permute.xlu0 %6101
    %6105 = vset.pattern.permute.xlu0 0
    %6106 = vperm.xlu0 %6105, %v6060
    %v6107 = vpop.permute.xlu0 %6106
    %6110 = vset.pattern.permute.xlu0 0
    %6111 = vperm.xlu0 %6110, %v6061
    %v6112 = vpop.permute.xlu0 %6111
    %6115 = vset.pattern.permute.xlu0 0
    %6116 = vperm.xlu0 %6115, %v6062
    %v6117 = vpop.permute.xlu0 %6116
    %6120 = vset.pattern.permute.xlu0 0
    %6121 = vperm.xlu0 %6120, %v6063
    %v6122 = vpop.permute.xlu0 %6121
    %6125 = vset.pattern.permute.xlu0 0
    %6126 = vperm.xlu0 %6125, %v6064
    %v6127 = vpop.permute.xlu0 %6126
    %6130 = vset.pattern.permute.xlu0 0
    %6131 = vperm.xlu0 %6130, %v6065
    %v6132 = vpop.permute.xlu0 %6131
    %6135 = vset.pattern.permute.xlu0 0
    %6136 = vperm.xlu0 %6135, %v6066
    %v6137 = vpop.permute.xlu0 %6136
    %6140 = vset.pattern.permute.xlu0 0
    %6141 = vperm.xlu0 %6140, %v6067
    %v6142 = vpop.permute.xlu0 %6141
    %6145 = vset.pattern.permute.xlu0 0
    %6146 = vperm.xlu0 %6145, %v6068
    %v6147 = vpop.permute.xlu0 %6146
    %v6149 = vadd.f32 %v6021, %v6072
    %v6150 = vadd.f32 %v6022, %v6072
    %v6151 = vadd.f32 %v6023, %v6077
    %v6152 = vadd.f32 %v6024, %v6077
    %v6153 = vadd.f32 %v6025, %v6082
    %v6154 = vadd.f32 %v6026, %v6082
    %v6155 = vadd.f32 %v6027, %v6087
    %v6156 = vadd.f32 %v6028, %v6087
    %v6157 = vadd.f32 %v6029, %v6092
    %v6158 = vadd.f32 %v6030, %v6092
    %v6159 = vadd.f32 %v6031, %v6097
    %v6160 = vadd.f32 %v6032, %v6097
    %v6161 = vadd.f32 %v6033, %v6102
    %v6162 = vadd.f32 %v6034, %v6102
    %v6163 = vadd.f32 %v6035, %v6107
    %v6164 = vadd.f32 %v6036, %v6107
    %v6165 = vadd.f32 %v6037, %v6112
    %v6166 = vadd.f32 %v6038, %v6112
    %v6167 = vadd.f32 %v6039, %v6117
    %v6168 = vadd.f32 %v6040, %v6117
    %v6169 = vadd.f32 %v6041, %v6122
    %v6170 = vadd.f32 %v6042, %v6122
    %v6171 = vadd.f32 %v6043, %v6127
    %v6172 = vadd.f32 %v6044, %v6127
    %v6173 = vadd.f32 %v6045, %v6132
    %v6174 = vadd.f32 %v6046, %v6132
    %v6175 = vadd.f32 %v6047, %v6137
    %v6176 = vadd.f32 %v6048, %v6137
    %v6177 = vadd.f32 %v6049, %v6142
    %v6178 = vadd.f32 %v6050, %v6142
    %v6179 = vadd.f32 %v6051, %v6147
    %v6180 = vadd.f32 %v6052, %v6147
    %v6181 = vmax.f32 %v6149, 0.0
    %v6182 = vmax.f32 %v6150, 0.0
    %v6183 = vmax.f32 %v6151, 0.0
    %v6184 = vmax.f32 %v6152, 0.0
    %v6185 = vmax.f32 %v6153, 0.0
    %v6186 = vmax.f32 %v6154, 0.0
    %v6187 = vmax.f32 %v6155, 0.0
    %v6188 = vmax.f32 %v6156, 0.0
    %v6189 = vmax.f32 %v6157, 0.0
    %v6190 = vmax.f32 %v6158, 0.0
    %v6191 = vmax.f32 %v6159, 0.0
    %v6192 = vmax.f32 %v6160, 0.0
    %v6193 = vmax.f32 %v6161, 0.0
    %v6194 = vmax.f32 %v6162, 0.0
    %v6195 = vmax.f32 %v6163, 0.0
    %v6196 = vmax.f32 %v6164, 0.0
    %v6197 = vmax.f32 %v6165, 0.0
    %v6198 = vmax.f32 %v6166, 0.0
    %v6199 = vmax.f32 %v6167, 0.0
    %v6200 = vmax.f32 %v6168, 0.0
    %v6201 = vmax.f32 %v6169, 0.0
    %v6202 = vmax.f32 %v6170, 0.0
    %v6203 = vmax.f32 %v6171, 0.0
    %v6204 = vmax.f32 %v6172, 0.0
    %v6205 = vmax.f32 %v6173, 0.0
    %v6206 = vmax.f32 %v6174, 0.0
    %v6207 = vmax.f32 %v6175, 0.0
    %v6208 = vmax.f32 %v6176, 0.0
    %v6209 = vmax.f32 %v6177, 0.0
    %v6210 = vmax.f32 %v6178, 0.0
    %v6211 = vmax.f32 %v6179, 0.0
    %v6212 = vmax.f32 %v6180, 0.0
    %v6213 = vpack.c.bf16 %v6183, %v6181
    %v6214 = vpack.c.bf16 %v6184, %v6182
    %v6215 = vpack.c.bf16 %v6187, %v6185
    %v6216 = vpack.c.bf16 %v6188, %v6186
    %v6217 = vpack.c.bf16 %v6191, %v6189
    %v6218 = vpack.c.bf16 %v6192, %v6190
    %v6219 = vpack.c.bf16 %v6195, %v6193
    %v6220 = vpack.c.bf16 %v6196, %v6194
    %v6221 = vpack.c.bf16 %v6199, %v6197
    %v6222 = vpack.c.bf16 %v6200, %v6198
    %v6223 = vpack.c.bf16 %v6203, %v6201
    %v6224 = vpack.c.bf16 %v6204, %v6202
    %v6225 = vpack.c.bf16 %v6207, %v6205
    %v6226 = vpack.c.bf16 %v6208, %v6206
    %v6227 = vpack.c.bf16 %v6211, %v6209
    %v6228 = vpack.c.bf16 %v6212, %v6210
    %6229 = vst [vmem:[#allocation8] sm:$0xff] %v6213
    %6230 = vst [vmem:[#allocation8 + $0x8] sm:$0xff] %v6215
    %6231 = vst [vmem:[#allocation8 + $0x10] sm:$0xff] %v6217
    %6232 = vst [vmem:[#allocation8 + $0x18] sm:$0xff] %v6219
    %6233 = vst [vmem:[#allocation8 + $0x20] sm:$0xff] %v6221
    %6234 = vst [vmem:[#allocation8 + $0x28] sm:$0xff] %v6223
    %6235 = vst [vmem:[#allocation8 + $0x30] sm:$0xff] %v6225
    %6236 = vst [vmem:[#allocation8 + $0x38] sm:$0xff] %v6227
    %6237 = vst [vmem:[#allocation8 + $0x40] sm:$0xff] %v6214
    %6238 = vst [vmem:[#allocation8 + $0x48] sm:$0xff] %v6216
    %6239 = vst [vmem:[#allocation8 + $0x50] sm:$0xff] %v6218
    %6240 = vst [vmem:[#allocation8 + $0x58] sm:$0xff] %v6220
    %6241 = vst [vmem:[#allocation8 + $0x60] sm:$0xff] %v6222
    %6242 = vst [vmem:[#allocation8 + $0x68] sm:$0xff] %v6224
    %6243 = vst [vmem:[#allocation8 + $0x70] sm:$0xff] %v6226
    %6244 = vst [vmem:[#allocation8 + $0x78] sm:$0xff] %v6228
    %v6245 = vld [vmem:[#allocation8] sm:$0xff]
    %v6246 = vld [vmem:[#allocation8 + $0x8] sm:$0xff]
    %v6247 = vld [vmem:[#allocation8 + $0x10] sm:$0xff]
    %v6248 = vld [vmem:[#allocation8 + $0x18] sm:$0xff]
    %v6249 = vld [vmem:[#allocation8 + $0x20] sm:$0xff]
    %v6250 = vld [vmem:[#allocation8 + $0x28] sm:$0xff]
    %v6251 = vld [vmem:[#allocation8 + $0x30] sm:$0xff]
    %v6252 = vld [vmem:[#allocation8 + $0x38] sm:$0xff]
    %v6253 = vld [vmem:[#allocation8 + $0x40] sm:$0xff]
    %v6254 = vld [vmem:[#allocation8 + $0x48] sm:$0xff]
    %v6255 = vld [vmem:[#allocation8 + $0x50] sm:$0xff]
    %v6256 = vld [vmem:[#allocation8 + $0x58] sm:$0xff]
    %v6257 = vld [vmem:[#allocation8 + $0x60] sm:$0xff]
    %v6258 = vld [vmem:[#allocation8 + $0x68] sm:$0xff]
    %v6259 = vld [vmem:[#allocation8 + $0x70] sm:$0xff]
    %v6260 = vld [vmem:[#allocation8 + $0x78] sm:$0xff]
    %v6261 = vld [vmem:[%s7] sm:$0xf]
    %v6262 = vld [vmem:[%s7 + $0x4] sm:$0xf]
    %v6263 = vld [vmem:[%s7 + $0x8] sm:$0xf]
    %v6264 = vld [vmem:[%s7 + $0xc] sm:$0xf]
    %v6265 = vld [vmem:[%s7 + $0x10] sm:$0xf]
    %v6266 = vld [vmem:[%s7 + $0x14] sm:$0xf]
    %v6267 = vld [vmem:[%s7 + $0x18] sm:$0xf]
    %v6268 = vld [vmem:[%s7 + $0x1c] sm:$0xf]
    %v6269 = vld [vmem:[%s7 + $0x20] sm:$0xf]
    %v6270 = vld [vmem:[%s7 + $0x24] sm:$0xf]
    %v6271 = vld [vmem:[%s7 + $0x28] sm:$0xf]
    %v6272 = vld [vmem:[%s7 + $0x2c] sm:$0xf]
    %v6273 = vld [vmem:[%s7 + $0x30] sm:$0xf]
    %v6274 = vld [vmem:[%s7 + $0x34] sm:$0xf]
    %v6275 = vld [vmem:[%s7 + $0x38] sm:$0xf]
    %v6276 = vld [vmem:[%s7 + $0x3c] sm:$0xf]
    %v6277 = vld [vmem:[%s8] sm:$0x1]
    %v6279 = vlaneseq
    %v6280 = vshrl.u32 %v6279, 7
    %v6281 = vsub.s32 0, %v6280
    %v6282 = vrot.slane %v6277, %v6281
    %v6300 = vunpack.c.l.b16 %v6261
    %v6301 = vunpack.c.l.b16 %v6262
    %v6302 = vunpack.c.l.b16 %v6263
    %v6303 = vunpack.c.l.b16 %v6264
    %v6304 = vunpack.c.l.b16 %v6265
    %v6305 = vunpack.c.l.b16 %v6266
    %v6306 = vunpack.c.l.b16 %v6267
    %v6307 = vunpack.c.l.b16 %v6268
    %v6308 = vunpack.c.l.b16 %v6269
    %v6309 = vunpack.c.l.b16 %v6270
    %v6310 = vunpack.c.l.b16 %v6271
    %v6311 = vunpack.c.l.b16 %v6272
    %v6312 = vunpack.c.l.b16 %v6273
    %v6313 = vunpack.c.l.b16 %v6274
    %v6314 = vunpack.c.l.b16 %v6275
    %v6315 = vunpack.c.l.b16 %v6276
    %v6316 = vpack.c.b16 %v6301, %v6300
    %v6317 = vpack.c.b16 %v6303, %v6302
    %v6318 = vpack.c.b16 %v6305, %v6304
    %v6319 = vpack.c.b16 %v6307, %v6306
    %v6320 = vpack.c.b16 %v6309, %v6308
    %v6321 = vpack.c.b16 %v6311, %v6310
    %v6322 = vpack.c.b16 %v6313, %v6312
    %v6323 = vpack.c.b16 %v6315, %v6314
    %6332 = vmatprep.subr.bf16.mxu0 0
    %6333 = vmatpush1.bf16.msra.mxu0 %v6316
    %6334 = vmatprep.subr.bf16.mxu0 0
    %6335 = vmatpush1.bf16.msra.mxu0 %v6317
    %6336 = vmatprep.subr.bf16.mxu0 0
    %6337 = vmatpush1.bf16.msra.mxu0 %v6318
    %6338 = vmatprep.subr.bf16.mxu0 0
    %6339 = vmatpush1.bf16.msra.mxu0 %v6319
    %6340 = vmatprep.subr.bf16.mxu0 0
    %6341 = vmatpush1.bf16.msra.mxu0 %v6320
    %6342 = vmatprep.subr.bf16.mxu0 0
    %6343 = vmatpush1.bf16.msra.mxu0 %v6321
    %6344 = vmatprep.subr.bf16.mxu0 0
    %6345 = vmatpush1.bf16.msra.mxu0 %v6322
    %6346 = vmatprep.subr.bf16.mxu0 0
    %6347 = vmatpush1.bf16.msra.mxu0 %v6323
    %6348 = vmatprep.subr.bf16.mxu0 0
    %6349 = vmatpush1.bf16.msra.mxu0 0
    %6350 = vmatprep.subr.bf16.mxu0 0
    %6351 = vmatpush1.bf16.msra.mxu0 0
    %6352 = vmatprep.subr.bf16.mxu0 0
    %6353 = vmatpush1.bf16.msra.mxu0 0
    %6354 = vmatprep.subr.bf16.mxu0 0
    %6355 = vmatpush1.bf16.msra.mxu0 0
    %6356 = vmatprep.subr.bf16.mxu0 0
    %6357 = vmatpush1.bf16.msra.mxu0 0
    %6358 = vmatprep.subr.bf16.mxu0 0
    %6359 = vmatpush1.bf16.msra.mxu0 0
    %6360 = vmatprep.subr.bf16.mxu0 0
    %6361 = vmatpush1.bf16.msra.mxu0 0
    %6362 = vmatprep.subr.bf16.mxu0 0
    %6363 = vmatpush1.bf16.msra.mxu0 0
    %6364 = vmatprep.mubr.bf16.mxu0 0
    %6365 = vmatmul.mubr.bf16.gmra.mrb[0].mxu0 %v6245
    %v6366 = vpop.f32.mrb[0].mxu0
    %v6367 = vadd.f32 %v6282, %v6366
    %v6368 = vpop.f32.mrb[0].mxu0
    %v6369 = vpop.f32.mrb[0].mxu0
    %v6370 = vadd.f32 %v6282, %v6369
    %v6371 = vpop.f32.mrb[0].mxu0
    %6372 = vmatprep.mubr.bf16.mxu0 0
    %6373 = vmatmul.mubr.bf16.gmra.mrb[0].mxu0 %v6246
    %v6374 = vpop.f32.mrb[0].mxu0
    %v6375 = vadd.f32 %v6282, %v6374
    %v6376 = vpop.f32.mrb[0].mxu0
    %v6377 = vpop.f32.mrb[0].mxu0
    %v6378 = vadd.f32 %v6282, %v6377
    %v6379 = vpop.f32.mrb[0].mxu0
    %6380 = vmatprep.mubr.bf16.mxu0 0
    %6381 = vmatmul.mubr.bf16.gmra.mrb[0].mxu0 %v6247
    %v6382 = vpop.f32.mrb[0].mxu0
    %v6383 = vadd.f32 %v6282, %v6382
    %v6384 = vpop.f32.mrb[0].mxu0
    %v6385 = vpop.f32.mrb[0].mxu0
    %v6386 = vadd.f32 %v6282, %v6385
    %v6387 = vpop.f32.mrb[0].mxu0
    %6388 = vmatprep.mubr.bf16.mxu0 0
    %6389 = vmatmul.mubr.bf16.gmra.mrb[0].mxu0 %v6248
    %v6390 = vpop.f32.mrb[0].mxu0
    %v6391 = vadd.f32 %v6282, %v6390
    %v6392 = vpop.f32.mrb[0].mxu0
    %v6393 = vpop.f32.mrb[0].mxu0
    %v6394 = vadd.f32 %v6282, %v6393
    %v6395 = vpop.f32.mrb[0].mxu0
    %6396 = vmatprep.mubr.bf16.mxu0 0
    %6397 = vmatmul.mubr.bf16.gmra.mrb[0].mxu0 %v6249
    %v6398 = vpop.f32.mrb[0].mxu0
    %v6399 = vadd.f32 %v6282, %v6398
    %v6400 = vpop.f32.mrb[0].mxu0
    %v6401 = vpop.f32.mrb[0].mxu0
    %v6402 = vadd.f32 %v6282, %v6401
    %v6403 = vpop.f32.mrb[0].mxu0
    %6404 = vmatprep.mubr.bf16.mxu0 0
    %6405 = vmatmul.mubr.bf16.gmra.mrb[0].mxu0 %v6250
    %v6406 = vpop.f32.mrb[0].mxu0
    %v6407 = vadd.f32 %v6282, %v6406
    %v6408 = vpop.f32.mrb[0].mxu0
    %v6409 = vpop.f32.mrb[0].mxu0
    %v6410 = vadd.f32 %v6282, %v6409
    %v6411 = vpop.f32.mrb[0].mxu0
    %6412 = vmatprep.mubr.bf16.mxu0 0
    %6413 = vmatmul.mubr.bf16.gmra.mrb[0].mxu0 %v6251
    %v6414 = vpop.f32.mrb[0].mxu0
    %v6415 = vadd.f32 %v6282, %v6414
    %v6416 = vpop.f32.mrb[0].mxu0
    %v6417 = vpop.f32.mrb[0].mxu0
    %v6418 = vadd.f32 %v6282, %v6417
    %v6419 = vpop.f32.mrb[0].mxu0
    %6420 = vmatprep.mubr.bf16.mxu0 0
    %6421 = vmatmul.mubr.bf16.gmra.mrb[0].mxu0 %v6252
    %v6422 = vpop.f32.mrb[0].mxu0
    %v6423 = vadd.f32 %v6282, %v6422
    %v6424 = vpop.f32.mrb[0].mxu0
    %v6425 = vpop.f32.mrb[0].mxu0
    %v6426 = vadd.f32 %v6282, %v6425
    %v6427 = vpop.f32.mrb[0].mxu0
    %6428 = vmatprep.mubr.bf16.mxu0 0
    %6429 = vmatmul.mubr.bf16.gmra.mrb[0].mxu0 %v6253
    %v6430 = vpop.f32.mrb[0].mxu0
    %v6431 = vadd.f32 %v6282, %v6430
    %v6432 = vpop.f32.mrb[0].mxu0
    %v6433 = vpop.f32.mrb[0].mxu0
    %v6434 = vadd.f32 %v6282, %v6433
    %v6435 = vpop.f32.mrb[0].mxu0
    %6436 = vmatprep.mubr.bf16.mxu0 0
    %6437 = vmatmul.mubr.bf16.gmra.mrb[0].mxu0 %v6254
    %v6438 = vpop.f32.mrb[0].mxu0
    %v6439 = vadd.f32 %v6282, %v6438
    %v6440 = vpop.f32.mrb[0].mxu0
    %v6441 = vpop.f32.mrb[0].mxu0
    %v6442 = vadd.f32 %v6282, %v6441
    %v6443 = vpop.f32.mrb[0].mxu0
    %6444 = vmatprep.mubr.bf16.mxu0 0
    %6445 = vmatmul.mubr.bf16.gmra.mrb[0].mxu0 %v6255
    %v6446 = vpop.f32.mrb[0].mxu0
    %v6447 = vadd.f32 %v6282, %v6446
    %v6448 = vpop.f32.mrb[0].mxu0
    %v6449 = vpop.f32.mrb[0].mxu0
    %v6450 = vadd.f32 %v6282, %v6449
    %v6451 = vpop.f32.mrb[0].mxu0
    %6452 = vmatprep.mubr.bf16.mxu0 0
    %6453 = vmatmul.mubr.bf16.gmra.mrb[0].mxu0 %v6256
    %v6454 = vpop.f32.mrb[0].mxu0
    %v6455 = vadd.f32 %v6282, %v6454
    %v6456 = vpop.f32.mrb[0].mxu0
    %v6457 = vpop.f32.mrb[0].mxu0
    %v6458 = vadd.f32 %v6282, %v6457
    %v6459 = vpop.f32.mrb[0].mxu0
    %6460 = vmatprep.mubr.bf16.mxu0 0
    %6461 = vmatmul.mubr.bf16.gmra.mrb[0].mxu0 %v6257
    %v6462 = vpop.f32.mrb[0].mxu0
    %v6463 = vadd.f32 %v6282, %v6462
    %v6464 = vpop.f32.mrb[0].mxu0
    %v6465 = vpop.f32.mrb[0].mxu0
    %v6466 = vadd.f32 %v6282, %v6465
    %v6467 = vpop.f32.mrb[0].mxu0
    %6468 = vmatprep.mubr.bf16.mxu0 0
    %6469 = vmatmul.mubr.bf16.gmra.mrb[0].mxu0 %v6258
    %v6470 = vpop.f32.mrb[0].mxu0
    %v6471 = vadd.f32 %v6282, %v6470
    %v6472 = vpop.f32.mrb[0].mxu0
    %v6473 = vpop.f32.mrb[0].mxu0
    %v6474 = vadd.f32 %v6282, %v6473
    %v6475 = vpop.f32.mrb[0].mxu0
    %6476 = vmatprep.mubr.bf16.mxu0 0
    %6477 = vmatmul.mubr.bf16.gmra.mrb[0].mxu0 %v6259
    %v6478 = vpop.f32.mrb[0].mxu0
    %v6479 = vadd.f32 %v6282, %v6478
    %v6480 = vpop.f32.mrb[0].mxu0
    %v6481 = vpop.f32.mrb[0].mxu0
    %v6482 = vadd.f32 %v6282, %v6481
    %v6483 = vpop.f32.mrb[0].mxu0
    %6484 = vmatprep.mubr.bf16.mxu0 0
    %6485 = vmatmul.mubr.bf16.gmra.mrb[0].mxu0 %v6260
    %v6486 = vpop.f32.mrb[0].mxu0
    %v6487 = vadd.f32 %v6282, %v6486
    %v6488 = vpop.f32.mrb[0].mxu0
    %v6489 = vpop.f32.mrb[0].mxu0
    %v6490 = vadd.f32 %v6282, %v6489
    %v6491 = vpop.f32.mrb[0].mxu0
    %6492 = vdwg.mxu0
    %6493 = vst [vmem:[#allocation9] sm:$0xff] %v6367
    %6494 = vst [vmem:[#allocation9 + $0x8] sm:$0xff] %v6370
    %6495 = vst [vmem:[#allocation9 + $0x10] sm:$0xff] %v6375
    %6496 = vst [vmem:[#allocation9 + $0x18] sm:$0xff] %v6378
    %6497 = vst [vmem:[#allocation9 + $0x20] sm:$0xff] %v6383
    %6498 = vst [vmem:[#allocation9 + $0x28] sm:$0xff] %v6386
    %6499 = vst [vmem:[#allocation9 + $0x30] sm:$0xff] %v6391
    %6500 = vst [vmem:[#allocation9 + $0x38] sm:$0xff] %v6394
    %6501 = vst [vmem:[#allocation9 + $0x40] sm:$0xff] %v6399
    %6502 = vst [vmem:[#allocation9 + $0x48] sm:$0xff] %v6402
    %6503 = vst [vmem:[#allocation9 + $0x50] sm:$0xff] %v6407
    %6504 = vst [vmem:[#allocation9 + $0x58] sm:$0xff] %v6410
    %6505 = vst [vmem:[#allocation9 + $0x60] sm:$0xff] %v6415
    %6506 = vst [vmem:[#allocation9 + $0x68] sm:$0xff] %v6418
    %6507 = vst [vmem:[#allocation9 + $0x70] sm:$0xff] %v6423
    %6508 = vst [vmem:[#allocation9 + $0x78] sm:$0xff] %v6426
    %6509 = vst [vmem:[#allocation9 + $0x80] sm:$0xff] %v6431
    %6510 = vst [vmem:[#allocation9 + $0x88] sm:$0xff] %v6434
    %6511 = vst [vmem:[#allocation9 + $0x90] sm:$0xff] %v6439
    %6512 = vst [vmem:[#allocation9 + $0x98] sm:$0xff] %v6442
    %6513 = vst [vmem:[#allocation9 + $0xa0] sm:$0xff] %v6447
    %6514 = vst [vmem:[#allocation9 + $0xa8] sm:$0xff] %v6450
    %6515 = vst [vmem:[#allocation9 + $0xb0] sm:$0xff] %v6455
    %6516 = vst [vmem:[#allocation9 + $0xb8] sm:$0xff] %v6458
    %6517 = vst [vmem:[#allocation9 + $0xc0] sm:$0xff] %v6463
    %6518 = vst [vmem:[#allocation9 + $0xc8] sm:$0xff] %v6466
    %6519 = vst [vmem:[#allocation9 + $0xd0] sm:$0xff] %v6471
    %6520 = vst [vmem:[#allocation9 + $0xd8] sm:$0xff] %v6474
    %6521 = vst [vmem:[#allocation9 + $0xe0] sm:$0xff] %v6479
    %6522 = vst [vmem:[#allocation9 + $0xe8] sm:$0xff] %v6482
    %6523 = vst [vmem:[#allocation9 + $0xf0] sm:$0xff] %v6487
    %6524 = vst [vmem:[#allocation9 + $0xf8] sm:$0xff] %v6490
    // Predicated region
    $region38: #{tpu_custom_call.1} parent=1 // pred_check
      _
    $region39: #{tpu_custom_call.1} parent=1 // pred_check_branch
      %6526 = sbr.rel (0) target = $region41
    $region40: #{tpu_custom_call.1} parent=1 // pred_region
      %s6528 = ssub.s32 4096, 4096
      %6529 = vsyncadd [#allocation10], %s6528
      %s6530 = sshll.u32 [#allocation9], 4
      %s6531 = int_to_ptr.vmem [resolvable:$true] %s6530
      %6536 = dma.vmem_to_hbm [thread:$0]  %s6531, 4096, %s9, [#allocation10], 128, 128, 8
    $region41: #{tpu_custom_call.1} parent=1 // pred_fallthru
      _
    // Predicated region
    $region42: #{tpu_custom_call.1} parent=1 // pred_check
      _
    $region43: #{tpu_custom_call.1} parent=1 // pred_check_branch
      %6538 = sbr.rel (0) target = $region45
    $region44: #{tpu_custom_call.1} parent=1 // pred_region
      %6539 = dma.done [#allocation10], 4096
    $region45: #{tpu_custom_call.1} parent=1 // pred_fallthru
      _
    %6540 = vsyncpa [#allocation10], 1

</llo_original>
